<compile_context>
chip_gen: v7x
topology: tpu7x:2x2x1
jax: 0.10.0
libtpu: 0.0.40
codegen_flags: <defaults>
</compile_context>

<pallas_src>
from functools import partial

import numpy as np
import jax
import jax.numpy as jnp
from jax.experimental import pallas as pl
from jax.experimental.pallas import tpu as pltpu


def _round_up(x, m):
    return ((x + m - 1) // m) * m


# ----------------------------- Pallas kernel --------------------------------
def _rpn_head_kernel(xs_ref, w1_ref, b1_ref, whead_ref, bhead_ref,
                     conv1_ref, head_ref, *, sec_a):
    i = pl.program_id(0)                      # spatial row block ("parallel")
    rows, c_mid = conv1_ref.shape
    W = xs_ref.shape[1]
    TH = rows // W
    r0 = i * TH

    # 3x3 conv as three accumulating K = 3*Cin matmuls (one per kernel row dy).
    # Horizontal taps were pre-shifted into the channel dim by the wrapper, so every
    # load here is lane/sublane aligned (no in-kernel im2col, no unaligned slices).
    acc = jnp.zeros((rows, c_mid), jnp.float32)
    for dy in range(3):
        band = xs_ref[pl.ds(r0 + dy, TH), :, :].reshape(rows, -1)   # (rows, 3C) bf16
        acc = acc + jnp.dot(band, w1_ref[dy],                       # bf16 x bf16 -> f32
                            preferred_element_type=jnp.float32)

    conv1 = jnp.maximum(acc + b1_ref[...], 0.0)                     # (rows, c_mid) f32
    conv1_bf = conv1.astype(jnp.bfloat16)
    conv1_ref[...] = conv1_bf                                       # bf16 writeback

    # Fused score_conv | bbox_conv 1x1 heads: one matmul over lane-padded sections
    # [bg(128) | fg(128) | bbox(128)] -- all slice/concat offsets are 128-aligned.
    head = jnp.dot(conv1_bf, whead_ref[...],
                   preferred_element_type=jnp.float32) + bhead_ref[...]

    s_bg = head[:, :sec_a]                    # aligned 128-wide section
    s_fg = head[:, sec_a:2 * sec_a]           # aligned 128-wide section
    m = jnp.maximum(s_bg, s_fg)
    e_bg = jnp.exp(s_bg - m)
    e_fg = jnp.exp(s_fg - m)
    denom = e_bg + e_fg
    inv = pl.reciprocal(denom, approx=True)   # EUP slot
    inv = inv * (2.0 - denom * inv)           # one Newton step (denom >= 1 -> safe)

    # Single full-width, lane-dense, unmasked store (padding sliced off in wrapper).
    out = jnp.concatenate([e_bg * inv, e_fg * inv, head[:, 2 * sec_a:]], axis=-1)
    head_ref[...] = out


# ------------------------------ Wrapper --------------------------------------
def _pick_row_blocks(H, W):
    """1 row block on single-TensorCore v5e/v6e; 2 on v7x (megacore)."""
    try:
        kind = jax.devices()[0].device_kind.lower()
    except Exception:
        kind = ""
    nb = 2 if ("v7" in kind or "7x" in kind) else 1
    while nb > 1 and (H % nb != 0 or ((H // nb) * W) % 8 != 0):
        nb -= 1
    return nb


@partial(jax.jit, static_argnames=("n_row_blocks",))
def rpn_head_forward(features_nchw, params, n_row_blocks=None):
    """features_nchw: (1, C, H, W) backbone output. Returns NCHW tensors:
       (rpn_conv1, rpn_cls_prob_reshape, rpn_bbox_pred)."""
    N, C, H, W = features_nchw.shape
    assert N == 1, "RPN operates on batch size 1"
    if n_row_blocks is None:
        n_row_blocks = _pick_row_blocks(H, W)
    assert H % n_row_blocks == 0
    TH = H // n_row_blocks
    assert (TH * W) % 8 == 0, "row-block rows must be a multiple of 8 (out BlockSpec)"

    c_mid = params["w1"].shape[-1]
    A = params["ws"].shape[-1] // 2
    sec_a = _round_up(A, 128)                 # bg / fg section widths (lane-aligned)
    sec_b = _round_up(4 * A, 128)             # bbox section width
    n_head = 2 * sec_a + sec_b

    # Features: NCHW -> NHWC, SAME pad, bf16 cast; pre-shift the 3 horizontal taps into
    # the channel dim so the kernel's conv loads are aligned (one (H+2, W, 3C) slab).
    x = jnp.transpose(features_nchw, (0, 2, 3, 1))[0].astype(jnp.bfloat16)     # (H,W,C)
    xpad = jnp.pad(x, ((1, 1), (1, 1), (0, 0)))                                # (H+2,W+2,C)
    xshift = jnp.concatenate([xpad[:, dx:dx + W, :] for dx in range(3)], -1)   # (H+2,W,3C)

    w1g = params["w1"].reshape(3, 3 * C, c_mid)          # row dy: col index = dx*C + cin

    ws, wb = params["ws"], params["wb"]
    bs, bb = params["bs"], params["bb"]
    whead = jnp.concatenate([
        jnp.pad(ws[:, :A], ((0, 0), (0, sec_a - A))),
        jnp.pad(ws[:, A:], ((0, 0), (0, sec_a - A))),
        jnp.pad(wb, ((0, 0), (0, sec_b - 4 * A)))], axis=-1)                   # (c_mid, n_head)
    bhead = jnp.concatenate([
        jnp.pad(bs[:, :A], ((0, 0), (0, sec_a - A))),
        jnp.pad(bs[:, A:], ((0, 0), (0, sec_a - A))),
        jnp.pad(bb, ((0, 0), (0, sec_b - 4 * A)))], axis=-1)                   # (1, n_head)

    kernel = partial(_rpn_head_kernel, sec_a=sec_a)

    # VMEM budget (test shapes, bf16): w1 ~4.7MB, xshift ~0.25MB, whead ~0.4MB, outputs
    # small -> well under the 32 MiB scoped limit (re-derive for large feature maps).
    conv1_2d, head_2d = pl.pallas_call(
        kernel,
        out_shape=(
            jax.ShapeDtypeStruct((H * W, c_mid), jnp.bfloat16),
            jax.ShapeDtypeStruct((H * W, n_head), jnp.float32),
        ),
        grid_spec=pltpu.PrefetchScalarGridSpec(
            num_scalar_prefetch=0,
            grid=(n_row_blocks,),
            in_specs=[
                pl.BlockSpec((H + 2, W, 3 * C), lambda i: (0, 0, 0)),   # resident activations
                pl.BlockSpec((3, 3 * C, c_mid), lambda i: (0, 0, 0)),   # resident conv weight (one DMA)
                pl.BlockSpec((1, c_mid), lambda i: (0, 0)),
                pl.BlockSpec((c_mid, n_head), lambda i: (0, 0)),
                pl.BlockSpec((1, n_head), lambda i: (0, 0)),
            ],
            out_specs=(
                pl.BlockSpec((TH * W, c_mid), lambda i: (i, 0)),
                pl.BlockSpec((TH * W, n_head), lambda i: (i, 0)),
            ),
        ),
        compiler_params=pltpu.CompilerParams(
            dimension_semantics=("parallel",),
            vmem_limit_bytes=32 << 20,
        ),
    )(xshift, w1g, params["b1"], whead, bhead)

    conv1 = conv1_2d.astype(jnp.float32).reshape(H, W, c_mid)
    cls_prob = jnp.concatenate(
        [head_2d[:, :A], head_2d[:, sec_a:sec_a + A]], axis=-1).reshape(H, W, 2 * A)
    bbox = head_2d[:, 2 * sec_a:2 * sec_a + 4 * A].reshape(H, W, 4 * A)

    # back to PyTorch NCHW conventions
    rpn_conv1 = jnp.transpose(conv1, (2, 0, 1))[None]               # (1, 512, H, W)
    rpn_cls_prob_reshape = jnp.transpose(cls_prob, (2, 0, 1))[None] # (1, 2A, H, W)
    rpn_bbox_pred = jnp.transpose(bbox, (2, 0, 1))[None]            # (1, 4A, H, W)
    return rpn_conv1, rpn_cls_prob_reshape, rpn_bbox_pred


# --------------------------- Parameter init -----------------------------------
def init_rpn_params(key, c_in=512, c_mid=512, anchor_num=30):
    """Matches RPN.__init__: conv1 512->512 (3x3), score_conv 512->2A (1x1),
    bbox_conv 512->4A (1x1); weights_normal_init dev=0.025 / 0.01, zero biases.
    Weights are kept in bf16 (the kernel is HBM-bandwidth bound on them)."""
    k1, k2, k3 = jax.random.split(key, 3)
    w1 = (0.025 * jax.random.normal(k1, (3, 3, c_in, c_mid), jnp.float32)).astype(jnp.bfloat16)
    ws = (0.025 * jax.random.normal(k2, (c_mid, anchor_num * 2), jnp.float32)).astype(jnp.bfloat16)
    wb = (0.010 * jax.random.normal(k3, (c_mid, anchor_num * 4), jnp.float32)).astype(jnp.bfloat16)
    return {
        "w1": w1, "b1": jnp.zeros((1, c_mid), jnp.float32),
        "ws": ws, "bs": jnp.zeros((1, anchor_num * 2), jnp.float32),
        "wb": wb, "bb": jnp.zeros((1, anchor_num * 4), jnp.float32),
    }


# ------------------------------ Reference -------------------------------------
def rpn_head_reference(features_nchw, params):
    """Pure-JAX reference at the kernel's effective precision:
    bf16 operands into the matmuls, f32 accumulation."""
    x = jnp.transpose(features_nchw, (0, 2, 3, 1))
    xq = x.astype(jnp.bfloat16).astype(jnp.float32)
    w1 = params["w1"].astype(jnp.float32)
    y = jax.lax.conv_general_dilated(
        xq, w1, (1, 1), "SAME",
        dimension_numbers=("NHWC", "HWIO", "NHWC"),
        precision=jax.lax.Precision.HIGHEST) + params["b1"][0]
    y = jnp.maximum(y, 0.0)
    yq = y.astype(jnp.bfloat16).astype(jnp.float32)
    ws = params["ws"].astype(jnp.float32)
    wb = params["wb"].astype(jnp.float32)
    scores = jnp.einsum("nhwc,co->nhwo", yq, ws,
                        precision=jax.lax.Precision.HIGHEST) + params["bs"][0]
    A = scores.shape[-1] // 2
    s_bg, s_fg = scores[..., :A], scores[..., A:]
    m = jnp.maximum(s_bg, s_fg)
    e_bg, e_fg = jnp.exp(s_bg - m), jnp.exp(s_fg - m)
    denom = e_bg + e_fg
    probs = jnp.concatenate([e_bg / denom, e_fg / denom], axis=-1)
    bbox = jnp.einsum("nhwc,co->nhwo", yq, wb,
                      precision=jax.lax.Precision.HIGHEST) + params["bb"][0]
    return (jnp.transpose(y, (0, 3, 1, 2)),
            jnp.transpose(probs, (0, 3, 1, 2)),
            jnp.transpose(bbox, (0, 3, 1, 2)))


# -------------------------------- Main -----------------------------------------
if __name__ == "__main__":
    # normal anchors: 6 scales x 5 ratios = 30
    anchor_num = len([2, 4, 8, 16, 32, 64]) * len([0.25, 0.5, 1, 2, 4])

    key = jax.random.PRNGKey(0)
    k_feat, k_par = jax.random.split(key)

    # Small spatial extent; channels kept at 512 as in the module (post-VGG16 map).
    C_IN, H, W = 512, 8, 8
    features = jax.random.normal(k_feat, (1, C_IN, H, W), jnp.float32)

    params = init_rpn_params(k_par, c_in=C_IN, c_mid=512, anchor_num=anchor_num)

    rpn_conv1, rpn_cls_prob, rpn_bbox_pred = jax.block_until_ready(
        rpn_head_forward(features, params))

    ref_conv1, ref_cls_prob, ref_bbox = jax.block_until_ready(
        rpn_head_reference(features, params))

    # rpn_conv1 is stored in bf16 by the kernel -> compare at bf16-appropriate tolerance.
    np.testing.assert_allclose(np.asarray(rpn_conv1), np.asarray(ref_conv1),
                               rtol=1e-2, atol=1e-2)
    np.testing.assert_allclose(np.asarray(rpn_cls_prob), np.asarray(ref_cls_prob),
                               rtol=2e-3, atol=2e-3)
    np.testing.assert_allclose(np.asarray(rpn_bbox_pred), np.asarray(ref_bbox),
                               rtol=2e-3, atol=2e-3)

    assert rpn_conv1.shape == (1, 512, H, W)
    assert rpn_cls_prob.shape == (1, anchor_num * 2, H, W)
    assert rpn_bbox_pred.shape == (1, anchor_num * 4, H, W)

    print("KERNEL_OK")
</pallas_src>

<mosaic_0001>
module attributes {stable_mosaic.version = 11 : i64} {
  func.func @_rpn_head_kernel(%arg0: i32, %arg1: memref<10x8x1536xbf16, #tpu.memory_space<vmem>>, %arg2: memref<3x1536x512xbf16, #tpu.memory_space<vmem>>, %arg3: memref<1x512xf32, #tpu.memory_space<vmem>>, %arg4: memref<512x384xbf16, #tpu.memory_space<vmem>>, %arg5: memref<1x384xf32, #tpu.memory_space<vmem>>, %arg6: memref<64x512xbf16, #tpu.memory_space<vmem>>, %arg7: memref<64x384xf32, #tpu.memory_space<vmem>>) attributes {dimension_semantics = [#tpu.dimension_semantics<parallel>], iteration_bounds = array<i64: 1>, scalar_prefetch = 0 : i64, scratch_operands = 0 : i64, tpu.core_type = #tpu.core_type<tc>, window_params = [{pipeline_mode = #tpu.pipeline_mode<synchronous>, transform_indices = @transform_0, window_bounds = array<i64: 10, 8, 1536>}, {pipeline_mode = #tpu.pipeline_mode<synchronous>, transform_indices = @transform_1, window_bounds = array<i64: 3, 1536, 512>}, {pipeline_mode = #tpu.pipeline_mode<synchronous>, transform_indices = @transform_2, window_bounds = array<i64: 1, 512>}, {pipeline_mode = #tpu.pipeline_mode<synchronous>, transform_indices = @transform_3, window_bounds = array<i64: 512, 384>}, {pipeline_mode = #tpu.pipeline_mode<synchronous>, transform_indices = @transform_4, window_bounds = array<i64: 1, 384>}, {transform_indices = @transform_5, window_bounds = array<i64: 64, 512>}, {transform_indices = @transform_6, window_bounds = array<i64: 64, 384>}]} {
    %c8_i32 = arith.constant 8 : i32
    %0 = arith.muli %arg0, %c8_i32 : i32
    %cst = arith.constant 0.000000e+00 : f32
    %1 = vector.broadcast %cst : f32 to vector<64x512xf32>
    %c0_i32 = arith.constant 0 : i32
    %2 = arith.addi %0, %c0_i32 : i32
    %3 = arith.index_cast %2 : i32 to index
    %c0 = arith.constant 0 : index
    %c0_0 = arith.constant 0 : index
    %4 = vector.load %arg1[%3, %c0, %c0_0] : memref<10x8x1536xbf16, #tpu.memory_space<vmem>>, vector<8x8x1536xbf16>
    %5 = vector.shape_cast %4 : vector<8x8x1536xbf16> to vector<64x1536xbf16>
    %c0_1 = arith.constant 0 : index
    %c0_2 = arith.constant 0 : index
    %c0_3 = arith.constant 0 : index
    %6 = vector.load %arg2[%c0_1, %c0_2, %c0_3] : memref<3x1536x512xbf16, #tpu.memory_space<vmem>>, vector<1x1536x512xbf16>
    %7 = vector.shape_cast %6 : vector<1x1536x512xbf16> to vector<1536x512xbf16>
    %cst_4 = arith.constant dense<0.000000e+00> : vector<64x512xf32>
    %8 = tpu.matmul %5, %7, %cst_4 {dimension_numbers = #tpu.dot_dimension_numbers<[1], [0], [0], [1], [0, 0, 1, 1], [], []>} : vector<64x1536xbf16>, vector<1536x512xbf16>, vector<64x512xf32> -> vector<64x512xf32>
    %9 = arith.addf %1, %8 : vector<64x512xf32>
    %c1_i32 = arith.constant 1 : i32
    %10 = arith.addi %0, %c1_i32 : i32
    %11 = arith.index_cast %10 : i32 to index
    %c0_5 = arith.constant 0 : index
    %c0_6 = arith.constant 0 : index
    %12 = vector.load %arg1[%11, %c0_5, %c0_6] : memref<10x8x1536xbf16, #tpu.memory_space<vmem>>, vector<8x8x1536xbf16>
    %13 = vector.shape_cast %12 : vector<8x8x1536xbf16> to vector<64x1536xbf16>
    %c1 = arith.constant 1 : index
    %c0_7 = arith.constant 0 : index
    %c0_8 = arith.constant 0 : index
    %14 = vector.load %arg2[%c1, %c0_7, %c0_8] : memref<3x1536x512xbf16, #tpu.memory_space<vmem>>, vector<1x1536x512xbf16>
    %15 = vector.shape_cast %14 : vector<1x1536x512xbf16> to vector<1536x512xbf16>
    %cst_9 = arith.constant dense<0.000000e+00> : vector<64x512xf32>
    %16 = tpu.matmul %13, %15, %cst_9 {dimension_numbers = #tpu.dot_dimension_numbers<[1], [0], [0], [1], [0, 0, 1, 1], [], []>} : vector<64x1536xbf16>, vector<1536x512xbf16>, vector<64x512xf32> -> vector<64x512xf32>
    %17 = arith.addf %9, %16 : vector<64x512xf32>
    %c2_i32 = arith.constant 2 : i32
    %18 = arith.addi %0, %c2_i32 : i32
    %19 = arith.index_cast %18 : i32 to index
    %c0_10 = arith.constant 0 : index
    %c0_11 = arith.constant 0 : index
    %20 = vector.load %arg1[%19, %c0_10, %c0_11] : memref<10x8x1536xbf16, #tpu.memory_space<vmem>>, vector<8x8x1536xbf16>
    %21 = vector.shape_cast %20 : vector<8x8x1536xbf16> to vector<64x1536xbf16>
    %c2 = arith.constant 2 : index
    %c0_12 = arith.constant 0 : index
    %c0_13 = arith.constant 0 : index
    %22 = vector.load %arg2[%c2, %c0_12, %c0_13] : memref<3x1536x512xbf16, #tpu.memory_space<vmem>>, vector<1x1536x512xbf16>
    %23 = vector.shape_cast %22 : vector<1x1536x512xbf16> to vector<1536x512xbf16>
    %cst_14 = arith.constant dense<0.000000e+00> : vector<64x512xf32>
    %24 = tpu.matmul %21, %23, %cst_14 {dimension_numbers = #tpu.dot_dimension_numbers<[1], [0], [0], [1], [0, 0, 1, 1], [], []>} : vector<64x1536xbf16>, vector<1536x512xbf16>, vector<64x512xf32> -> vector<64x512xf32>
    %25 = arith.addf %17, %24 : vector<64x512xf32>
    %c0_15 = arith.constant 0 : index
    %c0_16 = arith.constant 0 : index
    %26 = vector.load %arg3[%c0_15, %c0_16] : memref<1x512xf32, #tpu.memory_space<vmem>>, vector<1x512xf32>
    %27 = vector.broadcast %26 : vector<1x512xf32> to vector<64x512xf32>
    %28 = arith.addf %25, %27 : vector<64x512xf32>
    %cst_17 = arith.constant 0.000000e+00 : f32
    %29 = vector.broadcast %cst_17 : f32 to vector<64x512xf32>
    %30 = arith.maximumf %28, %29 : vector<64x512xf32>
    %31 = arith.truncf %30 : vector<64x512xf32> to vector<64x512xbf16>
    %c0_18 = arith.constant 0 : index
    %c0_19 = arith.constant 0 : index
    %32 = vector.load %arg6[%c0_18, %c0_19] : memref<64x512xbf16, #tpu.memory_space<vmem>>, vector<64x512xbf16>
    tpu.vector_store %arg6[%c0_18, %c0_19], %31 {strides = array<i32>} : memref<64x512xbf16, #tpu.memory_space<vmem>>, vector<64x512xbf16>,
    %c0_20 = arith.constant 0 : index
    %c0_21 = arith.constant 0 : index
    %33 = vector.load %arg4[%c0_20, %c0_21] : memref<512x384xbf16, #tpu.memory_space<vmem>>, vector<512x384xbf16>
    %cst_22 = arith.constant dense<0.000000e+00> : vector<64x384xf32>
    %34 = tpu.matmul %31, %33, %cst_22 {dimension_numbers = #tpu.dot_dimension_numbers<[1], [0], [0], [1], [0, 0, 1, 1], [], []>} : vector<64x512xbf16>, vector<512x384xbf16>, vector<64x384xf32> -> vector<64x384xf32>
    %c0_23 = arith.constant 0 : index
    %c0_24 = arith.constant 0 : index
    %35 = vector.load %arg5[%c0_23, %c0_24] : memref<1x384xf32, #tpu.memory_space<vmem>>, vector<1x384xf32>
    %36 = vector.broadcast %35 : vector<1x384xf32> to vector<64x384xf32>
    %37 = arith.addf %34, %36 : vector<64x384xf32>
    %38 = vector.extract_strided_slice %37 {offsets = [0, 0], sizes = [64, 128], strides = [1, 1]} : vector<64x384xf32> to vector<64x128xf32>
    %39 = vector.extract_strided_slice %37 {offsets = [0, 128], sizes = [64, 128], strides = [1, 1]} : vector<64x384xf32> to vector<64x128xf32>
    %40 = arith.maximumf %38, %39 : vector<64x128xf32>
    %41 = arith.subf %38, %40 : vector<64x128xf32>
    %42 = math.exp %41 : vector<64x128xf32>
    %43 = arith.subf %39, %40 : vector<64x128xf32>
    %44 = math.exp %43 : vector<64x128xf32>
    %45 = arith.addf %42, %44 : vector<64x128xf32>
    %46 = tpu.reciprocal %45 {approx = true} : vector<64x128xf32> -> vector<64x128xf32>
    %47 = arith.mulf %45, %46 : vector<64x128xf32>
    %cst_25 = arith.constant 2.000000e+00 : f32
    %48 = vector.broadcast %cst_25 : f32 to vector<64x128xf32>
    %49 = arith.subf %48, %47 : vector<64x128xf32>
    %50 = arith.mulf %46, %49 : vector<64x128xf32>
    %51 = arith.mulf %42, %50 : vector<64x128xf32>
    %52 = arith.mulf %44, %50 : vector<64x128xf32>
    %53 = vector.extract_strided_slice %37 {offsets = [0, 256], sizes = [64, 128], strides = [1, 1]} : vector<64x384xf32> to vector<64x128xf32>
    %54 = tpu.concatenate %51, %52, %53 in 1 : vector<64x128xf32>, vector<64x128xf32>, vector<64x128xf32> -> vector<64x384xf32>
    %c0_26 = arith.constant 0 : index
    %c0_27 = arith.constant 0 : index
    %55 = vector.load %arg7[%c0_26, %c0_27] : memref<64x384xf32, #tpu.memory_space<vmem>>, vector<64x384xf32>
    tpu.vector_store %arg7[%c0_26, %c0_27], %54 {strides = array<i32>} : memref<64x384xf32, #tpu.memory_space<vmem>>, vector<64x384xf32>,
    return
  }
  func.func @transform_0(%arg0: i32) -> (i32, i32, i32) {
    %c0_i32 = arith.constant 0 : i32
    %c0_i32_0 = arith.constant 0 : i32
    %c0_i32_1 = arith.constant 0 : i32
    %c0_i32_2 = arith.constant 0 : i32
    return %c0_i32, %c0_i32_0, %c0_i32_1 : i32, i32, i32
  }
  func.func @transform_1(%arg0: i32) -> (i32, i32, i32) {
    %c0_i32 = arith.constant 0 : i32
    %c0_i32_0 = arith.constant 0 : i32
    %c0_i32_1 = arith.constant 0 : i32
    %c0_i32_2 = arith.constant 0 : i32
    return %c0_i32, %c0_i32_0, %c0_i32_1 : i32, i32, i32
  }
  func.func @transform_2(%arg0: i32) -> (i32, i32) {
    %c0_i32 = arith.constant 0 : i32
    %c0_i32_0 = arith.constant 0 : i32
    %c0_i32_1 = arith.constant 0 : i32
    return %c0_i32, %c0_i32_0 : i32, i32
  }
  func.func @transform_3(%arg0: i32) -> (i32, i32) {
    %c0_i32 = arith.constant 0 : i32
    %c0_i32_0 = arith.constant 0 : i32
    %c0_i32_1 = arith.constant 0 : i32
    return %c0_i32, %c0_i32_0 : i32, i32
  }
  func.func @transform_4(%arg0: i32) -> (i32, i32) {
    %c0_i32 = arith.constant 0 : i32
    %c0_i32_0 = arith.constant 0 : i32
    %c0_i32_1 = arith.constant 0 : i32
    return %c0_i32, %c0_i32_0 : i32, i32
  }
  func.func @transform_5(%arg0: i32) -> (i32, i32) {
    %c0_i32 = arith.constant 0 : i32
    %c0_i32_0 = arith.constant 0 : i32
    return %arg0, %c0_i32 : i32, i32
  }
  func.func @transform_6(%arg0: i32) -> (i32, i32) {
    %c0_i32 = arith.constant 0 : i32
    %c0_i32_0 = arith.constant 0 : i32
    return %arg0, %c0_i32 : i32, i32
  }
}

</mosaic_0001>

<llo_original>
// kernel: rpn_head_forward.1
$region0: #{rpn_head_forward.1}
  #allocation0 [shape = 'u32[]', space=smem, size = 0x4, offset = 0x4, fixed_abs, tag = 'smem constant byte address 0x4 - core index']
  #allocation1 [shape = 'u32[144,128]{1,0:T(1,128)}', space=vmem, size = 0x12000, scoped, tag = 'internal scratch']
  %s0 = inlined_call_operand.vmem [shape: bf16[10,8,1536], index: 0, kind: input, shape index: {}]
  %s1 = inlined_call_operand.hbm [shape: bf16[3,1536,512], index: 1, kind: input, shape index: {}]
  %s2 = inlined_call_operand.hbm [shape: f32[1,512], index: 2, kind: input, shape index: {}]
  %s3 = inlined_call_operand.vmem [shape: bf16[512,384], index: 3, kind: input, shape index: {}]
  %s4 = inlined_call_operand.vmem [shape: f32[1,384], index: 4, kind: input, shape index: {}]
  %s5 = inlined_call_operand.vmem [shape: bf16[64,512], index: 5, kind: output, shape index: {0}]
  %s6 = inlined_call_operand.vmem [shape: f32[64,384], index: 6, kind: output, shape index: {1}]
  %7 = xla_tuple %s5, %s6
  %s8 = sld [smem:[#allocation0]]
  $region46: #{rpn_head_forward.1} parent=0
    _
  %s10 = ssub.s32 1, %s8
  %s11 = scalar_select 0, %s10, %s8
  $region1: #{rpn_head_forward.1} parent=0
    #allocation2 [shape = 'u8[4718592]{0}', space=vmem, size = 0x480000, scoped, tag = 'input window, operand 1, single buffered']
    #allocation3 [shape = 's32[1]{0}', space=sflag, size = 0x4, scoped, tag = 'scoped memory for rpn_head_forward.1']
    #allocation4 [shape = 'u8[2048]{0}', space=vmem, size = 0x800, scoped, tag = 'input window, operand 2, single buffered']
    #allocation5 [shape = 's32[1]{0}', space=sflag, size = 0x4, scoped, tag = 'scoped memory for rpn_head_forward.1']
    %12 = vsyncpa [#allocation3], 0
    %13 = vsyncpa [#allocation5], 0
    // Predicated region
    $region2: #{rpn_head_forward.1} parent=1 // pred_check
      _
    $region3: #{rpn_head_forward.1} parent=1 // pred_check_branch
      %15 = sbr.rel (0) target = $region5
    $region4: #{rpn_head_forward.1} parent=1 // pred_region
      _
    $region5: #{rpn_head_forward.1} parent=1 // pred_fallthru
      _
    // Predicated region
    $region6: #{rpn_head_forward.1} parent=1 // pred_check
      _
    $region7: #{rpn_head_forward.1} parent=1 // pred_check_branch
      %17 = sbr.rel (0) target = $region9
    $region8: #{rpn_head_forward.1} parent=1 // pred_region
      %s19 = ssub.s32 147456, 147456
      %20 = vsyncadd [#allocation3], %s19
      %s21 = sshll.u32 [#allocation2], 4
      %s22 = int_to_ptr.vmem [resolvable:$true] %s21
      %27 = dma.hbm_to_vmem [thread:$0]  %s1, 147456, %s22, [#allocation3], 256, 256, 16
    $region9: #{rpn_head_forward.1} parent=1 // pred_fallthru
      _
    // Predicated region
    $region10: #{rpn_head_forward.1} parent=1 // pred_check
      _
    $region11: #{rpn_head_forward.1} parent=1 // pred_check_branch
      %29 = sbr.rel (0) target = $region13
    $region12: #{rpn_head_forward.1} parent=1 // pred_region
      %s31 = ssub.s32 64, 64
      %32 = vsyncadd [#allocation5], %s31
      %s34 = sshll.u32 [#allocation4], 4
      %s35 = int_to_ptr.vmem [resolvable:$true] %s34
      %37 = dma.hbm_to_vmem [thread:$0]  %s2, 64, %s35, [#allocation5]
    $region13: #{rpn_head_forward.1} parent=1 // pred_fallthru
      _
    // Predicated region
    $region14: #{rpn_head_forward.1} parent=1 // pred_check
      _
    $region15: #{rpn_head_forward.1} parent=1 // pred_check_branch
      %39 = sbr.rel (0) target = $region17
    $region16: #{rpn_head_forward.1} parent=1 // pred_region
      _
    $region17: #{rpn_head_forward.1} parent=1 // pred_fallthru
      _
    // Predicated region
    $region18: #{rpn_head_forward.1} parent=1 // pred_check
      _
    $region19: #{rpn_head_forward.1} parent=1 // pred_check_branch
      %41 = sbr.rel (0) target = $region21
    $region20: #{rpn_head_forward.1} parent=1 // pred_region
      _
    $region21: #{rpn_head_forward.1} parent=1 // pred_fallthru
      _
    // Predicated region
    $region22: #{rpn_head_forward.1} parent=1 // pred_check
      _
    $region23: #{rpn_head_forward.1} parent=1 // pred_check_branch
      %43 = sbr.rel (0) target = $region25
    $region24: #{rpn_head_forward.1} parent=1 // pred_region
      %44 = dma.done [#allocation3], 147456
    $region25: #{rpn_head_forward.1} parent=1 // pred_fallthru
      _
    // Predicated region
    $region26: #{rpn_head_forward.1} parent=1 // pred_check
      _
    $region27: #{rpn_head_forward.1} parent=1 // pred_check_branch
      %46 = sbr.rel (0) target = $region29
    $region28: #{rpn_head_forward.1} parent=1 // pred_region
      %47 = dma.done [#allocation5], 64
    $region29: #{rpn_head_forward.1} parent=1 // pred_fallthru
      _
    %s49 = smul.u32 0, 8
    %s50 = smul.u32 %s49, 12
    %s51 = smul.addr %s50, 4
    %s52 = scalar_lea.vmem %s0, %s51
    %v53 = vld [vmem:[%s52] sm:$0xff]
    %v54 = vld [vmem:[%s52 + $0x8] sm:$0xff]
    %v55 = vld [vmem:[%s52 + $0x10] sm:$0xff]
    %v56 = vld [vmem:[%s52 + $0x18] sm:$0xff]
    %v57 = vld [vmem:[%s52 + $0x20] sm:$0xff]
    %v58 = vld [vmem:[%s52 + $0x28] sm:$0xff]
    %v59 = vld [vmem:[%s52 + $0x30] sm:$0xff]
    %v60 = vld [vmem:[%s52 + $0x38] sm:$0xff]
    %v61 = vld [vmem:[%s52 + $0x40] sm:$0xff]
    %v62 = vld [vmem:[%s52 + $0x48] sm:$0xff]
    %v63 = vld [vmem:[%s52 + $0x50] sm:$0xff]
    %v64 = vld [vmem:[%s52 + $0x58] sm:$0xff]
    %v65 = vld [vmem:[%s52 + $0x60] sm:$0xff]
    %v66 = vld [vmem:[%s52 + $0x68] sm:$0xff]
    %v67 = vld [vmem:[%s52 + $0x70] sm:$0xff]
    %v68 = vld [vmem:[%s52 + $0x78] sm:$0xff]
    %v69 = vld [vmem:[%s52 + $0x80] sm:$0xff]
    %v70 = vld [vmem:[%s52 + $0x88] sm:$0xff]
    %v71 = vld [vmem:[%s52 + $0x90] sm:$0xff]
    %v72 = vld [vmem:[%s52 + $0x98] sm:$0xff]
    %v73 = vld [vmem:[%s52 + $0xa0] sm:$0xff]
    %v74 = vld [vmem:[%s52 + $0xa8] sm:$0xff]
    %v75 = vld [vmem:[%s52 + $0xb0] sm:$0xff]
    %v76 = vld [vmem:[%s52 + $0xb8] sm:$0xff]
    %v77 = vld [vmem:[%s52 + $0xc0] sm:$0xff]
    %v78 = vld [vmem:[%s52 + $0xc8] sm:$0xff]
    %v79 = vld [vmem:[%s52 + $0xd0] sm:$0xff]
    %v80 = vld [vmem:[%s52 + $0xd8] sm:$0xff]
    %v81 = vld [vmem:[%s52 + $0xe0] sm:$0xff]
    %v82 = vld [vmem:[%s52 + $0xe8] sm:$0xff]
    %v83 = vld [vmem:[%s52 + $0xf0] sm:$0xff]
    %v84 = vld [vmem:[%s52 + $0xf8] sm:$0xff]
    %v85 = vld [vmem:[%s52 + $0x100] sm:$0xff]
    %v86 = vld [vmem:[%s52 + $0x108] sm:$0xff]
    %v87 = vld [vmem:[%s52 + $0x110] sm:$0xff]
    %v88 = vld [vmem:[%s52 + $0x118] sm:$0xff]
    %v89 = vld [vmem:[%s52 + $0x120] sm:$0xff]
    %v90 = vld [vmem:[%s52 + $0x128] sm:$0xff]
    %v91 = vld [vmem:[%s52 + $0x130] sm:$0xff]
    %v92 = vld [vmem:[%s52 + $0x138] sm:$0xff]
    %v93 = vld [vmem:[%s52 + $0x140] sm:$0xff]
    %v94 = vld [vmem:[%s52 + $0x148] sm:$0xff]
    %v95 = vld [vmem:[%s52 + $0x150] sm:$0xff]
    %v96 = vld [vmem:[%s52 + $0x158] sm:$0xff]
    %v97 = vld [vmem:[%s52 + $0x160] sm:$0xff]
    %v98 = vld [vmem:[%s52 + $0x168] sm:$0xff]
    %v99 = vld [vmem:[%s52 + $0x170] sm:$0xff]
    %v100 = vld [vmem:[%s52 + $0x178] sm:$0xff]
    %v101 = vld [vmem:[#allocation2] sm:$0xff]
    %v102 = vld [vmem:[#allocation2 + $0x8] sm:$0xff]
    %v103 = vld [vmem:[#allocation2 + $0x10] sm:$0xff]
    %v104 = vld [vmem:[#allocation2 + $0x18] sm:$0xff]
    %v105 = vld [vmem:[#allocation2 + $0x20] sm:$0xff]
    %v106 = vld [vmem:[#allocation2 + $0x28] sm:$0xff]
    %v107 = vld [vmem:[#allocation2 + $0x30] sm:$0xff]
    %v108 = vld [vmem:[#allocation2 + $0x38] sm:$0xff]
    %v109 = vld [vmem:[#allocation2 + $0x40] sm:$0xff]
    %v110 = vld [vmem:[#allocation2 + $0x48] sm:$0xff]
    %v111 = vld [vmem:[#allocation2 + $0x50] sm:$0xff]
    %v112 = vld [vmem:[#allocation2 + $0x58] sm:$0xff]
    %v113 = vld [vmem:[#allocation2 + $0x60] sm:$0xff]
    %v114 = vld [vmem:[#allocation2 + $0x68] sm:$0xff]
    %v115 = vld [vmem:[#allocation2 + $0x70] sm:$0xff]
    %v116 = vld [vmem:[#allocation2 + $0x78] sm:$0xff]
    %v117 = vld [vmem:[#allocation2 + $0x80] sm:$0xff]
    %v118 = vld [vmem:[#allocation2 + $0x88] sm:$0xff]
    %v119 = vld [vmem:[#allocation2 + $0x90] sm:$0xff]
    %v120 = vld [vmem:[#allocation2 + $0x98] sm:$0xff]
    %v121 = vld [vmem:[#allocation2 + $0xa0] sm:$0xff]
    %v122 = vld [vmem:[#allocation2 + $0xa8] sm:$0xff]
    %v123 = vld [vmem:[#allocation2 + $0xb0] sm:$0xff]
    %v124 = vld [vmem:[#allocation2 + $0xb8] sm:$0xff]
    %v125 = vld [vmem:[#allocation2 + $0xc0] sm:$0xff]
    %v126 = vld [vmem:[#allocation2 + $0xc8] sm:$0xff]
    %v127 = vld [vmem:[#allocation2 + $0xd0] sm:$0xff]
    %v128 = vld [vmem:[#allocation2 + $0xd8] sm:$0xff]
    %v129 = vld [vmem:[#allocation2 + $0xe0] sm:$0xff]
    %v130 = vld [vmem:[#allocation2 + $0xe8] sm:$0xff]
    %v131 = vld [vmem:[#allocation2 + $0xf0] sm:$0xff]
    %v132 = vld [vmem:[#allocation2 + $0xf8] sm:$0xff]
    %v133 = vld [vmem:[#allocation2 + $0x100] sm:$0xff]
    %v134 = vld [vmem:[#allocation2 + $0x108] sm:$0xff]
    %v135 = vld [vmem:[#allocation2 + $0x110] sm:$0xff]
    %v136 = vld [vmem:[#allocation2 + $0x118] sm:$0xff]
    %v137 = vld [vmem:[#allocation2 + $0x120] sm:$0xff]
    %v138 = vld [vmem:[#allocation2 + $0x128] sm:$0xff]
    %v139 = vld [vmem:[#allocation2 + $0x130] sm:$0xff]
    %v140 = vld [vmem:[#allocation2 + $0x138] sm:$0xff]
    %v141 = vld [vmem:[#allocation2 + $0x140] sm:$0xff]
    %v142 = vld [vmem:[#allocation2 + $0x148] sm:$0xff]
    %v143 = vld [vmem:[#allocation2 + $0x150] sm:$0xff]
    %v144 = vld [vmem:[#allocation2 + $0x158] sm:$0xff]
    %v145 = vld [vmem:[#allocation2 + $0x160] sm:$0xff]
    %v146 = vld [vmem:[#allocation2 + $0x168] sm:$0xff]
    %v147 = vld [vmem:[#allocation2 + $0x170] sm:$0xff]
    %v148 = vld [vmem:[#allocation2 + $0x178] sm:$0xff]
    %v149 = vld [vmem:[#allocation2 + $0x180] sm:$0xff]
    %v150 = vld [vmem:[#allocation2 + $0x188] sm:$0xff]
    %v151 = vld [vmem:[#allocation2 + $0x190] sm:$0xff]
    %v152 = vld [vmem:[#allocation2 + $0x198] sm:$0xff]
    %v153 = vld [vmem:[#allocation2 + $0x1a0] sm:$0xff]
    %v154 = vld [vmem:[#allocation2 + $0x1a8] sm:$0xff]
    %v155 = vld [vmem:[#allocation2 + $0x1b0] sm:$0xff]
    %v156 = vld [vmem:[#allocation2 + $0x1b8] sm:$0xff]
    %v157 = vld [vmem:[#allocation2 + $0x1c0] sm:$0xff]
    %v158 = vld [vmem:[#allocation2 + $0x1c8] sm:$0xff]
    %v159 = vld [vmem:[#allocation2 + $0x1d0] sm:$0xff]
    %v160 = vld [vmem:[#allocation2 + $0x1d8] sm:$0xff]
    %v161 = vld [vmem:[#allocation2 + $0x1e0] sm:$0xff]
    %v162 = vld [vmem:[#allocation2 + $0x1e8] sm:$0xff]
    %v163 = vld [vmem:[#allocation2 + $0x1f0] sm:$0xff]
    %v164 = vld [vmem:[#allocation2 + $0x1f8] sm:$0xff]
    %v165 = vld [vmem:[#allocation2 + $0x200] sm:$0xff]
    %v166 = vld [vmem:[#allocation2 + $0x208] sm:$0xff]
    %v167 = vld [vmem:[#allocation2 + $0x210] sm:$0xff]
    %v168 = vld [vmem:[#allocation2 + $0x218] sm:$0xff]
    %v169 = vld [vmem:[#allocation2 + $0x220] sm:$0xff]
    %v170 = vld [vmem:[#allocation2 + $0x228] sm:$0xff]
    %v171 = vld [vmem:[#allocation2 + $0x230] sm:$0xff]
    %v172 = vld [vmem:[#allocation2 + $0x238] sm:$0xff]
    %v173 = vld [vmem:[#allocation2 + $0x240] sm:$0xff]
    %v174 = vld [vmem:[#allocation2 + $0x248] sm:$0xff]
    %v175 = vld [vmem:[#allocation2 + $0x250] sm:$0xff]
    %v176 = vld [vmem:[#allocation2 + $0x258] sm:$0xff]
    %v177 = vld [vmem:[#allocation2 + $0x260] sm:$0xff]
    %v178 = vld [vmem:[#allocation2 + $0x268] sm:$0xff]
    %v179 = vld [vmem:[#allocation2 + $0x270] sm:$0xff]
    %v180 = vld [vmem:[#allocation2 + $0x278] sm:$0xff]
    %v181 = vld [vmem:[#allocation2 + $0x280] sm:$0xff]
    %v182 = vld [vmem:[#allocation2 + $0x288] sm:$0xff]
    %v183 = vld [vmem:[#allocation2 + $0x290] sm:$0xff]
    %v184 = vld [vmem:[#allocation2 + $0x298] sm:$0xff]
    %v185 = vld [vmem:[#allocation2 + $0x2a0] sm:$0xff]
    %v186 = vld [vmem:[#allocation2 + $0x2a8] sm:$0xff]
    %v187 = vld [vmem:[#allocation2 + $0x2b0] sm:$0xff]
    %v188 = vld [vmem:[#allocation2 + $0x2b8] sm:$0xff]
    %v189 = vld [vmem:[#allocation2 + $0x2c0] sm:$0xff]
    %v190 = vld [vmem:[#allocation2 + $0x2c8] sm:$0xff]
    %v191 = vld [vmem:[#allocation2 + $0x2d0] sm:$0xff]
    %v192 = vld [vmem:[#allocation2 + $0x2d8] sm:$0xff]
    %v193 = vld [vmem:[#allocation2 + $0x2e0] sm:$0xff]
    %v194 = vld [vmem:[#allocation2 + $0x2e8] sm:$0xff]
    %v195 = vld [vmem:[#allocation2 + $0x2f0] sm:$0xff]
    %v196 = vld [vmem:[#allocation2 + $0x2f8] sm:$0xff]
    %v197 = vld [vmem:[#allocation2 + $0x300] sm:$0xff]
    %v198 = vld [vmem:[#allocation2 + $0x308] sm:$0xff]
    %v199 = vld [vmem:[#allocation2 + $0x310] sm:$0xff]
    %v200 = vld [vmem:[#allocation2 + $0x318] sm:$0xff]
    %v201 = vld [vmem:[#allocation2 + $0x320] sm:$0xff]
    %v202 = vld [vmem:[#allocation2 + $0x328] sm:$0xff]
    %v203 = vld [vmem:[#allocation2 + $0x330] sm:$0xff]
    %v204 = vld [vmem:[#allocation2 + $0x338] sm:$0xff]
    %v205 = vld [vmem:[#allocation2 + $0x340] sm:$0xff]
    %v206 = vld [vmem:[#allocation2 + $0x348] sm:$0xff]
    %v207 = vld [vmem:[#allocation2 + $0x350] sm:$0xff]
    %v208 = vld [vmem:[#allocation2 + $0x358] sm:$0xff]
    %v209 = vld [vmem:[#allocation2 + $0x360] sm:$0xff]
    %v210 = vld [vmem:[#allocation2 + $0x368] sm:$0xff]
    %v211 = vld [vmem:[#allocation2 + $0x370] sm:$0xff]
    %v212 = vld [vmem:[#allocation2 + $0x378] sm:$0xff]
    %v213 = vld [vmem:[#allocation2 + $0x380] sm:$0xff]
    %v214 = vld [vmem:[#allocation2 + $0x388] sm:$0xff]
    %v215 = vld [vmem:[#allocation2 + $0x390] sm:$0xff]
    %v216 = vld [vmem:[#allocation2 + $0x398] sm:$0xff]
    %v217 = vld [vmem:[#allocation2 + $0x3a0] sm:$0xff]
    %v218 = vld [vmem:[#allocation2 + $0x3a8] sm:$0xff]
    %v219 = vld [vmem:[#allocation2 + $0x3b0] sm:$0xff]
    %v220 = vld [vmem:[#allocation2 + $0x3b8] sm:$0xff]
    %v221 = vld [vmem:[#allocation2 + $0x3c0] sm:$0xff]
    %v222 = vld [vmem:[#allocation2 + $0x3c8] sm:$0xff]
    %v223 = vld [vmem:[#allocation2 + $0x3d0] sm:$0xff]
    %v224 = vld [vmem:[#allocation2 + $0x3d8] sm:$0xff]
    %v225 = vld [vmem:[#allocation2 + $0x3e0] sm:$0xff]
    %v226 = vld [vmem:[#allocation2 + $0x3e8] sm:$0xff]
    %v227 = vld [vmem:[#allocation2 + $0x3f0] sm:$0xff]
    %v228 = vld [vmem:[#allocation2 + $0x3f8] sm:$0xff]
    %v229 = vld [vmem:[#allocation2 + $0x400] sm:$0xff]
    %v230 = vld [vmem:[#allocation2 + $0x408] sm:$0xff]
    %v231 = vld [vmem:[#allocation2 + $0x410] sm:$0xff]
    %v232 = vld [vmem:[#allocation2 + $0x418] sm:$0xff]
    %v233 = vld [vmem:[#allocation2 + $0x420] sm:$0xff]
    %v234 = vld [vmem:[#allocation2 + $0x428] sm:$0xff]
    %v235 = vld [vmem:[#allocation2 + $0x430] sm:$0xff]
    %v236 = vld [vmem:[#allocation2 + $0x438] sm:$0xff]
    %v237 = vld [vmem:[#allocation2 + $0x440] sm:$0xff]
    %v238 = vld [vmem:[#allocation2 + $0x448] sm:$0xff]
    %v239 = vld [vmem:[#allocation2 + $0x450] sm:$0xff]
    %v240 = vld [vmem:[#allocation2 + $0x458] sm:$0xff]
    %v241 = vld [vmem:[#allocation2 + $0x460] sm:$0xff]
    %v242 = vld [vmem:[#allocation2 + $0x468] sm:$0xff]
    %v243 = vld [vmem:[#allocation2 + $0x470] sm:$0xff]
    %v244 = vld [vmem:[#allocation2 + $0x478] sm:$0xff]
    %v245 = vld [vmem:[#allocation2 + $0x480] sm:$0xff]
    %v246 = vld [vmem:[#allocation2 + $0x488] sm:$0xff]
    %v247 = vld [vmem:[#allocation2 + $0x490] sm:$0xff]
    %v248 = vld [vmem:[#allocation2 + $0x498] sm:$0xff]
    %v249 = vld [vmem:[#allocation2 + $0x4a0] sm:$0xff]
    %v250 = vld [vmem:[#allocation2 + $0x4a8] sm:$0xff]
    %v251 = vld [vmem:[#allocation2 + $0x4b0] sm:$0xff]
    %v252 = vld [vmem:[#allocation2 + $0x4b8] sm:$0xff]
    %v253 = vld [vmem:[#allocation2 + $0x4c0] sm:$0xff]
    %v254 = vld [vmem:[#allocation2 + $0x4c8] sm:$0xff]
    %v255 = vld [vmem:[#allocation2 + $0x4d0] sm:$0xff]
    %v256 = vld [vmem:[#allocation2 + $0x4d8] sm:$0xff]
    %v257 = vld [vmem:[#allocation2 + $0x4e0] sm:$0xff]
    %v258 = vld [vmem:[#allocation2 + $0x4e8] sm:$0xff]
    %v259 = vld [vmem:[#allocation2 + $0x4f0] sm:$0xff]
    %v260 = vld [vmem:[#allocation2 + $0x4f8] sm:$0xff]
    %v261 = vld [vmem:[#allocation2 + $0x500] sm:$0xff]
    %v262 = vld [vmem:[#allocation2 + $0x508] sm:$0xff]
    %v263 = vld [vmem:[#allocation2 + $0x510] sm:$0xff]
    %v264 = vld [vmem:[#allocation2 + $0x518] sm:$0xff]
    %v265 = vld [vmem:[#allocation2 + $0x520] sm:$0xff]
    %v266 = vld [vmem:[#allocation2 + $0x528] sm:$0xff]
    %v267 = vld [vmem:[#allocation2 + $0x530] sm:$0xff]
    %v268 = vld [vmem:[#allocation2 + $0x538] sm:$0xff]
    %v269 = vld [vmem:[#allocation2 + $0x540] sm:$0xff]
    %v270 = vld [vmem:[#allocation2 + $0x548] sm:$0xff]
    %v271 = vld [vmem:[#allocation2 + $0x550] sm:$0xff]
    %v272 = vld [vmem:[#allocation2 + $0x558] sm:$0xff]
    %v273 = vld [vmem:[#allocation2 + $0x560] sm:$0xff]
    %v274 = vld [vmem:[#allocation2 + $0x568] sm:$0xff]
    %v275 = vld [vmem:[#allocation2 + $0x570] sm:$0xff]
    %v276 = vld [vmem:[#allocation2 + $0x578] sm:$0xff]
    %v277 = vld [vmem:[#allocation2 + $0x580] sm:$0xff]
    %v278 = vld [vmem:[#allocation2 + $0x588] sm:$0xff]
    %v279 = vld [vmem:[#allocation2 + $0x590] sm:$0xff]
    %v280 = vld [vmem:[#allocation2 + $0x598] sm:$0xff]
    %v281 = vld [vmem:[#allocation2 + $0x5a0] sm:$0xff]
    %v282 = vld [vmem:[#allocation2 + $0x5a8] sm:$0xff]
    %v283 = vld [vmem:[#allocation2 + $0x5b0] sm:$0xff]
    %v284 = vld [vmem:[#allocation2 + $0x5b8] sm:$0xff]
    %v285 = vld [vmem:[#allocation2 + $0x5c0] sm:$0xff]
    %v286 = vld [vmem:[#allocation2 + $0x5c8] sm:$0xff]
    %v287 = vld [vmem:[#allocation2 + $0x5d0] sm:$0xff]
    %v288 = vld [vmem:[#allocation2 + $0x5d8] sm:$0xff]
    %v289 = vld [vmem:[#allocation2 + $0x5e0] sm:$0xff]
    %v290 = vld [vmem:[#allocation2 + $0x5e8] sm:$0xff]
    %v291 = vld [vmem:[#allocation2 + $0x5f0] sm:$0xff]
    %v292 = vld [vmem:[#allocation2 + $0x5f8] sm:$0xff]
    %v293 = vld [vmem:[#allocation2 + $0x600] sm:$0xff]
    %v294 = vld [vmem:[#allocation2 + $0x608] sm:$0xff]
    %v295 = vld [vmem:[#allocation2 + $0x610] sm:$0xff]
    %v296 = vld [vmem:[#allocation2 + $0x618] sm:$0xff]
    %v297 = vld [vmem:[#allocation2 + $0x620] sm:$0xff]
    %v298 = vld [vmem:[#allocation2 + $0x628] sm:$0xff]
    %v299 = vld [vmem:[#allocation2 + $0x630] sm:$0xff]
    %v300 = vld [vmem:[#allocation2 + $0x638] sm:$0xff]
    %v301 = vld [vmem:[#allocation2 + $0x640] sm:$0xff]
    %v302 = vld [vmem:[#allocation2 + $0x648] sm:$0xff]
    %v303 = vld [vmem:[#allocation2 + $0x650] sm:$0xff]
    %v304 = vld [vmem:[#allocation2 + $0x658] sm:$0xff]
    %v305 = vld [vmem:[#allocation2 + $0x660] sm:$0xff]
    %v306 = vld [vmem:[#allocation2 + $0x668] sm:$0xff]
    %v307 = vld [vmem:[#allocation2 + $0x670] sm:$0xff]
    %v308 = vld [vmem:[#allocation2 + $0x678] sm:$0xff]
    %v309 = vld [vmem:[#allocation2 + $0x680] sm:$0xff]
    %v310 = vld [vmem:[#allocation2 + $0x688] sm:$0xff]
    %v311 = vld [vmem:[#allocation2 + $0x690] sm:$0xff]
    %v312 = vld [vmem:[#allocation2 + $0x698] sm:$0xff]
    %v313 = vld [vmem:[#allocation2 + $0x6a0] sm:$0xff]
    %v314 = vld [vmem:[#allocation2 + $0x6a8] sm:$0xff]
    %v315 = vld [vmem:[#allocation2 + $0x6b0] sm:$0xff]
    %v316 = vld [vmem:[#allocation2 + $0x6b8] sm:$0xff]
    %v317 = vld [vmem:[#allocation2 + $0x6c0] sm:$0xff]
    %v318 = vld [vmem:[#allocation2 + $0x6c8] sm:$0xff]
    %v319 = vld [vmem:[#allocation2 + $0x6d0] sm:$0xff]
    %v320 = vld [vmem:[#allocation2 + $0x6d8] sm:$0xff]
    %v321 = vld [vmem:[#allocation2 + $0x6e0] sm:$0xff]
    %v322 = vld [vmem:[#allocation2 + $0x6e8] sm:$0xff]
    %v323 = vld [vmem:[#allocation2 + $0x6f0] sm:$0xff]
    %v324 = vld [vmem:[#allocation2 + $0x6f8] sm:$0xff]
    %v325 = vld [vmem:[#allocation2 + $0x700] sm:$0xff]
    %v326 = vld [vmem:[#allocation2 + $0x708] sm:$0xff]
    %v327 = vld [vmem:[#allocation2 + $0x710] sm:$0xff]
    %v328 = vld [vmem:[#allocation2 + $0x718] sm:$0xff]
    %v329 = vld [vmem:[#allocation2 + $0x720] sm:$0xff]
    %v330 = vld [vmem:[#allocation2 + $0x728] sm:$0xff]
    %v331 = vld [vmem:[#allocation2 + $0x730] sm:$0xff]
    %v332 = vld [vmem:[#allocation2 + $0x738] sm:$0xff]
    %v333 = vld [vmem:[#allocation2 + $0x740] sm:$0xff]
    %v334 = vld [vmem:[#allocation2 + $0x748] sm:$0xff]
    %v335 = vld [vmem:[#allocation2 + $0x750] sm:$0xff]
    %v336 = vld [vmem:[#allocation2 + $0x758] sm:$0xff]
    %v337 = vld [vmem:[#allocation2 + $0x760] sm:$0xff]
    %v338 = vld [vmem:[#allocation2 + $0x768] sm:$0xff]
    %v339 = vld [vmem:[#allocation2 + $0x770] sm:$0xff]
    %v340 = vld [vmem:[#allocation2 + $0x778] sm:$0xff]
    %v341 = vld [vmem:[#allocation2 + $0x780] sm:$0xff]
    %v342 = vld [vmem:[#allocation2 + $0x788] sm:$0xff]
    %v343 = vld [vmem:[#allocation2 + $0x790] sm:$0xff]
    %v344 = vld [vmem:[#allocation2 + $0x798] sm:$0xff]
    %v345 = vld [vmem:[#allocation2 + $0x7a0] sm:$0xff]
    %v346 = vld [vmem:[#allocation2 + $0x7a8] sm:$0xff]
    %v347 = vld [vmem:[#allocation2 + $0x7b0] sm:$0xff]
    %v348 = vld [vmem:[#allocation2 + $0x7b8] sm:$0xff]
    %v349 = vld [vmem:[#allocation2 + $0x7c0] sm:$0xff]
    %v350 = vld [vmem:[#allocation2 + $0x7c8] sm:$0xff]
    %v351 = vld [vmem:[#allocation2 + $0x7d0] sm:$0xff]
    %v352 = vld [vmem:[#allocation2 + $0x7d8] sm:$0xff]
    %v353 = vld [vmem:[#allocation2 + $0x7e0] sm:$0xff]
    %v354 = vld [vmem:[#allocation2 + $0x7e8] sm:$0xff]
    %v355 = vld [vmem:[#allocation2 + $0x7f0] sm:$0xff]
    %v356 = vld [vmem:[#allocation2 + $0x7f8] sm:$0xff]
    %v357 = vld [vmem:[#allocation2 + $0x800] sm:$0xff]
    %v358 = vld [vmem:[#allocation2 + $0x808] sm:$0xff]
    %v359 = vld [vmem:[#allocation2 + $0x810] sm:$0xff]
    %v360 = vld [vmem:[#allocation2 + $0x818] sm:$0xff]
    %v361 = vld [vmem:[#allocation2 + $0x820] sm:$0xff]
    %v362 = vld [vmem:[#allocation2 + $0x828] sm:$0xff]
    %v363 = vld [vmem:[#allocation2 + $0x830] sm:$0xff]
    %v364 = vld [vmem:[#allocation2 + $0x838] sm:$0xff]
    %v365 = vld [vmem:[#allocation2 + $0x840] sm:$0xff]
    %v366 = vld [vmem:[#allocation2 + $0x848] sm:$0xff]
    %v367 = vld [vmem:[#allocation2 + $0x850] sm:$0xff]
    %v368 = vld [vmem:[#allocation2 + $0x858] sm:$0xff]
    %v369 = vld [vmem:[#allocation2 + $0x860] sm:$0xff]
    %v370 = vld [vmem:[#allocation2 + $0x868] sm:$0xff]
    %v371 = vld [vmem:[#allocation2 + $0x870] sm:$0xff]
    %v372 = vld [vmem:[#allocation2 + $0x878] sm:$0xff]
    %v373 = vld [vmem:[#allocation2 + $0x880] sm:$0xff]
    %v374 = vld [vmem:[#allocation2 + $0x888] sm:$0xff]
    %v375 = vld [vmem:[#allocation2 + $0x890] sm:$0xff]
    %v376 = vld [vmem:[#allocation2 + $0x898] sm:$0xff]
    %v377 = vld [vmem:[#allocation2 + $0x8a0] sm:$0xff]
    %v378 = vld [vmem:[#allocation2 + $0x8a8] sm:$0xff]
    %v379 = vld [vmem:[#allocation2 + $0x8b0] sm:$0xff]
    %v380 = vld [vmem:[#allocation2 + $0x8b8] sm:$0xff]
    %v381 = vld [vmem:[#allocation2 + $0x8c0] sm:$0xff]
    %v382 = vld [vmem:[#allocation2 + $0x8c8] sm:$0xff]
    %v383 = vld [vmem:[#allocation2 + $0x8d0] sm:$0xff]
    %v384 = vld [vmem:[#allocation2 + $0x8d8] sm:$0xff]
    %v385 = vld [vmem:[#allocation2 + $0x8e0] sm:$0xff]
    %v386 = vld [vmem:[#allocation2 + $0x8e8] sm:$0xff]
    %v387 = vld [vmem:[#allocation2 + $0x8f0] sm:$0xff]
    %v388 = vld [vmem:[#allocation2 + $0x8f8] sm:$0xff]
    %v389 = vld [vmem:[#allocation2 + $0x900] sm:$0xff]
    %v390 = vld [vmem:[#allocation2 + $0x908] sm:$0xff]
    %v391 = vld [vmem:[#allocation2 + $0x910] sm:$0xff]
    %v392 = vld [vmem:[#allocation2 + $0x918] sm:$0xff]
    %v393 = vld [vmem:[#allocation2 + $0x920] sm:$0xff]
    %v394 = vld [vmem:[#allocation2 + $0x928] sm:$0xff]
    %v395 = vld [vmem:[#allocation2 + $0x930] sm:$0xff]
    %v396 = vld [vmem:[#allocation2 + $0x938] sm:$0xff]
    %v397 = vld [vmem:[#allocation2 + $0x940] sm:$0xff]
    %v398 = vld [vmem:[#allocation2 + $0x948] sm:$0xff]
    %v399 = vld [vmem:[#allocation2 + $0x950] sm:$0xff]
    %v400 = vld [vmem:[#allocation2 + $0x958] sm:$0xff]
    %v401 = vld [vmem:[#allocation2 + $0x960] sm:$0xff]
    %v402 = vld [vmem:[#allocation2 + $0x968] sm:$0xff]
    %v403 = vld [vmem:[#allocation2 + $0x970] sm:$0xff]
    %v404 = vld [vmem:[#allocation2 + $0x978] sm:$0xff]
    %v405 = vld [vmem:[#allocation2 + $0x980] sm:$0xff]
    %v406 = vld [vmem:[#allocation2 + $0x988] sm:$0xff]
    %v407 = vld [vmem:[#allocation2 + $0x990] sm:$0xff]
    %v408 = vld [vmem:[#allocation2 + $0x998] sm:$0xff]
    %v409 = vld [vmem:[#allocation2 + $0x9a0] sm:$0xff]
    %v410 = vld [vmem:[#allocation2 + $0x9a8] sm:$0xff]
    %v411 = vld [vmem:[#allocation2 + $0x9b0] sm:$0xff]
    %v412 = vld [vmem:[#allocation2 + $0x9b8] sm:$0xff]
    %v413 = vld [vmem:[#allocation2 + $0x9c0] sm:$0xff]
    %v414 = vld [vmem:[#allocation2 + $0x9c8] sm:$0xff]
    %v415 = vld [vmem:[#allocation2 + $0x9d0] sm:$0xff]
    %v416 = vld [vmem:[#allocation2 + $0x9d8] sm:$0xff]
    %v417 = vld [vmem:[#allocation2 + $0x9e0] sm:$0xff]
    %v418 = vld [vmem:[#allocation2 + $0x9e8] sm:$0xff]
    %v419 = vld [vmem:[#allocation2 + $0x9f0] sm:$0xff]
    %v420 = vld [vmem:[#allocation2 + $0x9f8] sm:$0xff]
    %v421 = vld [vmem:[#allocation2 + $0xa00] sm:$0xff]
    %v422 = vld [vmem:[#allocation2 + $0xa08] sm:$0xff]
    %v423 = vld [vmem:[#allocation2 + $0xa10] sm:$0xff]
    %v424 = vld [vmem:[#allocation2 + $0xa18] sm:$0xff]
    %v425 = vld [vmem:[#allocation2 + $0xa20] sm:$0xff]
    %v426 = vld [vmem:[#allocation2 + $0xa28] sm:$0xff]
    %v427 = vld [vmem:[#allocation2 + $0xa30] sm:$0xff]
    %v428 = vld [vmem:[#allocation2 + $0xa38] sm:$0xff]
    %v429 = vld [vmem:[#allocation2 + $0xa40] sm:$0xff]
    %v430 = vld [vmem:[#allocation2 + $0xa48] sm:$0xff]
    %v431 = vld [vmem:[#allocation2 + $0xa50] sm:$0xff]
    %v432 = vld [vmem:[#allocation2 + $0xa58] sm:$0xff]
    %v433 = vld [vmem:[#allocation2 + $0xa60] sm:$0xff]
    %v434 = vld [vmem:[#allocation2 + $0xa68] sm:$0xff]
    %v435 = vld [vmem:[#allocation2 + $0xa70] sm:$0xff]
    %v436 = vld [vmem:[#allocation2 + $0xa78] sm:$0xff]
    %v437 = vld [vmem:[#allocation2 + $0xa80] sm:$0xff]
    %v438 = vld [vmem:[#allocation2 + $0xa88] sm:$0xff]
    %v439 = vld [vmem:[#allocation2 + $0xa90] sm:$0xff]
    %v440 = vld [vmem:[#allocation2 + $0xa98] sm:$0xff]
    %v441 = vld [vmem:[#allocation2 + $0xaa0] sm:$0xff]
    %v442 = vld [vmem:[#allocation2 + $0xaa8] sm:$0xff]
    %v443 = vld [vmem:[#allocation2 + $0xab0] sm:$0xff]
    %v444 = vld [vmem:[#allocation2 + $0xab8] sm:$0xff]
    %v445 = vld [vmem:[#allocation2 + $0xac0] sm:$0xff]
    %v446 = vld [vmem:[#allocation2 + $0xac8] sm:$0xff]
    %v447 = vld [vmem:[#allocation2 + $0xad0] sm:$0xff]
    %v448 = vld [vmem:[#allocation2 + $0xad8] sm:$0xff]
    %v449 = vld [vmem:[#allocation2 + $0xae0] sm:$0xff]
    %v450 = vld [vmem:[#allocation2 + $0xae8] sm:$0xff]
    %v451 = vld [vmem:[#allocation2 + $0xaf0] sm:$0xff]
    %v452 = vld [vmem:[#allocation2 + $0xaf8] sm:$0xff]
    %v453 = vld [vmem:[#allocation2 + $0xb00] sm:$0xff]
    %v454 = vld [vmem:[#allocation2 + $0xb08] sm:$0xff]
    %v455 = vld [vmem:[#allocation2 + $0xb10] sm:$0xff]
    %v456 = vld [vmem:[#allocation2 + $0xb18] sm:$0xff]
    %v457 = vld [vmem:[#allocation2 + $0xb20] sm:$0xff]
    %v458 = vld [vmem:[#allocation2 + $0xb28] sm:$0xff]
    %v459 = vld [vmem:[#allocation2 + $0xb30] sm:$0xff]
    %v460 = vld [vmem:[#allocation2 + $0xb38] sm:$0xff]
    %v461 = vld [vmem:[#allocation2 + $0xb40] sm:$0xff]
    %v462 = vld [vmem:[#allocation2 + $0xb48] sm:$0xff]
    %v463 = vld [vmem:[#allocation2 + $0xb50] sm:$0xff]
    %v464 = vld [vmem:[#allocation2 + $0xb58] sm:$0xff]
    %v465 = vld [vmem:[#allocation2 + $0xb60] sm:$0xff]
    %v466 = vld [vmem:[#allocation2 + $0xb68] sm:$0xff]
    %v467 = vld [vmem:[#allocation2 + $0xb70] sm:$0xff]
    %v468 = vld [vmem:[#allocation2 + $0xb78] sm:$0xff]
    %v469 = vld [vmem:[#allocation2 + $0xb80] sm:$0xff]
    %v470 = vld [vmem:[#allocation2 + $0xb88] sm:$0xff]
    %v471 = vld [vmem:[#allocation2 + $0xb90] sm:$0xff]
    %v472 = vld [vmem:[#allocation2 + $0xb98] sm:$0xff]
    %v473 = vld [vmem:[#allocation2 + $0xba0] sm:$0xff]
    %v474 = vld [vmem:[#allocation2 + $0xba8] sm:$0xff]
    %v475 = vld [vmem:[#allocation2 + $0xbb0] sm:$0xff]
    %v476 = vld [vmem:[#allocation2 + $0xbb8] sm:$0xff]
    %v477 = vld [vmem:[#allocation2 + $0xbc0] sm:$0xff]
    %v478 = vld [vmem:[#allocation2 + $0xbc8] sm:$0xff]
    %v479 = vld [vmem:[#allocation2 + $0xbd0] sm:$0xff]
    %v480 = vld [vmem:[#allocation2 + $0xbd8] sm:$0xff]
    %v481 = vld [vmem:[#allocation2 + $0xbe0] sm:$0xff]
    %v482 = vld [vmem:[#allocation2 + $0xbe8] sm:$0xff]
    %v483 = vld [vmem:[#allocation2 + $0xbf0] sm:$0xff]
    %v484 = vld [vmem:[#allocation2 + $0xbf8] sm:$0xff]
    %s485 = sadd.s32 %s49, 1
    %s486 = smul.u32 %s485, 12
    %s487 = smul.addr %s486, 4
    %s488 = scalar_lea.vmem %s0, %s487
    %v489 = vld [vmem:[%s488] sm:$0xff]
    %v490 = vld [vmem:[%s488 + $0x8] sm:$0xff]
    %v491 = vld [vmem:[%s488 + $0x10] sm:$0xff]
    %v492 = vld [vmem:[%s488 + $0x18] sm:$0xff]
    %v493 = vld [vmem:[%s488 + $0x20] sm:$0xff]
    %v494 = vld [vmem:[%s488 + $0x28] sm:$0xff]
    %v495 = vld [vmem:[%s488 + $0x30] sm:$0xff]
    %v496 = vld [vmem:[%s488 + $0x38] sm:$0xff]
    %v497 = vld [vmem:[%s488 + $0x40] sm:$0xff]
    %v498 = vld [vmem:[%s488 + $0x48] sm:$0xff]
    %v499 = vld [vmem:[%s488 + $0x50] sm:$0xff]
    %v500 = vld [vmem:[%s488 + $0x58] sm:$0xff]
    %v501 = vld [vmem:[%s488 + $0x60] sm:$0xff]
    %v502 = vld [vmem:[%s488 + $0x68] sm:$0xff]
    %v503 = vld [vmem:[%s488 + $0x70] sm:$0xff]
    %v504 = vld [vmem:[%s488 + $0x78] sm:$0xff]
    %v505 = vld [vmem:[%s488 + $0x80] sm:$0xff]
    %v506 = vld [vmem:[%s488 + $0x88] sm:$0xff]
    %v507 = vld [vmem:[%s488 + $0x90] sm:$0xff]
    %v508 = vld [vmem:[%s488 + $0x98] sm:$0xff]
    %v509 = vld [vmem:[%s488 + $0xa0] sm:$0xff]
    %v510 = vld [vmem:[%s488 + $0xa8] sm:$0xff]
    %v511 = vld [vmem:[%s488 + $0xb0] sm:$0xff]
    %v512 = vld [vmem:[%s488 + $0xb8] sm:$0xff]
    %v513 = vld [vmem:[%s488 + $0xc0] sm:$0xff]
    %v514 = vld [vmem:[%s488 + $0xc8] sm:$0xff]
    %v515 = vld [vmem:[%s488 + $0xd0] sm:$0xff]
    %v516 = vld [vmem:[%s488 + $0xd8] sm:$0xff]
    %v517 = vld [vmem:[%s488 + $0xe0] sm:$0xff]
    %v518 = vld [vmem:[%s488 + $0xe8] sm:$0xff]
    %v519 = vld [vmem:[%s488 + $0xf0] sm:$0xff]
    %v520 = vld [vmem:[%s488 + $0xf8] sm:$0xff]
    %v521 = vld [vmem:[%s488 + $0x100] sm:$0xff]
    %v522 = vld [vmem:[%s488 + $0x108] sm:$0xff]
    %v523 = vld [vmem:[%s488 + $0x110] sm:$0xff]
    %v524 = vld [vmem:[%s488 + $0x118] sm:$0xff]
    %v525 = vld [vmem:[%s488 + $0x120] sm:$0xff]
    %v526 = vld [vmem:[%s488 + $0x128] sm:$0xff]
    %v527 = vld [vmem:[%s488 + $0x130] sm:$0xff]
    %v528 = vld [vmem:[%s488 + $0x138] sm:$0xff]
    %v529 = vld [vmem:[%s488 + $0x140] sm:$0xff]
    %v530 = vld [vmem:[%s488 + $0x148] sm:$0xff]
    %v531 = vld [vmem:[%s488 + $0x150] sm:$0xff]
    %v532 = vld [vmem:[%s488 + $0x158] sm:$0xff]
    %v533 = vld [vmem:[%s488 + $0x160] sm:$0xff]
    %v534 = vld [vmem:[%s488 + $0x168] sm:$0xff]
    %v535 = vld [vmem:[%s488 + $0x170] sm:$0xff]
    %v536 = vld [vmem:[%s488 + $0x178] sm:$0xff]
    %s537 = scalar_lea.vmem [#allocation2], 3072
    %v538 = vld [vmem:[%s537] sm:$0xff]
    %v539 = vld [vmem:[%s537 + $0x8] sm:$0xff]
    %v540 = vld [vmem:[%s537 + $0x10] sm:$0xff]
    %v541 = vld [vmem:[%s537 + $0x18] sm:$0xff]
    %v542 = vld [vmem:[%s537 + $0x20] sm:$0xff]
    %v543 = vld [vmem:[%s537 + $0x28] sm:$0xff]
    %v544 = vld [vmem:[%s537 + $0x30] sm:$0xff]
    %v545 = vld [vmem:[%s537 + $0x38] sm:$0xff]
    %v546 = vld [vmem:[%s537 + $0x40] sm:$0xff]
    %v547 = vld [vmem:[%s537 + $0x48] sm:$0xff]
    %v548 = vld [vmem:[%s537 + $0x50] sm:$0xff]
    %v549 = vld [vmem:[%s537 + $0x58] sm:$0xff]
    %v550 = vld [vmem:[%s537 + $0x60] sm:$0xff]
    %v551 = vld [vmem:[%s537 + $0x68] sm:$0xff]
    %v552 = vld [vmem:[%s537 + $0x70] sm:$0xff]
    %v553 = vld [vmem:[%s537 + $0x78] sm:$0xff]
    %v554 = vld [vmem:[%s537 + $0x80] sm:$0xff]
    %v555 = vld [vmem:[%s537 + $0x88] sm:$0xff]
    %v556 = vld [vmem:[%s537 + $0x90] sm:$0xff]
    %v557 = vld [vmem:[%s537 + $0x98] sm:$0xff]
    %v558 = vld [vmem:[%s537 + $0xa0] sm:$0xff]
    %v559 = vld [vmem:[%s537 + $0xa8] sm:$0xff]
    %v560 = vld [vmem:[%s537 + $0xb0] sm:$0xff]
    %v561 = vld [vmem:[%s537 + $0xb8] sm:$0xff]
    %v562 = vld [vmem:[%s537 + $0xc0] sm:$0xff]
    %v563 = vld [vmem:[%s537 + $0xc8] sm:$0xff]
    %v564 = vld [vmem:[%s537 + $0xd0] sm:$0xff]
    %v565 = vld [vmem:[%s537 + $0xd8] sm:$0xff]
    %v566 = vld [vmem:[%s537 + $0xe0] sm:$0xff]
    %v567 = vld [vmem:[%s537 + $0xe8] sm:$0xff]
    %v568 = vld [vmem:[%s537 + $0xf0] sm:$0xff]
    %v569 = vld [vmem:[%s537 + $0xf8] sm:$0xff]
    %v570 = vld [vmem:[%s537 + $0x100] sm:$0xff]
    %v571 = vld [vmem:[%s537 + $0x108] sm:$0xff]
    %v572 = vld [vmem:[%s537 + $0x110] sm:$0xff]
    %v573 = vld [vmem:[%s537 + $0x118] sm:$0xff]
    %v574 = vld [vmem:[%s537 + $0x120] sm:$0xff]
    %v575 = vld [vmem:[%s537 + $0x128] sm:$0xff]
    %v576 = vld [vmem:[%s537 + $0x130] sm:$0xff]
    %v577 = vld [vmem:[%s537 + $0x138] sm:$0xff]
    %v578 = vld [vmem:[%s537 + $0x140] sm:$0xff]
    %v579 = vld [vmem:[%s537 + $0x148] sm:$0xff]
    %v580 = vld [vmem:[%s537 + $0x150] sm:$0xff]
    %v581 = vld [vmem:[%s537 + $0x158] sm:$0xff]
    %v582 = vld [vmem:[%s537 + $0x160] sm:$0xff]
    %v583 = vld [vmem:[%s537 + $0x168] sm:$0xff]
    %v584 = vld [vmem:[%s537 + $0x170] sm:$0xff]
    %v585 = vld [vmem:[%s537 + $0x178] sm:$0xff]
    %v586 = vld [vmem:[%s537 + $0x180] sm:$0xff]
    %v587 = vld [vmem:[%s537 + $0x188] sm:$0xff]
    %v588 = vld [vmem:[%s537 + $0x190] sm:$0xff]
    %v589 = vld [vmem:[%s537 + $0x198] sm:$0xff]
    %v590 = vld [vmem:[%s537 + $0x1a0] sm:$0xff]
    %v591 = vld [vmem:[%s537 + $0x1a8] sm:$0xff]
    %v592 = vld [vmem:[%s537 + $0x1b0] sm:$0xff]
    %v593 = vld [vmem:[%s537 + $0x1b8] sm:$0xff]
    %v594 = vld [vmem:[%s537 + $0x1c0] sm:$0xff]
    %v595 = vld [vmem:[%s537 + $0x1c8] sm:$0xff]
    %v596 = vld [vmem:[%s537 + $0x1d0] sm:$0xff]
    %v597 = vld [vmem:[%s537 + $0x1d8] sm:$0xff]
    %v598 = vld [vmem:[%s537 + $0x1e0] sm:$0xff]
    %v599 = vld [vmem:[%s537 + $0x1e8] sm:$0xff]
    %v600 = vld [vmem:[%s537 + $0x1f0] sm:$0xff]
    %v601 = vld [vmem:[%s537 + $0x1f8] sm:$0xff]
    %v602 = vld [vmem:[%s537 + $0x200] sm:$0xff]
    %v603 = vld [vmem:[%s537 + $0x208] sm:$0xff]
    %v604 = vld [vmem:[%s537 + $0x210] sm:$0xff]
    %v605 = vld [vmem:[%s537 + $0x218] sm:$0xff]
    %v606 = vld [vmem:[%s537 + $0x220] sm:$0xff]
    %v607 = vld [vmem:[%s537 + $0x228] sm:$0xff]
    %v608 = vld [vmem:[%s537 + $0x230] sm:$0xff]
    %v609 = vld [vmem:[%s537 + $0x238] sm:$0xff]
    %v610 = vld [vmem:[%s537 + $0x240] sm:$0xff]
    %v611 = vld [vmem:[%s537 + $0x248] sm:$0xff]
    %v612 = vld [vmem:[%s537 + $0x250] sm:$0xff]
    %v613 = vld [vmem:[%s537 + $0x258] sm:$0xff]
    %v614 = vld [vmem:[%s537 + $0x260] sm:$0xff]
    %v615 = vld [vmem:[%s537 + $0x268] sm:$0xff]
    %v616 = vld [vmem:[%s537 + $0x270] sm:$0xff]
    %v617 = vld [vmem:[%s537 + $0x278] sm:$0xff]
    %v618 = vld [vmem:[%s537 + $0x280] sm:$0xff]
    %v619 = vld [vmem:[%s537 + $0x288] sm:$0xff]
    %v620 = vld [vmem:[%s537 + $0x290] sm:$0xff]
    %v621 = vld [vmem:[%s537 + $0x298] sm:$0xff]
    %v622 = vld [vmem:[%s537 + $0x2a0] sm:$0xff]
    %v623 = vld [vmem:[%s537 + $0x2a8] sm:$0xff]
    %v624 = vld [vmem:[%s537 + $0x2b0] sm:$0xff]
    %v625 = vld [vmem:[%s537 + $0x2b8] sm:$0xff]
    %v626 = vld [vmem:[%s537 + $0x2c0] sm:$0xff]
    %v627 = vld [vmem:[%s537 + $0x2c8] sm:$0xff]
    %v628 = vld [vmem:[%s537 + $0x2d0] sm:$0xff]
    %v629 = vld [vmem:[%s537 + $0x2d8] sm:$0xff]
    %v630 = vld [vmem:[%s537 + $0x2e0] sm:$0xff]
    %v631 = vld [vmem:[%s537 + $0x2e8] sm:$0xff]
    %v632 = vld [vmem:[%s537 + $0x2f0] sm:$0xff]
    %v633 = vld [vmem:[%s537 + $0x2f8] sm:$0xff]
    %v634 = vld [vmem:[%s537 + $0x300] sm:$0xff]
    %v635 = vld [vmem:[%s537 + $0x308] sm:$0xff]
    %v636 = vld [vmem:[%s537 + $0x310] sm:$0xff]
    %v637 = vld [vmem:[%s537 + $0x318] sm:$0xff]
    %v638 = vld [vmem:[%s537 + $0x320] sm:$0xff]
    %v639 = vld [vmem:[%s537 + $0x328] sm:$0xff]
    %v640 = vld [vmem:[%s537 + $0x330] sm:$0xff]
    %v641 = vld [vmem:[%s537 + $0x338] sm:$0xff]
    %v642 = vld [vmem:[%s537 + $0x340] sm:$0xff]
    %v643 = vld [vmem:[%s537 + $0x348] sm:$0xff]
    %v644 = vld [vmem:[%s537 + $0x350] sm:$0xff]
    %v645 = vld [vmem:[%s537 + $0x358] sm:$0xff]
    %v646 = vld [vmem:[%s537 + $0x360] sm:$0xff]
    %v647 = vld [vmem:[%s537 + $0x368] sm:$0xff]
    %v648 = vld [vmem:[%s537 + $0x370] sm:$0xff]
    %v649 = vld [vmem:[%s537 + $0x378] sm:$0xff]
    %v650 = vld [vmem:[%s537 + $0x380] sm:$0xff]
    %v651 = vld [vmem:[%s537 + $0x388] sm:$0xff]
    %v652 = vld [vmem:[%s537 + $0x390] sm:$0xff]
    %v653 = vld [vmem:[%s537 + $0x398] sm:$0xff]
    %v654 = vld [vmem:[%s537 + $0x3a0] sm:$0xff]
    %v655 = vld [vmem:[%s537 + $0x3a8] sm:$0xff]
    %v656 = vld [vmem:[%s537 + $0x3b0] sm:$0xff]
    %v657 = vld [vmem:[%s537 + $0x3b8] sm:$0xff]
    %v658 = vld [vmem:[%s537 + $0x3c0] sm:$0xff]
    %v659 = vld [vmem:[%s537 + $0x3c8] sm:$0xff]
    %v660 = vld [vmem:[%s537 + $0x3d0] sm:$0xff]
    %v661 = vld [vmem:[%s537 + $0x3d8] sm:$0xff]
    %v662 = vld [vmem:[%s537 + $0x3e0] sm:$0xff]
    %v663 = vld [vmem:[%s537 + $0x3e8] sm:$0xff]
    %v664 = vld [vmem:[%s537 + $0x3f0] sm:$0xff]
    %v665 = vld [vmem:[%s537 + $0x3f8] sm:$0xff]
    %v666 = vld [vmem:[%s537 + $0x400] sm:$0xff]
    %v667 = vld [vmem:[%s537 + $0x408] sm:$0xff]
    %v668 = vld [vmem:[%s537 + $0x410] sm:$0xff]
    %v669 = vld [vmem:[%s537 + $0x418] sm:$0xff]
    %v670 = vld [vmem:[%s537 + $0x420] sm:$0xff]
    %v671 = vld [vmem:[%s537 + $0x428] sm:$0xff]
    %v672 = vld [vmem:[%s537 + $0x430] sm:$0xff]
    %v673 = vld [vmem:[%s537 + $0x438] sm:$0xff]
    %v674 = vld [vmem:[%s537 + $0x440] sm:$0xff]
    %v675 = vld [vmem:[%s537 + $0x448] sm:$0xff]
    %v676 = vld [vmem:[%s537 + $0x450] sm:$0xff]
    %v677 = vld [vmem:[%s537 + $0x458] sm:$0xff]
    %v678 = vld [vmem:[%s537 + $0x460] sm:$0xff]
    %v679 = vld [vmem:[%s537 + $0x468] sm:$0xff]
    %v680 = vld [vmem:[%s537 + $0x470] sm:$0xff]
    %v681 = vld [vmem:[%s537 + $0x478] sm:$0xff]
    %v682 = vld [vmem:[%s537 + $0x480] sm:$0xff]
    %v683 = vld [vmem:[%s537 + $0x488] sm:$0xff]
    %v684 = vld [vmem:[%s537 + $0x490] sm:$0xff]
    %v685 = vld [vmem:[%s537 + $0x498] sm:$0xff]
    %v686 = vld [vmem:[%s537 + $0x4a0] sm:$0xff]
    %v687 = vld [vmem:[%s537 + $0x4a8] sm:$0xff]
    %v688 = vld [vmem:[%s537 + $0x4b0] sm:$0xff]
    %v689 = vld [vmem:[%s537 + $0x4b8] sm:$0xff]
    %v690 = vld [vmem:[%s537 + $0x4c0] sm:$0xff]
    %v691 = vld [vmem:[%s537 + $0x4c8] sm:$0xff]
    %v692 = vld [vmem:[%s537 + $0x4d0] sm:$0xff]
    %v693 = vld [vmem:[%s537 + $0x4d8] sm:$0xff]
    %v694 = vld [vmem:[%s537 + $0x4e0] sm:$0xff]
    %v695 = vld [vmem:[%s537 + $0x4e8] sm:$0xff]
    %v696 = vld [vmem:[%s537 + $0x4f0] sm:$0xff]
    %v697 = vld [vmem:[%s537 + $0x4f8] sm:$0xff]
    %v698 = vld [vmem:[%s537 + $0x500] sm:$0xff]
    %v699 = vld [vmem:[%s537 + $0x508] sm:$0xff]
    %v700 = vld [vmem:[%s537 + $0x510] sm:$0xff]
    %v701 = vld [vmem:[%s537 + $0x518] sm:$0xff]
    %v702 = vld [vmem:[%s537 + $0x520] sm:$0xff]
    %v703 = vld [vmem:[%s537 + $0x528] sm:$0xff]
    %v704 = vld [vmem:[%s537 + $0x530] sm:$0xff]
    %v705 = vld [vmem:[%s537 + $0x538] sm:$0xff]
    %v706 = vld [vmem:[%s537 + $0x540] sm:$0xff]
    %v707 = vld [vmem:[%s537 + $0x548] sm:$0xff]
    %v708 = vld [vmem:[%s537 + $0x550] sm:$0xff]
    %v709 = vld [vmem:[%s537 + $0x558] sm:$0xff]
    %v710 = vld [vmem:[%s537 + $0x560] sm:$0xff]
    %v711 = vld [vmem:[%s537 + $0x568] sm:$0xff]
    %v712 = vld [vmem:[%s537 + $0x570] sm:$0xff]
    %v713 = vld [vmem:[%s537 + $0x578] sm:$0xff]
    %v714 = vld [vmem:[%s537 + $0x580] sm:$0xff]
    %v715 = vld [vmem:[%s537 + $0x588] sm:$0xff]
    %v716 = vld [vmem:[%s537 + $0x590] sm:$0xff]
    %v717 = vld [vmem:[%s537 + $0x598] sm:$0xff]
    %v718 = vld [vmem:[%s537 + $0x5a0] sm:$0xff]
    %v719 = vld [vmem:[%s537 + $0x5a8] sm:$0xff]
    %v720 = vld [vmem:[%s537 + $0x5b0] sm:$0xff]
    %v721 = vld [vmem:[%s537 + $0x5b8] sm:$0xff]
    %v722 = vld [vmem:[%s537 + $0x5c0] sm:$0xff]
    %v723 = vld [vmem:[%s537 + $0x5c8] sm:$0xff]
    %v724 = vld [vmem:[%s537 + $0x5d0] sm:$0xff]
    %v725 = vld [vmem:[%s537 + $0x5d8] sm:$0xff]
    %v726 = vld [vmem:[%s537 + $0x5e0] sm:$0xff]
    %v727 = vld [vmem:[%s537 + $0x5e8] sm:$0xff]
    %v728 = vld [vmem:[%s537 + $0x5f0] sm:$0xff]
    %v729 = vld [vmem:[%s537 + $0x5f8] sm:$0xff]
    %v730 = vld [vmem:[%s537 + $0x600] sm:$0xff]
    %v731 = vld [vmem:[%s537 + $0x608] sm:$0xff]
    %v732 = vld [vmem:[%s537 + $0x610] sm:$0xff]
    %v733 = vld [vmem:[%s537 + $0x618] sm:$0xff]
    %v734 = vld [vmem:[%s537 + $0x620] sm:$0xff]
    %v735 = vld [vmem:[%s537 + $0x628] sm:$0xff]
    %v736 = vld [vmem:[%s537 + $0x630] sm:$0xff]
    %v737 = vld [vmem:[%s537 + $0x638] sm:$0xff]
    %v738 = vld [vmem:[%s537 + $0x640] sm:$0xff]
    %v739 = vld [vmem:[%s537 + $0x648] sm:$0xff]
    %v740 = vld [vmem:[%s537 + $0x650] sm:$0xff]
    %v741 = vld [vmem:[%s537 + $0x658] sm:$0xff]
    %v742 = vld [vmem:[%s537 + $0x660] sm:$0xff]
    %v743 = vld [vmem:[%s537 + $0x668] sm:$0xff]
    %v744 = vld [vmem:[%s537 + $0x670] sm:$0xff]
    %v745 = vld [vmem:[%s537 + $0x678] sm:$0xff]
    %v746 = vld [vmem:[%s537 + $0x680] sm:$0xff]
    %v747 = vld [vmem:[%s537 + $0x688] sm:$0xff]
    %v748 = vld [vmem:[%s537 + $0x690] sm:$0xff]
    %v749 = vld [vmem:[%s537 + $0x698] sm:$0xff]
    %v750 = vld [vmem:[%s537 + $0x6a0] sm:$0xff]
    %v751 = vld [vmem:[%s537 + $0x6a8] sm:$0xff]
    %v752 = vld [vmem:[%s537 + $0x6b0] sm:$0xff]
    %v753 = vld [vmem:[%s537 + $0x6b8] sm:$0xff]
    %v754 = vld [vmem:[%s537 + $0x6c0] sm:$0xff]
    %v755 = vld [vmem:[%s537 + $0x6c8] sm:$0xff]
    %v756 = vld [vmem:[%s537 + $0x6d0] sm:$0xff]
    %v757 = vld [vmem:[%s537 + $0x6d8] sm:$0xff]
    %v758 = vld [vmem:[%s537 + $0x6e0] sm:$0xff]
    %v759 = vld [vmem:[%s537 + $0x6e8] sm:$0xff]
    %v760 = vld [vmem:[%s537 + $0x6f0] sm:$0xff]
    %v761 = vld [vmem:[%s537 + $0x6f8] sm:$0xff]
    %v762 = vld [vmem:[%s537 + $0x700] sm:$0xff]
    %v763 = vld [vmem:[%s537 + $0x708] sm:$0xff]
    %v764 = vld [vmem:[%s537 + $0x710] sm:$0xff]
    %v765 = vld [vmem:[%s537 + $0x718] sm:$0xff]
    %v766 = vld [vmem:[%s537 + $0x720] sm:$0xff]
    %v767 = vld [vmem:[%s537 + $0x728] sm:$0xff]
    %v768 = vld [vmem:[%s537 + $0x730] sm:$0xff]
    %v769 = vld [vmem:[%s537 + $0x738] sm:$0xff]
    %v770 = vld [vmem:[%s537 + $0x740] sm:$0xff]
    %v771 = vld [vmem:[%s537 + $0x748] sm:$0xff]
    %v772 = vld [vmem:[%s537 + $0x750] sm:$0xff]
    %v773 = vld [vmem:[%s537 + $0x758] sm:$0xff]
    %v774 = vld [vmem:[%s537 + $0x760] sm:$0xff]
    %v775 = vld [vmem:[%s537 + $0x768] sm:$0xff]
    %v776 = vld [vmem:[%s537 + $0x770] sm:$0xff]
    %v777 = vld [vmem:[%s537 + $0x778] sm:$0xff]
    %v778 = vld [vmem:[%s537 + $0x780] sm:$0xff]
    %v779 = vld [vmem:[%s537 + $0x788] sm:$0xff]
    %v780 = vld [vmem:[%s537 + $0x790] sm:$0xff]
    %v781 = vld [vmem:[%s537 + $0x798] sm:$0xff]
    %v782 = vld [vmem:[%s537 + $0x7a0] sm:$0xff]
    %v783 = vld [vmem:[%s537 + $0x7a8] sm:$0xff]
    %v784 = vld [vmem:[%s537 + $0x7b0] sm:$0xff]
    %v785 = vld [vmem:[%s537 + $0x7b8] sm:$0xff]
    %v786 = vld [vmem:[%s537 + $0x7c0] sm:$0xff]
    %v787 = vld [vmem:[%s537 + $0x7c8] sm:$0xff]
    %v788 = vld [vmem:[%s537 + $0x7d0] sm:$0xff]
    %v789 = vld [vmem:[%s537 + $0x7d8] sm:$0xff]
    %v790 = vld [vmem:[%s537 + $0x7e0] sm:$0xff]
    %v791 = vld [vmem:[%s537 + $0x7e8] sm:$0xff]
    %v792 = vld [vmem:[%s537 + $0x7f0] sm:$0xff]
    %v793 = vld [vmem:[%s537 + $0x7f8] sm:$0xff]
    %v794 = vld [vmem:[%s537 + $0x800] sm:$0xff]
    %v795 = vld [vmem:[%s537 + $0x808] sm:$0xff]
    %v796 = vld [vmem:[%s537 + $0x810] sm:$0xff]
    %v797 = vld [vmem:[%s537 + $0x818] sm:$0xff]
    %v798 = vld [vmem:[%s537 + $0x820] sm:$0xff]
    %v799 = vld [vmem:[%s537 + $0x828] sm:$0xff]
    %v800 = vld [vmem:[%s537 + $0x830] sm:$0xff]
    %v801 = vld [vmem:[%s537 + $0x838] sm:$0xff]
    %v802 = vld [vmem:[%s537 + $0x840] sm:$0xff]
    %v803 = vld [vmem:[%s537 + $0x848] sm:$0xff]
    %v804 = vld [vmem:[%s537 + $0x850] sm:$0xff]
    %v805 = vld [vmem:[%s537 + $0x858] sm:$0xff]
    %v806 = vld [vmem:[%s537 + $0x860] sm:$0xff]
    %v807 = vld [vmem:[%s537 + $0x868] sm:$0xff]
    %v808 = vld [vmem:[%s537 + $0x870] sm:$0xff]
    %v809 = vld [vmem:[%s537 + $0x878] sm:$0xff]
    %v810 = vld [vmem:[%s537 + $0x880] sm:$0xff]
    %v811 = vld [vmem:[%s537 + $0x888] sm:$0xff]
    %v812 = vld [vmem:[%s537 + $0x890] sm:$0xff]
    %v813 = vld [vmem:[%s537 + $0x898] sm:$0xff]
    %v814 = vld [vmem:[%s537 + $0x8a0] sm:$0xff]
    %v815 = vld [vmem:[%s537 + $0x8a8] sm:$0xff]
    %v816 = vld [vmem:[%s537 + $0x8b0] sm:$0xff]
    %v817 = vld [vmem:[%s537 + $0x8b8] sm:$0xff]
    %v818 = vld [vmem:[%s537 + $0x8c0] sm:$0xff]
    %v819 = vld [vmem:[%s537 + $0x8c8] sm:$0xff]
    %v820 = vld [vmem:[%s537 + $0x8d0] sm:$0xff]
    %v821 = vld [vmem:[%s537 + $0x8d8] sm:$0xff]
    %v822 = vld [vmem:[%s537 + $0x8e0] sm:$0xff]
    %v823 = vld [vmem:[%s537 + $0x8e8] sm:$0xff]
    %v824 = vld [vmem:[%s537 + $0x8f0] sm:$0xff]
    %v825 = vld [vmem:[%s537 + $0x8f8] sm:$0xff]
    %v826 = vld [vmem:[%s537 + $0x900] sm:$0xff]
    %v827 = vld [vmem:[%s537 + $0x908] sm:$0xff]
    %v828 = vld [vmem:[%s537 + $0x910] sm:$0xff]
    %v829 = vld [vmem:[%s537 + $0x918] sm:$0xff]
    %v830 = vld [vmem:[%s537 + $0x920] sm:$0xff]
    %v831 = vld [vmem:[%s537 + $0x928] sm:$0xff]
    %v832 = vld [vmem:[%s537 + $0x930] sm:$0xff]
    %v833 = vld [vmem:[%s537 + $0x938] sm:$0xff]
    %v834 = vld [vmem:[%s537 + $0x940] sm:$0xff]
    %v835 = vld [vmem:[%s537 + $0x948] sm:$0xff]
    %v836 = vld [vmem:[%s537 + $0x950] sm:$0xff]
    %v837 = vld [vmem:[%s537 + $0x958] sm:$0xff]
    %v838 = vld [vmem:[%s537 + $0x960] sm:$0xff]
    %v839 = vld [vmem:[%s537 + $0x968] sm:$0xff]
    %v840 = vld [vmem:[%s537 + $0x970] sm:$0xff]
    %v841 = vld [vmem:[%s537 + $0x978] sm:$0xff]
    %v842 = vld [vmem:[%s537 + $0x980] sm:$0xff]
    %v843 = vld [vmem:[%s537 + $0x988] sm:$0xff]
    %v844 = vld [vmem:[%s537 + $0x990] sm:$0xff]
    %v845 = vld [vmem:[%s537 + $0x998] sm:$0xff]
    %v846 = vld [vmem:[%s537 + $0x9a0] sm:$0xff]
    %v847 = vld [vmem:[%s537 + $0x9a8] sm:$0xff]
    %v848 = vld [vmem:[%s537 + $0x9b0] sm:$0xff]
    %v849 = vld [vmem:[%s537 + $0x9b8] sm:$0xff]
    %v850 = vld [vmem:[%s537 + $0x9c0] sm:$0xff]
    %v851 = vld [vmem:[%s537 + $0x9c8] sm:$0xff]
    %v852 = vld [vmem:[%s537 + $0x9d0] sm:$0xff]
    %v853 = vld [vmem:[%s537 + $0x9d8] sm:$0xff]
    %v854 = vld [vmem:[%s537 + $0x9e0] sm:$0xff]
    %v855 = vld [vmem:[%s537 + $0x9e8] sm:$0xff]
    %v856 = vld [vmem:[%s537 + $0x9f0] sm:$0xff]
    %v857 = vld [vmem:[%s537 + $0x9f8] sm:$0xff]
    %v858 = vld [vmem:[%s537 + $0xa00] sm:$0xff]
    %v859 = vld [vmem:[%s537 + $0xa08] sm:$0xff]
    %v860 = vld [vmem:[%s537 + $0xa10] sm:$0xff]
    %v861 = vld [vmem:[%s537 + $0xa18] sm:$0xff]
    %v862 = vld [vmem:[%s537 + $0xa20] sm:$0xff]
    %v863 = vld [vmem:[%s537 + $0xa28] sm:$0xff]
    %v864 = vld [vmem:[%s537 + $0xa30] sm:$0xff]
    %v865 = vld [vmem:[%s537 + $0xa38] sm:$0xff]
    %v866 = vld [vmem:[%s537 + $0xa40] sm:$0xff]
    %v867 = vld [vmem:[%s537 + $0xa48] sm:$0xff]
    %v868 = vld [vmem:[%s537 + $0xa50] sm:$0xff]
    %v869 = vld [vmem:[%s537 + $0xa58] sm:$0xff]
    %v870 = vld [vmem:[%s537 + $0xa60] sm:$0xff]
    %v871 = vld [vmem:[%s537 + $0xa68] sm:$0xff]
    %v872 = vld [vmem:[%s537 + $0xa70] sm:$0xff]
    %v873 = vld [vmem:[%s537 + $0xa78] sm:$0xff]
    %v874 = vld [vmem:[%s537 + $0xa80] sm:$0xff]
    %v875 = vld [vmem:[%s537 + $0xa88] sm:$0xff]
    %v876 = vld [vmem:[%s537 + $0xa90] sm:$0xff]
    %v877 = vld [vmem:[%s537 + $0xa98] sm:$0xff]
    %v878 = vld [vmem:[%s537 + $0xaa0] sm:$0xff]
    %v879 = vld [vmem:[%s537 + $0xaa8] sm:$0xff]
    %v880 = vld [vmem:[%s537 + $0xab0] sm:$0xff]
    %v881 = vld [vmem:[%s537 + $0xab8] sm:$0xff]
    %v882 = vld [vmem:[%s537 + $0xac0] sm:$0xff]
    %v883 = vld [vmem:[%s537 + $0xac8] sm:$0xff]
    %v884 = vld [vmem:[%s537 + $0xad0] sm:$0xff]
    %v885 = vld [vmem:[%s537 + $0xad8] sm:$0xff]
    %v886 = vld [vmem:[%s537 + $0xae0] sm:$0xff]
    %v887 = vld [vmem:[%s537 + $0xae8] sm:$0xff]
    %v888 = vld [vmem:[%s537 + $0xaf0] sm:$0xff]
    %v889 = vld [vmem:[%s537 + $0xaf8] sm:$0xff]
    %v890 = vld [vmem:[%s537 + $0xb00] sm:$0xff]
    %v891 = vld [vmem:[%s537 + $0xb08] sm:$0xff]
    %v892 = vld [vmem:[%s537 + $0xb10] sm:$0xff]
    %v893 = vld [vmem:[%s537 + $0xb18] sm:$0xff]
    %v894 = vld [vmem:[%s537 + $0xb20] sm:$0xff]
    %v895 = vld [vmem:[%s537 + $0xb28] sm:$0xff]
    %v896 = vld [vmem:[%s537 + $0xb30] sm:$0xff]
    %v897 = vld [vmem:[%s537 + $0xb38] sm:$0xff]
    %v898 = vld [vmem:[%s537 + $0xb40] sm:$0xff]
    %v899 = vld [vmem:[%s537 + $0xb48] sm:$0xff]
    %v900 = vld [vmem:[%s537 + $0xb50] sm:$0xff]
    %v901 = vld [vmem:[%s537 + $0xb58] sm:$0xff]
    %v902 = vld [vmem:[%s537 + $0xb60] sm:$0xff]
    %v903 = vld [vmem:[%s537 + $0xb68] sm:$0xff]
    %v904 = vld [vmem:[%s537 + $0xb70] sm:$0xff]
    %v905 = vld [vmem:[%s537 + $0xb78] sm:$0xff]
    %v906 = vld [vmem:[%s537 + $0xb80] sm:$0xff]
    %v907 = vld [vmem:[%s537 + $0xb88] sm:$0xff]
    %v908 = vld [vmem:[%s537 + $0xb90] sm:$0xff]
    %v909 = vld [vmem:[%s537 + $0xb98] sm:$0xff]
    %v910 = vld [vmem:[%s537 + $0xba0] sm:$0xff]
    %v911 = vld [vmem:[%s537 + $0xba8] sm:$0xff]
    %v912 = vld [vmem:[%s537 + $0xbb0] sm:$0xff]
    %v913 = vld [vmem:[%s537 + $0xbb8] sm:$0xff]
    %v914 = vld [vmem:[%s537 + $0xbc0] sm:$0xff]
    %v915 = vld [vmem:[%s537 + $0xbc8] sm:$0xff]
    %v916 = vld [vmem:[%s537 + $0xbd0] sm:$0xff]
    %v917 = vld [vmem:[%s537 + $0xbd8] sm:$0xff]
    %v918 = vld [vmem:[%s537 + $0xbe0] sm:$0xff]
    %v919 = vld [vmem:[%s537 + $0xbe8] sm:$0xff]
    %v920 = vld [vmem:[%s537 + $0xbf0] sm:$0xff]
    %v921 = vld [vmem:[%s537 + $0xbf8] sm:$0xff]
    %v970 = vunpack.c.l.b16 %v489
    %v971 = vunpack.c.h.b16 %v489
    %v972 = vunpack.c.l.b16 %v490
    %v973 = vunpack.c.h.b16 %v490
    %v974 = vunpack.c.l.b16 %v491
    %v975 = vunpack.c.h.b16 %v491
    %v976 = vunpack.c.l.b16 %v492
    %v977 = vunpack.c.h.b16 %v492
    %v978 = vunpack.c.l.b16 %v493
    %v979 = vunpack.c.h.b16 %v493
    %v980 = vunpack.c.l.b16 %v494
    %v981 = vunpack.c.h.b16 %v494
    %v982 = vunpack.c.l.b16 %v495
    %v983 = vunpack.c.h.b16 %v495
    %v984 = vunpack.c.l.b16 %v496
    %v985 = vunpack.c.h.b16 %v496
    %v986 = vunpack.c.l.b16 %v497
    %v987 = vunpack.c.h.b16 %v497
    %v988 = vunpack.c.l.b16 %v498
    %v989 = vunpack.c.h.b16 %v498
    %v990 = vunpack.c.l.b16 %v499
    %v991 = vunpack.c.h.b16 %v499
    %v992 = vunpack.c.l.b16 %v500
    %v993 = vunpack.c.h.b16 %v500
    %v994 = vunpack.c.l.b16 %v501
    %v995 = vunpack.c.h.b16 %v501
    %v996 = vunpack.c.l.b16 %v502
    %v997 = vunpack.c.h.b16 %v502
    %v998 = vunpack.c.l.b16 %v503
    %v999 = vunpack.c.h.b16 %v503
    %v1000 = vunpack.c.l.b16 %v504
    %v1001 = vunpack.c.h.b16 %v504
    %v1002 = vunpack.c.l.b16 %v505
    %v1003 = vunpack.c.h.b16 %v505
    %v1004 = vunpack.c.l.b16 %v506
    %v1005 = vunpack.c.h.b16 %v506
    %v1006 = vunpack.c.l.b16 %v507
    %v1007 = vunpack.c.h.b16 %v507
    %v1008 = vunpack.c.l.b16 %v508
    %v1009 = vunpack.c.h.b16 %v508
    %v1010 = vunpack.c.l.b16 %v509
    %v1011 = vunpack.c.h.b16 %v509
    %v1012 = vunpack.c.l.b16 %v510
    %v1013 = vunpack.c.h.b16 %v510
    %v1014 = vunpack.c.l.b16 %v511
    %v1015 = vunpack.c.h.b16 %v511
    %v1016 = vunpack.c.l.b16 %v512
    %v1017 = vunpack.c.h.b16 %v512
    %v1018 = vunpack.c.l.b16 %v513
    %v1019 = vunpack.c.h.b16 %v513
    %v1020 = vunpack.c.l.b16 %v514
    %v1021 = vunpack.c.h.b16 %v514
    %v1022 = vunpack.c.l.b16 %v515
    %v1023 = vunpack.c.h.b16 %v515
    %v1024 = vunpack.c.l.b16 %v516
    %v1025 = vunpack.c.h.b16 %v516
    %v1026 = vunpack.c.l.b16 %v517
    %v1027 = vunpack.c.h.b16 %v517
    %v1028 = vunpack.c.l.b16 %v518
    %v1029 = vunpack.c.h.b16 %v518
    %v1030 = vunpack.c.l.b16 %v519
    %v1031 = vunpack.c.h.b16 %v519
    %v1032 = vunpack.c.l.b16 %v520
    %v1033 = vunpack.c.h.b16 %v520
    %v1034 = vunpack.c.l.b16 %v521
    %v1035 = vunpack.c.h.b16 %v521
    %v1036 = vunpack.c.l.b16 %v522
    %v1037 = vunpack.c.h.b16 %v522
    %v1038 = vunpack.c.l.b16 %v523
    %v1039 = vunpack.c.h.b16 %v523
    %v1040 = vunpack.c.l.b16 %v524
    %v1041 = vunpack.c.h.b16 %v524
    %v1042 = vunpack.c.l.b16 %v525
    %v1043 = vunpack.c.h.b16 %v525
    %v1044 = vunpack.c.l.b16 %v526
    %v1045 = vunpack.c.h.b16 %v526
    %v1046 = vunpack.c.l.b16 %v527
    %v1047 = vunpack.c.h.b16 %v527
    %v1048 = vunpack.c.l.b16 %v528
    %v1049 = vunpack.c.h.b16 %v528
    %v1050 = vunpack.c.l.b16 %v529
    %v1051 = vunpack.c.h.b16 %v529
    %v1052 = vunpack.c.l.b16 %v530
    %v1053 = vunpack.c.h.b16 %v530
    %v1054 = vunpack.c.l.b16 %v531
    %v1055 = vunpack.c.h.b16 %v531
    %v1056 = vunpack.c.l.b16 %v532
    %v1057 = vunpack.c.h.b16 %v532
    %v1058 = vunpack.c.l.b16 %v533
    %v1059 = vunpack.c.h.b16 %v533
    %v1060 = vunpack.c.l.b16 %v534
    %v1061 = vunpack.c.h.b16 %v534
    %v1062 = vunpack.c.l.b16 %v535
    %v1063 = vunpack.c.h.b16 %v535
    %v1064 = vunpack.c.l.b16 %v536
    %v1065 = vunpack.c.h.b16 %v536
    %v1066 = vpack.c.b16 %v982, %v970
    %v1067 = vpack.c.b16 %v983, %v971
    %v1068 = vpack.c.b16 %v984, %v972
    %v1069 = vpack.c.b16 %v985, %v973
    %v1070 = vpack.c.b16 %v986, %v974
    %v1071 = vpack.c.b16 %v987, %v975
    %v1072 = vpack.c.b16 %v988, %v976
    %v1073 = vpack.c.b16 %v989, %v977
    %v1074 = vpack.c.b16 %v990, %v978
    %v1075 = vpack.c.b16 %v991, %v979
    %v1076 = vpack.c.b16 %v992, %v980
    %v1077 = vpack.c.b16 %v993, %v981
    %v1078 = vpack.c.b16 %v1006, %v994
    %v1079 = vpack.c.b16 %v1007, %v995
    %v1080 = vpack.c.b16 %v1008, %v996
    %v1081 = vpack.c.b16 %v1009, %v997
    %v1082 = vpack.c.b16 %v1010, %v998
    %v1083 = vpack.c.b16 %v1011, %v999
    %v1084 = vpack.c.b16 %v1012, %v1000
    %v1085 = vpack.c.b16 %v1013, %v1001
    %v1086 = vpack.c.b16 %v1014, %v1002
    %v1087 = vpack.c.b16 %v1015, %v1003
    %v1088 = vpack.c.b16 %v1016, %v1004
    %v1089 = vpack.c.b16 %v1017, %v1005
    %v1090 = vpack.c.b16 %v1030, %v1018
    %v1091 = vpack.c.b16 %v1031, %v1019
    %v1092 = vpack.c.b16 %v1032, %v1020
    %v1093 = vpack.c.b16 %v1033, %v1021
    %v1094 = vpack.c.b16 %v1034, %v1022
    %v1095 = vpack.c.b16 %v1035, %v1023
    %v1096 = vpack.c.b16 %v1036, %v1024
    %v1097 = vpack.c.b16 %v1037, %v1025
    %v1098 = vpack.c.b16 %v1038, %v1026
    %v1099 = vpack.c.b16 %v1039, %v1027
    %v1100 = vpack.c.b16 %v1040, %v1028
    %v1101 = vpack.c.b16 %v1041, %v1029
    %v1102 = vpack.c.b16 %v1054, %v1042
    %v1103 = vpack.c.b16 %v1055, %v1043
    %v1104 = vpack.c.b16 %v1056, %v1044
    %v1105 = vpack.c.b16 %v1057, %v1045
    %v1106 = vpack.c.b16 %v1058, %v1046
    %v1107 = vpack.c.b16 %v1059, %v1047
    %v1108 = vpack.c.b16 %v1060, %v1048
    %v1109 = vpack.c.b16 %v1061, %v1049
    %v1110 = vpack.c.b16 %v1062, %v1050
    %v1111 = vpack.c.b16 %v1063, %v1051
    %v1112 = vpack.c.b16 %v1064, %v1052
    %v1113 = vpack.c.b16 %v1065, %v1053
    %v1546 = vunpack.c.l.b16 %v538
    %v1547 = vunpack.c.h.b16 %v538
    %v1548 = vunpack.c.l.b16 %v539
    %v1549 = vunpack.c.h.b16 %v539
    %v1550 = vunpack.c.l.b16 %v540
    %v1551 = vunpack.c.h.b16 %v540
    %v1552 = vunpack.c.l.b16 %v541
    %v1553 = vunpack.c.h.b16 %v541
    %v1554 = vunpack.c.l.b16 %v542
    %v1555 = vunpack.c.h.b16 %v542
    %v1556 = vunpack.c.l.b16 %v543
    %v1557 = vunpack.c.h.b16 %v543
    %v1558 = vunpack.c.l.b16 %v544
    %v1559 = vunpack.c.h.b16 %v544
    %v1560 = vunpack.c.l.b16 %v545
    %v1561 = vunpack.c.h.b16 %v545
    %v1562 = vunpack.c.l.b16 %v546
    %v1563 = vunpack.c.h.b16 %v546
    %v1564 = vunpack.c.l.b16 %v547
    %v1565 = vunpack.c.h.b16 %v547
    %v1566 = vunpack.c.l.b16 %v548
    %v1567 = vunpack.c.h.b16 %v548
    %v1568 = vunpack.c.l.b16 %v549
    %v1569 = vunpack.c.h.b16 %v549
    %v1570 = vunpack.c.l.b16 %v550
    %v1571 = vunpack.c.h.b16 %v550
    %v1572 = vunpack.c.l.b16 %v551
    %v1573 = vunpack.c.h.b16 %v551
    %v1574 = vunpack.c.l.b16 %v552
    %v1575 = vunpack.c.h.b16 %v552
    %v1576 = vunpack.c.l.b16 %v553
    %v1577 = vunpack.c.h.b16 %v553
    %v1578 = vunpack.c.l.b16 %v554
    %v1579 = vunpack.c.h.b16 %v554
    %v1580 = vunpack.c.l.b16 %v555
    %v1581 = vunpack.c.h.b16 %v555
    %v1582 = vunpack.c.l.b16 %v556
    %v1583 = vunpack.c.h.b16 %v556
    %v1584 = vunpack.c.l.b16 %v557
    %v1585 = vunpack.c.h.b16 %v557
    %v1586 = vunpack.c.l.b16 %v558
    %v1587 = vunpack.c.h.b16 %v558
    %v1588 = vunpack.c.l.b16 %v559
    %v1589 = vunpack.c.h.b16 %v559
    %v1590 = vunpack.c.l.b16 %v560
    %v1591 = vunpack.c.h.b16 %v560
    %v1592 = vunpack.c.l.b16 %v561
    %v1593 = vunpack.c.h.b16 %v561
    %v1594 = vunpack.c.l.b16 %v562
    %v1595 = vunpack.c.h.b16 %v562
    %v1596 = vunpack.c.l.b16 %v563
    %v1597 = vunpack.c.h.b16 %v563
    %v1598 = vunpack.c.l.b16 %v564
    %v1599 = vunpack.c.h.b16 %v564
    %v1600 = vunpack.c.l.b16 %v565
    %v1601 = vunpack.c.h.b16 %v565
    %v1602 = vunpack.c.l.b16 %v566
    %v1603 = vunpack.c.h.b16 %v566
    %v1604 = vunpack.c.l.b16 %v567
    %v1605 = vunpack.c.h.b16 %v567
    %v1606 = vunpack.c.l.b16 %v568
    %v1607 = vunpack.c.h.b16 %v568
    %v1608 = vunpack.c.l.b16 %v569
    %v1609 = vunpack.c.h.b16 %v569
    %v1610 = vunpack.c.l.b16 %v570
    %v1611 = vunpack.c.h.b16 %v570
    %v1612 = vunpack.c.l.b16 %v571
    %v1613 = vunpack.c.h.b16 %v571
    %v1614 = vunpack.c.l.b16 %v572
    %v1615 = vunpack.c.h.b16 %v572
    %v1616 = vunpack.c.l.b16 %v573
    %v1617 = vunpack.c.h.b16 %v573
    %v1618 = vunpack.c.l.b16 %v574
    %v1619 = vunpack.c.h.b16 %v574
    %v1620 = vunpack.c.l.b16 %v575
    %v1621 = vunpack.c.h.b16 %v575
    %v1622 = vunpack.c.l.b16 %v576
    %v1623 = vunpack.c.h.b16 %v576
    %v1624 = vunpack.c.l.b16 %v577
    %v1625 = vunpack.c.h.b16 %v577
    %v1626 = vunpack.c.l.b16 %v578
    %v1627 = vunpack.c.h.b16 %v578
    %v1628 = vunpack.c.l.b16 %v579
    %v1629 = vunpack.c.h.b16 %v579
    %v1630 = vunpack.c.l.b16 %v580
    %v1631 = vunpack.c.h.b16 %v580
    %v1632 = vunpack.c.l.b16 %v581
    %v1633 = vunpack.c.h.b16 %v581
    %v1634 = vunpack.c.l.b16 %v582
    %v1635 = vunpack.c.h.b16 %v582
    %v1636 = vunpack.c.l.b16 %v583
    %v1637 = vunpack.c.h.b16 %v583
    %v1638 = vunpack.c.l.b16 %v584
    %v1639 = vunpack.c.h.b16 %v584
    %v1640 = vunpack.c.l.b16 %v585
    %v1641 = vunpack.c.h.b16 %v585
    %v1642 = vunpack.c.l.b16 %v586
    %v1643 = vunpack.c.h.b16 %v586
    %v1644 = vunpack.c.l.b16 %v587
    %v1645 = vunpack.c.h.b16 %v587
    %v1646 = vunpack.c.l.b16 %v588
    %v1647 = vunpack.c.h.b16 %v588
    %v1648 = vunpack.c.l.b16 %v589
    %v1649 = vunpack.c.h.b16 %v589
    %v1650 = vunpack.c.l.b16 %v590
    %v1651 = vunpack.c.h.b16 %v590
    %v1652 = vunpack.c.l.b16 %v591
    %v1653 = vunpack.c.h.b16 %v591
    %v1654 = vunpack.c.l.b16 %v592
    %v1655 = vunpack.c.h.b16 %v592
    %v1656 = vunpack.c.l.b16 %v593
    %v1657 = vunpack.c.h.b16 %v593
    %v1658 = vunpack.c.l.b16 %v594
    %v1659 = vunpack.c.h.b16 %v594
    %v1660 = vunpack.c.l.b16 %v595
    %v1661 = vunpack.c.h.b16 %v595
    %v1662 = vunpack.c.l.b16 %v596
    %v1663 = vunpack.c.h.b16 %v596
    %v1664 = vunpack.c.l.b16 %v597
    %v1665 = vunpack.c.h.b16 %v597
    %v1666 = vunpack.c.l.b16 %v598
    %v1667 = vunpack.c.h.b16 %v598
    %v1668 = vunpack.c.l.b16 %v599
    %v1669 = vunpack.c.h.b16 %v599
    %v1670 = vunpack.c.l.b16 %v600
    %v1671 = vunpack.c.h.b16 %v600
    %v1672 = vunpack.c.l.b16 %v601
    %v1673 = vunpack.c.h.b16 %v601
    %v1674 = vunpack.c.l.b16 %v602
    %v1675 = vunpack.c.h.b16 %v602
    %v1676 = vunpack.c.l.b16 %v603
    %v1677 = vunpack.c.h.b16 %v603
    %v1678 = vunpack.c.l.b16 %v604
    %v1679 = vunpack.c.h.b16 %v604
    %v1680 = vunpack.c.l.b16 %v605
    %v1681 = vunpack.c.h.b16 %v605
    %v1682 = vunpack.c.l.b16 %v606
    %v1683 = vunpack.c.h.b16 %v606
    %v1684 = vunpack.c.l.b16 %v607
    %v1685 = vunpack.c.h.b16 %v607
    %v1686 = vunpack.c.l.b16 %v608
    %v1687 = vunpack.c.h.b16 %v608
    %v1688 = vunpack.c.l.b16 %v609
    %v1689 = vunpack.c.h.b16 %v609
    %v1690 = vunpack.c.l.b16 %v610
    %v1691 = vunpack.c.h.b16 %v610
    %v1692 = vunpack.c.l.b16 %v611
    %v1693 = vunpack.c.h.b16 %v611
    %v1694 = vunpack.c.l.b16 %v612
    %v1695 = vunpack.c.h.b16 %v612
    %v1696 = vunpack.c.l.b16 %v613
    %v1697 = vunpack.c.h.b16 %v613
    %v1698 = vunpack.c.l.b16 %v614
    %v1699 = vunpack.c.h.b16 %v614
    %v1700 = vunpack.c.l.b16 %v615
    %v1701 = vunpack.c.h.b16 %v615
    %v1702 = vunpack.c.l.b16 %v616
    %v1703 = vunpack.c.h.b16 %v616
    %v1704 = vunpack.c.l.b16 %v617
    %v1705 = vunpack.c.h.b16 %v617
    %v1706 = vunpack.c.l.b16 %v618
    %v1707 = vunpack.c.h.b16 %v618
    %v1708 = vunpack.c.l.b16 %v619
    %v1709 = vunpack.c.h.b16 %v619
    %v1710 = vunpack.c.l.b16 %v620
    %v1711 = vunpack.c.h.b16 %v620
    %v1712 = vunpack.c.l.b16 %v621
    %v1713 = vunpack.c.h.b16 %v621
    %v1714 = vunpack.c.l.b16 %v622
    %v1715 = vunpack.c.h.b16 %v622
    %v1716 = vunpack.c.l.b16 %v623
    %v1717 = vunpack.c.h.b16 %v623
    %v1718 = vunpack.c.l.b16 %v624
    %v1719 = vunpack.c.h.b16 %v624
    %v1720 = vunpack.c.l.b16 %v625
    %v1721 = vunpack.c.h.b16 %v625
    %v1722 = vunpack.c.l.b16 %v626
    %v1723 = vunpack.c.h.b16 %v626
    %v1724 = vunpack.c.l.b16 %v627
    %v1725 = vunpack.c.h.b16 %v627
    %v1726 = vunpack.c.l.b16 %v628
    %v1727 = vunpack.c.h.b16 %v628
    %v1728 = vunpack.c.l.b16 %v629
    %v1729 = vunpack.c.h.b16 %v629
    %v1730 = vunpack.c.l.b16 %v630
    %v1731 = vunpack.c.h.b16 %v630
    %v1732 = vunpack.c.l.b16 %v631
    %v1733 = vunpack.c.h.b16 %v631
    %v1734 = vunpack.c.l.b16 %v632
    %v1735 = vunpack.c.h.b16 %v632
    %v1736 = vunpack.c.l.b16 %v633
    %v1737 = vunpack.c.h.b16 %v633
    %v1738 = vunpack.c.l.b16 %v634
    %v1739 = vunpack.c.h.b16 %v634
    %v1740 = vunpack.c.l.b16 %v635
    %v1741 = vunpack.c.h.b16 %v635
    %v1742 = vunpack.c.l.b16 %v636
    %v1743 = vunpack.c.h.b16 %v636
    %v1744 = vunpack.c.l.b16 %v637
    %v1745 = vunpack.c.h.b16 %v637
    %v1746 = vunpack.c.l.b16 %v638
    %v1747 = vunpack.c.h.b16 %v638
    %v1748 = vunpack.c.l.b16 %v639
    %v1749 = vunpack.c.h.b16 %v639
    %v1750 = vunpack.c.l.b16 %v640
    %v1751 = vunpack.c.h.b16 %v640
    %v1752 = vunpack.c.l.b16 %v641
    %v1753 = vunpack.c.h.b16 %v641
    %v1754 = vunpack.c.l.b16 %v642
    %v1755 = vunpack.c.h.b16 %v642
    %v1756 = vunpack.c.l.b16 %v643
    %v1757 = vunpack.c.h.b16 %v643
    %v1758 = vunpack.c.l.b16 %v644
    %v1759 = vunpack.c.h.b16 %v644
    %v1760 = vunpack.c.l.b16 %v645
    %v1761 = vunpack.c.h.b16 %v645
    %v1762 = vunpack.c.l.b16 %v646
    %v1763 = vunpack.c.h.b16 %v646
    %v1764 = vunpack.c.l.b16 %v647
    %v1765 = vunpack.c.h.b16 %v647
    %v1766 = vunpack.c.l.b16 %v648
    %v1767 = vunpack.c.h.b16 %v648
    %v1768 = vunpack.c.l.b16 %v649
    %v1769 = vunpack.c.h.b16 %v649
    %v1770 = vunpack.c.l.b16 %v650
    %v1771 = vunpack.c.h.b16 %v650
    %v1772 = vunpack.c.l.b16 %v651
    %v1773 = vunpack.c.h.b16 %v651
    %v1774 = vunpack.c.l.b16 %v652
    %v1775 = vunpack.c.h.b16 %v652
    %v1776 = vunpack.c.l.b16 %v653
    %v1777 = vunpack.c.h.b16 %v653
    %v1778 = vunpack.c.l.b16 %v654
    %v1779 = vunpack.c.h.b16 %v654
    %v1780 = vunpack.c.l.b16 %v655
    %v1781 = vunpack.c.h.b16 %v655
    %v1782 = vunpack.c.l.b16 %v656
    %v1783 = vunpack.c.h.b16 %v656
    %v1784 = vunpack.c.l.b16 %v657
    %v1785 = vunpack.c.h.b16 %v657
    %v1786 = vunpack.c.l.b16 %v658
    %v1787 = vunpack.c.h.b16 %v658
    %v1788 = vunpack.c.l.b16 %v659
    %v1789 = vunpack.c.h.b16 %v659
    %v1790 = vunpack.c.l.b16 %v660
    %v1791 = vunpack.c.h.b16 %v660
    %v1792 = vunpack.c.l.b16 %v661
    %v1793 = vunpack.c.h.b16 %v661
    %v1794 = vunpack.c.l.b16 %v662
    %v1795 = vunpack.c.h.b16 %v662
    %v1796 = vunpack.c.l.b16 %v663
    %v1797 = vunpack.c.h.b16 %v663
    %v1798 = vunpack.c.l.b16 %v664
    %v1799 = vunpack.c.h.b16 %v664
    %v1800 = vunpack.c.l.b16 %v665
    %v1801 = vunpack.c.h.b16 %v665
    %v1802 = vunpack.c.l.b16 %v666
    %v1803 = vunpack.c.h.b16 %v666
    %v1804 = vunpack.c.l.b16 %v667
    %v1805 = vunpack.c.h.b16 %v667
    %v1806 = vunpack.c.l.b16 %v668
    %v1807 = vunpack.c.h.b16 %v668
    %v1808 = vunpack.c.l.b16 %v669
    %v1809 = vunpack.c.h.b16 %v669
    %v1810 = vunpack.c.l.b16 %v670
    %v1811 = vunpack.c.h.b16 %v670
    %v1812 = vunpack.c.l.b16 %v671
    %v1813 = vunpack.c.h.b16 %v671
    %v1814 = vunpack.c.l.b16 %v672
    %v1815 = vunpack.c.h.b16 %v672
    %v1816 = vunpack.c.l.b16 %v673
    %v1817 = vunpack.c.h.b16 %v673
    %v1818 = vunpack.c.l.b16 %v674
    %v1819 = vunpack.c.h.b16 %v674
    %v1820 = vunpack.c.l.b16 %v675
    %v1821 = vunpack.c.h.b16 %v675
    %v1822 = vunpack.c.l.b16 %v676
    %v1823 = vunpack.c.h.b16 %v676
    %v1824 = vunpack.c.l.b16 %v677
    %v1825 = vunpack.c.h.b16 %v677
    %v1826 = vunpack.c.l.b16 %v678
    %v1827 = vunpack.c.h.b16 %v678
    %v1828 = vunpack.c.l.b16 %v679
    %v1829 = vunpack.c.h.b16 %v679
    %v1830 = vunpack.c.l.b16 %v680
    %v1831 = vunpack.c.h.b16 %v680
    %v1832 = vunpack.c.l.b16 %v681
    %v1833 = vunpack.c.h.b16 %v681
    %v1834 = vunpack.c.l.b16 %v682
    %v1835 = vunpack.c.h.b16 %v682
    %v1836 = vunpack.c.l.b16 %v683
    %v1837 = vunpack.c.h.b16 %v683
    %v1838 = vunpack.c.l.b16 %v684
    %v1839 = vunpack.c.h.b16 %v684
    %v1840 = vunpack.c.l.b16 %v685
    %v1841 = vunpack.c.h.b16 %v685
    %v1842 = vunpack.c.l.b16 %v686
    %v1843 = vunpack.c.h.b16 %v686
    %v1844 = vunpack.c.l.b16 %v687
    %v1845 = vunpack.c.h.b16 %v687
    %v1846 = vunpack.c.l.b16 %v688
    %v1847 = vunpack.c.h.b16 %v688
    %v1848 = vunpack.c.l.b16 %v689
    %v1849 = vunpack.c.h.b16 %v689
    %v1850 = vunpack.c.l.b16 %v690
    %v1851 = vunpack.c.h.b16 %v690
    %v1852 = vunpack.c.l.b16 %v691
    %v1853 = vunpack.c.h.b16 %v691
    %v1854 = vunpack.c.l.b16 %v692
    %v1855 = vunpack.c.h.b16 %v692
    %v1856 = vunpack.c.l.b16 %v693
    %v1857 = vunpack.c.h.b16 %v693
    %v1858 = vunpack.c.l.b16 %v694
    %v1859 = vunpack.c.h.b16 %v694
    %v1860 = vunpack.c.l.b16 %v695
    %v1861 = vunpack.c.h.b16 %v695
    %v1862 = vunpack.c.l.b16 %v696
    %v1863 = vunpack.c.h.b16 %v696
    %v1864 = vunpack.c.l.b16 %v697
    %v1865 = vunpack.c.h.b16 %v697
    %v1866 = vunpack.c.l.b16 %v698
    %v1867 = vunpack.c.h.b16 %v698
    %v1868 = vunpack.c.l.b16 %v699
    %v1869 = vunpack.c.h.b16 %v699
    %v1870 = vunpack.c.l.b16 %v700
    %v1871 = vunpack.c.h.b16 %v700
    %v1872 = vunpack.c.l.b16 %v701
    %v1873 = vunpack.c.h.b16 %v701
    %v1874 = vunpack.c.l.b16 %v702
    %v1875 = vunpack.c.h.b16 %v702
    %v1876 = vunpack.c.l.b16 %v703
    %v1877 = vunpack.c.h.b16 %v703
    %v1878 = vunpack.c.l.b16 %v704
    %v1879 = vunpack.c.h.b16 %v704
    %v1880 = vunpack.c.l.b16 %v705
    %v1881 = vunpack.c.h.b16 %v705
    %v1882 = vunpack.c.l.b16 %v706
    %v1883 = vunpack.c.h.b16 %v706
    %v1884 = vunpack.c.l.b16 %v707
    %v1885 = vunpack.c.h.b16 %v707
    %v1886 = vunpack.c.l.b16 %v708
    %v1887 = vunpack.c.h.b16 %v708
    %v1888 = vunpack.c.l.b16 %v709
    %v1889 = vunpack.c.h.b16 %v709
    %v1890 = vunpack.c.l.b16 %v710
    %v1891 = vunpack.c.h.b16 %v710
    %v1892 = vunpack.c.l.b16 %v711
    %v1893 = vunpack.c.h.b16 %v711
    %v1894 = vunpack.c.l.b16 %v712
    %v1895 = vunpack.c.h.b16 %v712
    %v1896 = vunpack.c.l.b16 %v713
    %v1897 = vunpack.c.h.b16 %v713
    %v1898 = vunpack.c.l.b16 %v714
    %v1899 = vunpack.c.h.b16 %v714
    %v1900 = vunpack.c.l.b16 %v715
    %v1901 = vunpack.c.h.b16 %v715
    %v1902 = vunpack.c.l.b16 %v716
    %v1903 = vunpack.c.h.b16 %v716
    %v1904 = vunpack.c.l.b16 %v717
    %v1905 = vunpack.c.h.b16 %v717
    %v1906 = vunpack.c.l.b16 %v718
    %v1907 = vunpack.c.h.b16 %v718
    %v1908 = vunpack.c.l.b16 %v719
    %v1909 = vunpack.c.h.b16 %v719
    %v1910 = vunpack.c.l.b16 %v720
    %v1911 = vunpack.c.h.b16 %v720
    %v1912 = vunpack.c.l.b16 %v721
    %v1913 = vunpack.c.h.b16 %v721
    %v1914 = vunpack.c.l.b16 %v722
    %v1915 = vunpack.c.h.b16 %v722
    %v1916 = vunpack.c.l.b16 %v723
    %v1917 = vunpack.c.h.b16 %v723
    %v1918 = vunpack.c.l.b16 %v724
    %v1919 = vunpack.c.h.b16 %v724
    %v1920 = vunpack.c.l.b16 %v725
    %v1921 = vunpack.c.h.b16 %v725
    %v1922 = vunpack.c.l.b16 %v726
    %v1923 = vunpack.c.h.b16 %v726
    %v1924 = vunpack.c.l.b16 %v727
    %v1925 = vunpack.c.h.b16 %v727
    %v1926 = vunpack.c.l.b16 %v728
    %v1927 = vunpack.c.h.b16 %v728
    %v1928 = vunpack.c.l.b16 %v729
    %v1929 = vunpack.c.h.b16 %v729
    %v1930 = vunpack.c.l.b16 %v730
    %v1931 = vunpack.c.h.b16 %v730
    %v1932 = vunpack.c.l.b16 %v731
    %v1933 = vunpack.c.h.b16 %v731
    %v1934 = vunpack.c.l.b16 %v732
    %v1935 = vunpack.c.h.b16 %v732
    %v1936 = vunpack.c.l.b16 %v733
    %v1937 = vunpack.c.h.b16 %v733
    %v1938 = vunpack.c.l.b16 %v734
    %v1939 = vunpack.c.h.b16 %v734
    %v1940 = vunpack.c.l.b16 %v735
    %v1941 = vunpack.c.h.b16 %v735
    %v1942 = vunpack.c.l.b16 %v736
    %v1943 = vunpack.c.h.b16 %v736
    %v1944 = vunpack.c.l.b16 %v737
    %v1945 = vunpack.c.h.b16 %v737
    %v1946 = vunpack.c.l.b16 %v738
    %v1947 = vunpack.c.h.b16 %v738
    %v1948 = vunpack.c.l.b16 %v739
    %v1949 = vunpack.c.h.b16 %v739
    %v1950 = vunpack.c.l.b16 %v740
    %v1951 = vunpack.c.h.b16 %v740
    %v1952 = vunpack.c.l.b16 %v741
    %v1953 = vunpack.c.h.b16 %v741
    %v1954 = vunpack.c.l.b16 %v742
    %v1955 = vunpack.c.h.b16 %v742
    %v1956 = vunpack.c.l.b16 %v743
    %v1957 = vunpack.c.h.b16 %v743
    %v1958 = vunpack.c.l.b16 %v744
    %v1959 = vunpack.c.h.b16 %v744
    %v1960 = vunpack.c.l.b16 %v745
    %v1961 = vunpack.c.h.b16 %v745
    %v1962 = vunpack.c.l.b16 %v746
    %v1963 = vunpack.c.h.b16 %v746
    %v1964 = vunpack.c.l.b16 %v747
    %v1965 = vunpack.c.h.b16 %v747
    %v1966 = vunpack.c.l.b16 %v748
    %v1967 = vunpack.c.h.b16 %v748
    %v1968 = vunpack.c.l.b16 %v749
    %v1969 = vunpack.c.h.b16 %v749
    %v1970 = vunpack.c.l.b16 %v750
    %v1971 = vunpack.c.h.b16 %v750
    %v1972 = vunpack.c.l.b16 %v751
    %v1973 = vunpack.c.h.b16 %v751
    %v1974 = vunpack.c.l.b16 %v752
    %v1975 = vunpack.c.h.b16 %v752
    %v1976 = vunpack.c.l.b16 %v753
    %v1977 = vunpack.c.h.b16 %v753
    %v1978 = vunpack.c.l.b16 %v754
    %v1979 = vunpack.c.h.b16 %v754
    %v1980 = vunpack.c.l.b16 %v755
    %v1981 = vunpack.c.h.b16 %v755
    %v1982 = vunpack.c.l.b16 %v756
    %v1983 = vunpack.c.h.b16 %v756
    %v1984 = vunpack.c.l.b16 %v757
    %v1985 = vunpack.c.h.b16 %v757
    %v1986 = vunpack.c.l.b16 %v758
    %v1987 = vunpack.c.h.b16 %v758
    %v1988 = vunpack.c.l.b16 %v759
    %v1989 = vunpack.c.h.b16 %v759
    %v1990 = vunpack.c.l.b16 %v760
    %v1991 = vunpack.c.h.b16 %v760
    %v1992 = vunpack.c.l.b16 %v761
    %v1993 = vunpack.c.h.b16 %v761
    %v1994 = vunpack.c.l.b16 %v762
    %v1995 = vunpack.c.h.b16 %v762
    %v1996 = vunpack.c.l.b16 %v763
    %v1997 = vunpack.c.h.b16 %v763
    %v1998 = vunpack.c.l.b16 %v764
    %v1999 = vunpack.c.h.b16 %v764
    %v2000 = vunpack.c.l.b16 %v765
    %v2001 = vunpack.c.h.b16 %v765
    %v2002 = vunpack.c.l.b16 %v766
    %v2003 = vunpack.c.h.b16 %v766
    %v2004 = vunpack.c.l.b16 %v767
    %v2005 = vunpack.c.h.b16 %v767
    %v2006 = vunpack.c.l.b16 %v768
    %v2007 = vunpack.c.h.b16 %v768
    %v2008 = vunpack.c.l.b16 %v769
    %v2009 = vunpack.c.h.b16 %v769
    %v2010 = vunpack.c.l.b16 %v770
    %v2011 = vunpack.c.h.b16 %v770
    %v2012 = vunpack.c.l.b16 %v771
    %v2013 = vunpack.c.h.b16 %v771
    %v2014 = vunpack.c.l.b16 %v772
    %v2015 = vunpack.c.h.b16 %v772
    %v2016 = vunpack.c.l.b16 %v773
    %v2017 = vunpack.c.h.b16 %v773
    %v2018 = vunpack.c.l.b16 %v774
    %v2019 = vunpack.c.h.b16 %v774
    %v2020 = vunpack.c.l.b16 %v775
    %v2021 = vunpack.c.h.b16 %v775
    %v2022 = vunpack.c.l.b16 %v776
    %v2023 = vunpack.c.h.b16 %v776
    %v2024 = vunpack.c.l.b16 %v777
    %v2025 = vunpack.c.h.b16 %v777
    %v2026 = vunpack.c.l.b16 %v778
    %v2027 = vunpack.c.h.b16 %v778
    %v2028 = vunpack.c.l.b16 %v779
    %v2029 = vunpack.c.h.b16 %v779
    %v2030 = vunpack.c.l.b16 %v780
    %v2031 = vunpack.c.h.b16 %v780
    %v2032 = vunpack.c.l.b16 %v781
    %v2033 = vunpack.c.h.b16 %v781
    %v2034 = vunpack.c.l.b16 %v782
    %v2035 = vunpack.c.h.b16 %v782
    %v2036 = vunpack.c.l.b16 %v783
    %v2037 = vunpack.c.h.b16 %v783
    %v2038 = vunpack.c.l.b16 %v784
    %v2039 = vunpack.c.h.b16 %v784
    %v2040 = vunpack.c.l.b16 %v785
    %v2041 = vunpack.c.h.b16 %v785
    %v2042 = vunpack.c.l.b16 %v786
    %v2043 = vunpack.c.h.b16 %v786
    %v2044 = vunpack.c.l.b16 %v787
    %v2045 = vunpack.c.h.b16 %v787
    %v2046 = vunpack.c.l.b16 %v788
    %v2047 = vunpack.c.h.b16 %v788
    %v2048 = vunpack.c.l.b16 %v789
    %v2049 = vunpack.c.h.b16 %v789
    %v2050 = vunpack.c.l.b16 %v790
    %v2051 = vunpack.c.h.b16 %v790
    %v2052 = vunpack.c.l.b16 %v791
    %v2053 = vunpack.c.h.b16 %v791
    %v2054 = vunpack.c.l.b16 %v792
    %v2055 = vunpack.c.h.b16 %v792
    %v2056 = vunpack.c.l.b16 %v793
    %v2057 = vunpack.c.h.b16 %v793
    %v2058 = vunpack.c.l.b16 %v794
    %v2059 = vunpack.c.h.b16 %v794
    %v2060 = vunpack.c.l.b16 %v795
    %v2061 = vunpack.c.h.b16 %v795
    %v2062 = vunpack.c.l.b16 %v796
    %v2063 = vunpack.c.h.b16 %v796
    %v2064 = vunpack.c.l.b16 %v797
    %v2065 = vunpack.c.h.b16 %v797
    %v2066 = vunpack.c.l.b16 %v798
    %v2067 = vunpack.c.h.b16 %v798
    %v2068 = vunpack.c.l.b16 %v799
    %v2069 = vunpack.c.h.b16 %v799
    %v2070 = vunpack.c.l.b16 %v800
    %v2071 = vunpack.c.h.b16 %v800
    %v2072 = vunpack.c.l.b16 %v801
    %v2073 = vunpack.c.h.b16 %v801
    %v2074 = vunpack.c.l.b16 %v802
    %v2075 = vunpack.c.h.b16 %v802
    %v2076 = vunpack.c.l.b16 %v803
    %v2077 = vunpack.c.h.b16 %v803
    %v2078 = vunpack.c.l.b16 %v804
    %v2079 = vunpack.c.h.b16 %v804
    %v2080 = vunpack.c.l.b16 %v805
    %v2081 = vunpack.c.h.b16 %v805
    %v2082 = vunpack.c.l.b16 %v806
    %v2083 = vunpack.c.h.b16 %v806
    %v2084 = vunpack.c.l.b16 %v807
    %v2085 = vunpack.c.h.b16 %v807
    %v2086 = vunpack.c.l.b16 %v808
    %v2087 = vunpack.c.h.b16 %v808
    %v2088 = vunpack.c.l.b16 %v809
    %v2089 = vunpack.c.h.b16 %v809
    %v2090 = vunpack.c.l.b16 %v810
    %v2091 = vunpack.c.h.b16 %v810
    %v2092 = vunpack.c.l.b16 %v811
    %v2093 = vunpack.c.h.b16 %v811
    %v2094 = vunpack.c.l.b16 %v812
    %v2095 = vunpack.c.h.b16 %v812
    %v2096 = vunpack.c.l.b16 %v813
    %v2097 = vunpack.c.h.b16 %v813
    %v2098 = vunpack.c.l.b16 %v814
    %v2099 = vunpack.c.h.b16 %v814
    %v2100 = vunpack.c.l.b16 %v815
    %v2101 = vunpack.c.h.b16 %v815
    %v2102 = vunpack.c.l.b16 %v816
    %v2103 = vunpack.c.h.b16 %v816
    %v2104 = vunpack.c.l.b16 %v817
    %v2105 = vunpack.c.h.b16 %v817
    %v2106 = vunpack.c.l.b16 %v818
    %v2107 = vunpack.c.h.b16 %v818
    %v2108 = vunpack.c.l.b16 %v819
    %v2109 = vunpack.c.h.b16 %v819
    %v2110 = vunpack.c.l.b16 %v820
    %v2111 = vunpack.c.h.b16 %v820
    %v2112 = vunpack.c.l.b16 %v821
    %v2113 = vunpack.c.h.b16 %v821
    %v2114 = vunpack.c.l.b16 %v822
    %v2115 = vunpack.c.h.b16 %v822
    %v2116 = vunpack.c.l.b16 %v823
    %v2117 = vunpack.c.h.b16 %v823
    %v2118 = vunpack.c.l.b16 %v824
    %v2119 = vunpack.c.h.b16 %v824
    %v2120 = vunpack.c.l.b16 %v825
    %v2121 = vunpack.c.h.b16 %v825
    %v2122 = vunpack.c.l.b16 %v826
    %v2123 = vunpack.c.h.b16 %v826
    %v2124 = vunpack.c.l.b16 %v827
    %v2125 = vunpack.c.h.b16 %v827
    %v2126 = vunpack.c.l.b16 %v828
    %v2127 = vunpack.c.h.b16 %v828
    %v2128 = vunpack.c.l.b16 %v829
    %v2129 = vunpack.c.h.b16 %v829
    %v2130 = vunpack.c.l.b16 %v830
    %v2131 = vunpack.c.h.b16 %v830
    %v2132 = vunpack.c.l.b16 %v831
    %v2133 = vunpack.c.h.b16 %v831
    %v2134 = vunpack.c.l.b16 %v832
    %v2135 = vunpack.c.h.b16 %v832
    %v2136 = vunpack.c.l.b16 %v833
    %v2137 = vunpack.c.h.b16 %v833
    %v2138 = vunpack.c.l.b16 %v834
    %v2139 = vunpack.c.h.b16 %v834
    %v2140 = vunpack.c.l.b16 %v835
    %v2141 = vunpack.c.h.b16 %v835
    %v2142 = vunpack.c.l.b16 %v836
    %v2143 = vunpack.c.h.b16 %v836
    %v2144 = vunpack.c.l.b16 %v837
    %v2145 = vunpack.c.h.b16 %v837
    %v2146 = vunpack.c.l.b16 %v838
    %v2147 = vunpack.c.h.b16 %v838
    %v2148 = vunpack.c.l.b16 %v839
    %v2149 = vunpack.c.h.b16 %v839
    %v2150 = vunpack.c.l.b16 %v840
    %v2151 = vunpack.c.h.b16 %v840
    %v2152 = vunpack.c.l.b16 %v841
    %v2153 = vunpack.c.h.b16 %v841
    %v2154 = vunpack.c.l.b16 %v842
    %v2155 = vunpack.c.h.b16 %v842
    %v2156 = vunpack.c.l.b16 %v843
    %v2157 = vunpack.c.h.b16 %v843
    %v2158 = vunpack.c.l.b16 %v844
    %v2159 = vunpack.c.h.b16 %v844
    %v2160 = vunpack.c.l.b16 %v845
    %v2161 = vunpack.c.h.b16 %v845
    %v2162 = vunpack.c.l.b16 %v846
    %v2163 = vunpack.c.h.b16 %v846
    %v2164 = vunpack.c.l.b16 %v847
    %v2165 = vunpack.c.h.b16 %v847
    %v2166 = vunpack.c.l.b16 %v848
    %v2167 = vunpack.c.h.b16 %v848
    %v2168 = vunpack.c.l.b16 %v849
    %v2169 = vunpack.c.h.b16 %v849
    %v2170 = vunpack.c.l.b16 %v850
    %v2171 = vunpack.c.h.b16 %v850
    %v2172 = vunpack.c.l.b16 %v851
    %v2173 = vunpack.c.h.b16 %v851
    %v2174 = vunpack.c.l.b16 %v852
    %v2175 = vunpack.c.h.b16 %v852
    %v2176 = vunpack.c.l.b16 %v853
    %v2177 = vunpack.c.h.b16 %v853
    %v2178 = vunpack.c.l.b16 %v854
    %v2179 = vunpack.c.h.b16 %v854
    %v2180 = vunpack.c.l.b16 %v855
    %v2181 = vunpack.c.h.b16 %v855
    %v2182 = vunpack.c.l.b16 %v856
    %v2183 = vunpack.c.h.b16 %v856
    %v2184 = vunpack.c.l.b16 %v857
    %v2185 = vunpack.c.h.b16 %v857
    %v2186 = vunpack.c.l.b16 %v858
    %v2187 = vunpack.c.h.b16 %v858
    %v2188 = vunpack.c.l.b16 %v859
    %v2189 = vunpack.c.h.b16 %v859
    %v2190 = vunpack.c.l.b16 %v860
    %v2191 = vunpack.c.h.b16 %v860
    %v2192 = vunpack.c.l.b16 %v861
    %v2193 = vunpack.c.h.b16 %v861
    %v2194 = vunpack.c.l.b16 %v862
    %v2195 = vunpack.c.h.b16 %v862
    %v2196 = vunpack.c.l.b16 %v863
    %v2197 = vunpack.c.h.b16 %v863
    %v2198 = vunpack.c.l.b16 %v864
    %v2199 = vunpack.c.h.b16 %v864
    %v2200 = vunpack.c.l.b16 %v865
    %v2201 = vunpack.c.h.b16 %v865
    %v2202 = vunpack.c.l.b16 %v866
    %v2203 = vunpack.c.h.b16 %v866
    %v2204 = vunpack.c.l.b16 %v867
    %v2205 = vunpack.c.h.b16 %v867
    %v2206 = vunpack.c.l.b16 %v868
    %v2207 = vunpack.c.h.b16 %v868
    %v2208 = vunpack.c.l.b16 %v869
    %v2209 = vunpack.c.h.b16 %v869
    %v2210 = vunpack.c.l.b16 %v870
    %v2211 = vunpack.c.h.b16 %v870
    %v2212 = vunpack.c.l.b16 %v871
    %v2213 = vunpack.c.h.b16 %v871
    %v2214 = vunpack.c.l.b16 %v872
    %v2215 = vunpack.c.h.b16 %v872
    %v2216 = vunpack.c.l.b16 %v873
    %v2217 = vunpack.c.h.b16 %v873
    %v2218 = vunpack.c.l.b16 %v874
    %v2219 = vunpack.c.h.b16 %v874
    %v2220 = vunpack.c.l.b16 %v875
    %v2221 = vunpack.c.h.b16 %v875
    %v2222 = vunpack.c.l.b16 %v876
    %v2223 = vunpack.c.h.b16 %v876
    %v2224 = vunpack.c.l.b16 %v877
    %v2225 = vunpack.c.h.b16 %v877
    %v2226 = vunpack.c.l.b16 %v878
    %v2227 = vunpack.c.h.b16 %v878
    %v2228 = vunpack.c.l.b16 %v879
    %v2229 = vunpack.c.h.b16 %v879
    %v2230 = vunpack.c.l.b16 %v880
    %v2231 = vunpack.c.h.b16 %v880
    %v2232 = vunpack.c.l.b16 %v881
    %v2233 = vunpack.c.h.b16 %v881
    %v2234 = vunpack.c.l.b16 %v882
    %v2235 = vunpack.c.h.b16 %v882
    %v2236 = vunpack.c.l.b16 %v883
    %v2237 = vunpack.c.h.b16 %v883
    %v2238 = vunpack.c.l.b16 %v884
    %v2239 = vunpack.c.h.b16 %v884
    %v2240 = vunpack.c.l.b16 %v885
    %v2241 = vunpack.c.h.b16 %v885
    %v2242 = vunpack.c.l.b16 %v886
    %v2243 = vunpack.c.h.b16 %v886
    %v2244 = vunpack.c.l.b16 %v887
    %v2245 = vunpack.c.h.b16 %v887
    %v2246 = vunpack.c.l.b16 %v888
    %v2247 = vunpack.c.h.b16 %v888
    %v2248 = vunpack.c.l.b16 %v889
    %v2249 = vunpack.c.h.b16 %v889
    %v2250 = vunpack.c.l.b16 %v890
    %v2251 = vunpack.c.h.b16 %v890
    %v2252 = vunpack.c.l.b16 %v891
    %v2253 = vunpack.c.h.b16 %v891
    %v2254 = vunpack.c.l.b16 %v892
    %v2255 = vunpack.c.h.b16 %v892
    %v2256 = vunpack.c.l.b16 %v893
    %v2257 = vunpack.c.h.b16 %v893
    %v2258 = vunpack.c.l.b16 %v894
    %v2259 = vunpack.c.h.b16 %v894
    %v2260 = vunpack.c.l.b16 %v895
    %v2261 = vunpack.c.h.b16 %v895
    %v2262 = vunpack.c.l.b16 %v896
    %v2263 = vunpack.c.h.b16 %v896
    %v2264 = vunpack.c.l.b16 %v897
    %v2265 = vunpack.c.h.b16 %v897
    %v2266 = vunpack.c.l.b16 %v898
    %v2267 = vunpack.c.h.b16 %v898
    %v2268 = vunpack.c.l.b16 %v899
    %v2269 = vunpack.c.h.b16 %v899
    %v2270 = vunpack.c.l.b16 %v900
    %v2271 = vunpack.c.h.b16 %v900
    %v2272 = vunpack.c.l.b16 %v901
    %v2273 = vunpack.c.h.b16 %v901
    %v2274 = vunpack.c.l.b16 %v902
    %v2275 = vunpack.c.h.b16 %v902
    %v2276 = vunpack.c.l.b16 %v903
    %v2277 = vunpack.c.h.b16 %v903
    %v2278 = vunpack.c.l.b16 %v904
    %v2279 = vunpack.c.h.b16 %v904
    %v2280 = vunpack.c.l.b16 %v905
    %v2281 = vunpack.c.h.b16 %v905
    %v2282 = vunpack.c.l.b16 %v906
    %v2283 = vunpack.c.h.b16 %v906
    %v2284 = vunpack.c.l.b16 %v907
    %v2285 = vunpack.c.h.b16 %v907
    %v2286 = vunpack.c.l.b16 %v908
    %v2287 = vunpack.c.h.b16 %v908
    %v2288 = vunpack.c.l.b16 %v909
    %v2289 = vunpack.c.h.b16 %v909
    %v2290 = vunpack.c.l.b16 %v910
    %v2291 = vunpack.c.h.b16 %v910
    %v2292 = vunpack.c.l.b16 %v911
    %v2293 = vunpack.c.h.b16 %v911
    %v2294 = vunpack.c.l.b16 %v912
    %v2295 = vunpack.c.h.b16 %v912
    %v2296 = vunpack.c.l.b16 %v913
    %v2297 = vunpack.c.h.b16 %v913
    %v2298 = vunpack.c.l.b16 %v914
    %v2299 = vunpack.c.h.b16 %v914
    %v2300 = vunpack.c.l.b16 %v915
    %v2301 = vunpack.c.h.b16 %v915
    %v2302 = vunpack.c.l.b16 %v916
    %v2303 = vunpack.c.h.b16 %v916
    %v2304 = vunpack.c.l.b16 %v917
    %v2305 = vunpack.c.h.b16 %v917
    %v2306 = vunpack.c.l.b16 %v918
    %v2307 = vunpack.c.h.b16 %v918
    %v2308 = vunpack.c.l.b16 %v919
    %v2309 = vunpack.c.h.b16 %v919
    %v2310 = vunpack.c.l.b16 %v920
    %v2311 = vunpack.c.h.b16 %v920
    %v2312 = vunpack.c.l.b16 %v921
    %v2313 = vunpack.c.h.b16 %v921
    %v2314 = vpack.c.b16 %v1550, %v1546
    %v2315 = vpack.c.b16 %v1551, %v1547
    %v2316 = vpack.c.b16 %v1552, %v1548
    %v2317 = vpack.c.b16 %v1553, %v1549
    %v2318 = vpack.c.b16 %v1558, %v1554
    %v2319 = vpack.c.b16 %v1559, %v1555
    %v2320 = vpack.c.b16 %v1560, %v1556
    %v2321 = vpack.c.b16 %v1561, %v1557
    %v2322 = vpack.c.b16 %v1566, %v1562
    %v2323 = vpack.c.b16 %v1567, %v1563
    %v2324 = vpack.c.b16 %v1568, %v1564
    %v2325 = vpack.c.b16 %v1569, %v1565
    %v2326 = vpack.c.b16 %v1574, %v1570
    %v2327 = vpack.c.b16 %v1575, %v1571
    %v2328 = vpack.c.b16 %v1576, %v1572
    %v2329 = vpack.c.b16 %v1577, %v1573
    %v2330 = vpack.c.b16 %v1582, %v1578
    %v2331 = vpack.c.b16 %v1583, %v1579
    %v2332 = vpack.c.b16 %v1584, %v1580
    %v2333 = vpack.c.b16 %v1585, %v1581
    %v2334 = vpack.c.b16 %v1590, %v1586
    %v2335 = vpack.c.b16 %v1591, %v1587
    %v2336 = vpack.c.b16 %v1592, %v1588
    %v2337 = vpack.c.b16 %v1593, %v1589
    %v2338 = vpack.c.b16 %v1598, %v1594
    %v2339 = vpack.c.b16 %v1599, %v1595
    %v2340 = vpack.c.b16 %v1600, %v1596
    %v2341 = vpack.c.b16 %v1601, %v1597
    %v2342 = vpack.c.b16 %v1606, %v1602
    %v2343 = vpack.c.b16 %v1607, %v1603
    %v2344 = vpack.c.b16 %v1608, %v1604
    %v2345 = vpack.c.b16 %v1609, %v1605
    %v2346 = vpack.c.b16 %v1614, %v1610
    %v2347 = vpack.c.b16 %v1615, %v1611
    %v2348 = vpack.c.b16 %v1616, %v1612
    %v2349 = vpack.c.b16 %v1617, %v1613
    %v2350 = vpack.c.b16 %v1622, %v1618
    %v2351 = vpack.c.b16 %v1623, %v1619
    %v2352 = vpack.c.b16 %v1624, %v1620
    %v2353 = vpack.c.b16 %v1625, %v1621
    %v2354 = vpack.c.b16 %v1630, %v1626
    %v2355 = vpack.c.b16 %v1631, %v1627
    %v2356 = vpack.c.b16 %v1632, %v1628
    %v2357 = vpack.c.b16 %v1633, %v1629
    %v2358 = vpack.c.b16 %v1638, %v1634
    %v2359 = vpack.c.b16 %v1639, %v1635
    %v2360 = vpack.c.b16 %v1640, %v1636
    %v2361 = vpack.c.b16 %v1641, %v1637
    %v2362 = vpack.c.b16 %v1646, %v1642
    %v2363 = vpack.c.b16 %v1647, %v1643
    %v2364 = vpack.c.b16 %v1648, %v1644
    %v2365 = vpack.c.b16 %v1649, %v1645
    %v2366 = vpack.c.b16 %v1654, %v1650
    %v2367 = vpack.c.b16 %v1655, %v1651
    %v2368 = vpack.c.b16 %v1656, %v1652
    %v2369 = vpack.c.b16 %v1657, %v1653
    %v2370 = vpack.c.b16 %v1662, %v1658
    %v2371 = vpack.c.b16 %v1663, %v1659
    %v2372 = vpack.c.b16 %v1664, %v1660
    %v2373 = vpack.c.b16 %v1665, %v1661
    %v2374 = vpack.c.b16 %v1670, %v1666
    %v2375 = vpack.c.b16 %v1671, %v1667
    %v2376 = vpack.c.b16 %v1672, %v1668
    %v2377 = vpack.c.b16 %v1673, %v1669
    %v2378 = vpack.c.b16 %v1678, %v1674
    %v2379 = vpack.c.b16 %v1679, %v1675
    %v2380 = vpack.c.b16 %v1680, %v1676
    %v2381 = vpack.c.b16 %v1681, %v1677
    %v2382 = vpack.c.b16 %v1686, %v1682
    %v2383 = vpack.c.b16 %v1687, %v1683
    %v2384 = vpack.c.b16 %v1688, %v1684
    %v2385 = vpack.c.b16 %v1689, %v1685
    %v2386 = vpack.c.b16 %v1694, %v1690
    %v2387 = vpack.c.b16 %v1695, %v1691
    %v2388 = vpack.c.b16 %v1696, %v1692
    %v2389 = vpack.c.b16 %v1697, %v1693
    %v2390 = vpack.c.b16 %v1702, %v1698
    %v2391 = vpack.c.b16 %v1703, %v1699
    %v2392 = vpack.c.b16 %v1704, %v1700
    %v2393 = vpack.c.b16 %v1705, %v1701
    %v2394 = vpack.c.b16 %v1710, %v1706
    %v2395 = vpack.c.b16 %v1711, %v1707
    %v2396 = vpack.c.b16 %v1712, %v1708
    %v2397 = vpack.c.b16 %v1713, %v1709
    %v2398 = vpack.c.b16 %v1718, %v1714
    %v2399 = vpack.c.b16 %v1719, %v1715
    %v2400 = vpack.c.b16 %v1720, %v1716
    %v2401 = vpack.c.b16 %v1721, %v1717
    %v2402 = vpack.c.b16 %v1726, %v1722
    %v2403 = vpack.c.b16 %v1727, %v1723
    %v2404 = vpack.c.b16 %v1728, %v1724
    %v2405 = vpack.c.b16 %v1729, %v1725
    %v2406 = vpack.c.b16 %v1734, %v1730
    %v2407 = vpack.c.b16 %v1735, %v1731
    %v2408 = vpack.c.b16 %v1736, %v1732
    %v2409 = vpack.c.b16 %v1737, %v1733
    %v2410 = vpack.c.b16 %v1742, %v1738
    %v2411 = vpack.c.b16 %v1743, %v1739
    %v2412 = vpack.c.b16 %v1744, %v1740
    %v2413 = vpack.c.b16 %v1745, %v1741
    %v2414 = vpack.c.b16 %v1750, %v1746
    %v2415 = vpack.c.b16 %v1751, %v1747
    %v2416 = vpack.c.b16 %v1752, %v1748
    %v2417 = vpack.c.b16 %v1753, %v1749
    %v2418 = vpack.c.b16 %v1758, %v1754
    %v2419 = vpack.c.b16 %v1759, %v1755
    %v2420 = vpack.c.b16 %v1760, %v1756
    %v2421 = vpack.c.b16 %v1761, %v1757
    %v2422 = vpack.c.b16 %v1766, %v1762
    %v2423 = vpack.c.b16 %v1767, %v1763
    %v2424 = vpack.c.b16 %v1768, %v1764
    %v2425 = vpack.c.b16 %v1769, %v1765
    %v2426 = vpack.c.b16 %v1774, %v1770
    %v2427 = vpack.c.b16 %v1775, %v1771
    %v2428 = vpack.c.b16 %v1776, %v1772
    %v2429 = vpack.c.b16 %v1777, %v1773
    %v2430 = vpack.c.b16 %v1782, %v1778
    %v2431 = vpack.c.b16 %v1783, %v1779
    %v2432 = vpack.c.b16 %v1784, %v1780
    %v2433 = vpack.c.b16 %v1785, %v1781
    %v2434 = vpack.c.b16 %v1790, %v1786
    %v2435 = vpack.c.b16 %v1791, %v1787
    %v2436 = vpack.c.b16 %v1792, %v1788
    %v2437 = vpack.c.b16 %v1793, %v1789
    %v2438 = vpack.c.b16 %v1798, %v1794
    %v2439 = vpack.c.b16 %v1799, %v1795
    %v2440 = vpack.c.b16 %v1800, %v1796
    %v2441 = vpack.c.b16 %v1801, %v1797
    %v2442 = vpack.c.b16 %v1806, %v1802
    %v2443 = vpack.c.b16 %v1807, %v1803
    %v2444 = vpack.c.b16 %v1808, %v1804
    %v2445 = vpack.c.b16 %v1809, %v1805
    %v2446 = vpack.c.b16 %v1814, %v1810
    %v2447 = vpack.c.b16 %v1815, %v1811
    %v2448 = vpack.c.b16 %v1816, %v1812
    %v2449 = vpack.c.b16 %v1817, %v1813
    %v2450 = vpack.c.b16 %v1822, %v1818
    %v2451 = vpack.c.b16 %v1823, %v1819
    %v2452 = vpack.c.b16 %v1824, %v1820
    %v2453 = vpack.c.b16 %v1825, %v1821
    %v2454 = vpack.c.b16 %v1830, %v1826
    %v2455 = vpack.c.b16 %v1831, %v1827
    %v2456 = vpack.c.b16 %v1832, %v1828
    %v2457 = vpack.c.b16 %v1833, %v1829
    %v2458 = vpack.c.b16 %v1838, %v1834
    %v2459 = vpack.c.b16 %v1839, %v1835
    %v2460 = vpack.c.b16 %v1840, %v1836
    %v2461 = vpack.c.b16 %v1841, %v1837
    %v2462 = vpack.c.b16 %v1846, %v1842
    %v2463 = vpack.c.b16 %v1847, %v1843
    %v2464 = vpack.c.b16 %v1848, %v1844
    %v2465 = vpack.c.b16 %v1849, %v1845
    %v2466 = vpack.c.b16 %v1854, %v1850
    %v2467 = vpack.c.b16 %v1855, %v1851
    %v2468 = vpack.c.b16 %v1856, %v1852
    %v2469 = vpack.c.b16 %v1857, %v1853
    %v2470 = vpack.c.b16 %v1862, %v1858
    %v2471 = vpack.c.b16 %v1863, %v1859
    %v2472 = vpack.c.b16 %v1864, %v1860
    %v2473 = vpack.c.b16 %v1865, %v1861
    %v2474 = vpack.c.b16 %v1870, %v1866
    %v2475 = vpack.c.b16 %v1871, %v1867
    %v2476 = vpack.c.b16 %v1872, %v1868
    %v2477 = vpack.c.b16 %v1873, %v1869
    %v2478 = vpack.c.b16 %v1878, %v1874
    %v2479 = vpack.c.b16 %v1879, %v1875
    %v2480 = vpack.c.b16 %v1880, %v1876
    %v2481 = vpack.c.b16 %v1881, %v1877
    %v2482 = vpack.c.b16 %v1886, %v1882
    %v2483 = vpack.c.b16 %v1887, %v1883
    %v2484 = vpack.c.b16 %v1888, %v1884
    %v2485 = vpack.c.b16 %v1889, %v1885
    %v2486 = vpack.c.b16 %v1894, %v1890
    %v2487 = vpack.c.b16 %v1895, %v1891
    %v2488 = vpack.c.b16 %v1896, %v1892
    %v2489 = vpack.c.b16 %v1897, %v1893
    %v2490 = vpack.c.b16 %v1902, %v1898
    %v2491 = vpack.c.b16 %v1903, %v1899
    %v2492 = vpack.c.b16 %v1904, %v1900
    %v2493 = vpack.c.b16 %v1905, %v1901
    %v2494 = vpack.c.b16 %v1910, %v1906
    %v2495 = vpack.c.b16 %v1911, %v1907
    %v2496 = vpack.c.b16 %v1912, %v1908
    %v2497 = vpack.c.b16 %v1913, %v1909
    %v2498 = vpack.c.b16 %v1918, %v1914
    %v2499 = vpack.c.b16 %v1919, %v1915
    %v2500 = vpack.c.b16 %v1920, %v1916
    %v2501 = vpack.c.b16 %v1921, %v1917
    %v2502 = vpack.c.b16 %v1926, %v1922
    %v2503 = vpack.c.b16 %v1927, %v1923
    %v2504 = vpack.c.b16 %v1928, %v1924
    %v2505 = vpack.c.b16 %v1929, %v1925
    %v2506 = vpack.c.b16 %v1934, %v1930
    %v2507 = vpack.c.b16 %v1935, %v1931
    %v2508 = vpack.c.b16 %v1936, %v1932
    %v2509 = vpack.c.b16 %v1937, %v1933
    %v2510 = vpack.c.b16 %v1942, %v1938
    %v2511 = vpack.c.b16 %v1943, %v1939
    %v2512 = vpack.c.b16 %v1944, %v1940
    %v2513 = vpack.c.b16 %v1945, %v1941
    %v2514 = vpack.c.b16 %v1950, %v1946
    %v2515 = vpack.c.b16 %v1951, %v1947
    %v2516 = vpack.c.b16 %v1952, %v1948
    %v2517 = vpack.c.b16 %v1953, %v1949
    %v2518 = vpack.c.b16 %v1958, %v1954
    %v2519 = vpack.c.b16 %v1959, %v1955
    %v2520 = vpack.c.b16 %v1960, %v1956
    %v2521 = vpack.c.b16 %v1961, %v1957
    %v2522 = vpack.c.b16 %v1966, %v1962
    %v2523 = vpack.c.b16 %v1967, %v1963
    %v2524 = vpack.c.b16 %v1968, %v1964
    %v2525 = vpack.c.b16 %v1969, %v1965
    %v2526 = vpack.c.b16 %v1974, %v1970
    %v2527 = vpack.c.b16 %v1975, %v1971
    %v2528 = vpack.c.b16 %v1976, %v1972
    %v2529 = vpack.c.b16 %v1977, %v1973
    %v2530 = vpack.c.b16 %v1982, %v1978
    %v2531 = vpack.c.b16 %v1983, %v1979
    %v2532 = vpack.c.b16 %v1984, %v1980
    %v2533 = vpack.c.b16 %v1985, %v1981
    %v2534 = vpack.c.b16 %v1990, %v1986
    %v2535 = vpack.c.b16 %v1991, %v1987
    %v2536 = vpack.c.b16 %v1992, %v1988
    %v2537 = vpack.c.b16 %v1993, %v1989
    %v2538 = vpack.c.b16 %v1998, %v1994
    %v2539 = vpack.c.b16 %v1999, %v1995
    %v2540 = vpack.c.b16 %v2000, %v1996
    %v2541 = vpack.c.b16 %v2001, %v1997
    %v2542 = vpack.c.b16 %v2006, %v2002
    %v2543 = vpack.c.b16 %v2007, %v2003
    %v2544 = vpack.c.b16 %v2008, %v2004
    %v2545 = vpack.c.b16 %v2009, %v2005
    %v2546 = vpack.c.b16 %v2014, %v2010
    %v2547 = vpack.c.b16 %v2015, %v2011
    %v2548 = vpack.c.b16 %v2016, %v2012
    %v2549 = vpack.c.b16 %v2017, %v2013
    %v2550 = vpack.c.b16 %v2022, %v2018
    %v2551 = vpack.c.b16 %v2023, %v2019
    %v2552 = vpack.c.b16 %v2024, %v2020
    %v2553 = vpack.c.b16 %v2025, %v2021
    %v2554 = vpack.c.b16 %v2030, %v2026
    %v2555 = vpack.c.b16 %v2031, %v2027
    %v2556 = vpack.c.b16 %v2032, %v2028
    %v2557 = vpack.c.b16 %v2033, %v2029
    %v2558 = vpack.c.b16 %v2038, %v2034
    %v2559 = vpack.c.b16 %v2039, %v2035
    %v2560 = vpack.c.b16 %v2040, %v2036
    %v2561 = vpack.c.b16 %v2041, %v2037
    %v2562 = vpack.c.b16 %v2046, %v2042
    %v2563 = vpack.c.b16 %v2047, %v2043
    %v2564 = vpack.c.b16 %v2048, %v2044
    %v2565 = vpack.c.b16 %v2049, %v2045
    %v2566 = vpack.c.b16 %v2054, %v2050
    %v2567 = vpack.c.b16 %v2055, %v2051
    %v2568 = vpack.c.b16 %v2056, %v2052
    %v2569 = vpack.c.b16 %v2057, %v2053
    %v2570 = vpack.c.b16 %v2062, %v2058
    %v2571 = vpack.c.b16 %v2063, %v2059
    %v2572 = vpack.c.b16 %v2064, %v2060
    %v2573 = vpack.c.b16 %v2065, %v2061
    %v2574 = vpack.c.b16 %v2070, %v2066
    %v2575 = vpack.c.b16 %v2071, %v2067
    %v2576 = vpack.c.b16 %v2072, %v2068
    %v2577 = vpack.c.b16 %v2073, %v2069
    %v2578 = vpack.c.b16 %v2078, %v2074
    %v2579 = vpack.c.b16 %v2079, %v2075
    %v2580 = vpack.c.b16 %v2080, %v2076
    %v2581 = vpack.c.b16 %v2081, %v2077
    %v2582 = vpack.c.b16 %v2086, %v2082
    %v2583 = vpack.c.b16 %v2087, %v2083
    %v2584 = vpack.c.b16 %v2088, %v2084
    %v2585 = vpack.c.b16 %v2089, %v2085
    %v2586 = vpack.c.b16 %v2094, %v2090
    %v2587 = vpack.c.b16 %v2095, %v2091
    %v2588 = vpack.c.b16 %v2096, %v2092
    %v2589 = vpack.c.b16 %v2097, %v2093
    %v2590 = vpack.c.b16 %v2102, %v2098
    %v2591 = vpack.c.b16 %v2103, %v2099
    %v2592 = vpack.c.b16 %v2104, %v2100
    %v2593 = vpack.c.b16 %v2105, %v2101
    %v2594 = vpack.c.b16 %v2110, %v2106
    %v2595 = vpack.c.b16 %v2111, %v2107
    %v2596 = vpack.c.b16 %v2112, %v2108
    %v2597 = vpack.c.b16 %v2113, %v2109
    %v2598 = vpack.c.b16 %v2118, %v2114
    %v2599 = vpack.c.b16 %v2119, %v2115
    %v2600 = vpack.c.b16 %v2120, %v2116
    %v2601 = vpack.c.b16 %v2121, %v2117
    %v2602 = vpack.c.b16 %v2126, %v2122
    %v2603 = vpack.c.b16 %v2127, %v2123
    %v2604 = vpack.c.b16 %v2128, %v2124
    %v2605 = vpack.c.b16 %v2129, %v2125
    %v2606 = vpack.c.b16 %v2134, %v2130
    %v2607 = vpack.c.b16 %v2135, %v2131
    %v2608 = vpack.c.b16 %v2136, %v2132
    %v2609 = vpack.c.b16 %v2137, %v2133
    %v2610 = vpack.c.b16 %v2142, %v2138
    %v2611 = vpack.c.b16 %v2143, %v2139
    %v2612 = vpack.c.b16 %v2144, %v2140
    %v2613 = vpack.c.b16 %v2145, %v2141
    %v2614 = vpack.c.b16 %v2150, %v2146
    %v2615 = vpack.c.b16 %v2151, %v2147
    %v2616 = vpack.c.b16 %v2152, %v2148
    %v2617 = vpack.c.b16 %v2153, %v2149
    %v2618 = vpack.c.b16 %v2158, %v2154
    %v2619 = vpack.c.b16 %v2159, %v2155
    %v2620 = vpack.c.b16 %v2160, %v2156
    %v2621 = vpack.c.b16 %v2161, %v2157
    %v2622 = vpack.c.b16 %v2166, %v2162
    %v2623 = vpack.c.b16 %v2167, %v2163
    %v2624 = vpack.c.b16 %v2168, %v2164
    %v2625 = vpack.c.b16 %v2169, %v2165
    %v2626 = vpack.c.b16 %v2174, %v2170
    %v2627 = vpack.c.b16 %v2175, %v2171
    %v2628 = vpack.c.b16 %v2176, %v2172
    %v2629 = vpack.c.b16 %v2177, %v2173
    %v2630 = vpack.c.b16 %v2182, %v2178
    %v2631 = vpack.c.b16 %v2183, %v2179
    %v2632 = vpack.c.b16 %v2184, %v2180
    %v2633 = vpack.c.b16 %v2185, %v2181
    %v2634 = vpack.c.b16 %v2190, %v2186
    %v2635 = vpack.c.b16 %v2191, %v2187
    %v2636 = vpack.c.b16 %v2192, %v2188
    %v2637 = vpack.c.b16 %v2193, %v2189
    %v2638 = vpack.c.b16 %v2198, %v2194
    %v2639 = vpack.c.b16 %v2199, %v2195
    %v2640 = vpack.c.b16 %v2200, %v2196
    %v2641 = vpack.c.b16 %v2201, %v2197
    %v2642 = vpack.c.b16 %v2206, %v2202
    %v2643 = vpack.c.b16 %v2207, %v2203
    %v2644 = vpack.c.b16 %v2208, %v2204
    %v2645 = vpack.c.b16 %v2209, %v2205
    %v2646 = vpack.c.b16 %v2214, %v2210
    %v2647 = vpack.c.b16 %v2215, %v2211
    %v2648 = vpack.c.b16 %v2216, %v2212
    %v2649 = vpack.c.b16 %v2217, %v2213
    %v2650 = vpack.c.b16 %v2222, %v2218
    %v2651 = vpack.c.b16 %v2223, %v2219
    %v2652 = vpack.c.b16 %v2224, %v2220
    %v2653 = vpack.c.b16 %v2225, %v2221
    %v2654 = vpack.c.b16 %v2230, %v2226
    %v2655 = vpack.c.b16 %v2231, %v2227
    %v2656 = vpack.c.b16 %v2232, %v2228
    %v2657 = vpack.c.b16 %v2233, %v2229
    %v2658 = vpack.c.b16 %v2238, %v2234
    %v2659 = vpack.c.b16 %v2239, %v2235
    %v2660 = vpack.c.b16 %v2240, %v2236
    %v2661 = vpack.c.b16 %v2241, %v2237
    %v2662 = vpack.c.b16 %v2246, %v2242
    %v2663 = vpack.c.b16 %v2247, %v2243
    %v2664 = vpack.c.b16 %v2248, %v2244
    %v2665 = vpack.c.b16 %v2249, %v2245
    %v2666 = vpack.c.b16 %v2254, %v2250
    %v2667 = vpack.c.b16 %v2255, %v2251
    %v2668 = vpack.c.b16 %v2256, %v2252
    %v2669 = vpack.c.b16 %v2257, %v2253
    %v2670 = vpack.c.b16 %v2262, %v2258
    %v2671 = vpack.c.b16 %v2263, %v2259
    %v2672 = vpack.c.b16 %v2264, %v2260
    %v2673 = vpack.c.b16 %v2265, %v2261
    %v2674 = vpack.c.b16 %v2270, %v2266
    %v2675 = vpack.c.b16 %v2271, %v2267
    %v2676 = vpack.c.b16 %v2272, %v2268
    %v2677 = vpack.c.b16 %v2273, %v2269
    %v2678 = vpack.c.b16 %v2278, %v2274
    %v2679 = vpack.c.b16 %v2279, %v2275
    %v2680 = vpack.c.b16 %v2280, %v2276
    %v2681 = vpack.c.b16 %v2281, %v2277
    %v2682 = vpack.c.b16 %v2286, %v2282
    %v2683 = vpack.c.b16 %v2287, %v2283
    %v2684 = vpack.c.b16 %v2288, %v2284
    %v2685 = vpack.c.b16 %v2289, %v2285
    %v2686 = vpack.c.b16 %v2294, %v2290
    %v2687 = vpack.c.b16 %v2295, %v2291
    %v2688 = vpack.c.b16 %v2296, %v2292
    %v2689 = vpack.c.b16 %v2297, %v2293
    %v2690 = vpack.c.b16 %v2302, %v2298
    %v2691 = vpack.c.b16 %v2303, %v2299
    %v2692 = vpack.c.b16 %v2304, %v2300
    %v2693 = vpack.c.b16 %v2305, %v2301
    %v2694 = vpack.c.b16 %v2310, %v2306
    %v2695 = vpack.c.b16 %v2311, %v2307
    %v2696 = vpack.c.b16 %v2312, %v2308
    %v2697 = vpack.c.b16 %v2313, %v2309
    %3082 = vmatprep.subr.bf16.mxu0 %v2315
    %3083 = vmatpush1.bf16.msra.mxu0 %v2314
    %3084 = vmatprep.subr.bf16.mxu0 %v2319
    %3085 = vmatpush1.bf16.msra.mxu0 %v2318
    %3086 = vmatprep.subr.bf16.mxu0 %v2323
    %3087 = vmatpush1.bf16.msra.mxu0 %v2322
    %3088 = vmatprep.subr.bf16.mxu0 %v2327
    %3089 = vmatpush1.bf16.msra.mxu0 %v2326
    %3090 = vmatprep.subr.bf16.mxu0 %v2331
    %3091 = vmatpush1.bf16.msra.mxu0 %v2330
    %3092 = vmatprep.subr.bf16.mxu0 %v2335
    %3093 = vmatpush1.bf16.msra.mxu0 %v2334
    %3094 = vmatprep.subr.bf16.mxu0 %v2339
    %3095 = vmatpush1.bf16.msra.mxu0 %v2338
    %3096 = vmatprep.subr.bf16.mxu0 %v2343
    %3097 = vmatpush1.bf16.msra.mxu0 %v2342
    %3098 = vmatprep.subr.bf16.mxu0 %v2347
    %3099 = vmatpush1.bf16.msra.mxu0 %v2346
    %3100 = vmatprep.subr.bf16.mxu0 %v2351
    %3101 = vmatpush1.bf16.msra.mxu0 %v2350
    %3102 = vmatprep.subr.bf16.mxu0 %v2355
    %3103 = vmatpush1.bf16.msra.mxu0 %v2354
    %3104 = vmatprep.subr.bf16.mxu0 %v2359
    %3105 = vmatpush1.bf16.msra.mxu0 %v2358
    %3106 = vmatprep.subr.bf16.mxu0 %v2363
    %3107 = vmatpush1.bf16.msra.mxu0 %v2362
    %3108 = vmatprep.subr.bf16.mxu0 %v2367
    %3109 = vmatpush1.bf16.msra.mxu0 %v2366
    %3110 = vmatprep.subr.bf16.mxu0 %v2371
    %3111 = vmatpush1.bf16.msra.mxu0 %v2370
    %3112 = vmatprep.subr.bf16.mxu0 %v2375
    %3113 = vmatpush1.bf16.msra.mxu0 %v2374
    %3114 = vmatprep.mubr.bf16.mxu0 %v1067
    %3115 = vmatmul.mubr.bf16.gmra.mrb[0].mxu0 %v1066
    %v3116 = vpop.f32.mrb[0].mxu0
    %v3117 = vadd.f32 0.0, %v3116
    %v3118 = vpop.f32.mrb[0].mxu0
    %v3119 = vadd.f32 0.0, %v3118
    %v3120 = vpop.f32.mrb[0].mxu0
    %v3121 = vadd.f32 0.0, %v3120
    %v3122 = vpop.f32.mrb[0].mxu0
    %v3123 = vadd.f32 0.0, %v3122
    %3124 = vmatprep.mubr.bf16.mxu0 %v1079
    %3125 = vmatmul.mubr.bf16.gmra.mrb[0].mxu0 %v1078
    %v3126 = vpop.f32.mrb[0].mxu0
    %v3127 = vadd.f32 0.0, %v3126
    %v3128 = vpop.f32.mrb[0].mxu0
    %v3129 = vadd.f32 0.0, %v3128
    %v3130 = vpop.f32.mrb[0].mxu0
    %v3131 = vadd.f32 0.0, %v3130
    %v3132 = vpop.f32.mrb[0].mxu0
    %v3133 = vadd.f32 0.0, %v3132
    %3134 = vmatprep.mubr.bf16.mxu0 %v1091
    %3135 = vmatmul.mubr.bf16.gmra.mrb[0].mxu0 %v1090
    %v3136 = vpop.f32.mrb[0].mxu0
    %v3137 = vadd.f32 0.0, %v3136
    %v3138 = vpop.f32.mrb[0].mxu0
    %v3139 = vadd.f32 0.0, %v3138
    %v3140 = vpop.f32.mrb[0].mxu0
    %v3141 = vadd.f32 0.0, %v3140
    %v3142 = vpop.f32.mrb[0].mxu0
    %v3143 = vadd.f32 0.0, %v3142
    %3144 = vmatprep.mubr.bf16.mxu0 %v1103
    %3145 = vmatmul.mubr.bf16.gmra.mrb[0].mxu0 %v1102
    %v3146 = vpop.f32.mrb[0].mxu0
    %v3147 = vadd.f32 0.0, %v3146
    %v3148 = vpop.f32.mrb[0].mxu0
    %v3149 = vadd.f32 0.0, %v3148
    %v3150 = vpop.f32.mrb[0].mxu0
    %v3151 = vadd.f32 0.0, %v3150
    %v3152 = vpop.f32.mrb[0].mxu0
    %v3153 = vadd.f32 0.0, %v3152
    %3154 = vdwg.mxu0
    %3155 = vmatprep.subr.bf16.mxu0 %v2379
    %3156 = vmatpush1.bf16.msra.mxu0 %v2378
    %3157 = vmatprep.subr.bf16.mxu0 %v2383
    %3158 = vmatpush1.bf16.msra.mxu0 %v2382
    %3159 = vmatprep.subr.bf16.mxu0 %v2387
    %3160 = vmatpush1.bf16.msra.mxu0 %v2386
    %3161 = vmatprep.subr.bf16.mxu0 %v2391
    %3162 = vmatpush1.bf16.msra.mxu0 %v2390
    %3163 = vmatprep.subr.bf16.mxu0 %v2395
    %3164 = vmatpush1.bf16.msra.mxu0 %v2394
    %3165 = vmatprep.subr.bf16.mxu0 %v2399
    %3166 = vmatpush1.bf16.msra.mxu0 %v2398
    %3167 = vmatprep.subr.bf16.mxu0 %v2403
    %3168 = vmatpush1.bf16.msra.mxu0 %v2402
    %3169 = vmatprep.subr.bf16.mxu0 %v2407
    %3170 = vmatpush1.bf16.msra.mxu0 %v2406
    %3171 = vmatprep.subr.bf16.mxu0 %v2411
    %3172 = vmatpush1.bf16.msra.mxu0 %v2410
    %3173 = vmatprep.subr.bf16.mxu0 %v2415
    %3174 = vmatpush1.bf16.msra.mxu0 %v2414
    %3175 = vmatprep.subr.bf16.mxu0 %v2419
    %3176 = vmatpush1.bf16.msra.mxu0 %v2418
    %3177 = vmatprep.subr.bf16.mxu0 %v2423
    %3178 = vmatpush1.bf16.msra.mxu0 %v2422
    %3179 = vmatprep.subr.bf16.mxu0 %v2427
    %3180 = vmatpush1.bf16.msra.mxu0 %v2426
    %3181 = vmatprep.subr.bf16.mxu0 %v2431
    %3182 = vmatpush1.bf16.msra.mxu0 %v2430
    %3183 = vmatprep.subr.bf16.mxu0 %v2435
    %3184 = vmatpush1.bf16.msra.mxu0 %v2434
    %3185 = vmatprep.subr.bf16.mxu0 %v2439
    %3186 = vmatpush1.bf16.msra.mxu0 %v2438
    %3187 = vmatprep.mubr.bf16.mxu0 %v1069
    %3188 = vmatmul.mubr.bf16.gmra.mrb[0].mxu0 %v1068
    %v3189 = vpop.f32.mrb[0].mxu0
    %v3190 = vadd.f32 %v3117, %v3189
    %v3191 = vpop.f32.mrb[0].mxu0
    %v3192 = vadd.f32 %v3119, %v3191
    %v3193 = vpop.f32.mrb[0].mxu0
    %v3194 = vadd.f32 %v3121, %v3193
    %v3195 = vpop.f32.mrb[0].mxu0
    %v3196 = vadd.f32 %v3123, %v3195
    %3197 = vmatprep.mubr.bf16.mxu0 %v1081
    %3198 = vmatmul.mubr.bf16.gmra.mrb[0].mxu0 %v1080
    %v3199 = vpop.f32.mrb[0].mxu0
    %v3200 = vadd.f32 %v3127, %v3199
    %v3201 = vpop.f32.mrb[0].mxu0
    %v3202 = vadd.f32 %v3129, %v3201
    %v3203 = vpop.f32.mrb[0].mxu0
    %v3204 = vadd.f32 %v3131, %v3203
    %v3205 = vpop.f32.mrb[0].mxu0
    %v3206 = vadd.f32 %v3133, %v3205
    %3207 = vmatprep.mubr.bf16.mxu0 %v1093
    %3208 = vmatmul.mubr.bf16.gmra.mrb[0].mxu0 %v1092
    %v3209 = vpop.f32.mrb[0].mxu0
    %v3210 = vadd.f32 %v3137, %v3209
    %v3211 = vpop.f32.mrb[0].mxu0
    %v3212 = vadd.f32 %v3139, %v3211
    %v3213 = vpop.f32.mrb[0].mxu0
    %v3214 = vadd.f32 %v3141, %v3213
    %v3215 = vpop.f32.mrb[0].mxu0
    %v3216 = vadd.f32 %v3143, %v3215
    %3217 = vmatprep.mubr.bf16.mxu0 %v1105
    %3218 = vmatmul.mubr.bf16.gmra.mrb[0].mxu0 %v1104
    %v3219 = vpop.f32.mrb[0].mxu0
    %v3220 = vadd.f32 %v3147, %v3219
    %v3221 = vpop.f32.mrb[0].mxu0
    %v3222 = vadd.f32 %v3149, %v3221
    %v3223 = vpop.f32.mrb[0].mxu0
    %v3224 = vadd.f32 %v3151, %v3223
    %v3225 = vpop.f32.mrb[0].mxu0
    %v3226 = vadd.f32 %v3153, %v3225
    %3227 = vdwg.mxu0
    %3228 = vmatprep.subr.bf16.mxu0 %v2443
    %3229 = vmatpush1.bf16.msra.mxu0 %v2442
    %3230 = vmatprep.subr.bf16.mxu0 %v2447
    %3231 = vmatpush1.bf16.msra.mxu0 %v2446
    %3232 = vmatprep.subr.bf16.mxu0 %v2451
    %3233 = vmatpush1.bf16.msra.mxu0 %v2450
    %3234 = vmatprep.subr.bf16.mxu0 %v2455
    %3235 = vmatpush1.bf16.msra.mxu0 %v2454
    %3236 = vmatprep.subr.bf16.mxu0 %v2459
    %3237 = vmatpush1.bf16.msra.mxu0 %v2458
    %3238 = vmatprep.subr.bf16.mxu0 %v2463
    %3239 = vmatpush1.bf16.msra.mxu0 %v2462
    %3240 = vmatprep.subr.bf16.mxu0 %v2467
    %3241 = vmatpush1.bf16.msra.mxu0 %v2466
    %3242 = vmatprep.subr.bf16.mxu0 %v2471
    %3243 = vmatpush1.bf16.msra.mxu0 %v2470
    %3244 = vmatprep.subr.bf16.mxu0 %v2475
    %3245 = vmatpush1.bf16.msra.mxu0 %v2474
    %3246 = vmatprep.subr.bf16.mxu0 %v2479
    %3247 = vmatpush1.bf16.msra.mxu0 %v2478
    %3248 = vmatprep.subr.bf16.mxu0 %v2483
    %3249 = vmatpush1.bf16.msra.mxu0 %v2482
    %3250 = vmatprep.subr.bf16.mxu0 %v2487
    %3251 = vmatpush1.bf16.msra.mxu0 %v2486
    %3252 = vmatprep.subr.bf16.mxu0 %v2491
    %3253 = vmatpush1.bf16.msra.mxu0 %v2490
    %3254 = vmatprep.subr.bf16.mxu0 %v2495
    %3255 = vmatpush1.bf16.msra.mxu0 %v2494
    %3256 = vmatprep.subr.bf16.mxu0 %v2499
    %3257 = vmatpush1.bf16.msra.mxu0 %v2498
    %3258 = vmatprep.subr.bf16.mxu0 %v2503
    %3259 = vmatpush1.bf16.msra.mxu0 %v2502
    %3260 = vmatprep.mubr.bf16.mxu0 %v1071
    %3261 = vmatmul.mubr.bf16.gmra.mrb[0].mxu0 %v1070
    %v3262 = vpop.f32.mrb[0].mxu0
    %v3263 = vadd.f32 %v3190, %v3262
    %v3264 = vpop.f32.mrb[0].mxu0
    %v3265 = vadd.f32 %v3192, %v3264
    %v3266 = vpop.f32.mrb[0].mxu0
    %v3267 = vadd.f32 %v3194, %v3266
    %v3268 = vpop.f32.mrb[0].mxu0
    %v3269 = vadd.f32 %v3196, %v3268
    %3270 = vmatprep.mubr.bf16.mxu0 %v1083
    %3271 = vmatmul.mubr.bf16.gmra.mrb[0].mxu0 %v1082
    %v3272 = vpop.f32.mrb[0].mxu0
    %v3273 = vadd.f32 %v3200, %v3272
    %v3274 = vpop.f32.mrb[0].mxu0
    %v3275 = vadd.f32 %v3202, %v3274
    %v3276 = vpop.f32.mrb[0].mxu0
    %v3277 = vadd.f32 %v3204, %v3276
    %v3278 = vpop.f32.mrb[0].mxu0
    %v3279 = vadd.f32 %v3206, %v3278
    %3280 = vmatprep.mubr.bf16.mxu0 %v1095
    %3281 = vmatmul.mubr.bf16.gmra.mrb[0].mxu0 %v1094
    %v3282 = vpop.f32.mrb[0].mxu0
    %v3283 = vadd.f32 %v3210, %v3282
    %v3284 = vpop.f32.mrb[0].mxu0
    %v3285 = vadd.f32 %v3212, %v3284
    %v3286 = vpop.f32.mrb[0].mxu0
    %v3287 = vadd.f32 %v3214, %v3286
    %v3288 = vpop.f32.mrb[0].mxu0
    %v3289 = vadd.f32 %v3216, %v3288
    %3290 = vmatprep.mubr.bf16.mxu0 %v1107
    %3291 = vmatmul.mubr.bf16.gmra.mrb[0].mxu0 %v1106
    %v3292 = vpop.f32.mrb[0].mxu0
    %v3293 = vadd.f32 %v3220, %v3292
    %v3294 = vpop.f32.mrb[0].mxu0
    %v3295 = vadd.f32 %v3222, %v3294
    %v3296 = vpop.f32.mrb[0].mxu0
    %v3297 = vadd.f32 %v3224, %v3296
    %v3298 = vpop.f32.mrb[0].mxu0
    %v3299 = vadd.f32 %v3226, %v3298
    %3300 = vdwg.mxu0
    %3301 = vmatprep.subr.bf16.mxu0 %v2507
    %3302 = vmatpush1.bf16.msra.mxu0 %v2506
    %3303 = vmatprep.subr.bf16.mxu0 %v2511
    %3304 = vmatpush1.bf16.msra.mxu0 %v2510
    %3305 = vmatprep.subr.bf16.mxu0 %v2515
    %3306 = vmatpush1.bf16.msra.mxu0 %v2514
    %3307 = vmatprep.subr.bf16.mxu0 %v2519
    %3308 = vmatpush1.bf16.msra.mxu0 %v2518
    %3309 = vmatprep.subr.bf16.mxu0 %v2523
    %3310 = vmatpush1.bf16.msra.mxu0 %v2522
    %3311 = vmatprep.subr.bf16.mxu0 %v2527
    %3312 = vmatpush1.bf16.msra.mxu0 %v2526
    %3313 = vmatprep.subr.bf16.mxu0 %v2531
    %3314 = vmatpush1.bf16.msra.mxu0 %v2530
    %3315 = vmatprep.subr.bf16.mxu0 %v2535
    %3316 = vmatpush1.bf16.msra.mxu0 %v2534
    %3317 = vmatprep.subr.bf16.mxu0 %v2539
    %3318 = vmatpush1.bf16.msra.mxu0 %v2538
    %3319 = vmatprep.subr.bf16.mxu0 %v2543
    %3320 = vmatpush1.bf16.msra.mxu0 %v2542
    %3321 = vmatprep.subr.bf16.mxu0 %v2547
    %3322 = vmatpush1.bf16.msra.mxu0 %v2546
    %3323 = vmatprep.subr.bf16.mxu0 %v2551
    %3324 = vmatpush1.bf16.msra.mxu0 %v2550
    %3325 = vmatprep.subr.bf16.mxu0 %v2555
    %3326 = vmatpush1.bf16.msra.mxu0 %v2554
    %3327 = vmatprep.subr.bf16.mxu0 %v2559
    %3328 = vmatpush1.bf16.msra.mxu0 %v2558
    %3329 = vmatprep.subr.bf16.mxu0 %v2563
    %3330 = vmatpush1.bf16.msra.mxu0 %v2562
    %3331 = vmatprep.subr.bf16.mxu0 %v2567
    %3332 = vmatpush1.bf16.msra.mxu0 %v2566
    %3333 = vmatprep.mubr.bf16.mxu0 %v1073
    %3334 = vmatmul.mubr.bf16.gmra.mrb[0].mxu0 %v1072
    %v3335 = vpop.f32.mrb[0].mxu0
    %v3336 = vadd.f32 %v3263, %v3335
    %v3337 = vpop.f32.mrb[0].mxu0
    %v3338 = vadd.f32 %v3265, %v3337
    %v3339 = vpop.f32.mrb[0].mxu0
    %v3340 = vadd.f32 %v3267, %v3339
    %v3341 = vpop.f32.mrb[0].mxu0
    %v3342 = vadd.f32 %v3269, %v3341
    %3343 = vmatprep.mubr.bf16.mxu0 %v1085
    %3344 = vmatmul.mubr.bf16.gmra.mrb[0].mxu0 %v1084
    %v3345 = vpop.f32.mrb[0].mxu0
    %v3346 = vadd.f32 %v3273, %v3345
    %v3347 = vpop.f32.mrb[0].mxu0
    %v3348 = vadd.f32 %v3275, %v3347
    %v3349 = vpop.f32.mrb[0].mxu0
    %v3350 = vadd.f32 %v3277, %v3349
    %v3351 = vpop.f32.mrb[0].mxu0
    %v3352 = vadd.f32 %v3279, %v3351
    %3353 = vmatprep.mubr.bf16.mxu0 %v1097
    %3354 = vmatmul.mubr.bf16.gmra.mrb[0].mxu0 %v1096
    %v3355 = vpop.f32.mrb[0].mxu0
    %v3356 = vadd.f32 %v3283, %v3355
    %v3357 = vpop.f32.mrb[0].mxu0
    %v3358 = vadd.f32 %v3285, %v3357
    %v3359 = vpop.f32.mrb[0].mxu0
    %v3360 = vadd.f32 %v3287, %v3359
    %v3361 = vpop.f32.mrb[0].mxu0
    %v3362 = vadd.f32 %v3289, %v3361
    %3363 = vmatprep.mubr.bf16.mxu0 %v1109
    %3364 = vmatmul.mubr.bf16.gmra.mrb[0].mxu0 %v1108
    %v3365 = vpop.f32.mrb[0].mxu0
    %v3366 = vadd.f32 %v3293, %v3365
    %v3367 = vpop.f32.mrb[0].mxu0
    %v3368 = vadd.f32 %v3295, %v3367
    %v3369 = vpop.f32.mrb[0].mxu0
    %v3370 = vadd.f32 %v3297, %v3369
    %v3371 = vpop.f32.mrb[0].mxu0
    %v3372 = vadd.f32 %v3299, %v3371
    %3373 = vdwg.mxu0
    %3374 = vmatprep.subr.bf16.mxu0 %v2571
    %3375 = vmatpush1.bf16.msra.mxu0 %v2570
    %3376 = vmatprep.subr.bf16.mxu0 %v2575
    %3377 = vmatpush1.bf16.msra.mxu0 %v2574
    %3378 = vmatprep.subr.bf16.mxu0 %v2579
    %3379 = vmatpush1.bf16.msra.mxu0 %v2578
    %3380 = vmatprep.subr.bf16.mxu0 %v2583
    %3381 = vmatpush1.bf16.msra.mxu0 %v2582
    %3382 = vmatprep.subr.bf16.mxu0 %v2587
    %3383 = vmatpush1.bf16.msra.mxu0 %v2586
    %3384 = vmatprep.subr.bf16.mxu0 %v2591
    %3385 = vmatpush1.bf16.msra.mxu0 %v2590
    %3386 = vmatprep.subr.bf16.mxu0 %v2595
    %3387 = vmatpush1.bf16.msra.mxu0 %v2594
    %3388 = vmatprep.subr.bf16.mxu0 %v2599
    %3389 = vmatpush1.bf16.msra.mxu0 %v2598
    %3390 = vmatprep.subr.bf16.mxu0 %v2603
    %3391 = vmatpush1.bf16.msra.mxu0 %v2602
    %3392 = vmatprep.subr.bf16.mxu0 %v2607
    %3393 = vmatpush1.bf16.msra.mxu0 %v2606
    %3394 = vmatprep.subr.bf16.mxu0 %v2611
    %3395 = vmatpush1.bf16.msra.mxu0 %v2610
    %3396 = vmatprep.subr.bf16.mxu0 %v2615
    %3397 = vmatpush1.bf16.msra.mxu0 %v2614
    %3398 = vmatprep.subr.bf16.mxu0 %v2619
    %3399 = vmatpush1.bf16.msra.mxu0 %v2618
    %3400 = vmatprep.subr.bf16.mxu0 %v2623
    %3401 = vmatpush1.bf16.msra.mxu0 %v2622
    %3402 = vmatprep.subr.bf16.mxu0 %v2627
    %3403 = vmatpush1.bf16.msra.mxu0 %v2626
    %3404 = vmatprep.subr.bf16.mxu0 %v2631
    %3405 = vmatpush1.bf16.msra.mxu0 %v2630
    %3406 = vmatprep.mubr.bf16.mxu0 %v1075
    %3407 = vmatmul.mubr.bf16.gmra.mrb[0].mxu0 %v1074
    %v3408 = vpop.f32.mrb[0].mxu0
    %v3409 = vadd.f32 %v3336, %v3408
    %v3410 = vpop.f32.mrb[0].mxu0
    %v3411 = vadd.f32 %v3338, %v3410
    %v3412 = vpop.f32.mrb[0].mxu0
    %v3413 = vadd.f32 %v3340, %v3412
    %v3414 = vpop.f32.mrb[0].mxu0
    %v3415 = vadd.f32 %v3342, %v3414
    %3416 = vmatprep.mubr.bf16.mxu0 %v1087
    %3417 = vmatmul.mubr.bf16.gmra.mrb[0].mxu0 %v1086
    %v3418 = vpop.f32.mrb[0].mxu0
    %v3419 = vadd.f32 %v3346, %v3418
    %v3420 = vpop.f32.mrb[0].mxu0
    %v3421 = vadd.f32 %v3348, %v3420
    %v3422 = vpop.f32.mrb[0].mxu0
    %v3423 = vadd.f32 %v3350, %v3422
    %v3424 = vpop.f32.mrb[0].mxu0
    %v3425 = vadd.f32 %v3352, %v3424
    %3426 = vmatprep.mubr.bf16.mxu0 %v1099
    %3427 = vmatmul.mubr.bf16.gmra.mrb[0].mxu0 %v1098
    %v3428 = vpop.f32.mrb[0].mxu0
    %v3429 = vadd.f32 %v3356, %v3428
    %v3430 = vpop.f32.mrb[0].mxu0
    %v3431 = vadd.f32 %v3358, %v3430
    %v3432 = vpop.f32.mrb[0].mxu0
    %v3433 = vadd.f32 %v3360, %v3432
    %v3434 = vpop.f32.mrb[0].mxu0
    %v3435 = vadd.f32 %v3362, %v3434
    %3436 = vmatprep.mubr.bf16.mxu0 %v1111
    %3437 = vmatmul.mubr.bf16.gmra.mrb[0].mxu0 %v1110
    %v3438 = vpop.f32.mrb[0].mxu0
    %v3439 = vadd.f32 %v3366, %v3438
    %v3440 = vpop.f32.mrb[0].mxu0
    %v3441 = vadd.f32 %v3368, %v3440
    %v3442 = vpop.f32.mrb[0].mxu0
    %v3443 = vadd.f32 %v3370, %v3442
    %v3444 = vpop.f32.mrb[0].mxu0
    %v3445 = vadd.f32 %v3372, %v3444
    %3446 = vdwg.mxu0
    %3447 = vmatprep.subr.bf16.mxu0 %v2635
    %3448 = vmatpush1.bf16.msra.mxu0 %v2634
    %3449 = vmatprep.subr.bf16.mxu0 %v2639
    %3450 = vmatpush1.bf16.msra.mxu0 %v2638
    %3451 = vmatprep.subr.bf16.mxu0 %v2643
    %3452 = vmatpush1.bf16.msra.mxu0 %v2642
    %3453 = vmatprep.subr.bf16.mxu0 %v2647
    %3454 = vmatpush1.bf16.msra.mxu0 %v2646
    %3455 = vmatprep.subr.bf16.mxu0 %v2651
    %3456 = vmatpush1.bf16.msra.mxu0 %v2650
    %3457 = vmatprep.subr.bf16.mxu0 %v2655
    %3458 = vmatpush1.bf16.msra.mxu0 %v2654
    %3459 = vmatprep.subr.bf16.mxu0 %v2659
    %3460 = vmatpush1.bf16.msra.mxu0 %v2658
    %3461 = vmatprep.subr.bf16.mxu0 %v2663
    %3462 = vmatpush1.bf16.msra.mxu0 %v2662
    %3463 = vmatprep.subr.bf16.mxu0 %v2667
    %3464 = vmatpush1.bf16.msra.mxu0 %v2666
    %3465 = vmatprep.subr.bf16.mxu0 %v2671
    %3466 = vmatpush1.bf16.msra.mxu0 %v2670
    %3467 = vmatprep.subr.bf16.mxu0 %v2675
    %3468 = vmatpush1.bf16.msra.mxu0 %v2674
    %3469 = vmatprep.subr.bf16.mxu0 %v2679
    %3470 = vmatpush1.bf16.msra.mxu0 %v2678
    %3471 = vmatprep.subr.bf16.mxu0 %v2683
    %3472 = vmatpush1.bf16.msra.mxu0 %v2682
    %3473 = vmatprep.subr.bf16.mxu0 %v2687
    %3474 = vmatpush1.bf16.msra.mxu0 %v2686
    %3475 = vmatprep.subr.bf16.mxu0 %v2691
    %3476 = vmatpush1.bf16.msra.mxu0 %v2690
    %3477 = vmatprep.subr.bf16.mxu0 %v2695
    %3478 = vmatpush1.bf16.msra.mxu0 %v2694
    %3479 = vmatprep.mubr.bf16.mxu0 %v1077
    %3480 = vmatmul.mubr.bf16.gmra.mrb[0].mxu0 %v1076
    %v3481 = vpop.f32.mrb[0].mxu0
    %v3482 = vadd.f32 %v3409, %v3481
    %v3483 = vpop.f32.mrb[0].mxu0
    %v3484 = vadd.f32 %v3411, %v3483
    %v3485 = vpop.f32.mrb[0].mxu0
    %v3486 = vadd.f32 %v3413, %v3485
    %v3487 = vpop.f32.mrb[0].mxu0
    %v3488 = vadd.f32 %v3415, %v3487
    %3489 = vmatprep.mubr.bf16.mxu0 %v1089
    %3490 = vmatmul.mubr.bf16.gmra.mrb[0].mxu0 %v1088
    %v3491 = vpop.f32.mrb[0].mxu0
    %v3492 = vadd.f32 %v3419, %v3491
    %v3493 = vpop.f32.mrb[0].mxu0
    %v3494 = vadd.f32 %v3421, %v3493
    %v3495 = vpop.f32.mrb[0].mxu0
    %v3496 = vadd.f32 %v3423, %v3495
    %v3497 = vpop.f32.mrb[0].mxu0
    %v3498 = vadd.f32 %v3425, %v3497
    %3499 = vmatprep.mubr.bf16.mxu0 %v1101
    %3500 = vmatmul.mubr.bf16.gmra.mrb[0].mxu0 %v1100
    %v3501 = vpop.f32.mrb[0].mxu0
    %v3502 = vadd.f32 %v3429, %v3501
    %v3503 = vpop.f32.mrb[0].mxu0
    %v3504 = vadd.f32 %v3431, %v3503
    %v3505 = vpop.f32.mrb[0].mxu0
    %v3506 = vadd.f32 %v3433, %v3505
    %v3507 = vpop.f32.mrb[0].mxu0
    %v3508 = vadd.f32 %v3435, %v3507
    %3509 = vmatprep.mubr.bf16.mxu0 %v1113
    %3510 = vmatmul.mubr.bf16.gmra.mrb[0].mxu0 %v1112
    %v3511 = vpop.f32.mrb[0].mxu0
    %v3512 = vadd.f32 %v3439, %v3511
    %v3513 = vpop.f32.mrb[0].mxu0
    %v3514 = vadd.f32 %v3441, %v3513
    %v3515 = vpop.f32.mrb[0].mxu0
    %v3516 = vadd.f32 %v3443, %v3515
    %v3517 = vpop.f32.mrb[0].mxu0
    %v3518 = vadd.f32 %v3445, %v3517
    %3519 = vdwg.mxu0
    %3520 = vmatprep.subr.bf16.mxu0 %v2317
    %3521 = vmatpush1.bf16.msra.mxu0 %v2316
    %3522 = vmatprep.subr.bf16.mxu0 %v2321
    %3523 = vmatpush1.bf16.msra.mxu0 %v2320
    %3524 = vmatprep.subr.bf16.mxu0 %v2325
    %3525 = vmatpush1.bf16.msra.mxu0 %v2324
    %3526 = vmatprep.subr.bf16.mxu0 %v2329
    %3527 = vmatpush1.bf16.msra.mxu0 %v2328
    %3528 = vmatprep.subr.bf16.mxu0 %v2333
    %3529 = vmatpush1.bf16.msra.mxu0 %v2332
    %3530 = vmatprep.subr.bf16.mxu0 %v2337
    %3531 = vmatpush1.bf16.msra.mxu0 %v2336
    %3532 = vmatprep.subr.bf16.mxu0 %v2341
    %3533 = vmatpush1.bf16.msra.mxu0 %v2340
    %3534 = vmatprep.subr.bf16.mxu0 %v2345
    %3535 = vmatpush1.bf16.msra.mxu0 %v2344
    %3536 = vmatprep.subr.bf16.mxu0 %v2349
    %3537 = vmatpush1.bf16.msra.mxu0 %v2348
    %3538 = vmatprep.subr.bf16.mxu0 %v2353
    %3539 = vmatpush1.bf16.msra.mxu0 %v2352
    %3540 = vmatprep.subr.bf16.mxu0 %v2357
    %3541 = vmatpush1.bf16.msra.mxu0 %v2356
    %3542 = vmatprep.subr.bf16.mxu0 %v2361
    %3543 = vmatpush1.bf16.msra.mxu0 %v2360
    %3544 = vmatprep.subr.bf16.mxu0 %v2365
    %3545 = vmatpush1.bf16.msra.mxu0 %v2364
    %3546 = vmatprep.subr.bf16.mxu0 %v2369
    %3547 = vmatpush1.bf16.msra.mxu0 %v2368
    %3548 = vmatprep.subr.bf16.mxu0 %v2373
    %3549 = vmatpush1.bf16.msra.mxu0 %v2372
    %3550 = vmatprep.subr.bf16.mxu0 %v2377
    %3551 = vmatpush1.bf16.msra.mxu0 %v2376
    %3552 = vmatprep.mubr.bf16.mxu0 %v1067
    %3553 = vmatmul.mubr.bf16.gmra.mrb[0].mxu0 %v1066
    %v3554 = vpop.f32.mrb[0].mxu0
    %v3555 = vadd.f32 0.0, %v3554
    %v3556 = vpop.f32.mrb[0].mxu0
    %v3557 = vadd.f32 0.0, %v3556
    %v3558 = vpop.f32.mrb[0].mxu0
    %v3559 = vadd.f32 0.0, %v3558
    %v3560 = vpop.f32.mrb[0].mxu0
    %v3561 = vadd.f32 0.0, %v3560
    %3562 = vmatprep.mubr.bf16.mxu0 %v1079
    %3563 = vmatmul.mubr.bf16.gmra.mrb[0].mxu0 %v1078
    %v3564 = vpop.f32.mrb[0].mxu0
    %v3565 = vadd.f32 0.0, %v3564
    %v3566 = vpop.f32.mrb[0].mxu0
    %v3567 = vadd.f32 0.0, %v3566
    %v3568 = vpop.f32.mrb[0].mxu0
    %v3569 = vadd.f32 0.0, %v3568
    %v3570 = vpop.f32.mrb[0].mxu0
    %v3571 = vadd.f32 0.0, %v3570
    %3572 = vmatprep.mubr.bf16.mxu0 %v1091
    %3573 = vmatmul.mubr.bf16.gmra.mrb[0].mxu0 %v1090
    %v3574 = vpop.f32.mrb[0].mxu0
    %v3575 = vadd.f32 0.0, %v3574
    %v3576 = vpop.f32.mrb[0].mxu0
    %v3577 = vadd.f32 0.0, %v3576
    %v3578 = vpop.f32.mrb[0].mxu0
    %v3579 = vadd.f32 0.0, %v3578
    %v3580 = vpop.f32.mrb[0].mxu0
    %v3581 = vadd.f32 0.0, %v3580
    %3582 = vmatprep.mubr.bf16.mxu0 %v1103
    %3583 = vmatmul.mubr.bf16.gmra.mrb[0].mxu0 %v1102
    %v3584 = vpop.f32.mrb[0].mxu0
    %v3585 = vadd.f32 0.0, %v3584
    %v3586 = vpop.f32.mrb[0].mxu0
    %v3587 = vadd.f32 0.0, %v3586
    %v3588 = vpop.f32.mrb[0].mxu0
    %v3589 = vadd.f32 0.0, %v3588
    %v3590 = vpop.f32.mrb[0].mxu0
    %v3591 = vadd.f32 0.0, %v3590
    %3592 = vdwg.mxu0
    %3593 = vmatprep.subr.bf16.mxu0 %v2381
    %3594 = vmatpush1.bf16.msra.mxu0 %v2380
    %3595 = vmatprep.subr.bf16.mxu0 %v2385
    %3596 = vmatpush1.bf16.msra.mxu0 %v2384
    %3597 = vmatprep.subr.bf16.mxu0 %v2389
    %3598 = vmatpush1.bf16.msra.mxu0 %v2388
    %3599 = vmatprep.subr.bf16.mxu0 %v2393
    %3600 = vmatpush1.bf16.msra.mxu0 %v2392
    %3601 = vmatprep.subr.bf16.mxu0 %v2397
    %3602 = vmatpush1.bf16.msra.mxu0 %v2396
    %3603 = vmatprep.subr.bf16.mxu0 %v2401
    %3604 = vmatpush1.bf16.msra.mxu0 %v2400
    %3605 = vmatprep.subr.bf16.mxu0 %v2405
    %3606 = vmatpush1.bf16.msra.mxu0 %v2404
    %3607 = vmatprep.subr.bf16.mxu0 %v2409
    %3608 = vmatpush1.bf16.msra.mxu0 %v2408
    %3609 = vmatprep.subr.bf16.mxu0 %v2413
    %3610 = vmatpush1.bf16.msra.mxu0 %v2412
    %3611 = vmatprep.subr.bf16.mxu0 %v2417
    %3612 = vmatpush1.bf16.msra.mxu0 %v2416
    %3613 = vmatprep.subr.bf16.mxu0 %v2421
    %3614 = vmatpush1.bf16.msra.mxu0 %v2420
    %3615 = vmatprep.subr.bf16.mxu0 %v2425
    %3616 = vmatpush1.bf16.msra.mxu0 %v2424
    %3617 = vmatprep.subr.bf16.mxu0 %v2429
    %3618 = vmatpush1.bf16.msra.mxu0 %v2428
    %3619 = vmatprep.subr.bf16.mxu0 %v2433
    %3620 = vmatpush1.bf16.msra.mxu0 %v2432
    %3621 = vmatprep.subr.bf16.mxu0 %v2437
    %3622 = vmatpush1.bf16.msra.mxu0 %v2436
    %3623 = vmatprep.subr.bf16.mxu0 %v2441
    %3624 = vmatpush1.bf16.msra.mxu0 %v2440
    %3625 = vmatprep.mubr.bf16.mxu0 %v1069
    %3626 = vmatmul.mubr.bf16.gmra.mrb[0].mxu0 %v1068
    %v3627 = vpop.f32.mrb[0].mxu0
    %v3628 = vadd.f32 %v3555, %v3627
    %v3629 = vpop.f32.mrb[0].mxu0
    %v3630 = vadd.f32 %v3557, %v3629
    %v3631 = vpop.f32.mrb[0].mxu0
    %v3632 = vadd.f32 %v3559, %v3631
    %v3633 = vpop.f32.mrb[0].mxu0
    %v3634 = vadd.f32 %v3561, %v3633
    %3635 = vmatprep.mubr.bf16.mxu0 %v1081
    %3636 = vmatmul.mubr.bf16.gmra.mrb[0].mxu0 %v1080
    %v3637 = vpop.f32.mrb[0].mxu0
    %v3638 = vadd.f32 %v3565, %v3637
    %v3639 = vpop.f32.mrb[0].mxu0
    %v3640 = vadd.f32 %v3567, %v3639
    %v3641 = vpop.f32.mrb[0].mxu0
    %v3642 = vadd.f32 %v3569, %v3641
    %v3643 = vpop.f32.mrb[0].mxu0
    %v3644 = vadd.f32 %v3571, %v3643
    %3645 = vmatprep.mubr.bf16.mxu0 %v1093
    %3646 = vmatmul.mubr.bf16.gmra.mrb[0].mxu0 %v1092
    %v3647 = vpop.f32.mrb[0].mxu0
    %v3648 = vadd.f32 %v3575, %v3647
    %v3649 = vpop.f32.mrb[0].mxu0
    %v3650 = vadd.f32 %v3577, %v3649
    %v3651 = vpop.f32.mrb[0].mxu0
    %v3652 = vadd.f32 %v3579, %v3651
    %v3653 = vpop.f32.mrb[0].mxu0
    %v3654 = vadd.f32 %v3581, %v3653
    %3655 = vmatprep.mubr.bf16.mxu0 %v1105
    %3656 = vmatmul.mubr.bf16.gmra.mrb[0].mxu0 %v1104
    %v3657 = vpop.f32.mrb[0].mxu0
    %v3658 = vadd.f32 %v3585, %v3657
    %v3659 = vpop.f32.mrb[0].mxu0
    %v3660 = vadd.f32 %v3587, %v3659
    %v3661 = vpop.f32.mrb[0].mxu0
    %v3662 = vadd.f32 %v3589, %v3661
    %v3663 = vpop.f32.mrb[0].mxu0
    %v3664 = vadd.f32 %v3591, %v3663
    %3665 = vdwg.mxu0
    %3666 = vmatprep.subr.bf16.mxu0 %v2445
    %3667 = vmatpush1.bf16.msra.mxu0 %v2444
    %3668 = vmatprep.subr.bf16.mxu0 %v2449
    %3669 = vmatpush1.bf16.msra.mxu0 %v2448
    %3670 = vmatprep.subr.bf16.mxu0 %v2453
    %3671 = vmatpush1.bf16.msra.mxu0 %v2452
    %3672 = vmatprep.subr.bf16.mxu0 %v2457
    %3673 = vmatpush1.bf16.msra.mxu0 %v2456
    %3674 = vmatprep.subr.bf16.mxu0 %v2461
    %3675 = vmatpush1.bf16.msra.mxu0 %v2460
    %3676 = vmatprep.subr.bf16.mxu0 %v2465
    %3677 = vmatpush1.bf16.msra.mxu0 %v2464
    %3678 = vmatprep.subr.bf16.mxu0 %v2469
    %3679 = vmatpush1.bf16.msra.mxu0 %v2468
    %3680 = vmatprep.subr.bf16.mxu0 %v2473
    %3681 = vmatpush1.bf16.msra.mxu0 %v2472
    %3682 = vmatprep.subr.bf16.mxu0 %v2477
    %3683 = vmatpush1.bf16.msra.mxu0 %v2476
    %3684 = vmatprep.subr.bf16.mxu0 %v2481
    %3685 = vmatpush1.bf16.msra.mxu0 %v2480
    %3686 = vmatprep.subr.bf16.mxu0 %v2485
    %3687 = vmatpush1.bf16.msra.mxu0 %v2484
    %3688 = vmatprep.subr.bf16.mxu0 %v2489
    %3689 = vmatpush1.bf16.msra.mxu0 %v2488
    %3690 = vmatprep.subr.bf16.mxu0 %v2493
    %3691 = vmatpush1.bf16.msra.mxu0 %v2492
    %3692 = vmatprep.subr.bf16.mxu0 %v2497
    %3693 = vmatpush1.bf16.msra.mxu0 %v2496
    %3694 = vmatprep.subr.bf16.mxu0 %v2501
    %3695 = vmatpush1.bf16.msra.mxu0 %v2500
    %3696 = vmatprep.subr.bf16.mxu0 %v2505
    %3697 = vmatpush1.bf16.msra.mxu0 %v2504
    %3698 = vmatprep.mubr.bf16.mxu0 %v1071
    %3699 = vmatmul.mubr.bf16.gmra.mrb[0].mxu0 %v1070
    %v3700 = vpop.f32.mrb[0].mxu0
    %v3701 = vadd.f32 %v3628, %v3700
    %v3702 = vpop.f32.mrb[0].mxu0
    %v3703 = vadd.f32 %v3630, %v3702
    %v3704 = vpop.f32.mrb[0].mxu0
    %v3705 = vadd.f32 %v3632, %v3704
    %v3706 = vpop.f32.mrb[0].mxu0
    %v3707 = vadd.f32 %v3634, %v3706
    %3708 = vmatprep.mubr.bf16.mxu0 %v1083
    %3709 = vmatmul.mubr.bf16.gmra.mrb[0].mxu0 %v1082
    %v3710 = vpop.f32.mrb[0].mxu0
    %v3711 = vadd.f32 %v3638, %v3710
    %v3712 = vpop.f32.mrb[0].mxu0
    %v3713 = vadd.f32 %v3640, %v3712
    %v3714 = vpop.f32.mrb[0].mxu0
    %v3715 = vadd.f32 %v3642, %v3714
    %v3716 = vpop.f32.mrb[0].mxu0
    %v3717 = vadd.f32 %v3644, %v3716
    %3718 = vmatprep.mubr.bf16.mxu0 %v1095
    %3719 = vmatmul.mubr.bf16.gmra.mrb[0].mxu0 %v1094
    %v3720 = vpop.f32.mrb[0].mxu0
    %v3721 = vadd.f32 %v3648, %v3720
    %v3722 = vpop.f32.mrb[0].mxu0
    %v3723 = vadd.f32 %v3650, %v3722
    %v3724 = vpop.f32.mrb[0].mxu0
    %v3725 = vadd.f32 %v3652, %v3724
    %v3726 = vpop.f32.mrb[0].mxu0
    %v3727 = vadd.f32 %v3654, %v3726
    %3728 = vmatprep.mubr.bf16.mxu0 %v1107
    %3729 = vmatmul.mubr.bf16.gmra.mrb[0].mxu0 %v1106
    %v3730 = vpop.f32.mrb[0].mxu0
    %v3731 = vadd.f32 %v3658, %v3730
    %v3732 = vpop.f32.mrb[0].mxu0
    %v3733 = vadd.f32 %v3660, %v3732
    %v3734 = vpop.f32.mrb[0].mxu0
    %v3735 = vadd.f32 %v3662, %v3734
    %v3736 = vpop.f32.mrb[0].mxu0
    %v3737 = vadd.f32 %v3664, %v3736
    %3738 = vdwg.mxu0
    %3739 = vmatprep.subr.bf16.mxu0 %v2509
    %3740 = vmatpush1.bf16.msra.mxu0 %v2508
    %3741 = vmatprep.subr.bf16.mxu0 %v2513
    %3742 = vmatpush1.bf16.msra.mxu0 %v2512
    %3743 = vmatprep.subr.bf16.mxu0 %v2517
    %3744 = vmatpush1.bf16.msra.mxu0 %v2516
    %3745 = vmatprep.subr.bf16.mxu0 %v2521
    %3746 = vmatpush1.bf16.msra.mxu0 %v2520
    %3747 = vmatprep.subr.bf16.mxu0 %v2525
    %3748 = vmatpush1.bf16.msra.mxu0 %v2524
    %3749 = vmatprep.subr.bf16.mxu0 %v2529
    %3750 = vmatpush1.bf16.msra.mxu0 %v2528
    %3751 = vmatprep.subr.bf16.mxu0 %v2533
    %3752 = vmatpush1.bf16.msra.mxu0 %v2532
    %3753 = vmatprep.subr.bf16.mxu0 %v2537
    %3754 = vmatpush1.bf16.msra.mxu0 %v2536
    %3755 = vmatprep.subr.bf16.mxu0 %v2541
    %3756 = vmatpush1.bf16.msra.mxu0 %v2540
    %3757 = vmatprep.subr.bf16.mxu0 %v2545
    %3758 = vmatpush1.bf16.msra.mxu0 %v2544
    %3759 = vmatprep.subr.bf16.mxu0 %v2549
    %3760 = vmatpush1.bf16.msra.mxu0 %v2548
    %3761 = vmatprep.subr.bf16.mxu0 %v2553
    %3762 = vmatpush1.bf16.msra.mxu0 %v2552
    %3763 = vmatprep.subr.bf16.mxu0 %v2557
    %3764 = vmatpush1.bf16.msra.mxu0 %v2556
    %3765 = vmatprep.subr.bf16.mxu0 %v2561
    %3766 = vmatpush1.bf16.msra.mxu0 %v2560
    %3767 = vmatprep.subr.bf16.mxu0 %v2565
    %3768 = vmatpush1.bf16.msra.mxu0 %v2564
    %3769 = vmatprep.subr.bf16.mxu0 %v2569
    %3770 = vmatpush1.bf16.msra.mxu0 %v2568
    %3771 = vmatprep.mubr.bf16.mxu0 %v1073
    %3772 = vmatmul.mubr.bf16.gmra.mrb[0].mxu0 %v1072
    %v3773 = vpop.f32.mrb[0].mxu0
    %v3774 = vadd.f32 %v3701, %v3773
    %v3775 = vpop.f32.mrb[0].mxu0
    %v3776 = vadd.f32 %v3703, %v3775
    %v3777 = vpop.f32.mrb[0].mxu0
    %v3778 = vadd.f32 %v3705, %v3777
    %v3779 = vpop.f32.mrb[0].mxu0
    %v3780 = vadd.f32 %v3707, %v3779
    %3781 = vmatprep.mubr.bf16.mxu0 %v1085
    %3782 = vmatmul.mubr.bf16.gmra.mrb[0].mxu0 %v1084
    %v3783 = vpop.f32.mrb[0].mxu0
    %v3784 = vadd.f32 %v3711, %v3783
    %v3785 = vpop.f32.mrb[0].mxu0
    %v3786 = vadd.f32 %v3713, %v3785
    %v3787 = vpop.f32.mrb[0].mxu0
    %v3788 = vadd.f32 %v3715, %v3787
    %v3789 = vpop.f32.mrb[0].mxu0
    %v3790 = vadd.f32 %v3717, %v3789
    %3791 = vmatprep.mubr.bf16.mxu0 %v1097
    %3792 = vmatmul.mubr.bf16.gmra.mrb[0].mxu0 %v1096
    %v3793 = vpop.f32.mrb[0].mxu0
    %v3794 = vadd.f32 %v3721, %v3793
    %v3795 = vpop.f32.mrb[0].mxu0
    %v3796 = vadd.f32 %v3723, %v3795
    %v3797 = vpop.f32.mrb[0].mxu0
    %v3798 = vadd.f32 %v3725, %v3797
    %v3799 = vpop.f32.mrb[0].mxu0
    %v3800 = vadd.f32 %v3727, %v3799
    %3801 = vmatprep.mubr.bf16.mxu0 %v1109
    %3802 = vmatmul.mubr.bf16.gmra.mrb[0].mxu0 %v1108
    %v3803 = vpop.f32.mrb[0].mxu0
    %v3804 = vadd.f32 %v3731, %v3803
    %v3805 = vpop.f32.mrb[0].mxu0
    %v3806 = vadd.f32 %v3733, %v3805
    %v3807 = vpop.f32.mrb[0].mxu0
    %v3808 = vadd.f32 %v3735, %v3807
    %v3809 = vpop.f32.mrb[0].mxu0
    %v3810 = vadd.f32 %v3737, %v3809
    %3811 = vdwg.mxu0
    %3812 = vmatprep.subr.bf16.mxu0 %v2573
    %3813 = vmatpush1.bf16.msra.mxu0 %v2572
    %3814 = vmatprep.subr.bf16.mxu0 %v2577
    %3815 = vmatpush1.bf16.msra.mxu0 %v2576
    %3816 = vmatprep.subr.bf16.mxu0 %v2581
    %3817 = vmatpush1.bf16.msra.mxu0 %v2580
    %3818 = vmatprep.subr.bf16.mxu0 %v2585
    %3819 = vmatpush1.bf16.msra.mxu0 %v2584
    %3820 = vmatprep.subr.bf16.mxu0 %v2589
    %3821 = vmatpush1.bf16.msra.mxu0 %v2588
    %3822 = vmatprep.subr.bf16.mxu0 %v2593
    %3823 = vmatpush1.bf16.msra.mxu0 %v2592
    %3824 = vmatprep.subr.bf16.mxu0 %v2597
    %3825 = vmatpush1.bf16.msra.mxu0 %v2596
    %3826 = vmatprep.subr.bf16.mxu0 %v2601
    %3827 = vmatpush1.bf16.msra.mxu0 %v2600
    %3828 = vmatprep.subr.bf16.mxu0 %v2605
    %3829 = vmatpush1.bf16.msra.mxu0 %v2604
    %3830 = vmatprep.subr.bf16.mxu0 %v2609
    %3831 = vmatpush1.bf16.msra.mxu0 %v2608
    %3832 = vmatprep.subr.bf16.mxu0 %v2613
    %3833 = vmatpush1.bf16.msra.mxu0 %v2612
    %3834 = vmatprep.subr.bf16.mxu0 %v2617
    %3835 = vmatpush1.bf16.msra.mxu0 %v2616
    %3836 = vmatprep.subr.bf16.mxu0 %v2621
    %3837 = vmatpush1.bf16.msra.mxu0 %v2620
    %3838 = vmatprep.subr.bf16.mxu0 %v2625
    %3839 = vmatpush1.bf16.msra.mxu0 %v2624
    %3840 = vmatprep.subr.bf16.mxu0 %v2629
    %3841 = vmatpush1.bf16.msra.mxu0 %v2628
    %3842 = vmatprep.subr.bf16.mxu0 %v2633
    %3843 = vmatpush1.bf16.msra.mxu0 %v2632
    %3844 = vmatprep.mubr.bf16.mxu0 %v1075
    %3845 = vmatmul.mubr.bf16.gmra.mrb[0].mxu0 %v1074
    %v3846 = vpop.f32.mrb[0].mxu0
    %v3847 = vadd.f32 %v3774, %v3846
    %v3848 = vpop.f32.mrb[0].mxu0
    %v3849 = vadd.f32 %v3776, %v3848
    %v3850 = vpop.f32.mrb[0].mxu0
    %v3851 = vadd.f32 %v3778, %v3850
    %v3852 = vpop.f32.mrb[0].mxu0
    %v3853 = vadd.f32 %v3780, %v3852
    %3854 = vmatprep.mubr.bf16.mxu0 %v1087
    %3855 = vmatmul.mubr.bf16.gmra.mrb[0].mxu0 %v1086
    %v3856 = vpop.f32.mrb[0].mxu0
    %v3857 = vadd.f32 %v3784, %v3856
    %v3858 = vpop.f32.mrb[0].mxu0
    %v3859 = vadd.f32 %v3786, %v3858
    %v3860 = vpop.f32.mrb[0].mxu0
    %v3861 = vadd.f32 %v3788, %v3860
    %v3862 = vpop.f32.mrb[0].mxu0
    %v3863 = vadd.f32 %v3790, %v3862
    %3864 = vmatprep.mubr.bf16.mxu0 %v1099
    %3865 = vmatmul.mubr.bf16.gmra.mrb[0].mxu0 %v1098
    %v3866 = vpop.f32.mrb[0].mxu0
    %v3867 = vadd.f32 %v3794, %v3866
    %v3868 = vpop.f32.mrb[0].mxu0
    %v3869 = vadd.f32 %v3796, %v3868
    %v3870 = vpop.f32.mrb[0].mxu0
    %v3871 = vadd.f32 %v3798, %v3870
    %v3872 = vpop.f32.mrb[0].mxu0
    %v3873 = vadd.f32 %v3800, %v3872
    %3874 = vmatprep.mubr.bf16.mxu0 %v1111
    %3875 = vmatmul.mubr.bf16.gmra.mrb[0].mxu0 %v1110
    %v3876 = vpop.f32.mrb[0].mxu0
    %v3877 = vadd.f32 %v3804, %v3876
    %v3878 = vpop.f32.mrb[0].mxu0
    %v3879 = vadd.f32 %v3806, %v3878
    %v3880 = vpop.f32.mrb[0].mxu0
    %v3881 = vadd.f32 %v3808, %v3880
    %v3882 = vpop.f32.mrb[0].mxu0
    %v3883 = vadd.f32 %v3810, %v3882
    %3884 = vdwg.mxu0
    %3885 = vmatprep.subr.bf16.mxu0 %v2637
    %3886 = vmatpush1.bf16.msra.mxu0 %v2636
    %3887 = vmatprep.subr.bf16.mxu0 %v2641
    %3888 = vmatpush1.bf16.msra.mxu0 %v2640
    %3889 = vmatprep.subr.bf16.mxu0 %v2645
    %3890 = vmatpush1.bf16.msra.mxu0 %v2644
    %3891 = vmatprep.subr.bf16.mxu0 %v2649
    %3892 = vmatpush1.bf16.msra.mxu0 %v2648
    %3893 = vmatprep.subr.bf16.mxu0 %v2653
    %3894 = vmatpush1.bf16.msra.mxu0 %v2652
    %3895 = vmatprep.subr.bf16.mxu0 %v2657
    %3896 = vmatpush1.bf16.msra.mxu0 %v2656
    %3897 = vmatprep.subr.bf16.mxu0 %v2661
    %3898 = vmatpush1.bf16.msra.mxu0 %v2660
    %3899 = vmatprep.subr.bf16.mxu0 %v2665
    %3900 = vmatpush1.bf16.msra.mxu0 %v2664
    %3901 = vmatprep.subr.bf16.mxu0 %v2669
    %3902 = vmatpush1.bf16.msra.mxu0 %v2668
    %3903 = vmatprep.subr.bf16.mxu0 %v2673
    %3904 = vmatpush1.bf16.msra.mxu0 %v2672
    %3905 = vmatprep.subr.bf16.mxu0 %v2677
    %3906 = vmatpush1.bf16.msra.mxu0 %v2676
    %3907 = vmatprep.subr.bf16.mxu0 %v2681
    %3908 = vmatpush1.bf16.msra.mxu0 %v2680
    %3909 = vmatprep.subr.bf16.mxu0 %v2685
    %3910 = vmatpush1.bf16.msra.mxu0 %v2684
    %3911 = vmatprep.subr.bf16.mxu0 %v2689
    %3912 = vmatpush1.bf16.msra.mxu0 %v2688
    %3913 = vmatprep.subr.bf16.mxu0 %v2693
    %3914 = vmatpush1.bf16.msra.mxu0 %v2692
    %3915 = vmatprep.subr.bf16.mxu0 %v2697
    %3916 = vmatpush1.bf16.msra.mxu0 %v2696
    %3917 = vmatprep.mubr.bf16.mxu0 %v1077
    %3918 = vmatmul.mubr.bf16.gmra.mrb[0].mxu0 %v1076
    %v3919 = vpop.f32.mrb[0].mxu0
    %v3920 = vadd.f32 %v3847, %v3919
    %v3921 = vpop.f32.mrb[0].mxu0
    %v3922 = vadd.f32 %v3849, %v3921
    %v3923 = vpop.f32.mrb[0].mxu0
    %v3924 = vadd.f32 %v3851, %v3923
    %v3925 = vpop.f32.mrb[0].mxu0
    %v3926 = vadd.f32 %v3853, %v3925
    %3927 = vmatprep.mubr.bf16.mxu0 %v1089
    %3928 = vmatmul.mubr.bf16.gmra.mrb[0].mxu0 %v1088
    %v3929 = vpop.f32.mrb[0].mxu0
    %v3930 = vadd.f32 %v3857, %v3929
    %v3931 = vpop.f32.mrb[0].mxu0
    %v3932 = vadd.f32 %v3859, %v3931
    %v3933 = vpop.f32.mrb[0].mxu0
    %v3934 = vadd.f32 %v3861, %v3933
    %v3935 = vpop.f32.mrb[0].mxu0
    %v3936 = vadd.f32 %v3863, %v3935
    %3937 = vmatprep.mubr.bf16.mxu0 %v1101
    %3938 = vmatmul.mubr.bf16.gmra.mrb[0].mxu0 %v1100
    %v3939 = vpop.f32.mrb[0].mxu0
    %v3940 = vadd.f32 %v3867, %v3939
    %v3941 = vpop.f32.mrb[0].mxu0
    %v3942 = vadd.f32 %v3869, %v3941
    %v3943 = vpop.f32.mrb[0].mxu0
    %v3944 = vadd.f32 %v3871, %v3943
    %v3945 = vpop.f32.mrb[0].mxu0
    %v3946 = vadd.f32 %v3873, %v3945
    %3947 = vmatprep.mubr.bf16.mxu0 %v1113
    %3948 = vmatmul.mubr.bf16.gmra.mrb[0].mxu0 %v1112
    %v3949 = vpop.f32.mrb[0].mxu0
    %v3950 = vadd.f32 %v3877, %v3949
    %v3951 = vpop.f32.mrb[0].mxu0
    %v3952 = vadd.f32 %v3879, %v3951
    %v3953 = vpop.f32.mrb[0].mxu0
    %v3954 = vadd.f32 %v3881, %v3953
    %v3955 = vpop.f32.mrb[0].mxu0
    %v3956 = vadd.f32 %v3883, %v3955
    %3957 = vdwg.mxu0
    %v4006 = vunpack.c.l.b16 %v53
    %v4007 = vunpack.c.h.b16 %v53
    %v4008 = vunpack.c.l.b16 %v54
    %v4009 = vunpack.c.h.b16 %v54
    %v4010 = vunpack.c.l.b16 %v55
    %v4011 = vunpack.c.h.b16 %v55
    %v4012 = vunpack.c.l.b16 %v56
    %v4013 = vunpack.c.h.b16 %v56
    %v4014 = vunpack.c.l.b16 %v57
    %v4015 = vunpack.c.h.b16 %v57
    %v4016 = vunpack.c.l.b16 %v58
    %v4017 = vunpack.c.h.b16 %v58
    %v4018 = vunpack.c.l.b16 %v59
    %v4019 = vunpack.c.h.b16 %v59
    %v4020 = vunpack.c.l.b16 %v60
    %v4021 = vunpack.c.h.b16 %v60
    %v4022 = vunpack.c.l.b16 %v61
    %v4023 = vunpack.c.h.b16 %v61
    %v4024 = vunpack.c.l.b16 %v62
    %v4025 = vunpack.c.h.b16 %v62
    %v4026 = vunpack.c.l.b16 %v63
    %v4027 = vunpack.c.h.b16 %v63
    %v4028 = vunpack.c.l.b16 %v64
    %v4029 = vunpack.c.h.b16 %v64
    %v4030 = vunpack.c.l.b16 %v65
    %v4031 = vunpack.c.h.b16 %v65
    %v4032 = vunpack.c.l.b16 %v66
    %v4033 = vunpack.c.h.b16 %v66
    %v4034 = vunpack.c.l.b16 %v67
    %v4035 = vunpack.c.h.b16 %v67
    %v4036 = vunpack.c.l.b16 %v68
    %v4037 = vunpack.c.h.b16 %v68
    %v4038 = vunpack.c.l.b16 %v69
    %v4039 = vunpack.c.h.b16 %v69
    %v4040 = vunpack.c.l.b16 %v70
    %v4041 = vunpack.c.h.b16 %v70
    %v4042 = vunpack.c.l.b16 %v71
    %v4043 = vunpack.c.h.b16 %v71
    %v4044 = vunpack.c.l.b16 %v72
    %v4045 = vunpack.c.h.b16 %v72
    %v4046 = vunpack.c.l.b16 %v73
    %v4047 = vunpack.c.h.b16 %v73
    %v4048 = vunpack.c.l.b16 %v74
    %v4049 = vunpack.c.h.b16 %v74
    %v4050 = vunpack.c.l.b16 %v75
    %v4051 = vunpack.c.h.b16 %v75
    %v4052 = vunpack.c.l.b16 %v76
    %v4053 = vunpack.c.h.b16 %v76
    %v4054 = vunpack.c.l.b16 %v77
    %v4055 = vunpack.c.h.b16 %v77
    %v4056 = vunpack.c.l.b16 %v78
    %v4057 = vunpack.c.h.b16 %v78
    %v4058 = vunpack.c.l.b16 %v79
    %v4059 = vunpack.c.h.b16 %v79
    %v4060 = vunpack.c.l.b16 %v80
    %v4061 = vunpack.c.h.b16 %v80
    %v4062 = vunpack.c.l.b16 %v81
    %v4063 = vunpack.c.h.b16 %v81
    %v4064 = vunpack.c.l.b16 %v82
    %v4065 = vunpack.c.h.b16 %v82
    %v4066 = vunpack.c.l.b16 %v83
    %v4067 = vunpack.c.h.b16 %v83
    %v4068 = vunpack.c.l.b16 %v84
    %v4069 = vunpack.c.h.b16 %v84
    %v4070 = vunpack.c.l.b16 %v85
    %v4071 = vunpack.c.h.b16 %v85
    %v4072 = vunpack.c.l.b16 %v86
    %v4073 = vunpack.c.h.b16 %v86
    %v4074 = vunpack.c.l.b16 %v87
    %v4075 = vunpack.c.h.b16 %v87
    %v4076 = vunpack.c.l.b16 %v88
    %v4077 = vunpack.c.h.b16 %v88
    %v4078 = vunpack.c.l.b16 %v89
    %v4079 = vunpack.c.h.b16 %v89
    %v4080 = vunpack.c.l.b16 %v90
    %v4081 = vunpack.c.h.b16 %v90
    %v4082 = vunpack.c.l.b16 %v91
    %v4083 = vunpack.c.h.b16 %v91
    %v4084 = vunpack.c.l.b16 %v92
    %v4085 = vunpack.c.h.b16 %v92
    %v4086 = vunpack.c.l.b16 %v93
    %v4087 = vunpack.c.h.b16 %v93
    %v4088 = vunpack.c.l.b16 %v94
    %v4089 = vunpack.c.h.b16 %v94
    %v4090 = vunpack.c.l.b16 %v95
    %v4091 = vunpack.c.h.b16 %v95
    %v4092 = vunpack.c.l.b16 %v96
    %v4093 = vunpack.c.h.b16 %v96
    %v4094 = vunpack.c.l.b16 %v97
    %v4095 = vunpack.c.h.b16 %v97
    %v4096 = vunpack.c.l.b16 %v98
    %v4097 = vunpack.c.h.b16 %v98
    %v4098 = vunpack.c.l.b16 %v99
    %v4099 = vunpack.c.h.b16 %v99
    %v4100 = vunpack.c.l.b16 %v100
    %v4101 = vunpack.c.h.b16 %v100
    %v4102 = vpack.c.b16 %v4018, %v4006
    %v4103 = vpack.c.b16 %v4019, %v4007
    %v4104 = vpack.c.b16 %v4020, %v4008
    %v4105 = vpack.c.b16 %v4021, %v4009
    %v4106 = vpack.c.b16 %v4022, %v4010
    %v4107 = vpack.c.b16 %v4023, %v4011
    %v4108 = vpack.c.b16 %v4024, %v4012
    %v4109 = vpack.c.b16 %v4025, %v4013
    %v4110 = vpack.c.b16 %v4026, %v4014
    %v4111 = vpack.c.b16 %v4027, %v4015
    %v4112 = vpack.c.b16 %v4028, %v4016
    %v4113 = vpack.c.b16 %v4029, %v4017
    %v4114 = vpack.c.b16 %v4042, %v4030
    %v4115 = vpack.c.b16 %v4043, %v4031
    %v4116 = vpack.c.b16 %v4044, %v4032
    %v4117 = vpack.c.b16 %v4045, %v4033
    %v4118 = vpack.c.b16 %v4046, %v4034
    %v4119 = vpack.c.b16 %v4047, %v4035
    %v4120 = vpack.c.b16 %v4048, %v4036
    %v4121 = vpack.c.b16 %v4049, %v4037
    %v4122 = vpack.c.b16 %v4050, %v4038
    %v4123 = vpack.c.b16 %v4051, %v4039
    %v4124 = vpack.c.b16 %v4052, %v4040
    %v4125 = vpack.c.b16 %v4053, %v4041
    %v4126 = vpack.c.b16 %v4066, %v4054
    %v4127 = vpack.c.b16 %v4067, %v4055
    %v4128 = vpack.c.b16 %v4068, %v4056
    %v4129 = vpack.c.b16 %v4069, %v4057
    %v4130 = vpack.c.b16 %v4070, %v4058
    %v4131 = vpack.c.b16 %v4071, %v4059
    %v4132 = vpack.c.b16 %v4072, %v4060
    %v4133 = vpack.c.b16 %v4073, %v4061
    %v4134 = vpack.c.b16 %v4074, %v4062
    %v4135 = vpack.c.b16 %v4075, %v4063
    %v4136 = vpack.c.b16 %v4076, %v4064
    %v4137 = vpack.c.b16 %v4077, %v4065
    %v4138 = vpack.c.b16 %v4090, %v4078
    %v4139 = vpack.c.b16 %v4091, %v4079
    %v4140 = vpack.c.b16 %v4092, %v4080
    %v4141 = vpack.c.b16 %v4093, %v4081
    %v4142 = vpack.c.b16 %v4094, %v4082
    %v4143 = vpack.c.b16 %v4095, %v4083
    %v4144 = vpack.c.b16 %v4096, %v4084
    %v4145 = vpack.c.b16 %v4097, %v4085
    %v4146 = vpack.c.b16 %v4098, %v4086
    %v4147 = vpack.c.b16 %v4099, %v4087
    %v4148 = vpack.c.b16 %v4100, %v4088
    %v4149 = vpack.c.b16 %v4101, %v4089
    %v4582 = vunpack.c.l.b16 %v101
    %v4583 = vunpack.c.h.b16 %v101
    %v4584 = vunpack.c.l.b16 %v102
    %v4585 = vunpack.c.h.b16 %v102
    %v4586 = vunpack.c.l.b16 %v103
    %v4587 = vunpack.c.h.b16 %v103
    %v4588 = vunpack.c.l.b16 %v104
    %v4589 = vunpack.c.h.b16 %v104
    %v4590 = vunpack.c.l.b16 %v105
    %v4591 = vunpack.c.h.b16 %v105
    %v4592 = vunpack.c.l.b16 %v106
    %v4593 = vunpack.c.h.b16 %v106
    %v4594 = vunpack.c.l.b16 %v107
    %v4595 = vunpack.c.h.b16 %v107
    %v4596 = vunpack.c.l.b16 %v108
    %v4597 = vunpack.c.h.b16 %v108
    %v4598 = vunpack.c.l.b16 %v109
    %v4599 = vunpack.c.h.b16 %v109
    %v4600 = vunpack.c.l.b16 %v110
    %v4601 = vunpack.c.h.b16 %v110
    %v4602 = vunpack.c.l.b16 %v111
    %v4603 = vunpack.c.h.b16 %v111
    %v4604 = vunpack.c.l.b16 %v112
    %v4605 = vunpack.c.h.b16 %v112
    %v4606 = vunpack.c.l.b16 %v113
    %v4607 = vunpack.c.h.b16 %v113
    %v4608 = vunpack.c.l.b16 %v114
    %v4609 = vunpack.c.h.b16 %v114
    %v4610 = vunpack.c.l.b16 %v115
    %v4611 = vunpack.c.h.b16 %v115
    %v4612 = vunpack.c.l.b16 %v116
    %v4613 = vunpack.c.h.b16 %v116
    %v4614 = vunpack.c.l.b16 %v117
    %v4615 = vunpack.c.h.b16 %v117
    %v4616 = vunpack.c.l.b16 %v118
    %v4617 = vunpack.c.h.b16 %v118
    %v4618 = vunpack.c.l.b16 %v119
    %v4619 = vunpack.c.h.b16 %v119
    %v4620 = vunpack.c.l.b16 %v120
    %v4621 = vunpack.c.h.b16 %v120
    %v4622 = vunpack.c.l.b16 %v121
    %v4623 = vunpack.c.h.b16 %v121
    %v4624 = vunpack.c.l.b16 %v122
    %v4625 = vunpack.c.h.b16 %v122
    %v4626 = vunpack.c.l.b16 %v123
    %v4627 = vunpack.c.h.b16 %v123
    %v4628 = vunpack.c.l.b16 %v124
    %v4629 = vunpack.c.h.b16 %v124
    %v4630 = vunpack.c.l.b16 %v125
    %v4631 = vunpack.c.h.b16 %v125
    %v4632 = vunpack.c.l.b16 %v126
    %v4633 = vunpack.c.h.b16 %v126
    %v4634 = vunpack.c.l.b16 %v127
    %v4635 = vunpack.c.h.b16 %v127
    %v4636 = vunpack.c.l.b16 %v128
    %v4637 = vunpack.c.h.b16 %v128
    %v4638 = vunpack.c.l.b16 %v129
    %v4639 = vunpack.c.h.b16 %v129
    %v4640 = vunpack.c.l.b16 %v130
    %v4641 = vunpack.c.h.b16 %v130
    %v4642 = vunpack.c.l.b16 %v131
    %v4643 = vunpack.c.h.b16 %v131
    %v4644 = vunpack.c.l.b16 %v132
    %v4645 = vunpack.c.h.b16 %v132
    %v4646 = vunpack.c.l.b16 %v133
    %v4647 = vunpack.c.h.b16 %v133
    %v4648 = vunpack.c.l.b16 %v134
    %v4649 = vunpack.c.h.b16 %v134
    %v4650 = vunpack.c.l.b16 %v135
    %v4651 = vunpack.c.h.b16 %v135
    %v4652 = vunpack.c.l.b16 %v136
    %v4653 = vunpack.c.h.b16 %v136
    %v4654 = vunpack.c.l.b16 %v137
    %v4655 = vunpack.c.h.b16 %v137
    %v4656 = vunpack.c.l.b16 %v138
    %v4657 = vunpack.c.h.b16 %v138
    %v4658 = vunpack.c.l.b16 %v139
    %v4659 = vunpack.c.h.b16 %v139
    %v4660 = vunpack.c.l.b16 %v140
    %v4661 = vunpack.c.h.b16 %v140
    %v4662 = vunpack.c.l.b16 %v141
    %v4663 = vunpack.c.h.b16 %v141
    %v4664 = vunpack.c.l.b16 %v142
    %v4665 = vunpack.c.h.b16 %v142
    %v4666 = vunpack.c.l.b16 %v143
    %v4667 = vunpack.c.h.b16 %v143
    %v4668 = vunpack.c.l.b16 %v144
    %v4669 = vunpack.c.h.b16 %v144
    %v4670 = vunpack.c.l.b16 %v145
    %v4671 = vunpack.c.h.b16 %v145
    %v4672 = vunpack.c.l.b16 %v146
    %v4673 = vunpack.c.h.b16 %v146
    %v4674 = vunpack.c.l.b16 %v147
    %v4675 = vunpack.c.h.b16 %v147
    %v4676 = vunpack.c.l.b16 %v148
    %v4677 = vunpack.c.h.b16 %v148
    %v4678 = vunpack.c.l.b16 %v149
    %v4679 = vunpack.c.h.b16 %v149
    %v4680 = vunpack.c.l.b16 %v150
    %v4681 = vunpack.c.h.b16 %v150
    %v4682 = vunpack.c.l.b16 %v151
    %v4683 = vunpack.c.h.b16 %v151
    %v4684 = vunpack.c.l.b16 %v152
    %v4685 = vunpack.c.h.b16 %v152
    %v4686 = vunpack.c.l.b16 %v153
    %v4687 = vunpack.c.h.b16 %v153
    %v4688 = vunpack.c.l.b16 %v154
    %v4689 = vunpack.c.h.b16 %v154
    %v4690 = vunpack.c.l.b16 %v155
    %v4691 = vunpack.c.h.b16 %v155
    %v4692 = vunpack.c.l.b16 %v156
    %v4693 = vunpack.c.h.b16 %v156
    %v4694 = vunpack.c.l.b16 %v157
    %v4695 = vunpack.c.h.b16 %v157
    %v4696 = vunpack.c.l.b16 %v158
    %v4697 = vunpack.c.h.b16 %v158
    %v4698 = vunpack.c.l.b16 %v159
    %v4699 = vunpack.c.h.b16 %v159
    %v4700 = vunpack.c.l.b16 %v160
    %v4701 = vunpack.c.h.b16 %v160
    %v4702 = vunpack.c.l.b16 %v161
    %v4703 = vunpack.c.h.b16 %v161
    %v4704 = vunpack.c.l.b16 %v162
    %v4705 = vunpack.c.h.b16 %v162
    %v4706 = vunpack.c.l.b16 %v163
    %v4707 = vunpack.c.h.b16 %v163
    %v4708 = vunpack.c.l.b16 %v164
    %v4709 = vunpack.c.h.b16 %v164
    %v4710 = vunpack.c.l.b16 %v165
    %v4711 = vunpack.c.h.b16 %v165
    %v4712 = vunpack.c.l.b16 %v166
    %v4713 = vunpack.c.h.b16 %v166
    %v4714 = vunpack.c.l.b16 %v167
    %v4715 = vunpack.c.h.b16 %v167
    %v4716 = vunpack.c.l.b16 %v168
    %v4717 = vunpack.c.h.b16 %v168
    %v4718 = vunpack.c.l.b16 %v169
    %v4719 = vunpack.c.h.b16 %v169
    %v4720 = vunpack.c.l.b16 %v170
    %v4721 = vunpack.c.h.b16 %v170
    %v4722 = vunpack.c.l.b16 %v171
    %v4723 = vunpack.c.h.b16 %v171
    %v4724 = vunpack.c.l.b16 %v172
    %v4725 = vunpack.c.h.b16 %v172
    %v4726 = vunpack.c.l.b16 %v173
    %v4727 = vunpack.c.h.b16 %v173
    %v4728 = vunpack.c.l.b16 %v174
    %v4729 = vunpack.c.h.b16 %v174
    %v4730 = vunpack.c.l.b16 %v175
    %v4731 = vunpack.c.h.b16 %v175
    %v4732 = vunpack.c.l.b16 %v176
    %v4733 = vunpack.c.h.b16 %v176
    %v4734 = vunpack.c.l.b16 %v177
    %v4735 = vunpack.c.h.b16 %v177
    %v4736 = vunpack.c.l.b16 %v178
    %v4737 = vunpack.c.h.b16 %v178
    %v4738 = vunpack.c.l.b16 %v179
    %v4739 = vunpack.c.h.b16 %v179
    %v4740 = vunpack.c.l.b16 %v180
    %v4741 = vunpack.c.h.b16 %v180
    %v4742 = vunpack.c.l.b16 %v181
    %v4743 = vunpack.c.h.b16 %v181
    %v4744 = vunpack.c.l.b16 %v182
    %v4745 = vunpack.c.h.b16 %v182
    %v4746 = vunpack.c.l.b16 %v183
    %v4747 = vunpack.c.h.b16 %v183
    %v4748 = vunpack.c.l.b16 %v184
    %v4749 = vunpack.c.h.b16 %v184
    %v4750 = vunpack.c.l.b16 %v185
    %v4751 = vunpack.c.h.b16 %v185
    %v4752 = vunpack.c.l.b16 %v186
    %v4753 = vunpack.c.h.b16 %v186
    %v4754 = vunpack.c.l.b16 %v187
    %v4755 = vunpack.c.h.b16 %v187
    %v4756 = vunpack.c.l.b16 %v188
    %v4757 = vunpack.c.h.b16 %v188
    %v4758 = vunpack.c.l.b16 %v189
    %v4759 = vunpack.c.h.b16 %v189
    %v4760 = vunpack.c.l.b16 %v190
    %v4761 = vunpack.c.h.b16 %v190
    %v4762 = vunpack.c.l.b16 %v191
    %v4763 = vunpack.c.h.b16 %v191
    %v4764 = vunpack.c.l.b16 %v192
    %v4765 = vunpack.c.h.b16 %v192
    %v4766 = vunpack.c.l.b16 %v193
    %v4767 = vunpack.c.h.b16 %v193
    %v4768 = vunpack.c.l.b16 %v194
    %v4769 = vunpack.c.h.b16 %v194
    %v4770 = vunpack.c.l.b16 %v195
    %v4771 = vunpack.c.h.b16 %v195
    %v4772 = vunpack.c.l.b16 %v196
    %v4773 = vunpack.c.h.b16 %v196
    %v4774 = vunpack.c.l.b16 %v197
    %v4775 = vunpack.c.h.b16 %v197
    %v4776 = vunpack.c.l.b16 %v198
    %v4777 = vunpack.c.h.b16 %v198
    %v4778 = vunpack.c.l.b16 %v199
    %v4779 = vunpack.c.h.b16 %v199
    %v4780 = vunpack.c.l.b16 %v200
    %v4781 = vunpack.c.h.b16 %v200
    %v4782 = vunpack.c.l.b16 %v201
    %v4783 = vunpack.c.h.b16 %v201
    %v4784 = vunpack.c.l.b16 %v202
    %v4785 = vunpack.c.h.b16 %v202
    %v4786 = vunpack.c.l.b16 %v203
    %v4787 = vunpack.c.h.b16 %v203
    %v4788 = vunpack.c.l.b16 %v204
    %v4789 = vunpack.c.h.b16 %v204
    %v4790 = vunpack.c.l.b16 %v205
    %v4791 = vunpack.c.h.b16 %v205
    %v4792 = vunpack.c.l.b16 %v206
    %v4793 = vunpack.c.h.b16 %v206
    %v4794 = vunpack.c.l.b16 %v207
    %v4795 = vunpack.c.h.b16 %v207
    %v4796 = vunpack.c.l.b16 %v208
    %v4797 = vunpack.c.h.b16 %v208
    %v4798 = vunpack.c.l.b16 %v209
    %v4799 = vunpack.c.h.b16 %v209
    %v4800 = vunpack.c.l.b16 %v210
    %v4801 = vunpack.c.h.b16 %v210
    %v4802 = vunpack.c.l.b16 %v211
    %v4803 = vunpack.c.h.b16 %v211
    %v4804 = vunpack.c.l.b16 %v212
    %v4805 = vunpack.c.h.b16 %v212
    %v4806 = vunpack.c.l.b16 %v213
    %v4807 = vunpack.c.h.b16 %v213
    %v4808 = vunpack.c.l.b16 %v214
    %v4809 = vunpack.c.h.b16 %v214
    %v4810 = vunpack.c.l.b16 %v215
    %v4811 = vunpack.c.h.b16 %v215
    %v4812 = vunpack.c.l.b16 %v216
    %v4813 = vunpack.c.h.b16 %v216
    %v4814 = vunpack.c.l.b16 %v217
    %v4815 = vunpack.c.h.b16 %v217
    %v4816 = vunpack.c.l.b16 %v218
    %v4817 = vunpack.c.h.b16 %v218
    %v4818 = vunpack.c.l.b16 %v219
    %v4819 = vunpack.c.h.b16 %v219
    %v4820 = vunpack.c.l.b16 %v220
    %v4821 = vunpack.c.h.b16 %v220
    %v4822 = vunpack.c.l.b16 %v221
    %v4823 = vunpack.c.h.b16 %v221
    %v4824 = vunpack.c.l.b16 %v222
    %v4825 = vunpack.c.h.b16 %v222
    %v4826 = vunpack.c.l.b16 %v223
    %v4827 = vunpack.c.h.b16 %v223
    %v4828 = vunpack.c.l.b16 %v224
    %v4829 = vunpack.c.h.b16 %v224
    %v4830 = vunpack.c.l.b16 %v225
    %v4831 = vunpack.c.h.b16 %v225
    %v4832 = vunpack.c.l.b16 %v226
    %v4833 = vunpack.c.h.b16 %v226
    %v4834 = vunpack.c.l.b16 %v227
    %v4835 = vunpack.c.h.b16 %v227
    %v4836 = vunpack.c.l.b16 %v228
    %v4837 = vunpack.c.h.b16 %v228
    %v4838 = vunpack.c.l.b16 %v229
    %v4839 = vunpack.c.h.b16 %v229
    %v4840 = vunpack.c.l.b16 %v230
    %v4841 = vunpack.c.h.b16 %v230
    %v4842 = vunpack.c.l.b16 %v231
    %v4843 = vunpack.c.h.b16 %v231
    %v4844 = vunpack.c.l.b16 %v232
    %v4845 = vunpack.c.h.b16 %v232
    %v4846 = vunpack.c.l.b16 %v233
    %v4847 = vunpack.c.h.b16 %v233
    %v4848 = vunpack.c.l.b16 %v234
    %v4849 = vunpack.c.h.b16 %v234
    %v4850 = vunpack.c.l.b16 %v235
    %v4851 = vunpack.c.h.b16 %v235
    %v4852 = vunpack.c.l.b16 %v236
    %v4853 = vunpack.c.h.b16 %v236
    %v4854 = vunpack.c.l.b16 %v237
    %v4855 = vunpack.c.h.b16 %v237
    %v4856 = vunpack.c.l.b16 %v238
    %v4857 = vunpack.c.h.b16 %v238
    %v4858 = vunpack.c.l.b16 %v239
    %v4859 = vunpack.c.h.b16 %v239
    %v4860 = vunpack.c.l.b16 %v240
    %v4861 = vunpack.c.h.b16 %v240
    %v4862 = vunpack.c.l.b16 %v241
    %v4863 = vunpack.c.h.b16 %v241
    %v4864 = vunpack.c.l.b16 %v242
    %v4865 = vunpack.c.h.b16 %v242
    %v4866 = vunpack.c.l.b16 %v243
    %v4867 = vunpack.c.h.b16 %v243
    %v4868 = vunpack.c.l.b16 %v244
    %v4869 = vunpack.c.h.b16 %v244
    %v4870 = vunpack.c.l.b16 %v245
    %v4871 = vunpack.c.h.b16 %v245
    %v4872 = vunpack.c.l.b16 %v246
    %v4873 = vunpack.c.h.b16 %v246
    %v4874 = vunpack.c.l.b16 %v247
    %v4875 = vunpack.c.h.b16 %v247
    %v4876 = vunpack.c.l.b16 %v248
    %v4877 = vunpack.c.h.b16 %v248
    %v4878 = vunpack.c.l.b16 %v249
    %v4879 = vunpack.c.h.b16 %v249
    %v4880 = vunpack.c.l.b16 %v250
    %v4881 = vunpack.c.h.b16 %v250
    %v4882 = vunpack.c.l.b16 %v251
    %v4883 = vunpack.c.h.b16 %v251
    %v4884 = vunpack.c.l.b16 %v252
    %v4885 = vunpack.c.h.b16 %v252
    %v4886 = vunpack.c.l.b16 %v253
    %v4887 = vunpack.c.h.b16 %v253
    %v4888 = vunpack.c.l.b16 %v254
    %v4889 = vunpack.c.h.b16 %v254
    %v4890 = vunpack.c.l.b16 %v255
    %v4891 = vunpack.c.h.b16 %v255
    %v4892 = vunpack.c.l.b16 %v256
    %v4893 = vunpack.c.h.b16 %v256
    %v4894 = vunpack.c.l.b16 %v257
    %v4895 = vunpack.c.h.b16 %v257
    %v4896 = vunpack.c.l.b16 %v258
    %v4897 = vunpack.c.h.b16 %v258
    %v4898 = vunpack.c.l.b16 %v259
    %v4899 = vunpack.c.h.b16 %v259
    %v4900 = vunpack.c.l.b16 %v260
    %v4901 = vunpack.c.h.b16 %v260
    %v4902 = vunpack.c.l.b16 %v261
    %v4903 = vunpack.c.h.b16 %v261
    %v4904 = vunpack.c.l.b16 %v262
    %v4905 = vunpack.c.h.b16 %v262
    %v4906 = vunpack.c.l.b16 %v263
    %v4907 = vunpack.c.h.b16 %v263
    %v4908 = vunpack.c.l.b16 %v264
    %v4909 = vunpack.c.h.b16 %v264
    %v4910 = vunpack.c.l.b16 %v265
    %v4911 = vunpack.c.h.b16 %v265
    %v4912 = vunpack.c.l.b16 %v266
    %v4913 = vunpack.c.h.b16 %v266
    %v4914 = vunpack.c.l.b16 %v267
    %v4915 = vunpack.c.h.b16 %v267
    %v4916 = vunpack.c.l.b16 %v268
    %v4917 = vunpack.c.h.b16 %v268
    %v4918 = vunpack.c.l.b16 %v269
    %v4919 = vunpack.c.h.b16 %v269
    %v4920 = vunpack.c.l.b16 %v270
    %v4921 = vunpack.c.h.b16 %v270
    %v4922 = vunpack.c.l.b16 %v271
    %v4923 = vunpack.c.h.b16 %v271
    %v4924 = vunpack.c.l.b16 %v272
    %v4925 = vunpack.c.h.b16 %v272
    %v4926 = vunpack.c.l.b16 %v273
    %v4927 = vunpack.c.h.b16 %v273
    %v4928 = vunpack.c.l.b16 %v274
    %v4929 = vunpack.c.h.b16 %v274
    %v4930 = vunpack.c.l.b16 %v275
    %v4931 = vunpack.c.h.b16 %v275
    %v4932 = vunpack.c.l.b16 %v276
    %v4933 = vunpack.c.h.b16 %v276
    %v4934 = vunpack.c.l.b16 %v277
    %v4935 = vunpack.c.h.b16 %v277
    %v4936 = vunpack.c.l.b16 %v278
    %v4937 = vunpack.c.h.b16 %v278
    %v4938 = vunpack.c.l.b16 %v279
    %v4939 = vunpack.c.h.b16 %v279
    %v4940 = vunpack.c.l.b16 %v280
    %v4941 = vunpack.c.h.b16 %v280
    %v4942 = vunpack.c.l.b16 %v281
    %v4943 = vunpack.c.h.b16 %v281
    %v4944 = vunpack.c.l.b16 %v282
    %v4945 = vunpack.c.h.b16 %v282
    %v4946 = vunpack.c.l.b16 %v283
    %v4947 = vunpack.c.h.b16 %v283
    %v4948 = vunpack.c.l.b16 %v284
    %v4949 = vunpack.c.h.b16 %v284
    %v4950 = vunpack.c.l.b16 %v285
    %v4951 = vunpack.c.h.b16 %v285
    %v4952 = vunpack.c.l.b16 %v286
    %v4953 = vunpack.c.h.b16 %v286
    %v4954 = vunpack.c.l.b16 %v287
    %v4955 = vunpack.c.h.b16 %v287
    %v4956 = vunpack.c.l.b16 %v288
    %v4957 = vunpack.c.h.b16 %v288
    %v4958 = vunpack.c.l.b16 %v289
    %v4959 = vunpack.c.h.b16 %v289
    %v4960 = vunpack.c.l.b16 %v290
    %v4961 = vunpack.c.h.b16 %v290
    %v4962 = vunpack.c.l.b16 %v291
    %v4963 = vunpack.c.h.b16 %v291
    %v4964 = vunpack.c.l.b16 %v292
    %v4965 = vunpack.c.h.b16 %v292
    %v4966 = vunpack.c.l.b16 %v293
    %v4967 = vunpack.c.h.b16 %v293
    %v4968 = vunpack.c.l.b16 %v294
    %v4969 = vunpack.c.h.b16 %v294
    %v4970 = vunpack.c.l.b16 %v295
    %v4971 = vunpack.c.h.b16 %v295
    %v4972 = vunpack.c.l.b16 %v296
    %v4973 = vunpack.c.h.b16 %v296
    %v4974 = vunpack.c.l.b16 %v297
    %v4975 = vunpack.c.h.b16 %v297
    %v4976 = vunpack.c.l.b16 %v298
    %v4977 = vunpack.c.h.b16 %v298
    %v4978 = vunpack.c.l.b16 %v299
    %v4979 = vunpack.c.h.b16 %v299
    %v4980 = vunpack.c.l.b16 %v300
    %v4981 = vunpack.c.h.b16 %v300
    %v4982 = vunpack.c.l.b16 %v301
    %v4983 = vunpack.c.h.b16 %v301
    %v4984 = vunpack.c.l.b16 %v302
    %v4985 = vunpack.c.h.b16 %v302
    %v4986 = vunpack.c.l.b16 %v303
    %v4987 = vunpack.c.h.b16 %v303
    %v4988 = vunpack.c.l.b16 %v304
    %v4989 = vunpack.c.h.b16 %v304
    %v4990 = vunpack.c.l.b16 %v305
    %v4991 = vunpack.c.h.b16 %v305
    %v4992 = vunpack.c.l.b16 %v306
    %v4993 = vunpack.c.h.b16 %v306
    %v4994 = vunpack.c.l.b16 %v307
    %v4995 = vunpack.c.h.b16 %v307
    %v4996 = vunpack.c.l.b16 %v308
    %v4997 = vunpack.c.h.b16 %v308
    %v4998 = vunpack.c.l.b16 %v309
    %v4999 = vunpack.c.h.b16 %v309
    %v5000 = vunpack.c.l.b16 %v310
    %v5001 = vunpack.c.h.b16 %v310
    %v5002 = vunpack.c.l.b16 %v311
    %v5003 = vunpack.c.h.b16 %v311
    %v5004 = vunpack.c.l.b16 %v312
    %v5005 = vunpack.c.h.b16 %v312
    %v5006 = vunpack.c.l.b16 %v313
    %v5007 = vunpack.c.h.b16 %v313
    %v5008 = vunpack.c.l.b16 %v314
    %v5009 = vunpack.c.h.b16 %v314
    %v5010 = vunpack.c.l.b16 %v315
    %v5011 = vunpack.c.h.b16 %v315
    %v5012 = vunpack.c.l.b16 %v316
    %v5013 = vunpack.c.h.b16 %v316
    %v5014 = vunpack.c.l.b16 %v317
    %v5015 = vunpack.c.h.b16 %v317
    %v5016 = vunpack.c.l.b16 %v318
    %v5017 = vunpack.c.h.b16 %v318
    %v5018 = vunpack.c.l.b16 %v319
    %v5019 = vunpack.c.h.b16 %v319
    %v5020 = vunpack.c.l.b16 %v320
    %v5021 = vunpack.c.h.b16 %v320
    %v5022 = vunpack.c.l.b16 %v321
    %v5023 = vunpack.c.h.b16 %v321
    %v5024 = vunpack.c.l.b16 %v322
    %v5025 = vunpack.c.h.b16 %v322
    %v5026 = vunpack.c.l.b16 %v323
    %v5027 = vunpack.c.h.b16 %v323
    %v5028 = vunpack.c.l.b16 %v324
    %v5029 = vunpack.c.h.b16 %v324
    %v5030 = vunpack.c.l.b16 %v325
    %v5031 = vunpack.c.h.b16 %v325
    %v5032 = vunpack.c.l.b16 %v326
    %v5033 = vunpack.c.h.b16 %v326
    %v5034 = vunpack.c.l.b16 %v327
    %v5035 = vunpack.c.h.b16 %v327
    %v5036 = vunpack.c.l.b16 %v328
    %v5037 = vunpack.c.h.b16 %v328
    %v5038 = vunpack.c.l.b16 %v329
    %v5039 = vunpack.c.h.b16 %v329
    %v5040 = vunpack.c.l.b16 %v330
    %v5041 = vunpack.c.h.b16 %v330
    %v5042 = vunpack.c.l.b16 %v331
    %v5043 = vunpack.c.h.b16 %v331
    %v5044 = vunpack.c.l.b16 %v332
    %v5045 = vunpack.c.h.b16 %v332
    %v5046 = vunpack.c.l.b16 %v333
    %v5047 = vunpack.c.h.b16 %v333
    %v5048 = vunpack.c.l.b16 %v334
    %v5049 = vunpack.c.h.b16 %v334
    %v5050 = vunpack.c.l.b16 %v335
    %v5051 = vunpack.c.h.b16 %v335
    %v5052 = vunpack.c.l.b16 %v336
    %v5053 = vunpack.c.h.b16 %v336
    %v5054 = vunpack.c.l.b16 %v337
    %v5055 = vunpack.c.h.b16 %v337
    %v5056 = vunpack.c.l.b16 %v338
    %v5057 = vunpack.c.h.b16 %v338
    %v5058 = vunpack.c.l.b16 %v339
    %v5059 = vunpack.c.h.b16 %v339
    %v5060 = vunpack.c.l.b16 %v340
    %v5061 = vunpack.c.h.b16 %v340
    %v5062 = vunpack.c.l.b16 %v341
    %v5063 = vunpack.c.h.b16 %v341
    %v5064 = vunpack.c.l.b16 %v342
    %v5065 = vunpack.c.h.b16 %v342
    %v5066 = vunpack.c.l.b16 %v343
    %v5067 = vunpack.c.h.b16 %v343
    %v5068 = vunpack.c.l.b16 %v344
    %v5069 = vunpack.c.h.b16 %v344
    %v5070 = vunpack.c.l.b16 %v345
    %v5071 = vunpack.c.h.b16 %v345
    %v5072 = vunpack.c.l.b16 %v346
    %v5073 = vunpack.c.h.b16 %v346
    %v5074 = vunpack.c.l.b16 %v347
    %v5075 = vunpack.c.h.b16 %v347
    %v5076 = vunpack.c.l.b16 %v348
    %v5077 = vunpack.c.h.b16 %v348
    %v5078 = vunpack.c.l.b16 %v349
    %v5079 = vunpack.c.h.b16 %v349
    %v5080 = vunpack.c.l.b16 %v350
    %v5081 = vunpack.c.h.b16 %v350
    %v5082 = vunpack.c.l.b16 %v351
    %v5083 = vunpack.c.h.b16 %v351
    %v5084 = vunpack.c.l.b16 %v352
    %v5085 = vunpack.c.h.b16 %v352
    %v5086 = vunpack.c.l.b16 %v353
    %v5087 = vunpack.c.h.b16 %v353
    %v5088 = vunpack.c.l.b16 %v354
    %v5089 = vunpack.c.h.b16 %v354
    %v5090 = vunpack.c.l.b16 %v355
    %v5091 = vunpack.c.h.b16 %v355
    %v5092 = vunpack.c.l.b16 %v356
    %v5093 = vunpack.c.h.b16 %v356
    %v5094 = vunpack.c.l.b16 %v357
    %v5095 = vunpack.c.h.b16 %v357
    %v5096 = vunpack.c.l.b16 %v358
    %v5097 = vunpack.c.h.b16 %v358
    %v5098 = vunpack.c.l.b16 %v359
    %v5099 = vunpack.c.h.b16 %v359
    %v5100 = vunpack.c.l.b16 %v360
    %v5101 = vunpack.c.h.b16 %v360
    %v5102 = vunpack.c.l.b16 %v361
    %v5103 = vunpack.c.h.b16 %v361
    %v5104 = vunpack.c.l.b16 %v362
    %v5105 = vunpack.c.h.b16 %v362
    %v5106 = vunpack.c.l.b16 %v363
    %v5107 = vunpack.c.h.b16 %v363
    %v5108 = vunpack.c.l.b16 %v364
    %v5109 = vunpack.c.h.b16 %v364
    %v5110 = vunpack.c.l.b16 %v365
    %v5111 = vunpack.c.h.b16 %v365
    %v5112 = vunpack.c.l.b16 %v366
    %v5113 = vunpack.c.h.b16 %v366
    %v5114 = vunpack.c.l.b16 %v367
    %v5115 = vunpack.c.h.b16 %v367
    %v5116 = vunpack.c.l.b16 %v368
    %v5117 = vunpack.c.h.b16 %v368
    %v5118 = vunpack.c.l.b16 %v369
    %v5119 = vunpack.c.h.b16 %v369
    %v5120 = vunpack.c.l.b16 %v370
    %v5121 = vunpack.c.h.b16 %v370
    %v5122 = vunpack.c.l.b16 %v371
    %v5123 = vunpack.c.h.b16 %v371
    %v5124 = vunpack.c.l.b16 %v372
    %v5125 = vunpack.c.h.b16 %v372
    %v5126 = vunpack.c.l.b16 %v373
    %v5127 = vunpack.c.h.b16 %v373
    %v5128 = vunpack.c.l.b16 %v374
    %v5129 = vunpack.c.h.b16 %v374
    %v5130 = vunpack.c.l.b16 %v375
    %v5131 = vunpack.c.h.b16 %v375
    %v5132 = vunpack.c.l.b16 %v376
    %v5133 = vunpack.c.h.b16 %v376
    %v5134 = vunpack.c.l.b16 %v377
    %v5135 = vunpack.c.h.b16 %v377
    %v5136 = vunpack.c.l.b16 %v378
    %v5137 = vunpack.c.h.b16 %v378
    %v5138 = vunpack.c.l.b16 %v379
    %v5139 = vunpack.c.h.b16 %v379
    %v5140 = vunpack.c.l.b16 %v380
    %v5141 = vunpack.c.h.b16 %v380
    %v5142 = vunpack.c.l.b16 %v381
    %v5143 = vunpack.c.h.b16 %v381
    %v5144 = vunpack.c.l.b16 %v382
    %v5145 = vunpack.c.h.b16 %v382
    %v5146 = vunpack.c.l.b16 %v383
    %v5147 = vunpack.c.h.b16 %v383
    %v5148 = vunpack.c.l.b16 %v384
    %v5149 = vunpack.c.h.b16 %v384
    %v5150 = vunpack.c.l.b16 %v385
    %v5151 = vunpack.c.h.b16 %v385
    %v5152 = vunpack.c.l.b16 %v386
    %v5153 = vunpack.c.h.b16 %v386
    %v5154 = vunpack.c.l.b16 %v387
    %v5155 = vunpack.c.h.b16 %v387
    %v5156 = vunpack.c.l.b16 %v388
    %v5157 = vunpack.c.h.b16 %v388
    %v5158 = vunpack.c.l.b16 %v389
    %v5159 = vunpack.c.h.b16 %v389
    %v5160 = vunpack.c.l.b16 %v390
    %v5161 = vunpack.c.h.b16 %v390
    %v5162 = vunpack.c.l.b16 %v391
    %v5163 = vunpack.c.h.b16 %v391
    %v5164 = vunpack.c.l.b16 %v392
    %v5165 = vunpack.c.h.b16 %v392
    %v5166 = vunpack.c.l.b16 %v393
    %v5167 = vunpack.c.h.b16 %v393
    %v5168 = vunpack.c.l.b16 %v394
    %v5169 = vunpack.c.h.b16 %v394
    %v5170 = vunpack.c.l.b16 %v395
    %v5171 = vunpack.c.h.b16 %v395
    %v5172 = vunpack.c.l.b16 %v396
    %v5173 = vunpack.c.h.b16 %v396
    %v5174 = vunpack.c.l.b16 %v397
    %v5175 = vunpack.c.h.b16 %v397
    %v5176 = vunpack.c.l.b16 %v398
    %v5177 = vunpack.c.h.b16 %v398
    %v5178 = vunpack.c.l.b16 %v399
    %v5179 = vunpack.c.h.b16 %v399
    %v5180 = vunpack.c.l.b16 %v400
    %v5181 = vunpack.c.h.b16 %v400
    %v5182 = vunpack.c.l.b16 %v401
    %v5183 = vunpack.c.h.b16 %v401
    %v5184 = vunpack.c.l.b16 %v402
    %v5185 = vunpack.c.h.b16 %v402
    %v5186 = vunpack.c.l.b16 %v403
    %v5187 = vunpack.c.h.b16 %v403
    %v5188 = vunpack.c.l.b16 %v404
    %v5189 = vunpack.c.h.b16 %v404
    %v5190 = vunpack.c.l.b16 %v405
    %v5191 = vunpack.c.h.b16 %v405
    %v5192 = vunpack.c.l.b16 %v406
    %v5193 = vunpack.c.h.b16 %v406
    %v5194 = vunpack.c.l.b16 %v407
    %v5195 = vunpack.c.h.b16 %v407
    %v5196 = vunpack.c.l.b16 %v408
    %v5197 = vunpack.c.h.b16 %v408
    %v5198 = vunpack.c.l.b16 %v409
    %v5199 = vunpack.c.h.b16 %v409
    %v5200 = vunpack.c.l.b16 %v410
    %v5201 = vunpack.c.h.b16 %v410
    %v5202 = vunpack.c.l.b16 %v411
    %v5203 = vunpack.c.h.b16 %v411
    %v5204 = vunpack.c.l.b16 %v412
    %v5205 = vunpack.c.h.b16 %v412
    %v5206 = vunpack.c.l.b16 %v413
    %v5207 = vunpack.c.h.b16 %v413
    %v5208 = vunpack.c.l.b16 %v414
    %v5209 = vunpack.c.h.b16 %v414
    %v5210 = vunpack.c.l.b16 %v415
    %v5211 = vunpack.c.h.b16 %v415
    %v5212 = vunpack.c.l.b16 %v416
    %v5213 = vunpack.c.h.b16 %v416
    %v5214 = vunpack.c.l.b16 %v417
    %v5215 = vunpack.c.h.b16 %v417
    %v5216 = vunpack.c.l.b16 %v418
    %v5217 = vunpack.c.h.b16 %v418
    %v5218 = vunpack.c.l.b16 %v419
    %v5219 = vunpack.c.h.b16 %v419
    %v5220 = vunpack.c.l.b16 %v420
    %v5221 = vunpack.c.h.b16 %v420
    %v5222 = vunpack.c.l.b16 %v421
    %v5223 = vunpack.c.h.b16 %v421
    %v5224 = vunpack.c.l.b16 %v422
    %v5225 = vunpack.c.h.b16 %v422
    %v5226 = vunpack.c.l.b16 %v423
    %v5227 = vunpack.c.h.b16 %v423
    %v5228 = vunpack.c.l.b16 %v424
    %v5229 = vunpack.c.h.b16 %v424
    %v5230 = vunpack.c.l.b16 %v425
    %v5231 = vunpack.c.h.b16 %v425
    %v5232 = vunpack.c.l.b16 %v426
    %v5233 = vunpack.c.h.b16 %v426
    %v5234 = vunpack.c.l.b16 %v427
    %v5235 = vunpack.c.h.b16 %v427
    %v5236 = vunpack.c.l.b16 %v428
    %v5237 = vunpack.c.h.b16 %v428
    %v5238 = vunpack.c.l.b16 %v429
    %v5239 = vunpack.c.h.b16 %v429
    %v5240 = vunpack.c.l.b16 %v430
    %v5241 = vunpack.c.h.b16 %v430
    %v5242 = vunpack.c.l.b16 %v431
    %v5243 = vunpack.c.h.b16 %v431
    %v5244 = vunpack.c.l.b16 %v432
    %v5245 = vunpack.c.h.b16 %v432
    %v5246 = vunpack.c.l.b16 %v433
    %v5247 = vunpack.c.h.b16 %v433
    %v5248 = vunpack.c.l.b16 %v434
    %v5249 = vunpack.c.h.b16 %v434
    %v5250 = vunpack.c.l.b16 %v435
    %v5251 = vunpack.c.h.b16 %v435
    %v5252 = vunpack.c.l.b16 %v436
    %v5253 = vunpack.c.h.b16 %v436
    %v5254 = vunpack.c.l.b16 %v437
    %v5255 = vunpack.c.h.b16 %v437
    %v5256 = vunpack.c.l.b16 %v438
    %v5257 = vunpack.c.h.b16 %v438
    %v5258 = vunpack.c.l.b16 %v439
    %v5259 = vunpack.c.h.b16 %v439
    %v5260 = vunpack.c.l.b16 %v440
    %v5261 = vunpack.c.h.b16 %v440
    %v5262 = vunpack.c.l.b16 %v441
    %v5263 = vunpack.c.h.b16 %v441
    %v5264 = vunpack.c.l.b16 %v442
    %v5265 = vunpack.c.h.b16 %v442
    %v5266 = vunpack.c.l.b16 %v443
    %v5267 = vunpack.c.h.b16 %v443
    %v5268 = vunpack.c.l.b16 %v444
    %v5269 = vunpack.c.h.b16 %v444
    %v5270 = vunpack.c.l.b16 %v445
    %v5271 = vunpack.c.h.b16 %v445
    %v5272 = vunpack.c.l.b16 %v446
    %v5273 = vunpack.c.h.b16 %v446
    %v5274 = vunpack.c.l.b16 %v447
    %v5275 = vunpack.c.h.b16 %v447
    %v5276 = vunpack.c.l.b16 %v448
    %v5277 = vunpack.c.h.b16 %v448
    %v5278 = vunpack.c.l.b16 %v449
    %v5279 = vunpack.c.h.b16 %v449
    %v5280 = vunpack.c.l.b16 %v450
    %v5281 = vunpack.c.h.b16 %v450
    %v5282 = vunpack.c.l.b16 %v451
    %v5283 = vunpack.c.h.b16 %v451
    %v5284 = vunpack.c.l.b16 %v452
    %v5285 = vunpack.c.h.b16 %v452
    %v5286 = vunpack.c.l.b16 %v453
    %v5287 = vunpack.c.h.b16 %v453
    %v5288 = vunpack.c.l.b16 %v454
    %v5289 = vunpack.c.h.b16 %v454
    %v5290 = vunpack.c.l.b16 %v455
    %v5291 = vunpack.c.h.b16 %v455
    %v5292 = vunpack.c.l.b16 %v456
    %v5293 = vunpack.c.h.b16 %v456
    %v5294 = vunpack.c.l.b16 %v457
    %v5295 = vunpack.c.h.b16 %v457
    %v5296 = vunpack.c.l.b16 %v458
    %v5297 = vunpack.c.h.b16 %v458
    %v5298 = vunpack.c.l.b16 %v459
    %v5299 = vunpack.c.h.b16 %v459
    %v5300 = vunpack.c.l.b16 %v460
    %v5301 = vunpack.c.h.b16 %v460
    %v5302 = vunpack.c.l.b16 %v461
    %v5303 = vunpack.c.h.b16 %v461
    %v5304 = vunpack.c.l.b16 %v462
    %v5305 = vunpack.c.h.b16 %v462
    %v5306 = vunpack.c.l.b16 %v463
    %v5307 = vunpack.c.h.b16 %v463
    %v5308 = vunpack.c.l.b16 %v464
    %v5309 = vunpack.c.h.b16 %v464
    %v5310 = vunpack.c.l.b16 %v465
    %v5311 = vunpack.c.h.b16 %v465
    %v5312 = vunpack.c.l.b16 %v466
    %v5313 = vunpack.c.h.b16 %v466
    %v5314 = vunpack.c.l.b16 %v467
    %v5315 = vunpack.c.h.b16 %v467
    %v5316 = vunpack.c.l.b16 %v468
    %v5317 = vunpack.c.h.b16 %v468
    %v5318 = vunpack.c.l.b16 %v469
    %v5319 = vunpack.c.h.b16 %v469
    %v5320 = vunpack.c.l.b16 %v470
    %v5321 = vunpack.c.h.b16 %v470
    %v5322 = vunpack.c.l.b16 %v471
    %v5323 = vunpack.c.h.b16 %v471
    %v5324 = vunpack.c.l.b16 %v472
    %v5325 = vunpack.c.h.b16 %v472
    %v5326 = vunpack.c.l.b16 %v473
    %v5327 = vunpack.c.h.b16 %v473
    %v5328 = vunpack.c.l.b16 %v474
    %v5329 = vunpack.c.h.b16 %v474
    %v5330 = vunpack.c.l.b16 %v475
    %v5331 = vunpack.c.h.b16 %v475
    %v5332 = vunpack.c.l.b16 %v476
    %v5333 = vunpack.c.h.b16 %v476
    %v5334 = vunpack.c.l.b16 %v477
    %v5335 = vunpack.c.h.b16 %v477
    %v5336 = vunpack.c.l.b16 %v478
    %v5337 = vunpack.c.h.b16 %v478
    %v5338 = vunpack.c.l.b16 %v479
    %v5339 = vunpack.c.h.b16 %v479
    %v5340 = vunpack.c.l.b16 %v480
    %v5341 = vunpack.c.h.b16 %v480
    %v5342 = vunpack.c.l.b16 %v481
    %v5343 = vunpack.c.h.b16 %v481
    %v5344 = vunpack.c.l.b16 %v482
    %v5345 = vunpack.c.h.b16 %v482
    %v5346 = vunpack.c.l.b16 %v483
    %v5347 = vunpack.c.h.b16 %v483
    %v5348 = vunpack.c.l.b16 %v484
    %v5349 = vunpack.c.h.b16 %v484
    %v5350 = vpack.c.b16 %v4586, %v4582
    %v5351 = vpack.c.b16 %v4587, %v4583
    %v5352 = vpack.c.b16 %v4588, %v4584
    %v5353 = vpack.c.b16 %v4589, %v4585
    %v5354 = vpack.c.b16 %v4594, %v4590
    %v5355 = vpack.c.b16 %v4595, %v4591
    %v5356 = vpack.c.b16 %v4596, %v4592
    %v5357 = vpack.c.b16 %v4597, %v4593
    %v5358 = vpack.c.b16 %v4602, %v4598
    %v5359 = vpack.c.b16 %v4603, %v4599
    %v5360 = vpack.c.b16 %v4604, %v4600
    %v5361 = vpack.c.b16 %v4605, %v4601
    %v5362 = vpack.c.b16 %v4610, %v4606
    %v5363 = vpack.c.b16 %v4611, %v4607
    %v5364 = vpack.c.b16 %v4612, %v4608
    %v5365 = vpack.c.b16 %v4613, %v4609
    %v5366 = vpack.c.b16 %v4618, %v4614
    %v5367 = vpack.c.b16 %v4619, %v4615
    %v5368 = vpack.c.b16 %v4620, %v4616
    %v5369 = vpack.c.b16 %v4621, %v4617
    %v5370 = vpack.c.b16 %v4626, %v4622
    %v5371 = vpack.c.b16 %v4627, %v4623
    %v5372 = vpack.c.b16 %v4628, %v4624
    %v5373 = vpack.c.b16 %v4629, %v4625
    %v5374 = vpack.c.b16 %v4634, %v4630
    %v5375 = vpack.c.b16 %v4635, %v4631
    %v5376 = vpack.c.b16 %v4636, %v4632
    %v5377 = vpack.c.b16 %v4637, %v4633
    %v5378 = vpack.c.b16 %v4642, %v4638
    %v5379 = vpack.c.b16 %v4643, %v4639
    %v5380 = vpack.c.b16 %v4644, %v4640
    %v5381 = vpack.c.b16 %v4645, %v4641
    %v5382 = vpack.c.b16 %v4650, %v4646
    %v5383 = vpack.c.b16 %v4651, %v4647
    %v5384 = vpack.c.b16 %v4652, %v4648
    %v5385 = vpack.c.b16 %v4653, %v4649
    %v5386 = vpack.c.b16 %v4658, %v4654
    %v5387 = vpack.c.b16 %v4659, %v4655
    %v5388 = vpack.c.b16 %v4660, %v4656
    %v5389 = vpack.c.b16 %v4661, %v4657
    %v5390 = vpack.c.b16 %v4666, %v4662
    %v5391 = vpack.c.b16 %v4667, %v4663
    %v5392 = vpack.c.b16 %v4668, %v4664
    %v5393 = vpack.c.b16 %v4669, %v4665
    %v5394 = vpack.c.b16 %v4674, %v4670
    %v5395 = vpack.c.b16 %v4675, %v4671
    %v5396 = vpack.c.b16 %v4676, %v4672
    %v5397 = vpack.c.b16 %v4677, %v4673
    %v5398 = vpack.c.b16 %v4682, %v4678
    %v5399 = vpack.c.b16 %v4683, %v4679
    %v5400 = vpack.c.b16 %v4684, %v4680
    %v5401 = vpack.c.b16 %v4685, %v4681
    %v5402 = vpack.c.b16 %v4690, %v4686
    %v5403 = vpack.c.b16 %v4691, %v4687
    %v5404 = vpack.c.b16 %v4692, %v4688
    %v5405 = vpack.c.b16 %v4693, %v4689
    %v5406 = vpack.c.b16 %v4698, %v4694
    %v5407 = vpack.c.b16 %v4699, %v4695
    %v5408 = vpack.c.b16 %v4700, %v4696
    %v5409 = vpack.c.b16 %v4701, %v4697
    %v5410 = vpack.c.b16 %v4706, %v4702
    %v5411 = vpack.c.b16 %v4707, %v4703
    %v5412 = vpack.c.b16 %v4708, %v4704
    %v5413 = vpack.c.b16 %v4709, %v4705
    %v5414 = vpack.c.b16 %v4714, %v4710
    %v5415 = vpack.c.b16 %v4715, %v4711
    %v5416 = vpack.c.b16 %v4716, %v4712
    %v5417 = vpack.c.b16 %v4717, %v4713
    %v5418 = vpack.c.b16 %v4722, %v4718
    %v5419 = vpack.c.b16 %v4723, %v4719
    %v5420 = vpack.c.b16 %v4724, %v4720
    %v5421 = vpack.c.b16 %v4725, %v4721
    %v5422 = vpack.c.b16 %v4730, %v4726
    %v5423 = vpack.c.b16 %v4731, %v4727
    %v5424 = vpack.c.b16 %v4732, %v4728
    %v5425 = vpack.c.b16 %v4733, %v4729
    %v5426 = vpack.c.b16 %v4738, %v4734
    %v5427 = vpack.c.b16 %v4739, %v4735
    %v5428 = vpack.c.b16 %v4740, %v4736
    %v5429 = vpack.c.b16 %v4741, %v4737
    %v5430 = vpack.c.b16 %v4746, %v4742
    %v5431 = vpack.c.b16 %v4747, %v4743
    %v5432 = vpack.c.b16 %v4748, %v4744
    %v5433 = vpack.c.b16 %v4749, %v4745
    %v5434 = vpack.c.b16 %v4754, %v4750
    %v5435 = vpack.c.b16 %v4755, %v4751
    %v5436 = vpack.c.b16 %v4756, %v4752
    %v5437 = vpack.c.b16 %v4757, %v4753
    %v5438 = vpack.c.b16 %v4762, %v4758
    %v5439 = vpack.c.b16 %v4763, %v4759
    %v5440 = vpack.c.b16 %v4764, %v4760
    %v5441 = vpack.c.b16 %v4765, %v4761
    %v5442 = vpack.c.b16 %v4770, %v4766
    %v5443 = vpack.c.b16 %v4771, %v4767
    %v5444 = vpack.c.b16 %v4772, %v4768
    %v5445 = vpack.c.b16 %v4773, %v4769
    %v5446 = vpack.c.b16 %v4778, %v4774
    %v5447 = vpack.c.b16 %v4779, %v4775
    %v5448 = vpack.c.b16 %v4780, %v4776
    %v5449 = vpack.c.b16 %v4781, %v4777
    %v5450 = vpack.c.b16 %v4786, %v4782
    %v5451 = vpack.c.b16 %v4787, %v4783
    %v5452 = vpack.c.b16 %v4788, %v4784
    %v5453 = vpack.c.b16 %v4789, %v4785
    %v5454 = vpack.c.b16 %v4794, %v4790
    %v5455 = vpack.c.b16 %v4795, %v4791
    %v5456 = vpack.c.b16 %v4796, %v4792
    %v5457 = vpack.c.b16 %v4797, %v4793
    %v5458 = vpack.c.b16 %v4802, %v4798
    %v5459 = vpack.c.b16 %v4803, %v4799
    %v5460 = vpack.c.b16 %v4804, %v4800
    %v5461 = vpack.c.b16 %v4805, %v4801
    %v5462 = vpack.c.b16 %v4810, %v4806
    %v5463 = vpack.c.b16 %v4811, %v4807
    %v5464 = vpack.c.b16 %v4812, %v4808
    %v5465 = vpack.c.b16 %v4813, %v4809
    %v5466 = vpack.c.b16 %v4818, %v4814
    %v5467 = vpack.c.b16 %v4819, %v4815
    %v5468 = vpack.c.b16 %v4820, %v4816
    %v5469 = vpack.c.b16 %v4821, %v4817
    %v5470 = vpack.c.b16 %v4826, %v4822
    %v5471 = vpack.c.b16 %v4827, %v4823
    %v5472 = vpack.c.b16 %v4828, %v4824
    %v5473 = vpack.c.b16 %v4829, %v4825
    %v5474 = vpack.c.b16 %v4834, %v4830
    %v5475 = vpack.c.b16 %v4835, %v4831
    %v5476 = vpack.c.b16 %v4836, %v4832
    %v5477 = vpack.c.b16 %v4837, %v4833
    %v5478 = vpack.c.b16 %v4842, %v4838
    %v5479 = vpack.c.b16 %v4843, %v4839
    %v5480 = vpack.c.b16 %v4844, %v4840
    %v5481 = vpack.c.b16 %v4845, %v4841
    %v5482 = vpack.c.b16 %v4850, %v4846
    %v5483 = vpack.c.b16 %v4851, %v4847
    %v5484 = vpack.c.b16 %v4852, %v4848
    %v5485 = vpack.c.b16 %v4853, %v4849
    %v5486 = vpack.c.b16 %v4858, %v4854
    %v5487 = vpack.c.b16 %v4859, %v4855
    %v5488 = vpack.c.b16 %v4860, %v4856
    %v5489 = vpack.c.b16 %v4861, %v4857
    %v5490 = vpack.c.b16 %v4866, %v4862
    %v5491 = vpack.c.b16 %v4867, %v4863
    %v5492 = vpack.c.b16 %v4868, %v4864
    %v5493 = vpack.c.b16 %v4869, %v4865
    %v5494 = vpack.c.b16 %v4874, %v4870
    %v5495 = vpack.c.b16 %v4875, %v4871
    %v5496 = vpack.c.b16 %v4876, %v4872
    %v5497 = vpack.c.b16 %v4877, %v4873
    %v5498 = vpack.c.b16 %v4882, %v4878
    %v5499 = vpack.c.b16 %v4883, %v4879
    %v5500 = vpack.c.b16 %v4884, %v4880
    %v5501 = vpack.c.b16 %v4885, %v4881
    %v5502 = vpack.c.b16 %v4890, %v4886
    %v5503 = vpack.c.b16 %v4891, %v4887
    %v5504 = vpack.c.b16 %v4892, %v4888
    %v5505 = vpack.c.b16 %v4893, %v4889
    %v5506 = vpack.c.b16 %v4898, %v4894
    %v5507 = vpack.c.b16 %v4899, %v4895
    %v5508 = vpack.c.b16 %v4900, %v4896
    %v5509 = vpack.c.b16 %v4901, %v4897
    %v5510 = vpack.c.b16 %v4906, %v4902
    %v5511 = vpack.c.b16 %v4907, %v4903
    %v5512 = vpack.c.b16 %v4908, %v4904
    %v5513 = vpack.c.b16 %v4909, %v4905
    %v5514 = vpack.c.b16 %v4914, %v4910
    %v5515 = vpack.c.b16 %v4915, %v4911
    %v5516 = vpack.c.b16 %v4916, %v4912
    %v5517 = vpack.c.b16 %v4917, %v4913
    %v5518 = vpack.c.b16 %v4922, %v4918
    %v5519 = vpack.c.b16 %v4923, %v4919
    %v5520 = vpack.c.b16 %v4924, %v4920
    %v5521 = vpack.c.b16 %v4925, %v4921
    %v5522 = vpack.c.b16 %v4930, %v4926
    %v5523 = vpack.c.b16 %v4931, %v4927
    %v5524 = vpack.c.b16 %v4932, %v4928
    %v5525 = vpack.c.b16 %v4933, %v4929
    %v5526 = vpack.c.b16 %v4938, %v4934
    %v5527 = vpack.c.b16 %v4939, %v4935
    %v5528 = vpack.c.b16 %v4940, %v4936
    %v5529 = vpack.c.b16 %v4941, %v4937
    %v5530 = vpack.c.b16 %v4946, %v4942
    %v5531 = vpack.c.b16 %v4947, %v4943
    %v5532 = vpack.c.b16 %v4948, %v4944
    %v5533 = vpack.c.b16 %v4949, %v4945
    %v5534 = vpack.c.b16 %v4954, %v4950
    %v5535 = vpack.c.b16 %v4955, %v4951
    %v5536 = vpack.c.b16 %v4956, %v4952
    %v5537 = vpack.c.b16 %v4957, %v4953
    %v5538 = vpack.c.b16 %v4962, %v4958
    %v5539 = vpack.c.b16 %v4963, %v4959
    %v5540 = vpack.c.b16 %v4964, %v4960
    %v5541 = vpack.c.b16 %v4965, %v4961
    %v5542 = vpack.c.b16 %v4970, %v4966
    %v5543 = vpack.c.b16 %v4971, %v4967
    %v5544 = vpack.c.b16 %v4972, %v4968
    %v5545 = vpack.c.b16 %v4973, %v4969
    %v5546 = vpack.c.b16 %v4978, %v4974
    %v5547 = vpack.c.b16 %v4979, %v4975
    %v5548 = vpack.c.b16 %v4980, %v4976
    %v5549 = vpack.c.b16 %v4981, %v4977
    %v5550 = vpack.c.b16 %v4986, %v4982
    %v5551 = vpack.c.b16 %v4987, %v4983
    %v5552 = vpack.c.b16 %v4988, %v4984
    %v5553 = vpack.c.b16 %v4989, %v4985
    %v5554 = vpack.c.b16 %v4994, %v4990
    %v5555 = vpack.c.b16 %v4995, %v4991
    %v5556 = vpack.c.b16 %v4996, %v4992
    %v5557 = vpack.c.b16 %v4997, %v4993
    %v5558 = vpack.c.b16 %v5002, %v4998
    %v5559 = vpack.c.b16 %v5003, %v4999
    %v5560 = vpack.c.b16 %v5004, %v5000
    %v5561 = vpack.c.b16 %v5005, %v5001
    %v5562 = vpack.c.b16 %v5010, %v5006
    %v5563 = vpack.c.b16 %v5011, %v5007
    %v5564 = vpack.c.b16 %v5012, %v5008
    %v5565 = vpack.c.b16 %v5013, %v5009
    %v5566 = vpack.c.b16 %v5018, %v5014
    %v5567 = vpack.c.b16 %v5019, %v5015
    %v5568 = vpack.c.b16 %v5020, %v5016
    %v5569 = vpack.c.b16 %v5021, %v5017
    %v5570 = vpack.c.b16 %v5026, %v5022
    %v5571 = vpack.c.b16 %v5027, %v5023
    %v5572 = vpack.c.b16 %v5028, %v5024
    %v5573 = vpack.c.b16 %v5029, %v5025
    %v5574 = vpack.c.b16 %v5034, %v5030
    %v5575 = vpack.c.b16 %v5035, %v5031
    %v5576 = vpack.c.b16 %v5036, %v5032
    %v5577 = vpack.c.b16 %v5037, %v5033
    %v5578 = vpack.c.b16 %v5042, %v5038
    %v5579 = vpack.c.b16 %v5043, %v5039
    %v5580 = vpack.c.b16 %v5044, %v5040
    %v5581 = vpack.c.b16 %v5045, %v5041
    %v5582 = vpack.c.b16 %v5050, %v5046
    %v5583 = vpack.c.b16 %v5051, %v5047
    %v5584 = vpack.c.b16 %v5052, %v5048
    %v5585 = vpack.c.b16 %v5053, %v5049
    %v5586 = vpack.c.b16 %v5058, %v5054
    %v5587 = vpack.c.b16 %v5059, %v5055
    %v5588 = vpack.c.b16 %v5060, %v5056
    %v5589 = vpack.c.b16 %v5061, %v5057
    %v5590 = vpack.c.b16 %v5066, %v5062
    %v5591 = vpack.c.b16 %v5067, %v5063
    %v5592 = vpack.c.b16 %v5068, %v5064
    %v5593 = vpack.c.b16 %v5069, %v5065
    %v5594 = vpack.c.b16 %v5074, %v5070
    %v5595 = vpack.c.b16 %v5075, %v5071
    %v5596 = vpack.c.b16 %v5076, %v5072
    %v5597 = vpack.c.b16 %v5077, %v5073
    %v5598 = vpack.c.b16 %v5082, %v5078
    %v5599 = vpack.c.b16 %v5083, %v5079
    %v5600 = vpack.c.b16 %v5084, %v5080
    %v5601 = vpack.c.b16 %v5085, %v5081
    %v5602 = vpack.c.b16 %v5090, %v5086
    %v5603 = vpack.c.b16 %v5091, %v5087
    %v5604 = vpack.c.b16 %v5092, %v5088
    %v5605 = vpack.c.b16 %v5093, %v5089
    %v5606 = vpack.c.b16 %v5098, %v5094
    %v5607 = vpack.c.b16 %v5099, %v5095
    %v5608 = vpack.c.b16 %v5100, %v5096
    %v5609 = vpack.c.b16 %v5101, %v5097
    %v5610 = vpack.c.b16 %v5106, %v5102
    %v5611 = vpack.c.b16 %v5107, %v5103
    %v5612 = vpack.c.b16 %v5108, %v5104
    %v5613 = vpack.c.b16 %v5109, %v5105
    %v5614 = vpack.c.b16 %v5114, %v5110
    %v5615 = vpack.c.b16 %v5115, %v5111
    %v5616 = vpack.c.b16 %v5116, %v5112
    %v5617 = vpack.c.b16 %v5117, %v5113
    %v5618 = vpack.c.b16 %v5122, %v5118
    %v5619 = vpack.c.b16 %v5123, %v5119
    %v5620 = vpack.c.b16 %v5124, %v5120
    %v5621 = vpack.c.b16 %v5125, %v5121
    %v5622 = vpack.c.b16 %v5130, %v5126
    %v5623 = vpack.c.b16 %v5131, %v5127
    %v5624 = vpack.c.b16 %v5132, %v5128
    %v5625 = vpack.c.b16 %v5133, %v5129
    %v5626 = vpack.c.b16 %v5138, %v5134
    %v5627 = vpack.c.b16 %v5139, %v5135
    %v5628 = vpack.c.b16 %v5140, %v5136
    %v5629 = vpack.c.b16 %v5141, %v5137
    %v5630 = vpack.c.b16 %v5146, %v5142
    %v5631 = vpack.c.b16 %v5147, %v5143
    %v5632 = vpack.c.b16 %v5148, %v5144
    %v5633 = vpack.c.b16 %v5149, %v5145
    %v5634 = vpack.c.b16 %v5154, %v5150
    %v5635 = vpack.c.b16 %v5155, %v5151
    %v5636 = vpack.c.b16 %v5156, %v5152
    %v5637 = vpack.c.b16 %v5157, %v5153
    %v5638 = vpack.c.b16 %v5162, %v5158
    %v5639 = vpack.c.b16 %v5163, %v5159
    %v5640 = vpack.c.b16 %v5164, %v5160
    %v5641 = vpack.c.b16 %v5165, %v5161
    %v5642 = vpack.c.b16 %v5170, %v5166
    %v5643 = vpack.c.b16 %v5171, %v5167
    %v5644 = vpack.c.b16 %v5172, %v5168
    %v5645 = vpack.c.b16 %v5173, %v5169
    %v5646 = vpack.c.b16 %v5178, %v5174
    %v5647 = vpack.c.b16 %v5179, %v5175
    %v5648 = vpack.c.b16 %v5180, %v5176
    %v5649 = vpack.c.b16 %v5181, %v5177
    %v5650 = vpack.c.b16 %v5186, %v5182
    %v5651 = vpack.c.b16 %v5187, %v5183
    %v5652 = vpack.c.b16 %v5188, %v5184
    %v5653 = vpack.c.b16 %v5189, %v5185
    %v5654 = vpack.c.b16 %v5194, %v5190
    %v5655 = vpack.c.b16 %v5195, %v5191
    %v5656 = vpack.c.b16 %v5196, %v5192
    %v5657 = vpack.c.b16 %v5197, %v5193
    %v5658 = vpack.c.b16 %v5202, %v5198
    %v5659 = vpack.c.b16 %v5203, %v5199
    %v5660 = vpack.c.b16 %v5204, %v5200
    %v5661 = vpack.c.b16 %v5205, %v5201
    %v5662 = vpack.c.b16 %v5210, %v5206
    %v5663 = vpack.c.b16 %v5211, %v5207
    %v5664 = vpack.c.b16 %v5212, %v5208
    %v5665 = vpack.c.b16 %v5213, %v5209
    %v5666 = vpack.c.b16 %v5218, %v5214
    %v5667 = vpack.c.b16 %v5219, %v5215
    %v5668 = vpack.c.b16 %v5220, %v5216
    %v5669 = vpack.c.b16 %v5221, %v5217
    %v5670 = vpack.c.b16 %v5226, %v5222
    %v5671 = vpack.c.b16 %v5227, %v5223
    %v5672 = vpack.c.b16 %v5228, %v5224
    %v5673 = vpack.c.b16 %v5229, %v5225
    %v5674 = vpack.c.b16 %v5234, %v5230
    %v5675 = vpack.c.b16 %v5235, %v5231
    %v5676 = vpack.c.b16 %v5236, %v5232
    %v5677 = vpack.c.b16 %v5237, %v5233
    %v5678 = vpack.c.b16 %v5242, %v5238
    %v5679 = vpack.c.b16 %v5243, %v5239
    %v5680 = vpack.c.b16 %v5244, %v5240
    %v5681 = vpack.c.b16 %v5245, %v5241
    %v5682 = vpack.c.b16 %v5250, %v5246
    %v5683 = vpack.c.b16 %v5251, %v5247
    %v5684 = vpack.c.b16 %v5252, %v5248
    %v5685 = vpack.c.b16 %v5253, %v5249
    %v5686 = vpack.c.b16 %v5258, %v5254
    %v5687 = vpack.c.b16 %v5259, %v5255
    %v5688 = vpack.c.b16 %v5260, %v5256
    %v5689 = vpack.c.b16 %v5261, %v5257
    %v5690 = vpack.c.b16 %v5266, %v5262
    %v5691 = vpack.c.b16 %v5267, %v5263
    %v5692 = vpack.c.b16 %v5268, %v5264
    %v5693 = vpack.c.b16 %v5269, %v5265
    %v5694 = vpack.c.b16 %v5274, %v5270
    %v5695 = vpack.c.b16 %v5275, %v5271
    %v5696 = vpack.c.b16 %v5276, %v5272
    %v5697 = vpack.c.b16 %v5277, %v5273
    %v5698 = vpack.c.b16 %v5282, %v5278
    %v5699 = vpack.c.b16 %v5283, %v5279
    %v5700 = vpack.c.b16 %v5284, %v5280
    %v5701 = vpack.c.b16 %v5285, %v5281
    %v5702 = vpack.c.b16 %v5290, %v5286
    %v5703 = vpack.c.b16 %v5291, %v5287
    %v5704 = vpack.c.b16 %v5292, %v5288
    %v5705 = vpack.c.b16 %v5293, %v5289
    %v5706 = vpack.c.b16 %v5298, %v5294
    %v5707 = vpack.c.b16 %v5299, %v5295
    %v5708 = vpack.c.b16 %v5300, %v5296
    %v5709 = vpack.c.b16 %v5301, %v5297
    %v5710 = vpack.c.b16 %v5306, %v5302
    %v5711 = vpack.c.b16 %v5307, %v5303
    %v5712 = vpack.c.b16 %v5308, %v5304
    %v5713 = vpack.c.b16 %v5309, %v5305
    %v5714 = vpack.c.b16 %v5314, %v5310
    %v5715 = vpack.c.b16 %v5315, %v5311
    %v5716 = vpack.c.b16 %v5316, %v5312
    %v5717 = vpack.c.b16 %v5317, %v5313
    %v5718 = vpack.c.b16 %v5322, %v5318
    %v5719 = vpack.c.b16 %v5323, %v5319
    %v5720 = vpack.c.b16 %v5324, %v5320
    %v5721 = vpack.c.b16 %v5325, %v5321
    %v5722 = vpack.c.b16 %v5330, %v5326
    %v5723 = vpack.c.b16 %v5331, %v5327
    %v5724 = vpack.c.b16 %v5332, %v5328
    %v5725 = vpack.c.b16 %v5333, %v5329
    %v5726 = vpack.c.b16 %v5338, %v5334
    %v5727 = vpack.c.b16 %v5339, %v5335
    %v5728 = vpack.c.b16 %v5340, %v5336
    %v5729 = vpack.c.b16 %v5341, %v5337
    %v5730 = vpack.c.b16 %v5346, %v5342
    %v5731 = vpack.c.b16 %v5347, %v5343
    %v5732 = vpack.c.b16 %v5348, %v5344
    %v5733 = vpack.c.b16 %v5349, %v5345
    %6118 = vmatprep.subr.bf16.mxu0 %v5351
    %6119 = vmatpush1.bf16.msra.mxu0 %v5350
    %6120 = vmatprep.subr.bf16.mxu0 %v5355
    %6121 = vmatpush1.bf16.msra.mxu0 %v5354
    %6122 = vmatprep.subr.bf16.mxu0 %v5359
    %6123 = vmatpush1.bf16.msra.mxu0 %v5358
    %6124 = vmatprep.subr.bf16.mxu0 %v5363
    %6125 = vmatpush1.bf16.msra.mxu0 %v5362
    %6126 = vmatprep.subr.bf16.mxu0 %v5367
    %6127 = vmatpush1.bf16.msra.mxu0 %v5366
    %6128 = vmatprep.subr.bf16.mxu0 %v5371
    %6129 = vmatpush1.bf16.msra.mxu0 %v5370
    %6130 = vmatprep.subr.bf16.mxu0 %v5375
    %6131 = vmatpush1.bf16.msra.mxu0 %v5374
    %6132 = vmatprep.subr.bf16.mxu0 %v5379
    %6133 = vmatpush1.bf16.msra.mxu0 %v5378
    %6134 = vmatprep.subr.bf16.mxu0 %v5383
    %6135 = vmatpush1.bf16.msra.mxu0 %v5382
    %6136 = vmatprep.subr.bf16.mxu0 %v5387
    %6137 = vmatpush1.bf16.msra.mxu0 %v5386
    %6138 = vmatprep.subr.bf16.mxu0 %v5391
    %6139 = vmatpush1.bf16.msra.mxu0 %v5390
    %6140 = vmatprep.subr.bf16.mxu0 %v5395
    %6141 = vmatpush1.bf16.msra.mxu0 %v5394
    %6142 = vmatprep.subr.bf16.mxu0 %v5399
    %6143 = vmatpush1.bf16.msra.mxu0 %v5398
    %6144 = vmatprep.subr.bf16.mxu0 %v5403
    %6145 = vmatpush1.bf16.msra.mxu0 %v5402
    %6146 = vmatprep.subr.bf16.mxu0 %v5407
    %6147 = vmatpush1.bf16.msra.mxu0 %v5406
    %6148 = vmatprep.subr.bf16.mxu0 %v5411
    %6149 = vmatpush1.bf16.msra.mxu0 %v5410
    %6150 = vmatprep.mubr.bf16.mxu0 %v4103
    %6151 = vmatmul.mubr.bf16.gmra.mrb[0].mxu0 %v4102
    %v6152 = vpop.f32.mrb[0].mxu0
    %v6153 = vadd.f32 %v3482, %v6152
    %v6154 = vpop.f32.mrb[0].mxu0
    %v6155 = vadd.f32 %v3484, %v6154
    %v6156 = vpop.f32.mrb[0].mxu0
    %v6157 = vadd.f32 %v3486, %v6156
    %v6158 = vpop.f32.mrb[0].mxu0
    %v6159 = vadd.f32 %v3488, %v6158
    %6160 = vmatprep.mubr.bf16.mxu0 %v4115
    %6161 = vmatmul.mubr.bf16.gmra.mrb[0].mxu0 %v4114
    %v6162 = vpop.f32.mrb[0].mxu0
    %v6163 = vadd.f32 %v3492, %v6162
    %v6164 = vpop.f32.mrb[0].mxu0
    %v6165 = vadd.f32 %v3494, %v6164
    %v6166 = vpop.f32.mrb[0].mxu0
    %v6167 = vadd.f32 %v3496, %v6166
    %v6168 = vpop.f32.mrb[0].mxu0
    %v6169 = vadd.f32 %v3498, %v6168
    %6170 = vmatprep.mubr.bf16.mxu0 %v4127
    %6171 = vmatmul.mubr.bf16.gmra.mrb[0].mxu0 %v4126
    %v6172 = vpop.f32.mrb[0].mxu0
    %v6173 = vadd.f32 %v3502, %v6172
    %v6174 = vpop.f32.mrb[0].mxu0
    %v6175 = vadd.f32 %v3504, %v6174
    %v6176 = vpop.f32.mrb[0].mxu0
    %v6177 = vadd.f32 %v3506, %v6176
    %v6178 = vpop.f32.mrb[0].mxu0
    %v6179 = vadd.f32 %v3508, %v6178
    %6180 = vmatprep.mubr.bf16.mxu0 %v4139
    %6181 = vmatmul.mubr.bf16.gmra.mrb[0].mxu0 %v4138
    %v6182 = vpop.f32.mrb[0].mxu0
    %v6183 = vadd.f32 %v3512, %v6182
    %v6184 = vpop.f32.mrb[0].mxu0
    %v6185 = vadd.f32 %v3514, %v6184
    %v6186 = vpop.f32.mrb[0].mxu0
    %v6187 = vadd.f32 %v3516, %v6186
    %v6188 = vpop.f32.mrb[0].mxu0
    %v6189 = vadd.f32 %v3518, %v6188
    %6190 = vdwg.mxu0
    %6191 = vmatprep.subr.bf16.mxu0 %v5415
    %6192 = vmatpush1.bf16.msra.mxu0 %v5414
    %6193 = vmatprep.subr.bf16.mxu0 %v5419
    %6194 = vmatpush1.bf16.msra.mxu0 %v5418
    %6195 = vmatprep.subr.bf16.mxu0 %v5423
    %6196 = vmatpush1.bf16.msra.mxu0 %v5422
    %6197 = vmatprep.subr.bf16.mxu0 %v5427
    %6198 = vmatpush1.bf16.msra.mxu0 %v5426
    %6199 = vmatprep.subr.bf16.mxu0 %v5431
    %6200 = vmatpush1.bf16.msra.mxu0 %v5430
    %6201 = vmatprep.subr.bf16.mxu0 %v5435
    %6202 = vmatpush1.bf16.msra.mxu0 %v5434
    %6203 = vmatprep.subr.bf16.mxu0 %v5439
    %6204 = vmatpush1.bf16.msra.mxu0 %v5438
    %6205 = vmatprep.subr.bf16.mxu0 %v5443
    %6206 = vmatpush1.bf16.msra.mxu0 %v5442
    %6207 = vmatprep.subr.bf16.mxu0 %v5447
    %6208 = vmatpush1.bf16.msra.mxu0 %v5446
    %6209 = vmatprep.subr.bf16.mxu0 %v5451
    %6210 = vmatpush1.bf16.msra.mxu0 %v5450
    %6211 = vmatprep.subr.bf16.mxu0 %v5455
    %6212 = vmatpush1.bf16.msra.mxu0 %v5454
    %6213 = vmatprep.subr.bf16.mxu0 %v5459
    %6214 = vmatpush1.bf16.msra.mxu0 %v5458
    %6215 = vmatprep.subr.bf16.mxu0 %v5463
    %6216 = vmatpush1.bf16.msra.mxu0 %v5462
    %6217 = vmatprep.subr.bf16.mxu0 %v5467
    %6218 = vmatpush1.bf16.msra.mxu0 %v5466
    %6219 = vmatprep.subr.bf16.mxu0 %v5471
    %6220 = vmatpush1.bf16.msra.mxu0 %v5470
    %6221 = vmatprep.subr.bf16.mxu0 %v5475
    %6222 = vmatpush1.bf16.msra.mxu0 %v5474
    %6223 = vmatprep.mubr.bf16.mxu0 %v4105
    %6224 = vmatmul.mubr.bf16.gmra.mrb[0].mxu0 %v4104
    %v6225 = vpop.f32.mrb[0].mxu0
    %v6226 = vadd.f32 %v6153, %v6225
    %v6227 = vpop.f32.mrb[0].mxu0
    %v6228 = vadd.f32 %v6155, %v6227
    %v6229 = vpop.f32.mrb[0].mxu0
    %v6230 = vadd.f32 %v6157, %v6229
    %v6231 = vpop.f32.mrb[0].mxu0
    %v6232 = vadd.f32 %v6159, %v6231
    %6233 = vmatprep.mubr.bf16.mxu0 %v4117
    %6234 = vmatmul.mubr.bf16.gmra.mrb[0].mxu0 %v4116
    %v6235 = vpop.f32.mrb[0].mxu0
    %v6236 = vadd.f32 %v6163, %v6235
    %v6237 = vpop.f32.mrb[0].mxu0
    %v6238 = vadd.f32 %v6165, %v6237
    %v6239 = vpop.f32.mrb[0].mxu0
    %v6240 = vadd.f32 %v6167, %v6239
    %v6241 = vpop.f32.mrb[0].mxu0
    %v6242 = vadd.f32 %v6169, %v6241
    %6243 = vmatprep.mubr.bf16.mxu0 %v4129
    %6244 = vmatmul.mubr.bf16.gmra.mrb[0].mxu0 %v4128
    %v6245 = vpop.f32.mrb[0].mxu0
    %v6246 = vadd.f32 %v6173, %v6245
    %v6247 = vpop.f32.mrb[0].mxu0
    %v6248 = vadd.f32 %v6175, %v6247
    %v6249 = vpop.f32.mrb[0].mxu0
    %v6250 = vadd.f32 %v6177, %v6249
    %v6251 = vpop.f32.mrb[0].mxu0
    %v6252 = vadd.f32 %v6179, %v6251
    %6253 = vmatprep.mubr.bf16.mxu0 %v4141
    %6254 = vmatmul.mubr.bf16.gmra.mrb[0].mxu0 %v4140
    %v6255 = vpop.f32.mrb[0].mxu0
    %v6256 = vadd.f32 %v6183, %v6255
    %v6257 = vpop.f32.mrb[0].mxu0
    %v6258 = vadd.f32 %v6185, %v6257
    %v6259 = vpop.f32.mrb[0].mxu0
    %v6260 = vadd.f32 %v6187, %v6259
    %v6261 = vpop.f32.mrb[0].mxu0
    %v6262 = vadd.f32 %v6189, %v6261
    %6263 = vdwg.mxu0
    %6264 = vmatprep.subr.bf16.mxu0 %v5479
    %6265 = vmatpush1.bf16.msra.mxu0 %v5478
    %6266 = vmatprep.subr.bf16.mxu0 %v5483
    %6267 = vmatpush1.bf16.msra.mxu0 %v5482
    %6268 = vmatprep.subr.bf16.mxu0 %v5487
    %6269 = vmatpush1.bf16.msra.mxu0 %v5486
    %6270 = vmatprep.subr.bf16.mxu0 %v5491
    %6271 = vmatpush1.bf16.msra.mxu0 %v5490
    %6272 = vmatprep.subr.bf16.mxu0 %v5495
    %6273 = vmatpush1.bf16.msra.mxu0 %v5494
    %6274 = vmatprep.subr.bf16.mxu0 %v5499
    %6275 = vmatpush1.bf16.msra.mxu0 %v5498
    %6276 = vmatprep.subr.bf16.mxu0 %v5503
    %6277 = vmatpush1.bf16.msra.mxu0 %v5502
    %6278 = vmatprep.subr.bf16.mxu0 %v5507
    %6279 = vmatpush1.bf16.msra.mxu0 %v5506
    %6280 = vmatprep.subr.bf16.mxu0 %v5511
    %6281 = vmatpush1.bf16.msra.mxu0 %v5510
    %6282 = vmatprep.subr.bf16.mxu0 %v5515
    %6283 = vmatpush1.bf16.msra.mxu0 %v5514
    %6284 = vmatprep.subr.bf16.mxu0 %v5519
    %6285 = vmatpush1.bf16.msra.mxu0 %v5518
    %6286 = vmatprep.subr.bf16.mxu0 %v5523
    %6287 = vmatpush1.bf16.msra.mxu0 %v5522
    %6288 = vmatprep.subr.bf16.mxu0 %v5527
    %6289 = vmatpush1.bf16.msra.mxu0 %v5526
    %6290 = vmatprep.subr.bf16.mxu0 %v5531
    %6291 = vmatpush1.bf16.msra.mxu0 %v5530
    %6292 = vmatprep.subr.bf16.mxu0 %v5535
    %6293 = vmatpush1.bf16.msra.mxu0 %v5534
    %6294 = vmatprep.subr.bf16.mxu0 %v5539
    %6295 = vmatpush1.bf16.msra.mxu0 %v5538
    %6296 = vmatprep.mubr.bf16.mxu0 %v4107
    %6297 = vmatmul.mubr.bf16.gmra.mrb[0].mxu0 %v4106
    %v6298 = vpop.f32.mrb[0].mxu0
    %v6299 = vadd.f32 %v6226, %v6298
    %v6300 = vpop.f32.mrb[0].mxu0
    %v6301 = vadd.f32 %v6228, %v6300
    %v6302 = vpop.f32.mrb[0].mxu0
    %v6303 = vadd.f32 %v6230, %v6302
    %v6304 = vpop.f32.mrb[0].mxu0
    %v6305 = vadd.f32 %v6232, %v6304
    %6306 = vmatprep.mubr.bf16.mxu0 %v4119
    %6307 = vmatmul.mubr.bf16.gmra.mrb[0].mxu0 %v4118
    %v6308 = vpop.f32.mrb[0].mxu0
    %v6309 = vadd.f32 %v6236, %v6308
    %v6310 = vpop.f32.mrb[0].mxu0
    %v6311 = vadd.f32 %v6238, %v6310
    %v6312 = vpop.f32.mrb[0].mxu0
    %v6313 = vadd.f32 %v6240, %v6312
    %v6314 = vpop.f32.mrb[0].mxu0
    %v6315 = vadd.f32 %v6242, %v6314
    %6316 = vmatprep.mubr.bf16.mxu0 %v4131
    %6317 = vmatmul.mubr.bf16.gmra.mrb[0].mxu0 %v4130
    %v6318 = vpop.f32.mrb[0].mxu0
    %v6319 = vadd.f32 %v6246, %v6318
    %v6320 = vpop.f32.mrb[0].mxu0
    %v6321 = vadd.f32 %v6248, %v6320
    %v6322 = vpop.f32.mrb[0].mxu0
    %v6323 = vadd.f32 %v6250, %v6322
    %v6324 = vpop.f32.mrb[0].mxu0
    %v6325 = vadd.f32 %v6252, %v6324
    %6326 = vmatprep.mubr.bf16.mxu0 %v4143
    %6327 = vmatmul.mubr.bf16.gmra.mrb[0].mxu0 %v4142
    %v6328 = vpop.f32.mrb[0].mxu0
    %v6329 = vadd.f32 %v6256, %v6328
    %v6330 = vpop.f32.mrb[0].mxu0
    %v6331 = vadd.f32 %v6258, %v6330
    %v6332 = vpop.f32.mrb[0].mxu0
    %v6333 = vadd.f32 %v6260, %v6332
    %v6334 = vpop.f32.mrb[0].mxu0
    %v6335 = vadd.f32 %v6262, %v6334
    %6336 = vdwg.mxu0
    %6337 = vmatprep.subr.bf16.mxu0 %v5543
    %6338 = vmatpush1.bf16.msra.mxu0 %v5542
    %6339 = vmatprep.subr.bf16.mxu0 %v5547
    %6340 = vmatpush1.bf16.msra.mxu0 %v5546
    %6341 = vmatprep.subr.bf16.mxu0 %v5551
    %6342 = vmatpush1.bf16.msra.mxu0 %v5550
    %6343 = vmatprep.subr.bf16.mxu0 %v5555
    %6344 = vmatpush1.bf16.msra.mxu0 %v5554
    %6345 = vmatprep.subr.bf16.mxu0 %v5559
    %6346 = vmatpush1.bf16.msra.mxu0 %v5558
    %6347 = vmatprep.subr.bf16.mxu0 %v5563
    %6348 = vmatpush1.bf16.msra.mxu0 %v5562
    %6349 = vmatprep.subr.bf16.mxu0 %v5567
    %6350 = vmatpush1.bf16.msra.mxu0 %v5566
    %6351 = vmatprep.subr.bf16.mxu0 %v5571
    %6352 = vmatpush1.bf16.msra.mxu0 %v5570
    %6353 = vmatprep.subr.bf16.mxu0 %v5575
    %6354 = vmatpush1.bf16.msra.mxu0 %v5574
    %6355 = vmatprep.subr.bf16.mxu0 %v5579
    %6356 = vmatpush1.bf16.msra.mxu0 %v5578
    %6357 = vmatprep.subr.bf16.mxu0 %v5583
    %6358 = vmatpush1.bf16.msra.mxu0 %v5582
    %6359 = vmatprep.subr.bf16.mxu0 %v5587
    %6360 = vmatpush1.bf16.msra.mxu0 %v5586
    %6361 = vmatprep.subr.bf16.mxu0 %v5591
    %6362 = vmatpush1.bf16.msra.mxu0 %v5590
    %6363 = vmatprep.subr.bf16.mxu0 %v5595
    %6364 = vmatpush1.bf16.msra.mxu0 %v5594
    %6365 = vmatprep.subr.bf16.mxu0 %v5599
    %6366 = vmatpush1.bf16.msra.mxu0 %v5598
    %6367 = vmatprep.subr.bf16.mxu0 %v5603
    %6368 = vmatpush1.bf16.msra.mxu0 %v5602
    %6369 = vmatprep.mubr.bf16.mxu0 %v4109
    %6370 = vmatmul.mubr.bf16.gmra.mrb[0].mxu0 %v4108
    %v6371 = vpop.f32.mrb[0].mxu0
    %v6372 = vadd.f32 %v6299, %v6371
    %v6373 = vpop.f32.mrb[0].mxu0
    %v6374 = vadd.f32 %v6301, %v6373
    %v6375 = vpop.f32.mrb[0].mxu0
    %v6376 = vadd.f32 %v6303, %v6375
    %v6377 = vpop.f32.mrb[0].mxu0
    %v6378 = vadd.f32 %v6305, %v6377
    %6379 = vmatprep.mubr.bf16.mxu0 %v4121
    %6380 = vmatmul.mubr.bf16.gmra.mrb[0].mxu0 %v4120
    %v6381 = vpop.f32.mrb[0].mxu0
    %v6382 = vadd.f32 %v6309, %v6381
    %v6383 = vpop.f32.mrb[0].mxu0
    %v6384 = vadd.f32 %v6311, %v6383
    %v6385 = vpop.f32.mrb[0].mxu0
    %v6386 = vadd.f32 %v6313, %v6385
    %v6387 = vpop.f32.mrb[0].mxu0
    %v6388 = vadd.f32 %v6315, %v6387
    %6389 = vmatprep.mubr.bf16.mxu0 %v4133
    %6390 = vmatmul.mubr.bf16.gmra.mrb[0].mxu0 %v4132
    %v6391 = vpop.f32.mrb[0].mxu0
    %v6392 = vadd.f32 %v6319, %v6391
    %v6393 = vpop.f32.mrb[0].mxu0
    %v6394 = vadd.f32 %v6321, %v6393
    %v6395 = vpop.f32.mrb[0].mxu0
    %v6396 = vadd.f32 %v6323, %v6395
    %v6397 = vpop.f32.mrb[0].mxu0
    %v6398 = vadd.f32 %v6325, %v6397
    %6399 = vmatprep.mubr.bf16.mxu0 %v4145
    %6400 = vmatmul.mubr.bf16.gmra.mrb[0].mxu0 %v4144
    %v6401 = vpop.f32.mrb[0].mxu0
    %v6402 = vadd.f32 %v6329, %v6401
    %v6403 = vpop.f32.mrb[0].mxu0
    %v6404 = vadd.f32 %v6331, %v6403
    %v6405 = vpop.f32.mrb[0].mxu0
    %v6406 = vadd.f32 %v6333, %v6405
    %v6407 = vpop.f32.mrb[0].mxu0
    %v6408 = vadd.f32 %v6335, %v6407
    %6409 = vdwg.mxu0
    %6410 = vmatprep.subr.bf16.mxu0 %v5607
    %6411 = vmatpush1.bf16.msra.mxu0 %v5606
    %6412 = vmatprep.subr.bf16.mxu0 %v5611
    %6413 = vmatpush1.bf16.msra.mxu0 %v5610
    %6414 = vmatprep.subr.bf16.mxu0 %v5615
    %6415 = vmatpush1.bf16.msra.mxu0 %v5614
    %6416 = vmatprep.subr.bf16.mxu0 %v5619
    %6417 = vmatpush1.bf16.msra.mxu0 %v5618
    %6418 = vmatprep.subr.bf16.mxu0 %v5623
    %6419 = vmatpush1.bf16.msra.mxu0 %v5622
    %6420 = vmatprep.subr.bf16.mxu0 %v5627
    %6421 = vmatpush1.bf16.msra.mxu0 %v5626
    %6422 = vmatprep.subr.bf16.mxu0 %v5631
    %6423 = vmatpush1.bf16.msra.mxu0 %v5630
    %6424 = vmatprep.subr.bf16.mxu0 %v5635
    %6425 = vmatpush1.bf16.msra.mxu0 %v5634
    %6426 = vmatprep.subr.bf16.mxu0 %v5639
    %6427 = vmatpush1.bf16.msra.mxu0 %v5638
    %6428 = vmatprep.subr.bf16.mxu0 %v5643
    %6429 = vmatpush1.bf16.msra.mxu0 %v5642
    %6430 = vmatprep.subr.bf16.mxu0 %v5647
    %6431 = vmatpush1.bf16.msra.mxu0 %v5646
    %6432 = vmatprep.subr.bf16.mxu0 %v5651
    %6433 = vmatpush1.bf16.msra.mxu0 %v5650
    %6434 = vmatprep.subr.bf16.mxu0 %v5655
    %6435 = vmatpush1.bf16.msra.mxu0 %v5654
    %6436 = vmatprep.subr.bf16.mxu0 %v5659
    %6437 = vmatpush1.bf16.msra.mxu0 %v5658
    %6438 = vmatprep.subr.bf16.mxu0 %v5663
    %6439 = vmatpush1.bf16.msra.mxu0 %v5662
    %6440 = vmatprep.subr.bf16.mxu0 %v5667
    %6441 = vmatpush1.bf16.msra.mxu0 %v5666
    %6442 = vmatprep.mubr.bf16.mxu0 %v4111
    %6443 = vmatmul.mubr.bf16.gmra.mrb[0].mxu0 %v4110
    %v6444 = vpop.f32.mrb[0].mxu0
    %v6445 = vadd.f32 %v6372, %v6444
    %v6446 = vpop.f32.mrb[0].mxu0
    %v6447 = vadd.f32 %v6374, %v6446
    %v6448 = vpop.f32.mrb[0].mxu0
    %v6449 = vadd.f32 %v6376, %v6448
    %v6450 = vpop.f32.mrb[0].mxu0
    %v6451 = vadd.f32 %v6378, %v6450
    %6452 = vmatprep.mubr.bf16.mxu0 %v4123
    %6453 = vmatmul.mubr.bf16.gmra.mrb[0].mxu0 %v4122
    %v6454 = vpop.f32.mrb[0].mxu0
    %v6455 = vadd.f32 %v6382, %v6454
    %v6456 = vpop.f32.mrb[0].mxu0
    %v6457 = vadd.f32 %v6384, %v6456
    %v6458 = vpop.f32.mrb[0].mxu0
    %v6459 = vadd.f32 %v6386, %v6458
    %v6460 = vpop.f32.mrb[0].mxu0
    %v6461 = vadd.f32 %v6388, %v6460
    %6462 = vmatprep.mubr.bf16.mxu0 %v4135
    %6463 = vmatmul.mubr.bf16.gmra.mrb[0].mxu0 %v4134
    %v6464 = vpop.f32.mrb[0].mxu0
    %v6465 = vadd.f32 %v6392, %v6464
    %v6466 = vpop.f32.mrb[0].mxu0
    %v6467 = vadd.f32 %v6394, %v6466
    %v6468 = vpop.f32.mrb[0].mxu0
    %v6469 = vadd.f32 %v6396, %v6468
    %v6470 = vpop.f32.mrb[0].mxu0
    %v6471 = vadd.f32 %v6398, %v6470
    %6472 = vmatprep.mubr.bf16.mxu0 %v4147
    %6473 = vmatmul.mubr.bf16.gmra.mrb[0].mxu0 %v4146
    %v6474 = vpop.f32.mrb[0].mxu0
    %v6475 = vadd.f32 %v6402, %v6474
    %v6476 = vpop.f32.mrb[0].mxu0
    %v6477 = vadd.f32 %v6404, %v6476
    %v6478 = vpop.f32.mrb[0].mxu0
    %v6479 = vadd.f32 %v6406, %v6478
    %v6480 = vpop.f32.mrb[0].mxu0
    %v6481 = vadd.f32 %v6408, %v6480
    %6482 = vdwg.mxu0
    %6483 = vmatprep.subr.bf16.mxu0 %v5671
    %6484 = vmatpush1.bf16.msra.mxu0 %v5670
    %6485 = vmatprep.subr.bf16.mxu0 %v5675
    %6486 = vmatpush1.bf16.msra.mxu0 %v5674
    %6487 = vmatprep.subr.bf16.mxu0 %v5679
    %6488 = vmatpush1.bf16.msra.mxu0 %v5678
    %6489 = vmatprep.subr.bf16.mxu0 %v5683
    %6490 = vmatpush1.bf16.msra.mxu0 %v5682
    %6491 = vmatprep.subr.bf16.mxu0 %v5687
    %6492 = vmatpush1.bf16.msra.mxu0 %v5686
    %6493 = vmatprep.subr.bf16.mxu0 %v5691
    %6494 = vmatpush1.bf16.msra.mxu0 %v5690
    %6495 = vmatprep.subr.bf16.mxu0 %v5695
    %6496 = vmatpush1.bf16.msra.mxu0 %v5694
    %6497 = vmatprep.subr.bf16.mxu0 %v5699
    %6498 = vmatpush1.bf16.msra.mxu0 %v5698
    %6499 = vmatprep.subr.bf16.mxu0 %v5703
    %6500 = vmatpush1.bf16.msra.mxu0 %v5702
    %6501 = vmatprep.subr.bf16.mxu0 %v5707
    %6502 = vmatpush1.bf16.msra.mxu0 %v5706
    %6503 = vmatprep.subr.bf16.mxu0 %v5711
    %6504 = vmatpush1.bf16.msra.mxu0 %v5710
    %6505 = vmatprep.subr.bf16.mxu0 %v5715
    %6506 = vmatpush1.bf16.msra.mxu0 %v5714
    %6507 = vmatprep.subr.bf16.mxu0 %v5719
    %6508 = vmatpush1.bf16.msra.mxu0 %v5718
    %6509 = vmatprep.subr.bf16.mxu0 %v5723
    %6510 = vmatpush1.bf16.msra.mxu0 %v5722
    %6511 = vmatprep.subr.bf16.mxu0 %v5727
    %6512 = vmatpush1.bf16.msra.mxu0 %v5726
    %6513 = vmatprep.subr.bf16.mxu0 %v5731
    %6514 = vmatpush1.bf16.msra.mxu0 %v5730
    %6515 = vmatprep.mubr.bf16.mxu0 %v4113
    %6516 = vmatmul.mubr.bf16.gmra.mrb[0].mxu0 %v4112
    %v6517 = vpop.f32.mrb[0].mxu0
    %v6518 = vadd.f32 %v6445, %v6517
    %v6519 = vpop.f32.mrb[0].mxu0
    %v6520 = vadd.f32 %v6447, %v6519
    %v6521 = vpop.f32.mrb[0].mxu0
    %v6522 = vadd.f32 %v6449, %v6521
    %v6523 = vpop.f32.mrb[0].mxu0
    %v6524 = vadd.f32 %v6451, %v6523
    %6525 = vmatprep.mubr.bf16.mxu0 %v4125
    %6526 = vmatmul.mubr.bf16.gmra.mrb[0].mxu0 %v4124
    %v6527 = vpop.f32.mrb[0].mxu0
    %v6528 = vadd.f32 %v6455, %v6527
    %v6529 = vpop.f32.mrb[0].mxu0
    %v6530 = vadd.f32 %v6457, %v6529
    %v6531 = vpop.f32.mrb[0].mxu0
    %v6532 = vadd.f32 %v6459, %v6531
    %v6533 = vpop.f32.mrb[0].mxu0
    %v6534 = vadd.f32 %v6461, %v6533
    %6535 = vmatprep.mubr.bf16.mxu0 %v4137
    %6536 = vmatmul.mubr.bf16.gmra.mrb[0].mxu0 %v4136
    %v6537 = vpop.f32.mrb[0].mxu0
    %v6538 = vadd.f32 %v6465, %v6537
    %v6539 = vpop.f32.mrb[0].mxu0
    %v6540 = vadd.f32 %v6467, %v6539
    %v6541 = vpop.f32.mrb[0].mxu0
    %v6542 = vadd.f32 %v6469, %v6541
    %v6543 = vpop.f32.mrb[0].mxu0
    %v6544 = vadd.f32 %v6471, %v6543
    %6545 = vmatprep.mubr.bf16.mxu0 %v4149
    %6546 = vmatmul.mubr.bf16.gmra.mrb[0].mxu0 %v4148
    %v6547 = vpop.f32.mrb[0].mxu0
    %v6548 = vadd.f32 %v6475, %v6547
    %v6549 = vpop.f32.mrb[0].mxu0
    %v6550 = vadd.f32 %v6477, %v6549
    %v6551 = vpop.f32.mrb[0].mxu0
    %v6552 = vadd.f32 %v6479, %v6551
    %v6553 = vpop.f32.mrb[0].mxu0
    %v6554 = vadd.f32 %v6481, %v6553
    %6555 = vdwg.mxu0
    %6556 = vmatprep.subr.bf16.mxu0 %v5353
    %6557 = vmatpush1.bf16.msra.mxu0 %v5352
    %6558 = vmatprep.subr.bf16.mxu0 %v5357
    %6559 = vmatpush1.bf16.msra.mxu0 %v5356
    %6560 = vmatprep.subr.bf16.mxu0 %v5361
    %6561 = vmatpush1.bf16.msra.mxu0 %v5360
    %6562 = vmatprep.subr.bf16.mxu0 %v5365
    %6563 = vmatpush1.bf16.msra.mxu0 %v5364
    %6564 = vmatprep.subr.bf16.mxu0 %v5369
    %6565 = vmatpush1.bf16.msra.mxu0 %v5368
    %6566 = vmatprep.subr.bf16.mxu0 %v5373
    %6567 = vmatpush1.bf16.msra.mxu0 %v5372
    %6568 = vmatprep.subr.bf16.mxu0 %v5377
    %6569 = vmatpush1.bf16.msra.mxu0 %v5376
    %6570 = vmatprep.subr.bf16.mxu0 %v5381
    %6571 = vmatpush1.bf16.msra.mxu0 %v5380
    %6572 = vmatprep.subr.bf16.mxu0 %v5385
    %6573 = vmatpush1.bf16.msra.mxu0 %v5384
    %6574 = vmatprep.subr.bf16.mxu0 %v5389
    %6575 = vmatpush1.bf16.msra.mxu0 %v5388
    %6576 = vmatprep.subr.bf16.mxu0 %v5393
    %6577 = vmatpush1.bf16.msra.mxu0 %v5392
    %6578 = vmatprep.subr.bf16.mxu0 %v5397
    %6579 = vmatpush1.bf16.msra.mxu0 %v5396
    %6580 = vmatprep.subr.bf16.mxu0 %v5401
    %6581 = vmatpush1.bf16.msra.mxu0 %v5400
    %6582 = vmatprep.subr.bf16.mxu0 %v5405
    %6583 = vmatpush1.bf16.msra.mxu0 %v5404
    %6584 = vmatprep.subr.bf16.mxu0 %v5409
    %6585 = vmatpush1.bf16.msra.mxu0 %v5408
    %6586 = vmatprep.subr.bf16.mxu0 %v5413
    %6587 = vmatpush1.bf16.msra.mxu0 %v5412
    %6588 = vmatprep.mubr.bf16.mxu0 %v4103
    %6589 = vmatmul.mubr.bf16.gmra.mrb[0].mxu0 %v4102
    %v6590 = vpop.f32.mrb[0].mxu0
    %v6591 = vadd.f32 %v3920, %v6590
    %v6592 = vpop.f32.mrb[0].mxu0
    %v6593 = vadd.f32 %v3922, %v6592
    %v6594 = vpop.f32.mrb[0].mxu0
    %v6595 = vadd.f32 %v3924, %v6594
    %v6596 = vpop.f32.mrb[0].mxu0
    %v6597 = vadd.f32 %v3926, %v6596
    %6598 = vmatprep.mubr.bf16.mxu0 %v4115
    %6599 = vmatmul.mubr.bf16.gmra.mrb[0].mxu0 %v4114
    %v6600 = vpop.f32.mrb[0].mxu0
    %v6601 = vadd.f32 %v3930, %v6600
    %v6602 = vpop.f32.mrb[0].mxu0
    %v6603 = vadd.f32 %v3932, %v6602
    %v6604 = vpop.f32.mrb[0].mxu0
    %v6605 = vadd.f32 %v3934, %v6604
    %v6606 = vpop.f32.mrb[0].mxu0
    %v6607 = vadd.f32 %v3936, %v6606
    %6608 = vmatprep.mubr.bf16.mxu0 %v4127
    %6609 = vmatmul.mubr.bf16.gmra.mrb[0].mxu0 %v4126
    %v6610 = vpop.f32.mrb[0].mxu0
    %v6611 = vadd.f32 %v3940, %v6610
    %v6612 = vpop.f32.mrb[0].mxu0
    %v6613 = vadd.f32 %v3942, %v6612
    %v6614 = vpop.f32.mrb[0].mxu0
    %v6615 = vadd.f32 %v3944, %v6614
    %v6616 = vpop.f32.mrb[0].mxu0
    %v6617 = vadd.f32 %v3946, %v6616
    %6618 = vmatprep.mubr.bf16.mxu0 %v4139
    %6619 = vmatmul.mubr.bf16.gmra.mrb[0].mxu0 %v4138
    %v6620 = vpop.f32.mrb[0].mxu0
    %v6621 = vadd.f32 %v3950, %v6620
    %v6622 = vpop.f32.mrb[0].mxu0
    %v6623 = vadd.f32 %v3952, %v6622
    %v6624 = vpop.f32.mrb[0].mxu0
    %v6625 = vadd.f32 %v3954, %v6624
    %v6626 = vpop.f32.mrb[0].mxu0
    %v6627 = vadd.f32 %v3956, %v6626
    %6628 = vdwg.mxu0
    %6629 = vmatprep.subr.bf16.mxu0 %v5417
    %6630 = vmatpush1.bf16.msra.mxu0 %v5416
    %6631 = vmatprep.subr.bf16.mxu0 %v5421
    %6632 = vmatpush1.bf16.msra.mxu0 %v5420
    %6633 = vmatprep.subr.bf16.mxu0 %v5425
    %6634 = vmatpush1.bf16.msra.mxu0 %v5424
    %6635 = vmatprep.subr.bf16.mxu0 %v5429
    %6636 = vmatpush1.bf16.msra.mxu0 %v5428
    %6637 = vmatprep.subr.bf16.mxu0 %v5433
    %6638 = vmatpush1.bf16.msra.mxu0 %v5432
    %6639 = vmatprep.subr.bf16.mxu0 %v5437
    %6640 = vmatpush1.bf16.msra.mxu0 %v5436
    %6641 = vmatprep.subr.bf16.mxu0 %v5441
    %6642 = vmatpush1.bf16.msra.mxu0 %v5440
    %6643 = vmatprep.subr.bf16.mxu0 %v5445
    %6644 = vmatpush1.bf16.msra.mxu0 %v5444
    %6645 = vmatprep.subr.bf16.mxu0 %v5449
    %6646 = vmatpush1.bf16.msra.mxu0 %v5448
    %6647 = vmatprep.subr.bf16.mxu0 %v5453
    %6648 = vmatpush1.bf16.msra.mxu0 %v5452
    %6649 = vmatprep.subr.bf16.mxu0 %v5457
    %6650 = vmatpush1.bf16.msra.mxu0 %v5456
    %6651 = vmatprep.subr.bf16.mxu0 %v5461
    %6652 = vmatpush1.bf16.msra.mxu0 %v5460
    %6653 = vmatprep.subr.bf16.mxu0 %v5465
    %6654 = vmatpush1.bf16.msra.mxu0 %v5464
    %6655 = vmatprep.subr.bf16.mxu0 %v5469
    %6656 = vmatpush1.bf16.msra.mxu0 %v5468
    %6657 = vmatprep.subr.bf16.mxu0 %v5473
    %6658 = vmatpush1.bf16.msra.mxu0 %v5472
    %6659 = vmatprep.subr.bf16.mxu0 %v5477
    %6660 = vmatpush1.bf16.msra.mxu0 %v5476
    %6661 = vmatprep.mubr.bf16.mxu0 %v4105
    %6662 = vmatmul.mubr.bf16.gmra.mrb[0].mxu0 %v4104
    %v6663 = vpop.f32.mrb[0].mxu0
    %v6664 = vadd.f32 %v6591, %v6663
    %v6665 = vpop.f32.mrb[0].mxu0
    %v6666 = vadd.f32 %v6593, %v6665
    %v6667 = vpop.f32.mrb[0].mxu0
    %v6668 = vadd.f32 %v6595, %v6667
    %v6669 = vpop.f32.mrb[0].mxu0
    %v6670 = vadd.f32 %v6597, %v6669
    %6671 = vmatprep.mubr.bf16.mxu0 %v4117
    %6672 = vmatmul.mubr.bf16.gmra.mrb[0].mxu0 %v4116
    %v6673 = vpop.f32.mrb[0].mxu0
    %v6674 = vadd.f32 %v6601, %v6673
    %v6675 = vpop.f32.mrb[0].mxu0
    %v6676 = vadd.f32 %v6603, %v6675
    %v6677 = vpop.f32.mrb[0].mxu0
    %v6678 = vadd.f32 %v6605, %v6677
    %v6679 = vpop.f32.mrb[0].mxu0
    %v6680 = vadd.f32 %v6607, %v6679
    %6681 = vmatprep.mubr.bf16.mxu0 %v4129
    %6682 = vmatmul.mubr.bf16.gmra.mrb[0].mxu0 %v4128
    %v6683 = vpop.f32.mrb[0].mxu0
    %v6684 = vadd.f32 %v6611, %v6683
    %v6685 = vpop.f32.mrb[0].mxu0
    %v6686 = vadd.f32 %v6613, %v6685
    %v6687 = vpop.f32.mrb[0].mxu0
    %v6688 = vadd.f32 %v6615, %v6687
    %v6689 = vpop.f32.mrb[0].mxu0
    %v6690 = vadd.f32 %v6617, %v6689
    %6691 = vmatprep.mubr.bf16.mxu0 %v4141
    %6692 = vmatmul.mubr.bf16.gmra.mrb[0].mxu0 %v4140
    %v6693 = vpop.f32.mrb[0].mxu0
    %v6694 = vadd.f32 %v6621, %v6693
    %v6695 = vpop.f32.mrb[0].mxu0
    %v6696 = vadd.f32 %v6623, %v6695
    %v6697 = vpop.f32.mrb[0].mxu0
    %v6698 = vadd.f32 %v6625, %v6697
    %v6699 = vpop.f32.mrb[0].mxu0
    %v6700 = vadd.f32 %v6627, %v6699
    %6701 = vdwg.mxu0
    %6702 = vmatprep.subr.bf16.mxu0 %v5481
    %6703 = vmatpush1.bf16.msra.mxu0 %v5480
    %6704 = vmatprep.subr.bf16.mxu0 %v5485
    %6705 = vmatpush1.bf16.msra.mxu0 %v5484
    %6706 = vmatprep.subr.bf16.mxu0 %v5489
    %6707 = vmatpush1.bf16.msra.mxu0 %v5488
    %6708 = vmatprep.subr.bf16.mxu0 %v5493
    %6709 = vmatpush1.bf16.msra.mxu0 %v5492
    %6710 = vmatprep.subr.bf16.mxu0 %v5497
    %6711 = vmatpush1.bf16.msra.mxu0 %v5496
    %6712 = vmatprep.subr.bf16.mxu0 %v5501
    %6713 = vmatpush1.bf16.msra.mxu0 %v5500
    %6714 = vmatprep.subr.bf16.mxu0 %v5505
    %6715 = vmatpush1.bf16.msra.mxu0 %v5504
    %6716 = vmatprep.subr.bf16.mxu0 %v5509
    %6717 = vmatpush1.bf16.msra.mxu0 %v5508
    %6718 = vmatprep.subr.bf16.mxu0 %v5513
    %6719 = vmatpush1.bf16.msra.mxu0 %v5512
    %6720 = vmatprep.subr.bf16.mxu0 %v5517
    %6721 = vmatpush1.bf16.msra.mxu0 %v5516
    %6722 = vmatprep.subr.bf16.mxu0 %v5521
    %6723 = vmatpush1.bf16.msra.mxu0 %v5520
    %6724 = vmatprep.subr.bf16.mxu0 %v5525
    %6725 = vmatpush1.bf16.msra.mxu0 %v5524
    %6726 = vmatprep.subr.bf16.mxu0 %v5529
    %6727 = vmatpush1.bf16.msra.mxu0 %v5528
    %6728 = vmatprep.subr.bf16.mxu0 %v5533
    %6729 = vmatpush1.bf16.msra.mxu0 %v5532
    %6730 = vmatprep.subr.bf16.mxu0 %v5537
    %6731 = vmatpush1.bf16.msra.mxu0 %v5536
    %6732 = vmatprep.subr.bf16.mxu0 %v5541
    %6733 = vmatpush1.bf16.msra.mxu0 %v5540
    %6734 = vmatprep.mubr.bf16.mxu0 %v4107
    %6735 = vmatmul.mubr.bf16.gmra.mrb[0].mxu0 %v4106
    %v6736 = vpop.f32.mrb[0].mxu0
    %v6737 = vadd.f32 %v6664, %v6736
    %v6738 = vpop.f32.mrb[0].mxu0
    %v6739 = vadd.f32 %v6666, %v6738
    %v6740 = vpop.f32.mrb[0].mxu0
    %v6741 = vadd.f32 %v6668, %v6740
    %v6742 = vpop.f32.mrb[0].mxu0
    %v6743 = vadd.f32 %v6670, %v6742
    %6744 = vmatprep.mubr.bf16.mxu0 %v4119
    %6745 = vmatmul.mubr.bf16.gmra.mrb[0].mxu0 %v4118
    %v6746 = vpop.f32.mrb[0].mxu0
    %v6747 = vadd.f32 %v6674, %v6746
    %v6748 = vpop.f32.mrb[0].mxu0
    %v6749 = vadd.f32 %v6676, %v6748
    %v6750 = vpop.f32.mrb[0].mxu0
    %v6751 = vadd.f32 %v6678, %v6750
    %v6752 = vpop.f32.mrb[0].mxu0
    %v6753 = vadd.f32 %v6680, %v6752
    %6754 = vmatprep.mubr.bf16.mxu0 %v4131
    %6755 = vmatmul.mubr.bf16.gmra.mrb[0].mxu0 %v4130
    %v6756 = vpop.f32.mrb[0].mxu0
    %v6757 = vadd.f32 %v6684, %v6756
    %v6758 = vpop.f32.mrb[0].mxu0
    %v6759 = vadd.f32 %v6686, %v6758
    %v6760 = vpop.f32.mrb[0].mxu0
    %v6761 = vadd.f32 %v6688, %v6760
    %v6762 = vpop.f32.mrb[0].mxu0
    %v6763 = vadd.f32 %v6690, %v6762
    %6764 = vmatprep.mubr.bf16.mxu0 %v4143
    %6765 = vmatmul.mubr.bf16.gmra.mrb[0].mxu0 %v4142
    %v6766 = vpop.f32.mrb[0].mxu0
    %v6767 = vadd.f32 %v6694, %v6766
    %v6768 = vpop.f32.mrb[0].mxu0
    %v6769 = vadd.f32 %v6696, %v6768
    %v6770 = vpop.f32.mrb[0].mxu0
    %v6771 = vadd.f32 %v6698, %v6770
    %v6772 = vpop.f32.mrb[0].mxu0
    %v6773 = vadd.f32 %v6700, %v6772
    %6774 = vdwg.mxu0
    %6775 = vmatprep.subr.bf16.mxu0 %v5545
    %6776 = vmatpush1.bf16.msra.mxu0 %v5544
    %6777 = vmatprep.subr.bf16.mxu0 %v5549
    %6778 = vmatpush1.bf16.msra.mxu0 %v5548
    %6779 = vmatprep.subr.bf16.mxu0 %v5553
    %6780 = vmatpush1.bf16.msra.mxu0 %v5552
    %6781 = vmatprep.subr.bf16.mxu0 %v5557
    %6782 = vmatpush1.bf16.msra.mxu0 %v5556
    %6783 = vmatprep.subr.bf16.mxu0 %v5561
    %6784 = vmatpush1.bf16.msra.mxu0 %v5560
    %6785 = vmatprep.subr.bf16.mxu0 %v5565
    %6786 = vmatpush1.bf16.msra.mxu0 %v5564
    %6787 = vmatprep.subr.bf16.mxu0 %v5569
    %6788 = vmatpush1.bf16.msra.mxu0 %v5568
    %6789 = vmatprep.subr.bf16.mxu0 %v5573
    %6790 = vmatpush1.bf16.msra.mxu0 %v5572
    %6791 = vmatprep.subr.bf16.mxu0 %v5577
    %6792 = vmatpush1.bf16.msra.mxu0 %v5576
    %6793 = vmatprep.subr.bf16.mxu0 %v5581
    %6794 = vmatpush1.bf16.msra.mxu0 %v5580
    %6795 = vmatprep.subr.bf16.mxu0 %v5585
    %6796 = vmatpush1.bf16.msra.mxu0 %v5584
    %6797 = vmatprep.subr.bf16.mxu0 %v5589
    %6798 = vmatpush1.bf16.msra.mxu0 %v5588
    %6799 = vmatprep.subr.bf16.mxu0 %v5593
    %6800 = vmatpush1.bf16.msra.mxu0 %v5592
    %6801 = vmatprep.subr.bf16.mxu0 %v5597
    %6802 = vmatpush1.bf16.msra.mxu0 %v5596
    %6803 = vmatprep.subr.bf16.mxu0 %v5601
    %6804 = vmatpush1.bf16.msra.mxu0 %v5600
    %6805 = vmatprep.subr.bf16.mxu0 %v5605
    %6806 = vmatpush1.bf16.msra.mxu0 %v5604
    %6807 = vmatprep.mubr.bf16.mxu0 %v4109
    %6808 = vmatmul.mubr.bf16.gmra.mrb[0].mxu0 %v4108
    %v6809 = vpop.f32.mrb[0].mxu0
    %v6810 = vadd.f32 %v6737, %v6809
    %v6811 = vpop.f32.mrb[0].mxu0
    %v6812 = vadd.f32 %v6739, %v6811
    %v6813 = vpop.f32.mrb[0].mxu0
    %v6814 = vadd.f32 %v6741, %v6813
    %v6815 = vpop.f32.mrb[0].mxu0
    %v6816 = vadd.f32 %v6743, %v6815
    %6817 = vmatprep.mubr.bf16.mxu0 %v4121
    %6818 = vmatmul.mubr.bf16.gmra.mrb[0].mxu0 %v4120
    %v6819 = vpop.f32.mrb[0].mxu0
    %v6820 = vadd.f32 %v6747, %v6819
    %v6821 = vpop.f32.mrb[0].mxu0
    %v6822 = vadd.f32 %v6749, %v6821
    %v6823 = vpop.f32.mrb[0].mxu0
    %v6824 = vadd.f32 %v6751, %v6823
    %v6825 = vpop.f32.mrb[0].mxu0
    %v6826 = vadd.f32 %v6753, %v6825
    %6827 = vmatprep.mubr.bf16.mxu0 %v4133
    %6828 = vmatmul.mubr.bf16.gmra.mrb[0].mxu0 %v4132
    %v6829 = vpop.f32.mrb[0].mxu0
    %v6830 = vadd.f32 %v6757, %v6829
    %v6831 = vpop.f32.mrb[0].mxu0
    %v6832 = vadd.f32 %v6759, %v6831
    %v6833 = vpop.f32.mrb[0].mxu0
    %v6834 = vadd.f32 %v6761, %v6833
    %v6835 = vpop.f32.mrb[0].mxu0
    %v6836 = vadd.f32 %v6763, %v6835
    %6837 = vmatprep.mubr.bf16.mxu0 %v4145
    %6838 = vmatmul.mubr.bf16.gmra.mrb[0].mxu0 %v4144
    %v6839 = vpop.f32.mrb[0].mxu0
    %v6840 = vadd.f32 %v6767, %v6839
    %v6841 = vpop.f32.mrb[0].mxu0
    %v6842 = vadd.f32 %v6769, %v6841
    %v6843 = vpop.f32.mrb[0].mxu0
    %v6844 = vadd.f32 %v6771, %v6843
    %v6845 = vpop.f32.mrb[0].mxu0
    %v6846 = vadd.f32 %v6773, %v6845
    %6847 = vdwg.mxu0
    %6848 = vmatprep.subr.bf16.mxu0 %v5609
    %6849 = vmatpush1.bf16.msra.mxu0 %v5608
    %6850 = vmatprep.subr.bf16.mxu0 %v5613
    %6851 = vmatpush1.bf16.msra.mxu0 %v5612
    %6852 = vmatprep.subr.bf16.mxu0 %v5617
    %6853 = vmatpush1.bf16.msra.mxu0 %v5616
    %6854 = vmatprep.subr.bf16.mxu0 %v5621
    %6855 = vmatpush1.bf16.msra.mxu0 %v5620
    %6856 = vmatprep.subr.bf16.mxu0 %v5625
    %6857 = vmatpush1.bf16.msra.mxu0 %v5624
    %6858 = vmatprep.subr.bf16.mxu0 %v5629
    %6859 = vmatpush1.bf16.msra.mxu0 %v5628
    %6860 = vmatprep.subr.bf16.mxu0 %v5633
    %6861 = vmatpush1.bf16.msra.mxu0 %v5632
    %6862 = vmatprep.subr.bf16.mxu0 %v5637
    %6863 = vmatpush1.bf16.msra.mxu0 %v5636
    %6864 = vmatprep.subr.bf16.mxu0 %v5641
    %6865 = vmatpush1.bf16.msra.mxu0 %v5640
    %6866 = vmatprep.subr.bf16.mxu0 %v5645
    %6867 = vmatpush1.bf16.msra.mxu0 %v5644
    %6868 = vmatprep.subr.bf16.mxu0 %v5649
    %6869 = vmatpush1.bf16.msra.mxu0 %v5648
    %6870 = vmatprep.subr.bf16.mxu0 %v5653
    %6871 = vmatpush1.bf16.msra.mxu0 %v5652
    %6872 = vmatprep.subr.bf16.mxu0 %v5657
    %6873 = vmatpush1.bf16.msra.mxu0 %v5656
    %6874 = vmatprep.subr.bf16.mxu0 %v5661
    %6875 = vmatpush1.bf16.msra.mxu0 %v5660
    %6876 = vmatprep.subr.bf16.mxu0 %v5665
    %6877 = vmatpush1.bf16.msra.mxu0 %v5664
    %6878 = vmatprep.subr.bf16.mxu0 %v5669
    %6879 = vmatpush1.bf16.msra.mxu0 %v5668
    %6880 = vmatprep.mubr.bf16.mxu0 %v4111
    %6881 = vmatmul.mubr.bf16.gmra.mrb[0].mxu0 %v4110
    %v6882 = vpop.f32.mrb[0].mxu0
    %v6883 = vadd.f32 %v6810, %v6882
    %v6884 = vpop.f32.mrb[0].mxu0
    %v6885 = vadd.f32 %v6812, %v6884
    %v6886 = vpop.f32.mrb[0].mxu0
    %v6887 = vadd.f32 %v6814, %v6886
    %v6888 = vpop.f32.mrb[0].mxu0
    %v6889 = vadd.f32 %v6816, %v6888
    %6890 = vmatprep.mubr.bf16.mxu0 %v4123
    %6891 = vmatmul.mubr.bf16.gmra.mrb[0].mxu0 %v4122
    %v6892 = vpop.f32.mrb[0].mxu0
    %v6893 = vadd.f32 %v6820, %v6892
    %v6894 = vpop.f32.mrb[0].mxu0
    %v6895 = vadd.f32 %v6822, %v6894
    %v6896 = vpop.f32.mrb[0].mxu0
    %v6897 = vadd.f32 %v6824, %v6896
    %v6898 = vpop.f32.mrb[0].mxu0
    %v6899 = vadd.f32 %v6826, %v6898
    %6900 = vmatprep.mubr.bf16.mxu0 %v4135
    %6901 = vmatmul.mubr.bf16.gmra.mrb[0].mxu0 %v4134
    %v6902 = vpop.f32.mrb[0].mxu0
    %v6903 = vadd.f32 %v6830, %v6902
    %v6904 = vpop.f32.mrb[0].mxu0
    %v6905 = vadd.f32 %v6832, %v6904
    %v6906 = vpop.f32.mrb[0].mxu0
    %v6907 = vadd.f32 %v6834, %v6906
    %v6908 = vpop.f32.mrb[0].mxu0
    %v6909 = vadd.f32 %v6836, %v6908
    %6910 = vmatprep.mubr.bf16.mxu0 %v4147
    %6911 = vmatmul.mubr.bf16.gmra.mrb[0].mxu0 %v4146
    %v6912 = vpop.f32.mrb[0].mxu0
    %v6913 = vadd.f32 %v6840, %v6912
    %v6914 = vpop.f32.mrb[0].mxu0
    %v6915 = vadd.f32 %v6842, %v6914
    %v6916 = vpop.f32.mrb[0].mxu0
    %v6917 = vadd.f32 %v6844, %v6916
    %v6918 = vpop.f32.mrb[0].mxu0
    %v6919 = vadd.f32 %v6846, %v6918
    %6920 = vdwg.mxu0
    %6921 = vmatprep.subr.bf16.mxu0 %v5673
    %6922 = vmatpush1.bf16.msra.mxu0 %v5672
    %6923 = vmatprep.subr.bf16.mxu0 %v5677
    %6924 = vmatpush1.bf16.msra.mxu0 %v5676
    %6925 = vmatprep.subr.bf16.mxu0 %v5681
    %6926 = vmatpush1.bf16.msra.mxu0 %v5680
    %6927 = vmatprep.subr.bf16.mxu0 %v5685
    %6928 = vmatpush1.bf16.msra.mxu0 %v5684
    %6929 = vmatprep.subr.bf16.mxu0 %v5689
    %6930 = vmatpush1.bf16.msra.mxu0 %v5688
    %6931 = vmatprep.subr.bf16.mxu0 %v5693
    %6932 = vmatpush1.bf16.msra.mxu0 %v5692
    %6933 = vmatprep.subr.bf16.mxu0 %v5697
    %6934 = vmatpush1.bf16.msra.mxu0 %v5696
    %6935 = vmatprep.subr.bf16.mxu0 %v5701
    %6936 = vmatpush1.bf16.msra.mxu0 %v5700
    %6937 = vmatprep.subr.bf16.mxu0 %v5705
    %6938 = vmatpush1.bf16.msra.mxu0 %v5704
    %6939 = vmatprep.subr.bf16.mxu0 %v5709
    %6940 = vmatpush1.bf16.msra.mxu0 %v5708
    %6941 = vmatprep.subr.bf16.mxu0 %v5713
    %6942 = vmatpush1.bf16.msra.mxu0 %v5712
    %6943 = vmatprep.subr.bf16.mxu0 %v5717
    %6944 = vmatpush1.bf16.msra.mxu0 %v5716
    %6945 = vmatprep.subr.bf16.mxu0 %v5721
    %6946 = vmatpush1.bf16.msra.mxu0 %v5720
    %6947 = vmatprep.subr.bf16.mxu0 %v5725
    %6948 = vmatpush1.bf16.msra.mxu0 %v5724
    %6949 = vmatprep.subr.bf16.mxu0 %v5729
    %6950 = vmatpush1.bf16.msra.mxu0 %v5728
    %6951 = vmatprep.subr.bf16.mxu0 %v5733
    %6952 = vmatpush1.bf16.msra.mxu0 %v5732
    %6953 = vmatprep.mubr.bf16.mxu0 %v4113
    %6954 = vmatmul.mubr.bf16.gmra.mrb[0].mxu0 %v4112
    %v6955 = vpop.f32.mrb[0].mxu0
    %v6956 = vadd.f32 %v6883, %v6955
    %v6957 = vpop.f32.mrb[0].mxu0
    %v6958 = vadd.f32 %v6885, %v6957
    %v6959 = vpop.f32.mrb[0].mxu0
    %v6960 = vadd.f32 %v6887, %v6959
    %v6961 = vpop.f32.mrb[0].mxu0
    %v6962 = vadd.f32 %v6889, %v6961
    %6963 = vmatprep.mubr.bf16.mxu0 %v4125
    %6964 = vmatmul.mubr.bf16.gmra.mrb[0].mxu0 %v4124
    %v6965 = vpop.f32.mrb[0].mxu0
    %v6966 = vadd.f32 %v6893, %v6965
    %v6967 = vpop.f32.mrb[0].mxu0
    %v6968 = vadd.f32 %v6895, %v6967
    %v6969 = vpop.f32.mrb[0].mxu0
    %v6970 = vadd.f32 %v6897, %v6969
    %v6971 = vpop.f32.mrb[0].mxu0
    %v6972 = vadd.f32 %v6899, %v6971
    %6973 = vmatprep.mubr.bf16.mxu0 %v4137
    %6974 = vmatmul.mubr.bf16.gmra.mrb[0].mxu0 %v4136
    %v6975 = vpop.f32.mrb[0].mxu0
    %v6976 = vadd.f32 %v6903, %v6975
    %v6977 = vpop.f32.mrb[0].mxu0
    %v6978 = vadd.f32 %v6905, %v6977
    %v6979 = vpop.f32.mrb[0].mxu0
    %v6980 = vadd.f32 %v6907, %v6979
    %v6981 = vpop.f32.mrb[0].mxu0
    %v6982 = vadd.f32 %v6909, %v6981
    %6983 = vmatprep.mubr.bf16.mxu0 %v4149
    %6984 = vmatmul.mubr.bf16.gmra.mrb[0].mxu0 %v4148
    %v6985 = vpop.f32.mrb[0].mxu0
    %v6986 = vadd.f32 %v6913, %v6985
    %v6987 = vpop.f32.mrb[0].mxu0
    %v6988 = vadd.f32 %v6915, %v6987
    %v6989 = vpop.f32.mrb[0].mxu0
    %v6990 = vadd.f32 %v6917, %v6989
    %v6991 = vpop.f32.mrb[0].mxu0
    %v6992 = vadd.f32 %v6919, %v6991
    %6993 = vdwg.mxu0
    %s6994 = sadd.s32 %s49, 2
    %s6995 = smul.u32 %s6994, 12
    %s6996 = smul.addr %s6995, 4
    %s6997 = scalar_lea.vmem %s0, %s6996
    %v6998 = vld [vmem:[%s6997] sm:$0xff]
    %v6999 = vld [vmem:[%s6997 + $0x8] sm:$0xff]
    %v7000 = vld [vmem:[%s6997 + $0x10] sm:$0xff]
    %v7001 = vld [vmem:[%s6997 + $0x18] sm:$0xff]
    %v7002 = vld [vmem:[%s6997 + $0x20] sm:$0xff]
    %v7003 = vld [vmem:[%s6997 + $0x28] sm:$0xff]
    %v7004 = vld [vmem:[%s6997 + $0x30] sm:$0xff]
    %v7005 = vld [vmem:[%s6997 + $0x38] sm:$0xff]
    %v7006 = vld [vmem:[%s6997 + $0x40] sm:$0xff]
    %v7007 = vld [vmem:[%s6997 + $0x48] sm:$0xff]
    %v7008 = vld [vmem:[%s6997 + $0x50] sm:$0xff]
    %v7009 = vld [vmem:[%s6997 + $0x58] sm:$0xff]
    %v7010 = vld [vmem:[%s6997 + $0x60] sm:$0xff]
    %v7011 = vld [vmem:[%s6997 + $0x68] sm:$0xff]
    %v7012 = vld [vmem:[%s6997 + $0x70] sm:$0xff]
    %v7013 = vld [vmem:[%s6997 + $0x78] sm:$0xff]
    %v7014 = vld [vmem:[%s6997 + $0x80] sm:$0xff]
    %v7015 = vld [vmem:[%s6997 + $0x88] sm:$0xff]
    %v7016 = vld [vmem:[%s6997 + $0x90] sm:$0xff]
    %v7017 = vld [vmem:[%s6997 + $0x98] sm:$0xff]
    %v7018 = vld [vmem:[%s6997 + $0xa0] sm:$0xff]
    %v7019 = vld [vmem:[%s6997 + $0xa8] sm:$0xff]
    %v7020 = vld [vmem:[%s6997 + $0xb0] sm:$0xff]
    %v7021 = vld [vmem:[%s6997 + $0xb8] sm:$0xff]
    %v7022 = vld [vmem:[%s6997 + $0xc0] sm:$0xff]
    %v7023 = vld [vmem:[%s6997 + $0xc8] sm:$0xff]
    %v7024 = vld [vmem:[%s6997 + $0xd0] sm:$0xff]
    %v7025 = vld [vmem:[%s6997 + $0xd8] sm:$0xff]
    %v7026 = vld [vmem:[%s6997 + $0xe0] sm:$0xff]
    %v7027 = vld [vmem:[%s6997 + $0xe8] sm:$0xff]
    %v7028 = vld [vmem:[%s6997 + $0xf0] sm:$0xff]
    %v7029 = vld [vmem:[%s6997 + $0xf8] sm:$0xff]
    %v7030 = vld [vmem:[%s6997 + $0x100] sm:$0xff]
    %v7031 = vld [vmem:[%s6997 + $0x108] sm:$0xff]
    %v7032 = vld [vmem:[%s6997 + $0x110] sm:$0xff]
    %v7033 = vld [vmem:[%s6997 + $0x118] sm:$0xff]
    %v7034 = vld [vmem:[%s6997 + $0x120] sm:$0xff]
    %v7035 = vld [vmem:[%s6997 + $0x128] sm:$0xff]
    %v7036 = vld [vmem:[%s6997 + $0x130] sm:$0xff]
    %v7037 = vld [vmem:[%s6997 + $0x138] sm:$0xff]
    %v7038 = vld [vmem:[%s6997 + $0x140] sm:$0xff]
    %v7039 = vld [vmem:[%s6997 + $0x148] sm:$0xff]
    %v7040 = vld [vmem:[%s6997 + $0x150] sm:$0xff]
    %v7041 = vld [vmem:[%s6997 + $0x158] sm:$0xff]
    %v7042 = vld [vmem:[%s6997 + $0x160] sm:$0xff]
    %v7043 = vld [vmem:[%s6997 + $0x168] sm:$0xff]
    %v7044 = vld [vmem:[%s6997 + $0x170] sm:$0xff]
    %v7045 = vld [vmem:[%s6997 + $0x178] sm:$0xff]
    %s7046 = scalar_lea.vmem [#allocation2], 6144
    %v7047 = vld [vmem:[%s7046] sm:$0xff]
    %v7048 = vld [vmem:[%s7046 + $0x8] sm:$0xff]
    %v7049 = vld [vmem:[%s7046 + $0x10] sm:$0xff]
    %v7050 = vld [vmem:[%s7046 + $0x18] sm:$0xff]
    %v7051 = vld [vmem:[%s7046 + $0x20] sm:$0xff]
    %v7052 = vld [vmem:[%s7046 + $0x28] sm:$0xff]
    %v7053 = vld [vmem:[%s7046 + $0x30] sm:$0xff]
    %v7054 = vld [vmem:[%s7046 + $0x38] sm:$0xff]
    %v7055 = vld [vmem:[%s7046 + $0x40] sm:$0xff]
    %v7056 = vld [vmem:[%s7046 + $0x48] sm:$0xff]
    %v7057 = vld [vmem:[%s7046 + $0x50] sm:$0xff]
    %v7058 = vld [vmem:[%s7046 + $0x58] sm:$0xff]
    %v7059 = vld [vmem:[%s7046 + $0x60] sm:$0xff]
    %v7060 = vld [vmem:[%s7046 + $0x68] sm:$0xff]
    %v7061 = vld [vmem:[%s7046 + $0x70] sm:$0xff]
    %v7062 = vld [vmem:[%s7046 + $0x78] sm:$0xff]
    %v7063 = vld [vmem:[%s7046 + $0x80] sm:$0xff]
    %v7064 = vld [vmem:[%s7046 + $0x88] sm:$0xff]
    %v7065 = vld [vmem:[%s7046 + $0x90] sm:$0xff]
    %v7066 = vld [vmem:[%s7046 + $0x98] sm:$0xff]
    %v7067 = vld [vmem:[%s7046 + $0xa0] sm:$0xff]
    %v7068 = vld [vmem:[%s7046 + $0xa8] sm:$0xff]
    %v7069 = vld [vmem:[%s7046 + $0xb0] sm:$0xff]
    %v7070 = vld [vmem:[%s7046 + $0xb8] sm:$0xff]
    %v7071 = vld [vmem:[%s7046 + $0xc0] sm:$0xff]
    %v7072 = vld [vmem:[%s7046 + $0xc8] sm:$0xff]
    %v7073 = vld [vmem:[%s7046 + $0xd0] sm:$0xff]
    %v7074 = vld [vmem:[%s7046 + $0xd8] sm:$0xff]
    %v7075 = vld [vmem:[%s7046 + $0xe0] sm:$0xff]
    %v7076 = vld [vmem:[%s7046 + $0xe8] sm:$0xff]
    %v7077 = vld [vmem:[%s7046 + $0xf0] sm:$0xff]
    %v7078 = vld [vmem:[%s7046 + $0xf8] sm:$0xff]
    %v7079 = vld [vmem:[%s7046 + $0x100] sm:$0xff]
    %v7080 = vld [vmem:[%s7046 + $0x108] sm:$0xff]
    %v7081 = vld [vmem:[%s7046 + $0x110] sm:$0xff]
    %v7082 = vld [vmem:[%s7046 + $0x118] sm:$0xff]
    %v7083 = vld [vmem:[%s7046 + $0x120] sm:$0xff]
    %v7084 = vld [vmem:[%s7046 + $0x128] sm:$0xff]
    %v7085 = vld [vmem:[%s7046 + $0x130] sm:$0xff]
    %v7086 = vld [vmem:[%s7046 + $0x138] sm:$0xff]
    %v7087 = vld [vmem:[%s7046 + $0x140] sm:$0xff]
    %v7088 = vld [vmem:[%s7046 + $0x148] sm:$0xff]
    %v7089 = vld [vmem:[%s7046 + $0x150] sm:$0xff]
    %v7090 = vld [vmem:[%s7046 + $0x158] sm:$0xff]
    %v7091 = vld [vmem:[%s7046 + $0x160] sm:$0xff]
    %v7092 = vld [vmem:[%s7046 + $0x168] sm:$0xff]
    %v7093 = vld [vmem:[%s7046 + $0x170] sm:$0xff]
    %v7094 = vld [vmem:[%s7046 + $0x178] sm:$0xff]
    %v7095 = vld [vmem:[%s7046 + $0x180] sm:$0xff]
    %v7096 = vld [vmem:[%s7046 + $0x188] sm:$0xff]
    %v7097 = vld [vmem:[%s7046 + $0x190] sm:$0xff]
    %v7098 = vld [vmem:[%s7046 + $0x198] sm:$0xff]
    %v7099 = vld [vmem:[%s7046 + $0x1a0] sm:$0xff]
    %v7100 = vld [vmem:[%s7046 + $0x1a8] sm:$0xff]
    %v7101 = vld [vmem:[%s7046 + $0x1b0] sm:$0xff]
    %v7102 = vld [vmem:[%s7046 + $0x1b8] sm:$0xff]
    %v7103 = vld [vmem:[%s7046 + $0x1c0] sm:$0xff]
    %v7104 = vld [vmem:[%s7046 + $0x1c8] sm:$0xff]
    %v7105 = vld [vmem:[%s7046 + $0x1d0] sm:$0xff]
    %v7106 = vld [vmem:[%s7046 + $0x1d8] sm:$0xff]
    %v7107 = vld [vmem:[%s7046 + $0x1e0] sm:$0xff]
    %v7108 = vld [vmem:[%s7046 + $0x1e8] sm:$0xff]
    %v7109 = vld [vmem:[%s7046 + $0x1f0] sm:$0xff]
    %v7110 = vld [vmem:[%s7046 + $0x1f8] sm:$0xff]
    %v7111 = vld [vmem:[%s7046 + $0x200] sm:$0xff]
    %v7112 = vld [vmem:[%s7046 + $0x208] sm:$0xff]
    %v7113 = vld [vmem:[%s7046 + $0x210] sm:$0xff]
    %v7114 = vld [vmem:[%s7046 + $0x218] sm:$0xff]
    %v7115 = vld [vmem:[%s7046 + $0x220] sm:$0xff]
    %v7116 = vld [vmem:[%s7046 + $0x228] sm:$0xff]
    %v7117 = vld [vmem:[%s7046 + $0x230] sm:$0xff]
    %v7118 = vld [vmem:[%s7046 + $0x238] sm:$0xff]
    %v7119 = vld [vmem:[%s7046 + $0x240] sm:$0xff]
    %v7120 = vld [vmem:[%s7046 + $0x248] sm:$0xff]
    %v7121 = vld [vmem:[%s7046 + $0x250] sm:$0xff]
    %v7122 = vld [vmem:[%s7046 + $0x258] sm:$0xff]
    %v7123 = vld [vmem:[%s7046 + $0x260] sm:$0xff]
    %v7124 = vld [vmem:[%s7046 + $0x268] sm:$0xff]
    %v7125 = vld [vmem:[%s7046 + $0x270] sm:$0xff]
    %v7126 = vld [vmem:[%s7046 + $0x278] sm:$0xff]
    %v7127 = vld [vmem:[%s7046 + $0x280] sm:$0xff]
    %v7128 = vld [vmem:[%s7046 + $0x288] sm:$0xff]
    %v7129 = vld [vmem:[%s7046 + $0x290] sm:$0xff]
    %v7130 = vld [vmem:[%s7046 + $0x298] sm:$0xff]
    %v7131 = vld [vmem:[%s7046 + $0x2a0] sm:$0xff]
    %v7132 = vld [vmem:[%s7046 + $0x2a8] sm:$0xff]
    %v7133 = vld [vmem:[%s7046 + $0x2b0] sm:$0xff]
    %v7134 = vld [vmem:[%s7046 + $0x2b8] sm:$0xff]
    %v7135 = vld [vmem:[%s7046 + $0x2c0] sm:$0xff]
    %v7136 = vld [vmem:[%s7046 + $0x2c8] sm:$0xff]
    %v7137 = vld [vmem:[%s7046 + $0x2d0] sm:$0xff]
    %v7138 = vld [vmem:[%s7046 + $0x2d8] sm:$0xff]
    %v7139 = vld [vmem:[%s7046 + $0x2e0] sm:$0xff]
    %v7140 = vld [vmem:[%s7046 + $0x2e8] sm:$0xff]
    %v7141 = vld [vmem:[%s7046 + $0x2f0] sm:$0xff]
    %v7142 = vld [vmem:[%s7046 + $0x2f8] sm:$0xff]
    %v7143 = vld [vmem:[%s7046 + $0x300] sm:$0xff]
    %v7144 = vld [vmem:[%s7046 + $0x308] sm:$0xff]
    %v7145 = vld [vmem:[%s7046 + $0x310] sm:$0xff]
    %v7146 = vld [vmem:[%s7046 + $0x318] sm:$0xff]
    %v7147 = vld [vmem:[%s7046 + $0x320] sm:$0xff]
    %v7148 = vld [vmem:[%s7046 + $0x328] sm:$0xff]
    %v7149 = vld [vmem:[%s7046 + $0x330] sm:$0xff]
    %v7150 = vld [vmem:[%s7046 + $0x338] sm:$0xff]
    %v7151 = vld [vmem:[%s7046 + $0x340] sm:$0xff]
    %v7152 = vld [vmem:[%s7046 + $0x348] sm:$0xff]
    %v7153 = vld [vmem:[%s7046 + $0x350] sm:$0xff]
    %v7154 = vld [vmem:[%s7046 + $0x358] sm:$0xff]
    %v7155 = vld [vmem:[%s7046 + $0x360] sm:$0xff]
    %v7156 = vld [vmem:[%s7046 + $0x368] sm:$0xff]
    %v7157 = vld [vmem:[%s7046 + $0x370] sm:$0xff]
    %v7158 = vld [vmem:[%s7046 + $0x378] sm:$0xff]
    %v7159 = vld [vmem:[%s7046 + $0x380] sm:$0xff]
    %v7160 = vld [vmem:[%s7046 + $0x388] sm:$0xff]
    %v7161 = vld [vmem:[%s7046 + $0x390] sm:$0xff]
    %v7162 = vld [vmem:[%s7046 + $0x398] sm:$0xff]
    %v7163 = vld [vmem:[%s7046 + $0x3a0] sm:$0xff]
    %v7164 = vld [vmem:[%s7046 + $0x3a8] sm:$0xff]
    %v7165 = vld [vmem:[%s7046 + $0x3b0] sm:$0xff]
    %v7166 = vld [vmem:[%s7046 + $0x3b8] sm:$0xff]
    %v7167 = vld [vmem:[%s7046 + $0x3c0] sm:$0xff]
    %v7168 = vld [vmem:[%s7046 + $0x3c8] sm:$0xff]
    %v7169 = vld [vmem:[%s7046 + $0x3d0] sm:$0xff]
    %v7170 = vld [vmem:[%s7046 + $0x3d8] sm:$0xff]
    %v7171 = vld [vmem:[%s7046 + $0x3e0] sm:$0xff]
    %v7172 = vld [vmem:[%s7046 + $0x3e8] sm:$0xff]
    %v7173 = vld [vmem:[%s7046 + $0x3f0] sm:$0xff]
    %v7174 = vld [vmem:[%s7046 + $0x3f8] sm:$0xff]
    %v7175 = vld [vmem:[%s7046 + $0x400] sm:$0xff]
    %v7176 = vld [vmem:[%s7046 + $0x408] sm:$0xff]
    %v7177 = vld [vmem:[%s7046 + $0x410] sm:$0xff]
    %v7178 = vld [vmem:[%s7046 + $0x418] sm:$0xff]
    %v7179 = vld [vmem:[%s7046 + $0x420] sm:$0xff]
    %v7180 = vld [vmem:[%s7046 + $0x428] sm:$0xff]
    %v7181 = vld [vmem:[%s7046 + $0x430] sm:$0xff]
    %v7182 = vld [vmem:[%s7046 + $0x438] sm:$0xff]
    %v7183 = vld [vmem:[%s7046 + $0x440] sm:$0xff]
    %v7184 = vld [vmem:[%s7046 + $0x448] sm:$0xff]
    %v7185 = vld [vmem:[%s7046 + $0x450] sm:$0xff]
    %v7186 = vld [vmem:[%s7046 + $0x458] sm:$0xff]
    %v7187 = vld [vmem:[%s7046 + $0x460] sm:$0xff]
    %v7188 = vld [vmem:[%s7046 + $0x468] sm:$0xff]
    %v7189 = vld [vmem:[%s7046 + $0x470] sm:$0xff]
    %v7190 = vld [vmem:[%s7046 + $0x478] sm:$0xff]
    %v7191 = vld [vmem:[%s7046 + $0x480] sm:$0xff]
    %v7192 = vld [vmem:[%s7046 + $0x488] sm:$0xff]
    %v7193 = vld [vmem:[%s7046 + $0x490] sm:$0xff]
    %v7194 = vld [vmem:[%s7046 + $0x498] sm:$0xff]
    %v7195 = vld [vmem:[%s7046 + $0x4a0] sm:$0xff]
    %v7196 = vld [vmem:[%s7046 + $0x4a8] sm:$0xff]
    %v7197 = vld [vmem:[%s7046 + $0x4b0] sm:$0xff]
    %v7198 = vld [vmem:[%s7046 + $0x4b8] sm:$0xff]
    %v7199 = vld [vmem:[%s7046 + $0x4c0] sm:$0xff]
    %v7200 = vld [vmem:[%s7046 + $0x4c8] sm:$0xff]
    %v7201 = vld [vmem:[%s7046 + $0x4d0] sm:$0xff]
    %v7202 = vld [vmem:[%s7046 + $0x4d8] sm:$0xff]
    %v7203 = vld [vmem:[%s7046 + $0x4e0] sm:$0xff]
    %v7204 = vld [vmem:[%s7046 + $0x4e8] sm:$0xff]
    %v7205 = vld [vmem:[%s7046 + $0x4f0] sm:$0xff]
    %v7206 = vld [vmem:[%s7046 + $0x4f8] sm:$0xff]
    %v7207 = vld [vmem:[%s7046 + $0x500] sm:$0xff]
    %v7208 = vld [vmem:[%s7046 + $0x508] sm:$0xff]
    %v7209 = vld [vmem:[%s7046 + $0x510] sm:$0xff]
    %v7210 = vld [vmem:[%s7046 + $0x518] sm:$0xff]
    %v7211 = vld [vmem:[%s7046 + $0x520] sm:$0xff]
    %v7212 = vld [vmem:[%s7046 + $0x528] sm:$0xff]
    %v7213 = vld [vmem:[%s7046 + $0x530] sm:$0xff]
    %v7214 = vld [vmem:[%s7046 + $0x538] sm:$0xff]
    %v7215 = vld [vmem:[%s7046 + $0x540] sm:$0xff]
    %v7216 = vld [vmem:[%s7046 + $0x548] sm:$0xff]
    %v7217 = vld [vmem:[%s7046 + $0x550] sm:$0xff]
    %v7218 = vld [vmem:[%s7046 + $0x558] sm:$0xff]
    %v7219 = vld [vmem:[%s7046 + $0x560] sm:$0xff]
    %v7220 = vld [vmem:[%s7046 + $0x568] sm:$0xff]
    %v7221 = vld [vmem:[%s7046 + $0x570] sm:$0xff]
    %v7222 = vld [vmem:[%s7046 + $0x578] sm:$0xff]
    %v7223 = vld [vmem:[%s7046 + $0x580] sm:$0xff]
    %v7224 = vld [vmem:[%s7046 + $0x588] sm:$0xff]
    %v7225 = vld [vmem:[%s7046 + $0x590] sm:$0xff]
    %v7226 = vld [vmem:[%s7046 + $0x598] sm:$0xff]
    %v7227 = vld [vmem:[%s7046 + $0x5a0] sm:$0xff]
    %v7228 = vld [vmem:[%s7046 + $0x5a8] sm:$0xff]
    %v7229 = vld [vmem:[%s7046 + $0x5b0] sm:$0xff]
    %v7230 = vld [vmem:[%s7046 + $0x5b8] sm:$0xff]
    %v7231 = vld [vmem:[%s7046 + $0x5c0] sm:$0xff]
    %v7232 = vld [vmem:[%s7046 + $0x5c8] sm:$0xff]
    %v7233 = vld [vmem:[%s7046 + $0x5d0] sm:$0xff]
    %v7234 = vld [vmem:[%s7046 + $0x5d8] sm:$0xff]
    %v7235 = vld [vmem:[%s7046 + $0x5e0] sm:$0xff]
    %v7236 = vld [vmem:[%s7046 + $0x5e8] sm:$0xff]
    %v7237 = vld [vmem:[%s7046 + $0x5f0] sm:$0xff]
    %v7238 = vld [vmem:[%s7046 + $0x5f8] sm:$0xff]
    %v7239 = vld [vmem:[%s7046 + $0x600] sm:$0xff]
    %v7240 = vld [vmem:[%s7046 + $0x608] sm:$0xff]
    %v7241 = vld [vmem:[%s7046 + $0x610] sm:$0xff]
    %v7242 = vld [vmem:[%s7046 + $0x618] sm:$0xff]
    %v7243 = vld [vmem:[%s7046 + $0x620] sm:$0xff]
    %v7244 = vld [vmem:[%s7046 + $0x628] sm:$0xff]
    %v7245 = vld [vmem:[%s7046 + $0x630] sm:$0xff]
    %v7246 = vld [vmem:[%s7046 + $0x638] sm:$0xff]
    %v7247 = vld [vmem:[%s7046 + $0x640] sm:$0xff]
    %v7248 = vld [vmem:[%s7046 + $0x648] sm:$0xff]
    %v7249 = vld [vmem:[%s7046 + $0x650] sm:$0xff]
    %v7250 = vld [vmem:[%s7046 + $0x658] sm:$0xff]
    %v7251 = vld [vmem:[%s7046 + $0x660] sm:$0xff]
    %v7252 = vld [vmem:[%s7046 + $0x668] sm:$0xff]
    %v7253 = vld [vmem:[%s7046 + $0x670] sm:$0xff]
    %v7254 = vld [vmem:[%s7046 + $0x678] sm:$0xff]
    %v7255 = vld [vmem:[%s7046 + $0x680] sm:$0xff]
    %v7256 = vld [vmem:[%s7046 + $0x688] sm:$0xff]
    %v7257 = vld [vmem:[%s7046 + $0x690] sm:$0xff]
    %v7258 = vld [vmem:[%s7046 + $0x698] sm:$0xff]
    %v7259 = vld [vmem:[%s7046 + $0x6a0] sm:$0xff]
    %v7260 = vld [vmem:[%s7046 + $0x6a8] sm:$0xff]
    %v7261 = vld [vmem:[%s7046 + $0x6b0] sm:$0xff]
    %v7262 = vld [vmem:[%s7046 + $0x6b8] sm:$0xff]
    %v7263 = vld [vmem:[%s7046 + $0x6c0] sm:$0xff]
    %v7264 = vld [vmem:[%s7046 + $0x6c8] sm:$0xff]
    %v7265 = vld [vmem:[%s7046 + $0x6d0] sm:$0xff]
    %v7266 = vld [vmem:[%s7046 + $0x6d8] sm:$0xff]
    %v7267 = vld [vmem:[%s7046 + $0x6e0] sm:$0xff]
    %v7268 = vld [vmem:[%s7046 + $0x6e8] sm:$0xff]
    %v7269 = vld [vmem:[%s7046 + $0x6f0] sm:$0xff]
    %v7270 = vld [vmem:[%s7046 + $0x6f8] sm:$0xff]
    %v7271 = vld [vmem:[%s7046 + $0x700] sm:$0xff]
    %v7272 = vld [vmem:[%s7046 + $0x708] sm:$0xff]
    %v7273 = vld [vmem:[%s7046 + $0x710] sm:$0xff]
    %v7274 = vld [vmem:[%s7046 + $0x718] sm:$0xff]
    %v7275 = vld [vmem:[%s7046 + $0x720] sm:$0xff]
    %v7276 = vld [vmem:[%s7046 + $0x728] sm:$0xff]
    %v7277 = vld [vmem:[%s7046 + $0x730] sm:$0xff]
    %v7278 = vld [vmem:[%s7046 + $0x738] sm:$0xff]
    %v7279 = vld [vmem:[%s7046 + $0x740] sm:$0xff]
    %v7280 = vld [vmem:[%s7046 + $0x748] sm:$0xff]
    %v7281 = vld [vmem:[%s7046 + $0x750] sm:$0xff]
    %v7282 = vld [vmem:[%s7046 + $0x758] sm:$0xff]
    %v7283 = vld [vmem:[%s7046 + $0x760] sm:$0xff]
    %v7284 = vld [vmem:[%s7046 + $0x768] sm:$0xff]
    %v7285 = vld [vmem:[%s7046 + $0x770] sm:$0xff]
    %v7286 = vld [vmem:[%s7046 + $0x778] sm:$0xff]
    %v7287 = vld [vmem:[%s7046 + $0x780] sm:$0xff]
    %v7288 = vld [vmem:[%s7046 + $0x788] sm:$0xff]
    %v7289 = vld [vmem:[%s7046 + $0x790] sm:$0xff]
    %v7290 = vld [vmem:[%s7046 + $0x798] sm:$0xff]
    %v7291 = vld [vmem:[%s7046 + $0x7a0] sm:$0xff]
    %v7292 = vld [vmem:[%s7046 + $0x7a8] sm:$0xff]
    %v7293 = vld [vmem:[%s7046 + $0x7b0] sm:$0xff]
    %v7294 = vld [vmem:[%s7046 + $0x7b8] sm:$0xff]
    %v7295 = vld [vmem:[%s7046 + $0x7c0] sm:$0xff]
    %v7296 = vld [vmem:[%s7046 + $0x7c8] sm:$0xff]
    %v7297 = vld [vmem:[%s7046 + $0x7d0] sm:$0xff]
    %v7298 = vld [vmem:[%s7046 + $0x7d8] sm:$0xff]
    %v7299 = vld [vmem:[%s7046 + $0x7e0] sm:$0xff]
    %v7300 = vld [vmem:[%s7046 + $0x7e8] sm:$0xff]
    %v7301 = vld [vmem:[%s7046 + $0x7f0] sm:$0xff]
    %v7302 = vld [vmem:[%s7046 + $0x7f8] sm:$0xff]
    %v7303 = vld [vmem:[%s7046 + $0x800] sm:$0xff]
    %v7304 = vld [vmem:[%s7046 + $0x808] sm:$0xff]
    %v7305 = vld [vmem:[%s7046 + $0x810] sm:$0xff]
    %v7306 = vld [vmem:[%s7046 + $0x818] sm:$0xff]
    %v7307 = vld [vmem:[%s7046 + $0x820] sm:$0xff]
    %v7308 = vld [vmem:[%s7046 + $0x828] sm:$0xff]
    %v7309 = vld [vmem:[%s7046 + $0x830] sm:$0xff]
    %v7310 = vld [vmem:[%s7046 + $0x838] sm:$0xff]
    %v7311 = vld [vmem:[%s7046 + $0x840] sm:$0xff]
    %v7312 = vld [vmem:[%s7046 + $0x848] sm:$0xff]
    %v7313 = vld [vmem:[%s7046 + $0x850] sm:$0xff]
    %v7314 = vld [vmem:[%s7046 + $0x858] sm:$0xff]
    %v7315 = vld [vmem:[%s7046 + $0x860] sm:$0xff]
    %v7316 = vld [vmem:[%s7046 + $0x868] sm:$0xff]
    %v7317 = vld [vmem:[%s7046 + $0x870] sm:$0xff]
    %v7318 = vld [vmem:[%s7046 + $0x878] sm:$0xff]
    %v7319 = vld [vmem:[%s7046 + $0x880] sm:$0xff]
    %v7320 = vld [vmem:[%s7046 + $0x888] sm:$0xff]
    %v7321 = vld [vmem:[%s7046 + $0x890] sm:$0xff]
    %v7322 = vld [vmem:[%s7046 + $0x898] sm:$0xff]
    %v7323 = vld [vmem:[%s7046 + $0x8a0] sm:$0xff]
    %v7324 = vld [vmem:[%s7046 + $0x8a8] sm:$0xff]
    %v7325 = vld [vmem:[%s7046 + $0x8b0] sm:$0xff]
    %v7326 = vld [vmem:[%s7046 + $0x8b8] sm:$0xff]
    %v7327 = vld [vmem:[%s7046 + $0x8c0] sm:$0xff]
    %v7328 = vld [vmem:[%s7046 + $0x8c8] sm:$0xff]
    %v7329 = vld [vmem:[%s7046 + $0x8d0] sm:$0xff]
    %v7330 = vld [vmem:[%s7046 + $0x8d8] sm:$0xff]
    %v7331 = vld [vmem:[%s7046 + $0x8e0] sm:$0xff]
    %v7332 = vld [vmem:[%s7046 + $0x8e8] sm:$0xff]
    %v7333 = vld [vmem:[%s7046 + $0x8f0] sm:$0xff]
    %v7334 = vld [vmem:[%s7046 + $0x8f8] sm:$0xff]
    %v7335 = vld [vmem:[%s7046 + $0x900] sm:$0xff]
    %v7336 = vld [vmem:[%s7046 + $0x908] sm:$0xff]
    %v7337 = vld [vmem:[%s7046 + $0x910] sm:$0xff]
    %v7338 = vld [vmem:[%s7046 + $0x918] sm:$0xff]
    %v7339 = vld [vmem:[%s7046 + $0x920] sm:$0xff]
    %v7340 = vld [vmem:[%s7046 + $0x928] sm:$0xff]
    %v7341 = vld [vmem:[%s7046 + $0x930] sm:$0xff]
    %v7342 = vld [vmem:[%s7046 + $0x938] sm:$0xff]
    %v7343 = vld [vmem:[%s7046 + $0x940] sm:$0xff]
    %v7344 = vld [vmem:[%s7046 + $0x948] sm:$0xff]
    %v7345 = vld [vmem:[%s7046 + $0x950] sm:$0xff]
    %v7346 = vld [vmem:[%s7046 + $0x958] sm:$0xff]
    %v7347 = vld [vmem:[%s7046 + $0x960] sm:$0xff]
    %v7348 = vld [vmem:[%s7046 + $0x968] sm:$0xff]
    %v7349 = vld [vmem:[%s7046 + $0x970] sm:$0xff]
    %v7350 = vld [vmem:[%s7046 + $0x978] sm:$0xff]
    %v7351 = vld [vmem:[%s7046 + $0x980] sm:$0xff]
    %v7352 = vld [vmem:[%s7046 + $0x988] sm:$0xff]
    %v7353 = vld [vmem:[%s7046 + $0x990] sm:$0xff]
    %v7354 = vld [vmem:[%s7046 + $0x998] sm:$0xff]
    %v7355 = vld [vmem:[%s7046 + $0x9a0] sm:$0xff]
    %v7356 = vld [vmem:[%s7046 + $0x9a8] sm:$0xff]
    %v7357 = vld [vmem:[%s7046 + $0x9b0] sm:$0xff]
    %v7358 = vld [vmem:[%s7046 + $0x9b8] sm:$0xff]
    %v7359 = vld [vmem:[%s7046 + $0x9c0] sm:$0xff]
    %v7360 = vld [vmem:[%s7046 + $0x9c8] sm:$0xff]
    %v7361 = vld [vmem:[%s7046 + $0x9d0] sm:$0xff]
    %v7362 = vld [vmem:[%s7046 + $0x9d8] sm:$0xff]
    %v7363 = vld [vmem:[%s7046 + $0x9e0] sm:$0xff]
    %v7364 = vld [vmem:[%s7046 + $0x9e8] sm:$0xff]
    %v7365 = vld [vmem:[%s7046 + $0x9f0] sm:$0xff]
    %v7366 = vld [vmem:[%s7046 + $0x9f8] sm:$0xff]
    %v7367 = vld [vmem:[%s7046 + $0xa00] sm:$0xff]
    %v7368 = vld [vmem:[%s7046 + $0xa08] sm:$0xff]
    %v7369 = vld [vmem:[%s7046 + $0xa10] sm:$0xff]
    %v7370 = vld [vmem:[%s7046 + $0xa18] sm:$0xff]
    %v7371 = vld [vmem:[%s7046 + $0xa20] sm:$0xff]
    %v7372 = vld [vmem:[%s7046 + $0xa28] sm:$0xff]
    %v7373 = vld [vmem:[%s7046 + $0xa30] sm:$0xff]
    %v7374 = vld [vmem:[%s7046 + $0xa38] sm:$0xff]
    %v7375 = vld [vmem:[%s7046 + $0xa40] sm:$0xff]
    %v7376 = vld [vmem:[%s7046 + $0xa48] sm:$0xff]
    %v7377 = vld [vmem:[%s7046 + $0xa50] sm:$0xff]
    %v7378 = vld [vmem:[%s7046 + $0xa58] sm:$0xff]
    %v7379 = vld [vmem:[%s7046 + $0xa60] sm:$0xff]
    %v7380 = vld [vmem:[%s7046 + $0xa68] sm:$0xff]
    %v7381 = vld [vmem:[%s7046 + $0xa70] sm:$0xff]
    %v7382 = vld [vmem:[%s7046 + $0xa78] sm:$0xff]
    %v7383 = vld [vmem:[%s7046 + $0xa80] sm:$0xff]
    %v7384 = vld [vmem:[%s7046 + $0xa88] sm:$0xff]
    %v7385 = vld [vmem:[%s7046 + $0xa90] sm:$0xff]
    %v7386 = vld [vmem:[%s7046 + $0xa98] sm:$0xff]
    %v7387 = vld [vmem:[%s7046 + $0xaa0] sm:$0xff]
    %v7388 = vld [vmem:[%s7046 + $0xaa8] sm:$0xff]
    %v7389 = vld [vmem:[%s7046 + $0xab0] sm:$0xff]
    %v7390 = vld [vmem:[%s7046 + $0xab8] sm:$0xff]
    %v7391 = vld [vmem:[%s7046 + $0xac0] sm:$0xff]
    %v7392 = vld [vmem:[%s7046 + $0xac8] sm:$0xff]
    %v7393 = vld [vmem:[%s7046 + $0xad0] sm:$0xff]
    %v7394 = vld [vmem:[%s7046 + $0xad8] sm:$0xff]
    %v7395 = vld [vmem:[%s7046 + $0xae0] sm:$0xff]
    %v7396 = vld [vmem:[%s7046 + $0xae8] sm:$0xff]
    %v7397 = vld [vmem:[%s7046 + $0xaf0] sm:$0xff]
    %v7398 = vld [vmem:[%s7046 + $0xaf8] sm:$0xff]
    %v7399 = vld [vmem:[%s7046 + $0xb00] sm:$0xff]
    %v7400 = vld [vmem:[%s7046 + $0xb08] sm:$0xff]
    %v7401 = vld [vmem:[%s7046 + $0xb10] sm:$0xff]
    %v7402 = vld [vmem:[%s7046 + $0xb18] sm:$0xff]
    %v7403 = vld [vmem:[%s7046 + $0xb20] sm:$0xff]
    %v7404 = vld [vmem:[%s7046 + $0xb28] sm:$0xff]
    %v7405 = vld [vmem:[%s7046 + $0xb30] sm:$0xff]
    %v7406 = vld [vmem:[%s7046 + $0xb38] sm:$0xff]
    %v7407 = vld [vmem:[%s7046 + $0xb40] sm:$0xff]
    %v7408 = vld [vmem:[%s7046 + $0xb48] sm:$0xff]
    %v7409 = vld [vmem:[%s7046 + $0xb50] sm:$0xff]
    %v7410 = vld [vmem:[%s7046 + $0xb58] sm:$0xff]
    %v7411 = vld [vmem:[%s7046 + $0xb60] sm:$0xff]
    %v7412 = vld [vmem:[%s7046 + $0xb68] sm:$0xff]
    %v7413 = vld [vmem:[%s7046 + $0xb70] sm:$0xff]
    %v7414 = vld [vmem:[%s7046 + $0xb78] sm:$0xff]
    %v7415 = vld [vmem:[%s7046 + $0xb80] sm:$0xff]
    %v7416 = vld [vmem:[%s7046 + $0xb88] sm:$0xff]
    %v7417 = vld [vmem:[%s7046 + $0xb90] sm:$0xff]
    %v7418 = vld [vmem:[%s7046 + $0xb98] sm:$0xff]
    %v7419 = vld [vmem:[%s7046 + $0xba0] sm:$0xff]
    %v7420 = vld [vmem:[%s7046 + $0xba8] sm:$0xff]
    %v7421 = vld [vmem:[%s7046 + $0xbb0] sm:$0xff]
    %v7422 = vld [vmem:[%s7046 + $0xbb8] sm:$0xff]
    %v7423 = vld [vmem:[%s7046 + $0xbc0] sm:$0xff]
    %v7424 = vld [vmem:[%s7046 + $0xbc8] sm:$0xff]
    %v7425 = vld [vmem:[%s7046 + $0xbd0] sm:$0xff]
    %v7426 = vld [vmem:[%s7046 + $0xbd8] sm:$0xff]
    %v7427 = vld [vmem:[%s7046 + $0xbe0] sm:$0xff]
    %v7428 = vld [vmem:[%s7046 + $0xbe8] sm:$0xff]
    %v7429 = vld [vmem:[%s7046 + $0xbf0] sm:$0xff]
    %v7430 = vld [vmem:[%s7046 + $0xbf8] sm:$0xff]
    %v7479 = vunpack.c.l.b16 %v6998
    %v7480 = vunpack.c.h.b16 %v6998
    %v7481 = vunpack.c.l.b16 %v6999
    %v7482 = vunpack.c.h.b16 %v6999
    %v7483 = vunpack.c.l.b16 %v7000
    %v7484 = vunpack.c.h.b16 %v7000
    %v7485 = vunpack.c.l.b16 %v7001
    %v7486 = vunpack.c.h.b16 %v7001
    %v7487 = vunpack.c.l.b16 %v7002
    %v7488 = vunpack.c.h.b16 %v7002
    %v7489 = vunpack.c.l.b16 %v7003
    %v7490 = vunpack.c.h.b16 %v7003
    %v7491 = vunpack.c.l.b16 %v7004
    %v7492 = vunpack.c.h.b16 %v7004
    %v7493 = vunpack.c.l.b16 %v7005
    %v7494 = vunpack.c.h.b16 %v7005
    %v7495 = vunpack.c.l.b16 %v7006
    %v7496 = vunpack.c.h.b16 %v7006
    %v7497 = vunpack.c.l.b16 %v7007
    %v7498 = vunpack.c.h.b16 %v7007
    %v7499 = vunpack.c.l.b16 %v7008
    %v7500 = vunpack.c.h.b16 %v7008
    %v7501 = vunpack.c.l.b16 %v7009
    %v7502 = vunpack.c.h.b16 %v7009
    %v7503 = vunpack.c.l.b16 %v7010
    %v7504 = vunpack.c.h.b16 %v7010
    %v7505 = vunpack.c.l.b16 %v7011
    %v7506 = vunpack.c.h.b16 %v7011
    %v7507 = vunpack.c.l.b16 %v7012
    %v7508 = vunpack.c.h.b16 %v7012
    %v7509 = vunpack.c.l.b16 %v7013
    %v7510 = vunpack.c.h.b16 %v7013
    %v7511 = vunpack.c.l.b16 %v7014
    %v7512 = vunpack.c.h.b16 %v7014
    %v7513 = vunpack.c.l.b16 %v7015
    %v7514 = vunpack.c.h.b16 %v7015
    %v7515 = vunpack.c.l.b16 %v7016
    %v7516 = vunpack.c.h.b16 %v7016
    %v7517 = vunpack.c.l.b16 %v7017
    %v7518 = vunpack.c.h.b16 %v7017
    %v7519 = vunpack.c.l.b16 %v7018
    %v7520 = vunpack.c.h.b16 %v7018
    %v7521 = vunpack.c.l.b16 %v7019
    %v7522 = vunpack.c.h.b16 %v7019
    %v7523 = vunpack.c.l.b16 %v7020
    %v7524 = vunpack.c.h.b16 %v7020
    %v7525 = vunpack.c.l.b16 %v7021
    %v7526 = vunpack.c.h.b16 %v7021
    %v7527 = vunpack.c.l.b16 %v7022
    %v7528 = vunpack.c.h.b16 %v7022
    %v7529 = vunpack.c.l.b16 %v7023
    %v7530 = vunpack.c.h.b16 %v7023
    %v7531 = vunpack.c.l.b16 %v7024
    %v7532 = vunpack.c.h.b16 %v7024
    %v7533 = vunpack.c.l.b16 %v7025
    %v7534 = vunpack.c.h.b16 %v7025
    %v7535 = vunpack.c.l.b16 %v7026
    %v7536 = vunpack.c.h.b16 %v7026
    %v7537 = vunpack.c.l.b16 %v7027
    %v7538 = vunpack.c.h.b16 %v7027
    %v7539 = vunpack.c.l.b16 %v7028
    %v7540 = vunpack.c.h.b16 %v7028
    %v7541 = vunpack.c.l.b16 %v7029
    %v7542 = vunpack.c.h.b16 %v7029
    %v7543 = vunpack.c.l.b16 %v7030
    %v7544 = vunpack.c.h.b16 %v7030
    %v7545 = vunpack.c.l.b16 %v7031
    %v7546 = vunpack.c.h.b16 %v7031
    %v7547 = vunpack.c.l.b16 %v7032
    %v7548 = vunpack.c.h.b16 %v7032
    %v7549 = vunpack.c.l.b16 %v7033
    %v7550 = vunpack.c.h.b16 %v7033
    %v7551 = vunpack.c.l.b16 %v7034
    %v7552 = vunpack.c.h.b16 %v7034
    %v7553 = vunpack.c.l.b16 %v7035
    %v7554 = vunpack.c.h.b16 %v7035
    %v7555 = vunpack.c.l.b16 %v7036
    %v7556 = vunpack.c.h.b16 %v7036
    %v7557 = vunpack.c.l.b16 %v7037
    %v7558 = vunpack.c.h.b16 %v7037
    %v7559 = vunpack.c.l.b16 %v7038
    %v7560 = vunpack.c.h.b16 %v7038
    %v7561 = vunpack.c.l.b16 %v7039
    %v7562 = vunpack.c.h.b16 %v7039
    %v7563 = vunpack.c.l.b16 %v7040
    %v7564 = vunpack.c.h.b16 %v7040
    %v7565 = vunpack.c.l.b16 %v7041
    %v7566 = vunpack.c.h.b16 %v7041
    %v7567 = vunpack.c.l.b16 %v7042
    %v7568 = vunpack.c.h.b16 %v7042
    %v7569 = vunpack.c.l.b16 %v7043
    %v7570 = vunpack.c.h.b16 %v7043
    %v7571 = vunpack.c.l.b16 %v7044
    %v7572 = vunpack.c.h.b16 %v7044
    %v7573 = vunpack.c.l.b16 %v7045
    %v7574 = vunpack.c.h.b16 %v7045
    %v7575 = vpack.c.b16 %v7491, %v7479
    %v7576 = vpack.c.b16 %v7492, %v7480
    %v7577 = vpack.c.b16 %v7493, %v7481
    %v7578 = vpack.c.b16 %v7494, %v7482
    %v7579 = vpack.c.b16 %v7495, %v7483
    %v7580 = vpack.c.b16 %v7496, %v7484
    %v7581 = vpack.c.b16 %v7497, %v7485
    %v7582 = vpack.c.b16 %v7498, %v7486
    %v7583 = vpack.c.b16 %v7499, %v7487
    %v7584 = vpack.c.b16 %v7500, %v7488
    %v7585 = vpack.c.b16 %v7501, %v7489
    %v7586 = vpack.c.b16 %v7502, %v7490
    %v7587 = vpack.c.b16 %v7515, %v7503
    %v7588 = vpack.c.b16 %v7516, %v7504
    %v7589 = vpack.c.b16 %v7517, %v7505
    %v7590 = vpack.c.b16 %v7518, %v7506
    %v7591 = vpack.c.b16 %v7519, %v7507
    %v7592 = vpack.c.b16 %v7520, %v7508
    %v7593 = vpack.c.b16 %v7521, %v7509
    %v7594 = vpack.c.b16 %v7522, %v7510
    %v7595 = vpack.c.b16 %v7523, %v7511
    %v7596 = vpack.c.b16 %v7524, %v7512
    %v7597 = vpack.c.b16 %v7525, %v7513
    %v7598 = vpack.c.b16 %v7526, %v7514
    %v7599 = vpack.c.b16 %v7539, %v7527
    %v7600 = vpack.c.b16 %v7540, %v7528
    %v7601 = vpack.c.b16 %v7541, %v7529
    %v7602 = vpack.c.b16 %v7542, %v7530
    %v7603 = vpack.c.b16 %v7543, %v7531
    %v7604 = vpack.c.b16 %v7544, %v7532
    %v7605 = vpack.c.b16 %v7545, %v7533
    %v7606 = vpack.c.b16 %v7546, %v7534
    %v7607 = vpack.c.b16 %v7547, %v7535
    %v7608 = vpack.c.b16 %v7548, %v7536
    %v7609 = vpack.c.b16 %v7549, %v7537
    %v7610 = vpack.c.b16 %v7550, %v7538
    %v7611 = vpack.c.b16 %v7563, %v7551
    %v7612 = vpack.c.b16 %v7564, %v7552
    %v7613 = vpack.c.b16 %v7565, %v7553
    %v7614 = vpack.c.b16 %v7566, %v7554
    %v7615 = vpack.c.b16 %v7567, %v7555
    %v7616 = vpack.c.b16 %v7568, %v7556
    %v7617 = vpack.c.b16 %v7569, %v7557
    %v7618 = vpack.c.b16 %v7570, %v7558
    %v7619 = vpack.c.b16 %v7571, %v7559
    %v7620 = vpack.c.b16 %v7572, %v7560
    %v7621 = vpack.c.b16 %v7573, %v7561
    %v7622 = vpack.c.b16 %v7574, %v7562
    %v8055 = vunpack.c.l.b16 %v7047
    %v8056 = vunpack.c.h.b16 %v7047
    %v8057 = vunpack.c.l.b16 %v7048
    %v8058 = vunpack.c.h.b16 %v7048
    %v8059 = vunpack.c.l.b16 %v7049
    %v8060 = vunpack.c.h.b16 %v7049
    %v8061 = vunpack.c.l.b16 %v7050
    %v8062 = vunpack.c.h.b16 %v7050
    %v8063 = vunpack.c.l.b16 %v7051
    %v8064 = vunpack.c.h.b16 %v7051
    %v8065 = vunpack.c.l.b16 %v7052
    %v8066 = vunpack.c.h.b16 %v7052
    %v8067 = vunpack.c.l.b16 %v7053
    %v8068 = vunpack.c.h.b16 %v7053
    %v8069 = vunpack.c.l.b16 %v7054
    %v8070 = vunpack.c.h.b16 %v7054
    %v8071 = vunpack.c.l.b16 %v7055
    %v8072 = vunpack.c.h.b16 %v7055
    %v8073 = vunpack.c.l.b16 %v7056
    %v8074 = vunpack.c.h.b16 %v7056
    %v8075 = vunpack.c.l.b16 %v7057
    %v8076 = vunpack.c.h.b16 %v7057
    %v8077 = vunpack.c.l.b16 %v7058
    %v8078 = vunpack.c.h.b16 %v7058
    %v8079 = vunpack.c.l.b16 %v7059
    %v8080 = vunpack.c.h.b16 %v7059
    %v8081 = vunpack.c.l.b16 %v7060
    %v8082 = vunpack.c.h.b16 %v7060
    %v8083 = vunpack.c.l.b16 %v7061
    %v8084 = vunpack.c.h.b16 %v7061
    %v8085 = vunpack.c.l.b16 %v7062
    %v8086 = vunpack.c.h.b16 %v7062
    %v8087 = vunpack.c.l.b16 %v7063
    %v8088 = vunpack.c.h.b16 %v7063
    %v8089 = vunpack.c.l.b16 %v7064
    %v8090 = vunpack.c.h.b16 %v7064
    %v8091 = vunpack.c.l.b16 %v7065
    %v8092 = vunpack.c.h.b16 %v7065
    %v8093 = vunpack.c.l.b16 %v7066
    %v8094 = vunpack.c.h.b16 %v7066
    %v8095 = vunpack.c.l.b16 %v7067
    %v8096 = vunpack.c.h.b16 %v7067
    %v8097 = vunpack.c.l.b16 %v7068
    %v8098 = vunpack.c.h.b16 %v7068
    %v8099 = vunpack.c.l.b16 %v7069
    %v8100 = vunpack.c.h.b16 %v7069
    %v8101 = vunpack.c.l.b16 %v7070
    %v8102 = vunpack.c.h.b16 %v7070
    %v8103 = vunpack.c.l.b16 %v7071
    %v8104 = vunpack.c.h.b16 %v7071
    %v8105 = vunpack.c.l.b16 %v7072
    %v8106 = vunpack.c.h.b16 %v7072
    %v8107 = vunpack.c.l.b16 %v7073
    %v8108 = vunpack.c.h.b16 %v7073
    %v8109 = vunpack.c.l.b16 %v7074
    %v8110 = vunpack.c.h.b16 %v7074
    %v8111 = vunpack.c.l.b16 %v7075
    %v8112 = vunpack.c.h.b16 %v7075
    %v8113 = vunpack.c.l.b16 %v7076
    %v8114 = vunpack.c.h.b16 %v7076
    %v8115 = vunpack.c.l.b16 %v7077
    %v8116 = vunpack.c.h.b16 %v7077
    %v8117 = vunpack.c.l.b16 %v7078
    %v8118 = vunpack.c.h.b16 %v7078
    %v8119 = vunpack.c.l.b16 %v7079
    %v8120 = vunpack.c.h.b16 %v7079
    %v8121 = vunpack.c.l.b16 %v7080
    %v8122 = vunpack.c.h.b16 %v7080
    %v8123 = vunpack.c.l.b16 %v7081
    %v8124 = vunpack.c.h.b16 %v7081
    %v8125 = vunpack.c.l.b16 %v7082
    %v8126 = vunpack.c.h.b16 %v7082
    %v8127 = vunpack.c.l.b16 %v7083
    %v8128 = vunpack.c.h.b16 %v7083
    %v8129 = vunpack.c.l.b16 %v7084
    %v8130 = vunpack.c.h.b16 %v7084
    %v8131 = vunpack.c.l.b16 %v7085
    %v8132 = vunpack.c.h.b16 %v7085
    %v8133 = vunpack.c.l.b16 %v7086
    %v8134 = vunpack.c.h.b16 %v7086
    %v8135 = vunpack.c.l.b16 %v7087
    %v8136 = vunpack.c.h.b16 %v7087
    %v8137 = vunpack.c.l.b16 %v7088
    %v8138 = vunpack.c.h.b16 %v7088
    %v8139 = vunpack.c.l.b16 %v7089
    %v8140 = vunpack.c.h.b16 %v7089
    %v8141 = vunpack.c.l.b16 %v7090
    %v8142 = vunpack.c.h.b16 %v7090
    %v8143 = vunpack.c.l.b16 %v7091
    %v8144 = vunpack.c.h.b16 %v7091
    %v8145 = vunpack.c.l.b16 %v7092
    %v8146 = vunpack.c.h.b16 %v7092
    %v8147 = vunpack.c.l.b16 %v7093
    %v8148 = vunpack.c.h.b16 %v7093
    %v8149 = vunpack.c.l.b16 %v7094
    %v8150 = vunpack.c.h.b16 %v7094
    %v8151 = vunpack.c.l.b16 %v7095
    %v8152 = vunpack.c.h.b16 %v7095
    %v8153 = vunpack.c.l.b16 %v7096
    %v8154 = vunpack.c.h.b16 %v7096
    %v8155 = vunpack.c.l.b16 %v7097
    %v8156 = vunpack.c.h.b16 %v7097
    %v8157 = vunpack.c.l.b16 %v7098
    %v8158 = vunpack.c.h.b16 %v7098
    %v8159 = vunpack.c.l.b16 %v7099
    %v8160 = vunpack.c.h.b16 %v7099
    %v8161 = vunpack.c.l.b16 %v7100
    %v8162 = vunpack.c.h.b16 %v7100
    %v8163 = vunpack.c.l.b16 %v7101
    %v8164 = vunpack.c.h.b16 %v7101
    %v8165 = vunpack.c.l.b16 %v7102
    %v8166 = vunpack.c.h.b16 %v7102
    %v8167 = vunpack.c.l.b16 %v7103
    %v8168 = vunpack.c.h.b16 %v7103
    %v8169 = vunpack.c.l.b16 %v7104
    %v8170 = vunpack.c.h.b16 %v7104
    %v8171 = vunpack.c.l.b16 %v7105
    %v8172 = vunpack.c.h.b16 %v7105
    %v8173 = vunpack.c.l.b16 %v7106
    %v8174 = vunpack.c.h.b16 %v7106
    %v8175 = vunpack.c.l.b16 %v7107
    %v8176 = vunpack.c.h.b16 %v7107
    %v8177 = vunpack.c.l.b16 %v7108
    %v8178 = vunpack.c.h.b16 %v7108
    %v8179 = vunpack.c.l.b16 %v7109
    %v8180 = vunpack.c.h.b16 %v7109
    %v8181 = vunpack.c.l.b16 %v7110
    %v8182 = vunpack.c.h.b16 %v7110
    %v8183 = vunpack.c.l.b16 %v7111
    %v8184 = vunpack.c.h.b16 %v7111
    %v8185 = vunpack.c.l.b16 %v7112
    %v8186 = vunpack.c.h.b16 %v7112
    %v8187 = vunpack.c.l.b16 %v7113
    %v8188 = vunpack.c.h.b16 %v7113
    %v8189 = vunpack.c.l.b16 %v7114
    %v8190 = vunpack.c.h.b16 %v7114
    %v8191 = vunpack.c.l.b16 %v7115
    %v8192 = vunpack.c.h.b16 %v7115
    %v8193 = vunpack.c.l.b16 %v7116
    %v8194 = vunpack.c.h.b16 %v7116
    %v8195 = vunpack.c.l.b16 %v7117
    %v8196 = vunpack.c.h.b16 %v7117
    %v8197 = vunpack.c.l.b16 %v7118
    %v8198 = vunpack.c.h.b16 %v7118
    %v8199 = vunpack.c.l.b16 %v7119
    %v8200 = vunpack.c.h.b16 %v7119
    %v8201 = vunpack.c.l.b16 %v7120
    %v8202 = vunpack.c.h.b16 %v7120
    %v8203 = vunpack.c.l.b16 %v7121
    %v8204 = vunpack.c.h.b16 %v7121
    %v8205 = vunpack.c.l.b16 %v7122
    %v8206 = vunpack.c.h.b16 %v7122
    %v8207 = vunpack.c.l.b16 %v7123
    %v8208 = vunpack.c.h.b16 %v7123
    %v8209 = vunpack.c.l.b16 %v7124
    %v8210 = vunpack.c.h.b16 %v7124
    %v8211 = vunpack.c.l.b16 %v7125
    %v8212 = vunpack.c.h.b16 %v7125
    %v8213 = vunpack.c.l.b16 %v7126
    %v8214 = vunpack.c.h.b16 %v7126
    %v8215 = vunpack.c.l.b16 %v7127
    %v8216 = vunpack.c.h.b16 %v7127
    %v8217 = vunpack.c.l.b16 %v7128
    %v8218 = vunpack.c.h.b16 %v7128
    %v8219 = vunpack.c.l.b16 %v7129
    %v8220 = vunpack.c.h.b16 %v7129
    %v8221 = vunpack.c.l.b16 %v7130
    %v8222 = vunpack.c.h.b16 %v7130
    %v8223 = vunpack.c.l.b16 %v7131
    %v8224 = vunpack.c.h.b16 %v7131
    %v8225 = vunpack.c.l.b16 %v7132
    %v8226 = vunpack.c.h.b16 %v7132
    %v8227 = vunpack.c.l.b16 %v7133
    %v8228 = vunpack.c.h.b16 %v7133
    %v8229 = vunpack.c.l.b16 %v7134
    %v8230 = vunpack.c.h.b16 %v7134
    %v8231 = vunpack.c.l.b16 %v7135
    %v8232 = vunpack.c.h.b16 %v7135
    %v8233 = vunpack.c.l.b16 %v7136
    %v8234 = vunpack.c.h.b16 %v7136
    %v8235 = vunpack.c.l.b16 %v7137
    %v8236 = vunpack.c.h.b16 %v7137
    %v8237 = vunpack.c.l.b16 %v7138
    %v8238 = vunpack.c.h.b16 %v7138
    %v8239 = vunpack.c.l.b16 %v7139
    %v8240 = vunpack.c.h.b16 %v7139
    %v8241 = vunpack.c.l.b16 %v7140
    %v8242 = vunpack.c.h.b16 %v7140
    %v8243 = vunpack.c.l.b16 %v7141
    %v8244 = vunpack.c.h.b16 %v7141
    %v8245 = vunpack.c.l.b16 %v7142
    %v8246 = vunpack.c.h.b16 %v7142
    %v8247 = vunpack.c.l.b16 %v7143
    %v8248 = vunpack.c.h.b16 %v7143
    %v8249 = vunpack.c.l.b16 %v7144
    %v8250 = vunpack.c.h.b16 %v7144
    %v8251 = vunpack.c.l.b16 %v7145
    %v8252 = vunpack.c.h.b16 %v7145
    %v8253 = vunpack.c.l.b16 %v7146
    %v8254 = vunpack.c.h.b16 %v7146
    %v8255 = vunpack.c.l.b16 %v7147
    %v8256 = vunpack.c.h.b16 %v7147
    %v8257 = vunpack.c.l.b16 %v7148
    %v8258 = vunpack.c.h.b16 %v7148
    %v8259 = vunpack.c.l.b16 %v7149
    %v8260 = vunpack.c.h.b16 %v7149
    %v8261 = vunpack.c.l.b16 %v7150
    %v8262 = vunpack.c.h.b16 %v7150
    %v8263 = vunpack.c.l.b16 %v7151
    %v8264 = vunpack.c.h.b16 %v7151
    %v8265 = vunpack.c.l.b16 %v7152
    %v8266 = vunpack.c.h.b16 %v7152
    %v8267 = vunpack.c.l.b16 %v7153
    %v8268 = vunpack.c.h.b16 %v7153
    %v8269 = vunpack.c.l.b16 %v7154
    %v8270 = vunpack.c.h.b16 %v7154
    %v8271 = vunpack.c.l.b16 %v7155
    %v8272 = vunpack.c.h.b16 %v7155
    %v8273 = vunpack.c.l.b16 %v7156
    %v8274 = vunpack.c.h.b16 %v7156
    %v8275 = vunpack.c.l.b16 %v7157
    %v8276 = vunpack.c.h.b16 %v7157
    %v8277 = vunpack.c.l.b16 %v7158
    %v8278 = vunpack.c.h.b16 %v7158
    %v8279 = vunpack.c.l.b16 %v7159
    %v8280 = vunpack.c.h.b16 %v7159
    %v8281 = vunpack.c.l.b16 %v7160
    %v8282 = vunpack.c.h.b16 %v7160
    %v8283 = vunpack.c.l.b16 %v7161
    %v8284 = vunpack.c.h.b16 %v7161
    %v8285 = vunpack.c.l.b16 %v7162
    %v8286 = vunpack.c.h.b16 %v7162
    %v8287 = vunpack.c.l.b16 %v7163
    %v8288 = vunpack.c.h.b16 %v7163
    %v8289 = vunpack.c.l.b16 %v7164
    %v8290 = vunpack.c.h.b16 %v7164
    %v8291 = vunpack.c.l.b16 %v7165
    %v8292 = vunpack.c.h.b16 %v7165
    %v8293 = vunpack.c.l.b16 %v7166
    %v8294 = vunpack.c.h.b16 %v7166
    %v8295 = vunpack.c.l.b16 %v7167
    %v8296 = vunpack.c.h.b16 %v7167
    %v8297 = vunpack.c.l.b16 %v7168
    %v8298 = vunpack.c.h.b16 %v7168
    %v8299 = vunpack.c.l.b16 %v7169
    %v8300 = vunpack.c.h.b16 %v7169
    %v8301 = vunpack.c.l.b16 %v7170
    %v8302 = vunpack.c.h.b16 %v7170
    %v8303 = vunpack.c.l.b16 %v7171
    %v8304 = vunpack.c.h.b16 %v7171
    %v8305 = vunpack.c.l.b16 %v7172
    %v8306 = vunpack.c.h.b16 %v7172
    %v8307 = vunpack.c.l.b16 %v7173
    %v8308 = vunpack.c.h.b16 %v7173
    %v8309 = vunpack.c.l.b16 %v7174
    %v8310 = vunpack.c.h.b16 %v7174
    %v8311 = vunpack.c.l.b16 %v7175
    %v8312 = vunpack.c.h.b16 %v7175
    %v8313 = vunpack.c.l.b16 %v7176
    %v8314 = vunpack.c.h.b16 %v7176
    %v8315 = vunpack.c.l.b16 %v7177
    %v8316 = vunpack.c.h.b16 %v7177
    %v8317 = vunpack.c.l.b16 %v7178
    %v8318 = vunpack.c.h.b16 %v7178
    %v8319 = vunpack.c.l.b16 %v7179
    %v8320 = vunpack.c.h.b16 %v7179
    %v8321 = vunpack.c.l.b16 %v7180
    %v8322 = vunpack.c.h.b16 %v7180
    %v8323 = vunpack.c.l.b16 %v7181
    %v8324 = vunpack.c.h.b16 %v7181
    %v8325 = vunpack.c.l.b16 %v7182
    %v8326 = vunpack.c.h.b16 %v7182
    %v8327 = vunpack.c.l.b16 %v7183
    %v8328 = vunpack.c.h.b16 %v7183
    %v8329 = vunpack.c.l.b16 %v7184
    %v8330 = vunpack.c.h.b16 %v7184
    %v8331 = vunpack.c.l.b16 %v7185
    %v8332 = vunpack.c.h.b16 %v7185
    %v8333 = vunpack.c.l.b16 %v7186
    %v8334 = vunpack.c.h.b16 %v7186
    %v8335 = vunpack.c.l.b16 %v7187
    %v8336 = vunpack.c.h.b16 %v7187
    %v8337 = vunpack.c.l.b16 %v7188
    %v8338 = vunpack.c.h.b16 %v7188
    %v8339 = vunpack.c.l.b16 %v7189
    %v8340 = vunpack.c.h.b16 %v7189
    %v8341 = vunpack.c.l.b16 %v7190
    %v8342 = vunpack.c.h.b16 %v7190
    %v8343 = vunpack.c.l.b16 %v7191
    %v8344 = vunpack.c.h.b16 %v7191
    %v8345 = vunpack.c.l.b16 %v7192
    %v8346 = vunpack.c.h.b16 %v7192
    %v8347 = vunpack.c.l.b16 %v7193
    %v8348 = vunpack.c.h.b16 %v7193
    %v8349 = vunpack.c.l.b16 %v7194
    %v8350 = vunpack.c.h.b16 %v7194
    %v8351 = vunpack.c.l.b16 %v7195
    %v8352 = vunpack.c.h.b16 %v7195
    %v8353 = vunpack.c.l.b16 %v7196
    %v8354 = vunpack.c.h.b16 %v7196
    %v8355 = vunpack.c.l.b16 %v7197
    %v8356 = vunpack.c.h.b16 %v7197
    %v8357 = vunpack.c.l.b16 %v7198
    %v8358 = vunpack.c.h.b16 %v7198
    %v8359 = vunpack.c.l.b16 %v7199
    %v8360 = vunpack.c.h.b16 %v7199
    %v8361 = vunpack.c.l.b16 %v7200
    %v8362 = vunpack.c.h.b16 %v7200
    %v8363 = vunpack.c.l.b16 %v7201
    %v8364 = vunpack.c.h.b16 %v7201
    %v8365 = vunpack.c.l.b16 %v7202
    %v8366 = vunpack.c.h.b16 %v7202
    %v8367 = vunpack.c.l.b16 %v7203
    %v8368 = vunpack.c.h.b16 %v7203
    %v8369 = vunpack.c.l.b16 %v7204
    %v8370 = vunpack.c.h.b16 %v7204
    %v8371 = vunpack.c.l.b16 %v7205
    %v8372 = vunpack.c.h.b16 %v7205
    %v8373 = vunpack.c.l.b16 %v7206
    %v8374 = vunpack.c.h.b16 %v7206
    %v8375 = vunpack.c.l.b16 %v7207
    %v8376 = vunpack.c.h.b16 %v7207
    %v8377 = vunpack.c.l.b16 %v7208
    %v8378 = vunpack.c.h.b16 %v7208
    %v8379 = vunpack.c.l.b16 %v7209
    %v8380 = vunpack.c.h.b16 %v7209
    %v8381 = vunpack.c.l.b16 %v7210
    %v8382 = vunpack.c.h.b16 %v7210
    %v8383 = vunpack.c.l.b16 %v7211
    %v8384 = vunpack.c.h.b16 %v7211
    %v8385 = vunpack.c.l.b16 %v7212
    %v8386 = vunpack.c.h.b16 %v7212
    %v8387 = vunpack.c.l.b16 %v7213
    %v8388 = vunpack.c.h.b16 %v7213
    %v8389 = vunpack.c.l.b16 %v7214
    %v8390 = vunpack.c.h.b16 %v7214
    %v8391 = vunpack.c.l.b16 %v7215
    %v8392 = vunpack.c.h.b16 %v7215
    %v8393 = vunpack.c.l.b16 %v7216
    %v8394 = vunpack.c.h.b16 %v7216
    %v8395 = vunpack.c.l.b16 %v7217
    %v8396 = vunpack.c.h.b16 %v7217
    %v8397 = vunpack.c.l.b16 %v7218
    %v8398 = vunpack.c.h.b16 %v7218
    %v8399 = vunpack.c.l.b16 %v7219
    %v8400 = vunpack.c.h.b16 %v7219
    %v8401 = vunpack.c.l.b16 %v7220
    %v8402 = vunpack.c.h.b16 %v7220
    %v8403 = vunpack.c.l.b16 %v7221
    %v8404 = vunpack.c.h.b16 %v7221
    %v8405 = vunpack.c.l.b16 %v7222
    %v8406 = vunpack.c.h.b16 %v7222
    %v8407 = vunpack.c.l.b16 %v7223
    %v8408 = vunpack.c.h.b16 %v7223
    %v8409 = vunpack.c.l.b16 %v7224
    %v8410 = vunpack.c.h.b16 %v7224
    %v8411 = vunpack.c.l.b16 %v7225
    %v8412 = vunpack.c.h.b16 %v7225
    %v8413 = vunpack.c.l.b16 %v7226
    %v8414 = vunpack.c.h.b16 %v7226
    %v8415 = vunpack.c.l.b16 %v7227
    %v8416 = vunpack.c.h.b16 %v7227
    %v8417 = vunpack.c.l.b16 %v7228
    %v8418 = vunpack.c.h.b16 %v7228
    %v8419 = vunpack.c.l.b16 %v7229
    %v8420 = vunpack.c.h.b16 %v7229
    %v8421 = vunpack.c.l.b16 %v7230
    %v8422 = vunpack.c.h.b16 %v7230
    %v8423 = vunpack.c.l.b16 %v7231
    %v8424 = vunpack.c.h.b16 %v7231
    %v8425 = vunpack.c.l.b16 %v7232
    %v8426 = vunpack.c.h.b16 %v7232
    %v8427 = vunpack.c.l.b16 %v7233
    %v8428 = vunpack.c.h.b16 %v7233
    %v8429 = vunpack.c.l.b16 %v7234
    %v8430 = vunpack.c.h.b16 %v7234
    %v8431 = vunpack.c.l.b16 %v7235
    %v8432 = vunpack.c.h.b16 %v7235
    %v8433 = vunpack.c.l.b16 %v7236
    %v8434 = vunpack.c.h.b16 %v7236
    %v8435 = vunpack.c.l.b16 %v7237
    %v8436 = vunpack.c.h.b16 %v7237
    %v8437 = vunpack.c.l.b16 %v7238
    %v8438 = vunpack.c.h.b16 %v7238
    %v8439 = vunpack.c.l.b16 %v7239
    %v8440 = vunpack.c.h.b16 %v7239
    %v8441 = vunpack.c.l.b16 %v7240
    %v8442 = vunpack.c.h.b16 %v7240
    %v8443 = vunpack.c.l.b16 %v7241
    %v8444 = vunpack.c.h.b16 %v7241
    %v8445 = vunpack.c.l.b16 %v7242
    %v8446 = vunpack.c.h.b16 %v7242
    %v8447 = vunpack.c.l.b16 %v7243
    %v8448 = vunpack.c.h.b16 %v7243
    %v8449 = vunpack.c.l.b16 %v7244
    %v8450 = vunpack.c.h.b16 %v7244
    %v8451 = vunpack.c.l.b16 %v7245
    %v8452 = vunpack.c.h.b16 %v7245
    %v8453 = vunpack.c.l.b16 %v7246
    %v8454 = vunpack.c.h.b16 %v7246
    %v8455 = vunpack.c.l.b16 %v7247
    %v8456 = vunpack.c.h.b16 %v7247
    %v8457 = vunpack.c.l.b16 %v7248
    %v8458 = vunpack.c.h.b16 %v7248
    %v8459 = vunpack.c.l.b16 %v7249
    %v8460 = vunpack.c.h.b16 %v7249
    %v8461 = vunpack.c.l.b16 %v7250
    %v8462 = vunpack.c.h.b16 %v7250
    %v8463 = vunpack.c.l.b16 %v7251
    %v8464 = vunpack.c.h.b16 %v7251
    %v8465 = vunpack.c.l.b16 %v7252
    %v8466 = vunpack.c.h.b16 %v7252
    %v8467 = vunpack.c.l.b16 %v7253
    %v8468 = vunpack.c.h.b16 %v7253
    %v8469 = vunpack.c.l.b16 %v7254
    %v8470 = vunpack.c.h.b16 %v7254
    %v8471 = vunpack.c.l.b16 %v7255
    %v8472 = vunpack.c.h.b16 %v7255
    %v8473 = vunpack.c.l.b16 %v7256
    %v8474 = vunpack.c.h.b16 %v7256
    %v8475 = vunpack.c.l.b16 %v7257
    %v8476 = vunpack.c.h.b16 %v7257
    %v8477 = vunpack.c.l.b16 %v7258
    %v8478 = vunpack.c.h.b16 %v7258
    %v8479 = vunpack.c.l.b16 %v7259
    %v8480 = vunpack.c.h.b16 %v7259
    %v8481 = vunpack.c.l.b16 %v7260
    %v8482 = vunpack.c.h.b16 %v7260
    %v8483 = vunpack.c.l.b16 %v7261
    %v8484 = vunpack.c.h.b16 %v7261
    %v8485 = vunpack.c.l.b16 %v7262
    %v8486 = vunpack.c.h.b16 %v7262
    %v8487 = vunpack.c.l.b16 %v7263
    %v8488 = vunpack.c.h.b16 %v7263
    %v8489 = vunpack.c.l.b16 %v7264
    %v8490 = vunpack.c.h.b16 %v7264
    %v8491 = vunpack.c.l.b16 %v7265
    %v8492 = vunpack.c.h.b16 %v7265
    %v8493 = vunpack.c.l.b16 %v7266
    %v8494 = vunpack.c.h.b16 %v7266
    %v8495 = vunpack.c.l.b16 %v7267
    %v8496 = vunpack.c.h.b16 %v7267
    %v8497 = vunpack.c.l.b16 %v7268
    %v8498 = vunpack.c.h.b16 %v7268
    %v8499 = vunpack.c.l.b16 %v7269
    %v8500 = vunpack.c.h.b16 %v7269
    %v8501 = vunpack.c.l.b16 %v7270
    %v8502 = vunpack.c.h.b16 %v7270
    %v8503 = vunpack.c.l.b16 %v7271
    %v8504 = vunpack.c.h.b16 %v7271
    %v8505 = vunpack.c.l.b16 %v7272
    %v8506 = vunpack.c.h.b16 %v7272
    %v8507 = vunpack.c.l.b16 %v7273
    %v8508 = vunpack.c.h.b16 %v7273
    %v8509 = vunpack.c.l.b16 %v7274
    %v8510 = vunpack.c.h.b16 %v7274
    %v8511 = vunpack.c.l.b16 %v7275
    %v8512 = vunpack.c.h.b16 %v7275
    %v8513 = vunpack.c.l.b16 %v7276
    %v8514 = vunpack.c.h.b16 %v7276
    %v8515 = vunpack.c.l.b16 %v7277
    %v8516 = vunpack.c.h.b16 %v7277
    %v8517 = vunpack.c.l.b16 %v7278
    %v8518 = vunpack.c.h.b16 %v7278
    %v8519 = vunpack.c.l.b16 %v7279
    %v8520 = vunpack.c.h.b16 %v7279
    %v8521 = vunpack.c.l.b16 %v7280
    %v8522 = vunpack.c.h.b16 %v7280
    %v8523 = vunpack.c.l.b16 %v7281
    %v8524 = vunpack.c.h.b16 %v7281
    %v8525 = vunpack.c.l.b16 %v7282
    %v8526 = vunpack.c.h.b16 %v7282
    %v8527 = vunpack.c.l.b16 %v7283
    %v8528 = vunpack.c.h.b16 %v7283
    %v8529 = vunpack.c.l.b16 %v7284
    %v8530 = vunpack.c.h.b16 %v7284
    %v8531 = vunpack.c.l.b16 %v7285
    %v8532 = vunpack.c.h.b16 %v7285
    %v8533 = vunpack.c.l.b16 %v7286
    %v8534 = vunpack.c.h.b16 %v7286
    %v8535 = vunpack.c.l.b16 %v7287
    %v8536 = vunpack.c.h.b16 %v7287
    %v8537 = vunpack.c.l.b16 %v7288
    %v8538 = vunpack.c.h.b16 %v7288
    %v8539 = vunpack.c.l.b16 %v7289
    %v8540 = vunpack.c.h.b16 %v7289
    %v8541 = vunpack.c.l.b16 %v7290
    %v8542 = vunpack.c.h.b16 %v7290
    %v8543 = vunpack.c.l.b16 %v7291
    %v8544 = vunpack.c.h.b16 %v7291
    %v8545 = vunpack.c.l.b16 %v7292
    %v8546 = vunpack.c.h.b16 %v7292
    %v8547 = vunpack.c.l.b16 %v7293
    %v8548 = vunpack.c.h.b16 %v7293
    %v8549 = vunpack.c.l.b16 %v7294
    %v8550 = vunpack.c.h.b16 %v7294
    %v8551 = vunpack.c.l.b16 %v7295
    %v8552 = vunpack.c.h.b16 %v7295
    %v8553 = vunpack.c.l.b16 %v7296
    %v8554 = vunpack.c.h.b16 %v7296
    %v8555 = vunpack.c.l.b16 %v7297
    %v8556 = vunpack.c.h.b16 %v7297
    %v8557 = vunpack.c.l.b16 %v7298
    %v8558 = vunpack.c.h.b16 %v7298
    %v8559 = vunpack.c.l.b16 %v7299
    %v8560 = vunpack.c.h.b16 %v7299
    %v8561 = vunpack.c.l.b16 %v7300
    %v8562 = vunpack.c.h.b16 %v7300
    %v8563 = vunpack.c.l.b16 %v7301
    %v8564 = vunpack.c.h.b16 %v7301
    %v8565 = vunpack.c.l.b16 %v7302
    %v8566 = vunpack.c.h.b16 %v7302
    %v8567 = vunpack.c.l.b16 %v7303
    %v8568 = vunpack.c.h.b16 %v7303
    %v8569 = vunpack.c.l.b16 %v7304
    %v8570 = vunpack.c.h.b16 %v7304
    %v8571 = vunpack.c.l.b16 %v7305
    %v8572 = vunpack.c.h.b16 %v7305
    %v8573 = vunpack.c.l.b16 %v7306
    %v8574 = vunpack.c.h.b16 %v7306
    %v8575 = vunpack.c.l.b16 %v7307
    %v8576 = vunpack.c.h.b16 %v7307
    %v8577 = vunpack.c.l.b16 %v7308
    %v8578 = vunpack.c.h.b16 %v7308
    %v8579 = vunpack.c.l.b16 %v7309
    %v8580 = vunpack.c.h.b16 %v7309
    %v8581 = vunpack.c.l.b16 %v7310
    %v8582 = vunpack.c.h.b16 %v7310
    %v8583 = vunpack.c.l.b16 %v7311
    %v8584 = vunpack.c.h.b16 %v7311
    %v8585 = vunpack.c.l.b16 %v7312
    %v8586 = vunpack.c.h.b16 %v7312
    %v8587 = vunpack.c.l.b16 %v7313
    %v8588 = vunpack.c.h.b16 %v7313
    %v8589 = vunpack.c.l.b16 %v7314
    %v8590 = vunpack.c.h.b16 %v7314
    %v8591 = vunpack.c.l.b16 %v7315
    %v8592 = vunpack.c.h.b16 %v7315
    %v8593 = vunpack.c.l.b16 %v7316
    %v8594 = vunpack.c.h.b16 %v7316
    %v8595 = vunpack.c.l.b16 %v7317
    %v8596 = vunpack.c.h.b16 %v7317
    %v8597 = vunpack.c.l.b16 %v7318
    %v8598 = vunpack.c.h.b16 %v7318
    %v8599 = vunpack.c.l.b16 %v7319
    %v8600 = vunpack.c.h.b16 %v7319
    %v8601 = vunpack.c.l.b16 %v7320
    %v8602 = vunpack.c.h.b16 %v7320
    %v8603 = vunpack.c.l.b16 %v7321
    %v8604 = vunpack.c.h.b16 %v7321
    %v8605 = vunpack.c.l.b16 %v7322
    %v8606 = vunpack.c.h.b16 %v7322
    %v8607 = vunpack.c.l.b16 %v7323
    %v8608 = vunpack.c.h.b16 %v7323
    %v8609 = vunpack.c.l.b16 %v7324
    %v8610 = vunpack.c.h.b16 %v7324
    %v8611 = vunpack.c.l.b16 %v7325
    %v8612 = vunpack.c.h.b16 %v7325
    %v8613 = vunpack.c.l.b16 %v7326
    %v8614 = vunpack.c.h.b16 %v7326
    %v8615 = vunpack.c.l.b16 %v7327
    %v8616 = vunpack.c.h.b16 %v7327
    %v8617 = vunpack.c.l.b16 %v7328
    %v8618 = vunpack.c.h.b16 %v7328
    %v8619 = vunpack.c.l.b16 %v7329
    %v8620 = vunpack.c.h.b16 %v7329
    %v8621 = vunpack.c.l.b16 %v7330
    %v8622 = vunpack.c.h.b16 %v7330
    %v8623 = vunpack.c.l.b16 %v7331
    %v8624 = vunpack.c.h.b16 %v7331
    %v8625 = vunpack.c.l.b16 %v7332
    %v8626 = vunpack.c.h.b16 %v7332
    %v8627 = vunpack.c.l.b16 %v7333
    %v8628 = vunpack.c.h.b16 %v7333
    %v8629 = vunpack.c.l.b16 %v7334
    %v8630 = vunpack.c.h.b16 %v7334
    %v8631 = vunpack.c.l.b16 %v7335
    %v8632 = vunpack.c.h.b16 %v7335
    %v8633 = vunpack.c.l.b16 %v7336
    %v8634 = vunpack.c.h.b16 %v7336
    %v8635 = vunpack.c.l.b16 %v7337
    %v8636 = vunpack.c.h.b16 %v7337
    %v8637 = vunpack.c.l.b16 %v7338
    %v8638 = vunpack.c.h.b16 %v7338
    %v8639 = vunpack.c.l.b16 %v7339
    %v8640 = vunpack.c.h.b16 %v7339
    %v8641 = vunpack.c.l.b16 %v7340
    %v8642 = vunpack.c.h.b16 %v7340
    %v8643 = vunpack.c.l.b16 %v7341
    %v8644 = vunpack.c.h.b16 %v7341
    %v8645 = vunpack.c.l.b16 %v7342
    %v8646 = vunpack.c.h.b16 %v7342
    %v8647 = vunpack.c.l.b16 %v7343
    %v8648 = vunpack.c.h.b16 %v7343
    %v8649 = vunpack.c.l.b16 %v7344
    %v8650 = vunpack.c.h.b16 %v7344
    %v8651 = vunpack.c.l.b16 %v7345
    %v8652 = vunpack.c.h.b16 %v7345
    %v8653 = vunpack.c.l.b16 %v7346
    %v8654 = vunpack.c.h.b16 %v7346
    %v8655 = vunpack.c.l.b16 %v7347
    %v8656 = vunpack.c.h.b16 %v7347
    %v8657 = vunpack.c.l.b16 %v7348
    %v8658 = vunpack.c.h.b16 %v7348
    %v8659 = vunpack.c.l.b16 %v7349
    %v8660 = vunpack.c.h.b16 %v7349
    %v8661 = vunpack.c.l.b16 %v7350
    %v8662 = vunpack.c.h.b16 %v7350
    %v8663 = vunpack.c.l.b16 %v7351
    %v8664 = vunpack.c.h.b16 %v7351
    %v8665 = vunpack.c.l.b16 %v7352
    %v8666 = vunpack.c.h.b16 %v7352
    %v8667 = vunpack.c.l.b16 %v7353
    %v8668 = vunpack.c.h.b16 %v7353
    %v8669 = vunpack.c.l.b16 %v7354
    %v8670 = vunpack.c.h.b16 %v7354
    %v8671 = vunpack.c.l.b16 %v7355
    %v8672 = vunpack.c.h.b16 %v7355
    %v8673 = vunpack.c.l.b16 %v7356
    %v8674 = vunpack.c.h.b16 %v7356
    %v8675 = vunpack.c.l.b16 %v7357
    %v8676 = vunpack.c.h.b16 %v7357
    %v8677 = vunpack.c.l.b16 %v7358
    %v8678 = vunpack.c.h.b16 %v7358
    %v8679 = vunpack.c.l.b16 %v7359
    %v8680 = vunpack.c.h.b16 %v7359
    %v8681 = vunpack.c.l.b16 %v7360
    %v8682 = vunpack.c.h.b16 %v7360
    %v8683 = vunpack.c.l.b16 %v7361
    %v8684 = vunpack.c.h.b16 %v7361
    %v8685 = vunpack.c.l.b16 %v7362
    %v8686 = vunpack.c.h.b16 %v7362
    %v8687 = vunpack.c.l.b16 %v7363
    %v8688 = vunpack.c.h.b16 %v7363
    %v8689 = vunpack.c.l.b16 %v7364
    %v8690 = vunpack.c.h.b16 %v7364
    %v8691 = vunpack.c.l.b16 %v7365
    %v8692 = vunpack.c.h.b16 %v7365
    %v8693 = vunpack.c.l.b16 %v7366
    %v8694 = vunpack.c.h.b16 %v7366
    %v8695 = vunpack.c.l.b16 %v7367
    %v8696 = vunpack.c.h.b16 %v7367
    %v8697 = vunpack.c.l.b16 %v7368
    %v8698 = vunpack.c.h.b16 %v7368
    %v8699 = vunpack.c.l.b16 %v7369
    %v8700 = vunpack.c.h.b16 %v7369
    %v8701 = vunpack.c.l.b16 %v7370
    %v8702 = vunpack.c.h.b16 %v7370
    %v8703 = vunpack.c.l.b16 %v7371
    %v8704 = vunpack.c.h.b16 %v7371
    %v8705 = vunpack.c.l.b16 %v7372
    %v8706 = vunpack.c.h.b16 %v7372
    %v8707 = vunpack.c.l.b16 %v7373
    %v8708 = vunpack.c.h.b16 %v7373
    %v8709 = vunpack.c.l.b16 %v7374
    %v8710 = vunpack.c.h.b16 %v7374
    %v8711 = vunpack.c.l.b16 %v7375
    %v8712 = vunpack.c.h.b16 %v7375
    %v8713 = vunpack.c.l.b16 %v7376
    %v8714 = vunpack.c.h.b16 %v7376
    %v8715 = vunpack.c.l.b16 %v7377
    %v8716 = vunpack.c.h.b16 %v7377
    %v8717 = vunpack.c.l.b16 %v7378
    %v8718 = vunpack.c.h.b16 %v7378
    %v8719 = vunpack.c.l.b16 %v7379
    %v8720 = vunpack.c.h.b16 %v7379
    %v8721 = vunpack.c.l.b16 %v7380
    %v8722 = vunpack.c.h.b16 %v7380
    %v8723 = vunpack.c.l.b16 %v7381
    %v8724 = vunpack.c.h.b16 %v7381
    %v8725 = vunpack.c.l.b16 %v7382
    %v8726 = vunpack.c.h.b16 %v7382
    %v8727 = vunpack.c.l.b16 %v7383
    %v8728 = vunpack.c.h.b16 %v7383
    %v8729 = vunpack.c.l.b16 %v7384
    %v8730 = vunpack.c.h.b16 %v7384
    %v8731 = vunpack.c.l.b16 %v7385
    %v8732 = vunpack.c.h.b16 %v7385
    %v8733 = vunpack.c.l.b16 %v7386
    %v8734 = vunpack.c.h.b16 %v7386
    %v8735 = vunpack.c.l.b16 %v7387
    %v8736 = vunpack.c.h.b16 %v7387
    %v8737 = vunpack.c.l.b16 %v7388
    %v8738 = vunpack.c.h.b16 %v7388
    %v8739 = vunpack.c.l.b16 %v7389
    %v8740 = vunpack.c.h.b16 %v7389
    %v8741 = vunpack.c.l.b16 %v7390
    %v8742 = vunpack.c.h.b16 %v7390
    %v8743 = vunpack.c.l.b16 %v7391
    %v8744 = vunpack.c.h.b16 %v7391
    %v8745 = vunpack.c.l.b16 %v7392
    %v8746 = vunpack.c.h.b16 %v7392
    %v8747 = vunpack.c.l.b16 %v7393
    %v8748 = vunpack.c.h.b16 %v7393
    %v8749 = vunpack.c.l.b16 %v7394
    %v8750 = vunpack.c.h.b16 %v7394
    %v8751 = vunpack.c.l.b16 %v7395
    %v8752 = vunpack.c.h.b16 %v7395
    %v8753 = vunpack.c.l.b16 %v7396
    %v8754 = vunpack.c.h.b16 %v7396
    %v8755 = vunpack.c.l.b16 %v7397
    %v8756 = vunpack.c.h.b16 %v7397
    %v8757 = vunpack.c.l.b16 %v7398
    %v8758 = vunpack.c.h.b16 %v7398
    %v8759 = vunpack.c.l.b16 %v7399
    %v8760 = vunpack.c.h.b16 %v7399
    %v8761 = vunpack.c.l.b16 %v7400
    %v8762 = vunpack.c.h.b16 %v7400
    %v8763 = vunpack.c.l.b16 %v7401
    %v8764 = vunpack.c.h.b16 %v7401
    %v8765 = vunpack.c.l.b16 %v7402
    %v8766 = vunpack.c.h.b16 %v7402
    %v8767 = vunpack.c.l.b16 %v7403
    %v8768 = vunpack.c.h.b16 %v7403
    %v8769 = vunpack.c.l.b16 %v7404
    %v8770 = vunpack.c.h.b16 %v7404
    %v8771 = vunpack.c.l.b16 %v7405
    %v8772 = vunpack.c.h.b16 %v7405
    %v8773 = vunpack.c.l.b16 %v7406
    %v8774 = vunpack.c.h.b16 %v7406
    %v8775 = vunpack.c.l.b16 %v7407
    %v8776 = vunpack.c.h.b16 %v7407
    %v8777 = vunpack.c.l.b16 %v7408
    %v8778 = vunpack.c.h.b16 %v7408
    %v8779 = vunpack.c.l.b16 %v7409
    %v8780 = vunpack.c.h.b16 %v7409
    %v8781 = vunpack.c.l.b16 %v7410
    %v8782 = vunpack.c.h.b16 %v7410
    %v8783 = vunpack.c.l.b16 %v7411
    %v8784 = vunpack.c.h.b16 %v7411
    %v8785 = vunpack.c.l.b16 %v7412
    %v8786 = vunpack.c.h.b16 %v7412
    %v8787 = vunpack.c.l.b16 %v7413
    %v8788 = vunpack.c.h.b16 %v7413
    %v8789 = vunpack.c.l.b16 %v7414
    %v8790 = vunpack.c.h.b16 %v7414
    %v8791 = vunpack.c.l.b16 %v7415
    %v8792 = vunpack.c.h.b16 %v7415
    %v8793 = vunpack.c.l.b16 %v7416
    %v8794 = vunpack.c.h.b16 %v7416
    %v8795 = vunpack.c.l.b16 %v7417
    %v8796 = vunpack.c.h.b16 %v7417
    %v8797 = vunpack.c.l.b16 %v7418
    %v8798 = vunpack.c.h.b16 %v7418
    %v8799 = vunpack.c.l.b16 %v7419
    %v8800 = vunpack.c.h.b16 %v7419
    %v8801 = vunpack.c.l.b16 %v7420
    %v8802 = vunpack.c.h.b16 %v7420
    %v8803 = vunpack.c.l.b16 %v7421
    %v8804 = vunpack.c.h.b16 %v7421
    %v8805 = vunpack.c.l.b16 %v7422
    %v8806 = vunpack.c.h.b16 %v7422
    %v8807 = vunpack.c.l.b16 %v7423
    %v8808 = vunpack.c.h.b16 %v7423
    %v8809 = vunpack.c.l.b16 %v7424
    %v8810 = vunpack.c.h.b16 %v7424
    %v8811 = vunpack.c.l.b16 %v7425
    %v8812 = vunpack.c.h.b16 %v7425
    %v8813 = vunpack.c.l.b16 %v7426
    %v8814 = vunpack.c.h.b16 %v7426
    %v8815 = vunpack.c.l.b16 %v7427
    %v8816 = vunpack.c.h.b16 %v7427
    %v8817 = vunpack.c.l.b16 %v7428
    %v8818 = vunpack.c.h.b16 %v7428
    %v8819 = vunpack.c.l.b16 %v7429
    %v8820 = vunpack.c.h.b16 %v7429
    %v8821 = vunpack.c.l.b16 %v7430
    %v8822 = vunpack.c.h.b16 %v7430
    %v8823 = vpack.c.b16 %v8059, %v8055
    %v8824 = vpack.c.b16 %v8060, %v8056
    %v8825 = vpack.c.b16 %v8061, %v8057
    %v8826 = vpack.c.b16 %v8062, %v8058
    %v8827 = vpack.c.b16 %v8067, %v8063
    %v8828 = vpack.c.b16 %v8068, %v8064
    %v8829 = vpack.c.b16 %v8069, %v8065
    %v8830 = vpack.c.b16 %v8070, %v8066
    %v8831 = vpack.c.b16 %v8075, %v8071
    %v8832 = vpack.c.b16 %v8076, %v8072
    %v8833 = vpack.c.b16 %v8077, %v8073
    %v8834 = vpack.c.b16 %v8078, %v8074
    %v8835 = vpack.c.b16 %v8083, %v8079
    %v8836 = vpack.c.b16 %v8084, %v8080
    %v8837 = vpack.c.b16 %v8085, %v8081
    %v8838 = vpack.c.b16 %v8086, %v8082
    %v8839 = vpack.c.b16 %v8091, %v8087
    %v8840 = vpack.c.b16 %v8092, %v8088
    %v8841 = vpack.c.b16 %v8093, %v8089
    %v8842 = vpack.c.b16 %v8094, %v8090
    %v8843 = vpack.c.b16 %v8099, %v8095
    %v8844 = vpack.c.b16 %v8100, %v8096
    %v8845 = vpack.c.b16 %v8101, %v8097
    %v8846 = vpack.c.b16 %v8102, %v8098
    %v8847 = vpack.c.b16 %v8107, %v8103
    %v8848 = vpack.c.b16 %v8108, %v8104
    %v8849 = vpack.c.b16 %v8109, %v8105
    %v8850 = vpack.c.b16 %v8110, %v8106
    %v8851 = vpack.c.b16 %v8115, %v8111
    %v8852 = vpack.c.b16 %v8116, %v8112
    %v8853 = vpack.c.b16 %v8117, %v8113
    %v8854 = vpack.c.b16 %v8118, %v8114
    %v8855 = vpack.c.b16 %v8123, %v8119
    %v8856 = vpack.c.b16 %v8124, %v8120
    %v8857 = vpack.c.b16 %v8125, %v8121
    %v8858 = vpack.c.b16 %v8126, %v8122
    %v8859 = vpack.c.b16 %v8131, %v8127
    %v8860 = vpack.c.b16 %v8132, %v8128
    %v8861 = vpack.c.b16 %v8133, %v8129
    %v8862 = vpack.c.b16 %v8134, %v8130
    %v8863 = vpack.c.b16 %v8139, %v8135
    %v8864 = vpack.c.b16 %v8140, %v8136
    %v8865 = vpack.c.b16 %v8141, %v8137
    %v8866 = vpack.c.b16 %v8142, %v8138
    %v8867 = vpack.c.b16 %v8147, %v8143
    %v8868 = vpack.c.b16 %v8148, %v8144
    %v8869 = vpack.c.b16 %v8149, %v8145
    %v8870 = vpack.c.b16 %v8150, %v8146
    %v8871 = vpack.c.b16 %v8155, %v8151
    %v8872 = vpack.c.b16 %v8156, %v8152
    %v8873 = vpack.c.b16 %v8157, %v8153
    %v8874 = vpack.c.b16 %v8158, %v8154
    %v8875 = vpack.c.b16 %v8163, %v8159
    %v8876 = vpack.c.b16 %v8164, %v8160
    %v8877 = vpack.c.b16 %v8165, %v8161
    %v8878 = vpack.c.b16 %v8166, %v8162
    %v8879 = vpack.c.b16 %v8171, %v8167
    %v8880 = vpack.c.b16 %v8172, %v8168
    %v8881 = vpack.c.b16 %v8173, %v8169
    %v8882 = vpack.c.b16 %v8174, %v8170
    %v8883 = vpack.c.b16 %v8179, %v8175
    %v8884 = vpack.c.b16 %v8180, %v8176
    %v8885 = vpack.c.b16 %v8181, %v8177
    %v8886 = vpack.c.b16 %v8182, %v8178
    %v8887 = vpack.c.b16 %v8187, %v8183
    %v8888 = vpack.c.b16 %v8188, %v8184
    %v8889 = vpack.c.b16 %v8189, %v8185
    %v8890 = vpack.c.b16 %v8190, %v8186
    %v8891 = vpack.c.b16 %v8195, %v8191
    %v8892 = vpack.c.b16 %v8196, %v8192
    %v8893 = vpack.c.b16 %v8197, %v8193
    %v8894 = vpack.c.b16 %v8198, %v8194
    %v8895 = vpack.c.b16 %v8203, %v8199
    %v8896 = vpack.c.b16 %v8204, %v8200
    %v8897 = vpack.c.b16 %v8205, %v8201
    %v8898 = vpack.c.b16 %v8206, %v8202
    %v8899 = vpack.c.b16 %v8211, %v8207
    %v8900 = vpack.c.b16 %v8212, %v8208
    %v8901 = vpack.c.b16 %v8213, %v8209
    %v8902 = vpack.c.b16 %v8214, %v8210
    %v8903 = vpack.c.b16 %v8219, %v8215
    %v8904 = vpack.c.b16 %v8220, %v8216
    %v8905 = vpack.c.b16 %v8221, %v8217
    %v8906 = vpack.c.b16 %v8222, %v8218
    %v8907 = vpack.c.b16 %v8227, %v8223
    %v8908 = vpack.c.b16 %v8228, %v8224
    %v8909 = vpack.c.b16 %v8229, %v8225
    %v8910 = vpack.c.b16 %v8230, %v8226
    %v8911 = vpack.c.b16 %v8235, %v8231
    %v8912 = vpack.c.b16 %v8236, %v8232
    %v8913 = vpack.c.b16 %v8237, %v8233
    %v8914 = vpack.c.b16 %v8238, %v8234
    %v8915 = vpack.c.b16 %v8243, %v8239
    %v8916 = vpack.c.b16 %v8244, %v8240
    %v8917 = vpack.c.b16 %v8245, %v8241
    %v8918 = vpack.c.b16 %v8246, %v8242
    %v8919 = vpack.c.b16 %v8251, %v8247
    %v8920 = vpack.c.b16 %v8252, %v8248
    %v8921 = vpack.c.b16 %v8253, %v8249
    %v8922 = vpack.c.b16 %v8254, %v8250
    %v8923 = vpack.c.b16 %v8259, %v8255
    %v8924 = vpack.c.b16 %v8260, %v8256
    %v8925 = vpack.c.b16 %v8261, %v8257
    %v8926 = vpack.c.b16 %v8262, %v8258
    %v8927 = vpack.c.b16 %v8267, %v8263
    %v8928 = vpack.c.b16 %v8268, %v8264
    %v8929 = vpack.c.b16 %v8269, %v8265
    %v8930 = vpack.c.b16 %v8270, %v8266
    %v8931 = vpack.c.b16 %v8275, %v8271
    %v8932 = vpack.c.b16 %v8276, %v8272
    %v8933 = vpack.c.b16 %v8277, %v8273
    %v8934 = vpack.c.b16 %v8278, %v8274
    %v8935 = vpack.c.b16 %v8283, %v8279
    %v8936 = vpack.c.b16 %v8284, %v8280
    %v8937 = vpack.c.b16 %v8285, %v8281
    %v8938 = vpack.c.b16 %v8286, %v8282
    %v8939 = vpack.c.b16 %v8291, %v8287
    %v8940 = vpack.c.b16 %v8292, %v8288
    %v8941 = vpack.c.b16 %v8293, %v8289
    %v8942 = vpack.c.b16 %v8294, %v8290
    %v8943 = vpack.c.b16 %v8299, %v8295
    %v8944 = vpack.c.b16 %v8300, %v8296
    %v8945 = vpack.c.b16 %v8301, %v8297
    %v8946 = vpack.c.b16 %v8302, %v8298
    %v8947 = vpack.c.b16 %v8307, %v8303
    %v8948 = vpack.c.b16 %v8308, %v8304
    %v8949 = vpack.c.b16 %v8309, %v8305
    %v8950 = vpack.c.b16 %v8310, %v8306
    %v8951 = vpack.c.b16 %v8315, %v8311
    %v8952 = vpack.c.b16 %v8316, %v8312
    %v8953 = vpack.c.b16 %v8317, %v8313
    %v8954 = vpack.c.b16 %v8318, %v8314
    %v8955 = vpack.c.b16 %v8323, %v8319
    %v8956 = vpack.c.b16 %v8324, %v8320
    %v8957 = vpack.c.b16 %v8325, %v8321
    %v8958 = vpack.c.b16 %v8326, %v8322
    %v8959 = vpack.c.b16 %v8331, %v8327
    %v8960 = vpack.c.b16 %v8332, %v8328
    %v8961 = vpack.c.b16 %v8333, %v8329
    %v8962 = vpack.c.b16 %v8334, %v8330
    %v8963 = vpack.c.b16 %v8339, %v8335
    %v8964 = vpack.c.b16 %v8340, %v8336
    %v8965 = vpack.c.b16 %v8341, %v8337
    %v8966 = vpack.c.b16 %v8342, %v8338
    %v8967 = vpack.c.b16 %v8347, %v8343
    %v8968 = vpack.c.b16 %v8348, %v8344
    %v8969 = vpack.c.b16 %v8349, %v8345
    %v8970 = vpack.c.b16 %v8350, %v8346
    %v8971 = vpack.c.b16 %v8355, %v8351
    %v8972 = vpack.c.b16 %v8356, %v8352
    %v8973 = vpack.c.b16 %v8357, %v8353
    %v8974 = vpack.c.b16 %v8358, %v8354
    %v8975 = vpack.c.b16 %v8363, %v8359
    %v8976 = vpack.c.b16 %v8364, %v8360
    %v8977 = vpack.c.b16 %v8365, %v8361
    %v8978 = vpack.c.b16 %v8366, %v8362
    %v8979 = vpack.c.b16 %v8371, %v8367
    %v8980 = vpack.c.b16 %v8372, %v8368
    %v8981 = vpack.c.b16 %v8373, %v8369
    %v8982 = vpack.c.b16 %v8374, %v8370
    %v8983 = vpack.c.b16 %v8379, %v8375
    %v8984 = vpack.c.b16 %v8380, %v8376
    %v8985 = vpack.c.b16 %v8381, %v8377
    %v8986 = vpack.c.b16 %v8382, %v8378
    %v8987 = vpack.c.b16 %v8387, %v8383
    %v8988 = vpack.c.b16 %v8388, %v8384
    %v8989 = vpack.c.b16 %v8389, %v8385
    %v8990 = vpack.c.b16 %v8390, %v8386
    %v8991 = vpack.c.b16 %v8395, %v8391
    %v8992 = vpack.c.b16 %v8396, %v8392
    %v8993 = vpack.c.b16 %v8397, %v8393
    %v8994 = vpack.c.b16 %v8398, %v8394
    %v8995 = vpack.c.b16 %v8403, %v8399
    %v8996 = vpack.c.b16 %v8404, %v8400
    %v8997 = vpack.c.b16 %v8405, %v8401
    %v8998 = vpack.c.b16 %v8406, %v8402
    %v8999 = vpack.c.b16 %v8411, %v8407
    %v9000 = vpack.c.b16 %v8412, %v8408
    %v9001 = vpack.c.b16 %v8413, %v8409
    %v9002 = vpack.c.b16 %v8414, %v8410
    %v9003 = vpack.c.b16 %v8419, %v8415
    %v9004 = vpack.c.b16 %v8420, %v8416
    %v9005 = vpack.c.b16 %v8421, %v8417
    %v9006 = vpack.c.b16 %v8422, %v8418
    %v9007 = vpack.c.b16 %v8427, %v8423
    %v9008 = vpack.c.b16 %v8428, %v8424
    %v9009 = vpack.c.b16 %v8429, %v8425
    %v9010 = vpack.c.b16 %v8430, %v8426
    %v9011 = vpack.c.b16 %v8435, %v8431
    %v9012 = vpack.c.b16 %v8436, %v8432
    %v9013 = vpack.c.b16 %v8437, %v8433
    %v9014 = vpack.c.b16 %v8438, %v8434
    %v9015 = vpack.c.b16 %v8443, %v8439
    %v9016 = vpack.c.b16 %v8444, %v8440
    %v9017 = vpack.c.b16 %v8445, %v8441
    %v9018 = vpack.c.b16 %v8446, %v8442
    %v9019 = vpack.c.b16 %v8451, %v8447
    %v9020 = vpack.c.b16 %v8452, %v8448
    %v9021 = vpack.c.b16 %v8453, %v8449
    %v9022 = vpack.c.b16 %v8454, %v8450
    %v9023 = vpack.c.b16 %v8459, %v8455
    %v9024 = vpack.c.b16 %v8460, %v8456
    %v9025 = vpack.c.b16 %v8461, %v8457
    %v9026 = vpack.c.b16 %v8462, %v8458
    %v9027 = vpack.c.b16 %v8467, %v8463
    %v9028 = vpack.c.b16 %v8468, %v8464
    %v9029 = vpack.c.b16 %v8469, %v8465
    %v9030 = vpack.c.b16 %v8470, %v8466
    %v9031 = vpack.c.b16 %v8475, %v8471
    %v9032 = vpack.c.b16 %v8476, %v8472
    %v9033 = vpack.c.b16 %v8477, %v8473
    %v9034 = vpack.c.b16 %v8478, %v8474
    %v9035 = vpack.c.b16 %v8483, %v8479
    %v9036 = vpack.c.b16 %v8484, %v8480
    %v9037 = vpack.c.b16 %v8485, %v8481
    %v9038 = vpack.c.b16 %v8486, %v8482
    %v9039 = vpack.c.b16 %v8491, %v8487
    %v9040 = vpack.c.b16 %v8492, %v8488
    %v9041 = vpack.c.b16 %v8493, %v8489
    %v9042 = vpack.c.b16 %v8494, %v8490
    %v9043 = vpack.c.b16 %v8499, %v8495
    %v9044 = vpack.c.b16 %v8500, %v8496
    %v9045 = vpack.c.b16 %v8501, %v8497
    %v9046 = vpack.c.b16 %v8502, %v8498
    %v9047 = vpack.c.b16 %v8507, %v8503
    %v9048 = vpack.c.b16 %v8508, %v8504
    %v9049 = vpack.c.b16 %v8509, %v8505
    %v9050 = vpack.c.b16 %v8510, %v8506
    %v9051 = vpack.c.b16 %v8515, %v8511
    %v9052 = vpack.c.b16 %v8516, %v8512
    %v9053 = vpack.c.b16 %v8517, %v8513
    %v9054 = vpack.c.b16 %v8518, %v8514
    %v9055 = vpack.c.b16 %v8523, %v8519
    %v9056 = vpack.c.b16 %v8524, %v8520
    %v9057 = vpack.c.b16 %v8525, %v8521
    %v9058 = vpack.c.b16 %v8526, %v8522
    %v9059 = vpack.c.b16 %v8531, %v8527
    %v9060 = vpack.c.b16 %v8532, %v8528
    %v9061 = vpack.c.b16 %v8533, %v8529
    %v9062 = vpack.c.b16 %v8534, %v8530
    %v9063 = vpack.c.b16 %v8539, %v8535
    %v9064 = vpack.c.b16 %v8540, %v8536
    %v9065 = vpack.c.b16 %v8541, %v8537
    %v9066 = vpack.c.b16 %v8542, %v8538
    %v9067 = vpack.c.b16 %v8547, %v8543
    %v9068 = vpack.c.b16 %v8548, %v8544
    %v9069 = vpack.c.b16 %v8549, %v8545
    %v9070 = vpack.c.b16 %v8550, %v8546
    %v9071 = vpack.c.b16 %v8555, %v8551
    %v9072 = vpack.c.b16 %v8556, %v8552
    %v9073 = vpack.c.b16 %v8557, %v8553
    %v9074 = vpack.c.b16 %v8558, %v8554
    %v9075 = vpack.c.b16 %v8563, %v8559
    %v9076 = vpack.c.b16 %v8564, %v8560
    %v9077 = vpack.c.b16 %v8565, %v8561
    %v9078 = vpack.c.b16 %v8566, %v8562
    %v9079 = vpack.c.b16 %v8571, %v8567
    %v9080 = vpack.c.b16 %v8572, %v8568
    %v9081 = vpack.c.b16 %v8573, %v8569
    %v9082 = vpack.c.b16 %v8574, %v8570
    %v9083 = vpack.c.b16 %v8579, %v8575
    %v9084 = vpack.c.b16 %v8580, %v8576
    %v9085 = vpack.c.b16 %v8581, %v8577
    %v9086 = vpack.c.b16 %v8582, %v8578
    %v9087 = vpack.c.b16 %v8587, %v8583
    %v9088 = vpack.c.b16 %v8588, %v8584
    %v9089 = vpack.c.b16 %v8589, %v8585
    %v9090 = vpack.c.b16 %v8590, %v8586
    %v9091 = vpack.c.b16 %v8595, %v8591
    %v9092 = vpack.c.b16 %v8596, %v8592
    %v9093 = vpack.c.b16 %v8597, %v8593
    %v9094 = vpack.c.b16 %v8598, %v8594
    %v9095 = vpack.c.b16 %v8603, %v8599
    %v9096 = vpack.c.b16 %v8604, %v8600
    %v9097 = vpack.c.b16 %v8605, %v8601
    %v9098 = vpack.c.b16 %v8606, %v8602
    %v9099 = vpack.c.b16 %v8611, %v8607
    %v9100 = vpack.c.b16 %v8612, %v8608
    %v9101 = vpack.c.b16 %v8613, %v8609
    %v9102 = vpack.c.b16 %v8614, %v8610
    %v9103 = vpack.c.b16 %v8619, %v8615
    %v9104 = vpack.c.b16 %v8620, %v8616
    %v9105 = vpack.c.b16 %v8621, %v8617
    %v9106 = vpack.c.b16 %v8622, %v8618
    %v9107 = vpack.c.b16 %v8627, %v8623
    %v9108 = vpack.c.b16 %v8628, %v8624
    %v9109 = vpack.c.b16 %v8629, %v8625
    %v9110 = vpack.c.b16 %v8630, %v8626
    %v9111 = vpack.c.b16 %v8635, %v8631
    %v9112 = vpack.c.b16 %v8636, %v8632
    %v9113 = vpack.c.b16 %v8637, %v8633
    %v9114 = vpack.c.b16 %v8638, %v8634
    %v9115 = vpack.c.b16 %v8643, %v8639
    %v9116 = vpack.c.b16 %v8644, %v8640
    %v9117 = vpack.c.b16 %v8645, %v8641
    %v9118 = vpack.c.b16 %v8646, %v8642
    %v9119 = vpack.c.b16 %v8651, %v8647
    %v9120 = vpack.c.b16 %v8652, %v8648
    %v9121 = vpack.c.b16 %v8653, %v8649
    %v9122 = vpack.c.b16 %v8654, %v8650
    %v9123 = vpack.c.b16 %v8659, %v8655
    %v9124 = vpack.c.b16 %v8660, %v8656
    %v9125 = vpack.c.b16 %v8661, %v8657
    %v9126 = vpack.c.b16 %v8662, %v8658
    %v9127 = vpack.c.b16 %v8667, %v8663
    %v9128 = vpack.c.b16 %v8668, %v8664
    %v9129 = vpack.c.b16 %v8669, %v8665
    %v9130 = vpack.c.b16 %v8670, %v8666
    %v9131 = vpack.c.b16 %v8675, %v8671
    %v9132 = vpack.c.b16 %v8676, %v8672
    %v9133 = vpack.c.b16 %v8677, %v8673
    %v9134 = vpack.c.b16 %v8678, %v8674
    %v9135 = vpack.c.b16 %v8683, %v8679
    %v9136 = vpack.c.b16 %v8684, %v8680
    %v9137 = vpack.c.b16 %v8685, %v8681
    %v9138 = vpack.c.b16 %v8686, %v8682
    %v9139 = vpack.c.b16 %v8691, %v8687
    %v9140 = vpack.c.b16 %v8692, %v8688
    %v9141 = vpack.c.b16 %v8693, %v8689
    %v9142 = vpack.c.b16 %v8694, %v8690
    %v9143 = vpack.c.b16 %v8699, %v8695
    %v9144 = vpack.c.b16 %v8700, %v8696
    %v9145 = vpack.c.b16 %v8701, %v8697
    %v9146 = vpack.c.b16 %v8702, %v8698
    %v9147 = vpack.c.b16 %v8707, %v8703
    %v9148 = vpack.c.b16 %v8708, %v8704
    %v9149 = vpack.c.b16 %v8709, %v8705
    %v9150 = vpack.c.b16 %v8710, %v8706
    %v9151 = vpack.c.b16 %v8715, %v8711
    %v9152 = vpack.c.b16 %v8716, %v8712
    %v9153 = vpack.c.b16 %v8717, %v8713
    %v9154 = vpack.c.b16 %v8718, %v8714
    %v9155 = vpack.c.b16 %v8723, %v8719
    %v9156 = vpack.c.b16 %v8724, %v8720
    %v9157 = vpack.c.b16 %v8725, %v8721
    %v9158 = vpack.c.b16 %v8726, %v8722
    %v9159 = vpack.c.b16 %v8731, %v8727
    %v9160 = vpack.c.b16 %v8732, %v8728
    %v9161 = vpack.c.b16 %v8733, %v8729
    %v9162 = vpack.c.b16 %v8734, %v8730
    %v9163 = vpack.c.b16 %v8739, %v8735
    %v9164 = vpack.c.b16 %v8740, %v8736
    %v9165 = vpack.c.b16 %v8741, %v8737
    %v9166 = vpack.c.b16 %v8742, %v8738
    %v9167 = vpack.c.b16 %v8747, %v8743
    %v9168 = vpack.c.b16 %v8748, %v8744
    %v9169 = vpack.c.b16 %v8749, %v8745
    %v9170 = vpack.c.b16 %v8750, %v8746
    %v9171 = vpack.c.b16 %v8755, %v8751
    %v9172 = vpack.c.b16 %v8756, %v8752
    %v9173 = vpack.c.b16 %v8757, %v8753
    %v9174 = vpack.c.b16 %v8758, %v8754
    %v9175 = vpack.c.b16 %v8763, %v8759
    %v9176 = vpack.c.b16 %v8764, %v8760
    %v9177 = vpack.c.b16 %v8765, %v8761
    %v9178 = vpack.c.b16 %v8766, %v8762
    %v9179 = vpack.c.b16 %v8771, %v8767
    %v9180 = vpack.c.b16 %v8772, %v8768
    %v9181 = vpack.c.b16 %v8773, %v8769
    %v9182 = vpack.c.b16 %v8774, %v8770
    %v9183 = vpack.c.b16 %v8779, %v8775
    %v9184 = vpack.c.b16 %v8780, %v8776
    %v9185 = vpack.c.b16 %v8781, %v8777
    %v9186 = vpack.c.b16 %v8782, %v8778
    %v9187 = vpack.c.b16 %v8787, %v8783
    %v9188 = vpack.c.b16 %v8788, %v8784
    %v9189 = vpack.c.b16 %v8789, %v8785
    %v9190 = vpack.c.b16 %v8790, %v8786
    %v9191 = vpack.c.b16 %v8795, %v8791
    %v9192 = vpack.c.b16 %v8796, %v8792
    %v9193 = vpack.c.b16 %v8797, %v8793
    %v9194 = vpack.c.b16 %v8798, %v8794
    %v9195 = vpack.c.b16 %v8803, %v8799
    %v9196 = vpack.c.b16 %v8804, %v8800
    %v9197 = vpack.c.b16 %v8805, %v8801
    %v9198 = vpack.c.b16 %v8806, %v8802
    %v9199 = vpack.c.b16 %v8811, %v8807
    %v9200 = vpack.c.b16 %v8812, %v8808
    %v9201 = vpack.c.b16 %v8813, %v8809
    %v9202 = vpack.c.b16 %v8814, %v8810
    %v9203 = vpack.c.b16 %v8819, %v8815
    %v9204 = vpack.c.b16 %v8820, %v8816
    %v9205 = vpack.c.b16 %v8821, %v8817
    %v9206 = vpack.c.b16 %v8822, %v8818
    %9591 = vmatprep.subr.bf16.mxu0 %v8824
    %9592 = vmatpush1.bf16.msra.mxu0 %v8823
    %9593 = vmatprep.subr.bf16.mxu0 %v8828
    %9594 = vmatpush1.bf16.msra.mxu0 %v8827
    %9595 = vmatprep.subr.bf16.mxu0 %v8832
    %9596 = vmatpush1.bf16.msra.mxu0 %v8831
    %9597 = vmatprep.subr.bf16.mxu0 %v8836
    %9598 = vmatpush1.bf16.msra.mxu0 %v8835
    %9599 = vmatprep.subr.bf16.mxu0 %v8840
    %9600 = vmatpush1.bf16.msra.mxu0 %v8839
    %9601 = vmatprep.subr.bf16.mxu0 %v8844
    %9602 = vmatpush1.bf16.msra.mxu0 %v8843
    %9603 = vmatprep.subr.bf16.mxu0 %v8848
    %9604 = vmatpush1.bf16.msra.mxu0 %v8847
    %9605 = vmatprep.subr.bf16.mxu0 %v8852
    %9606 = vmatpush1.bf16.msra.mxu0 %v8851
    %9607 = vmatprep.subr.bf16.mxu0 %v8856
    %9608 = vmatpush1.bf16.msra.mxu0 %v8855
    %9609 = vmatprep.subr.bf16.mxu0 %v8860
    %9610 = vmatpush1.bf16.msra.mxu0 %v8859
    %9611 = vmatprep.subr.bf16.mxu0 %v8864
    %9612 = vmatpush1.bf16.msra.mxu0 %v8863
    %9613 = vmatprep.subr.bf16.mxu0 %v8868
    %9614 = vmatpush1.bf16.msra.mxu0 %v8867
    %9615 = vmatprep.subr.bf16.mxu0 %v8872
    %9616 = vmatpush1.bf16.msra.mxu0 %v8871
    %9617 = vmatprep.subr.bf16.mxu0 %v8876
    %9618 = vmatpush1.bf16.msra.mxu0 %v8875
    %9619 = vmatprep.subr.bf16.mxu0 %v8880
    %9620 = vmatpush1.bf16.msra.mxu0 %v8879
    %9621 = vmatprep.subr.bf16.mxu0 %v8884
    %9622 = vmatpush1.bf16.msra.mxu0 %v8883
    %9623 = vmatprep.mubr.bf16.mxu0 %v7576
    %9624 = vmatmul.mubr.bf16.gmra.mrb[0].mxu0 %v7575
    %v9625 = vpop.f32.mrb[0].mxu0
    %v9626 = vadd.f32 0.0, %v9625
    %v9627 = vpop.f32.mrb[0].mxu0
    %v9628 = vadd.f32 0.0, %v9627
    %v9629 = vpop.f32.mrb[0].mxu0
    %v9630 = vadd.f32 0.0, %v9629
    %v9631 = vpop.f32.mrb[0].mxu0
    %v9632 = vadd.f32 0.0, %v9631
    %9633 = vmatprep.mubr.bf16.mxu0 %v7588
    %9634 = vmatmul.mubr.bf16.gmra.mrb[0].mxu0 %v7587
    %v9635 = vpop.f32.mrb[0].mxu0
    %v9636 = vadd.f32 0.0, %v9635
    %v9637 = vpop.f32.mrb[0].mxu0
    %v9638 = vadd.f32 0.0, %v9637
    %v9639 = vpop.f32.mrb[0].mxu0
    %v9640 = vadd.f32 0.0, %v9639
    %v9641 = vpop.f32.mrb[0].mxu0
    %v9642 = vadd.f32 0.0, %v9641
    %9643 = vmatprep.mubr.bf16.mxu0 %v7600
    %9644 = vmatmul.mubr.bf16.gmra.mrb[0].mxu0 %v7599
    %v9645 = vpop.f32.mrb[0].mxu0
    %v9646 = vadd.f32 0.0, %v9645
    %v9647 = vpop.f32.mrb[0].mxu0
    %v9648 = vadd.f32 0.0, %v9647
    %v9649 = vpop.f32.mrb[0].mxu0
    %v9650 = vadd.f32 0.0, %v9649
    %v9651 = vpop.f32.mrb[0].mxu0
    %v9652 = vadd.f32 0.0, %v9651
    %9653 = vmatprep.mubr.bf16.mxu0 %v7612
    %9654 = vmatmul.mubr.bf16.gmra.mrb[0].mxu0 %v7611
    %v9655 = vpop.f32.mrb[0].mxu0
    %v9656 = vadd.f32 0.0, %v9655
    %v9657 = vpop.f32.mrb[0].mxu0
    %v9658 = vadd.f32 0.0, %v9657
    %v9659 = vpop.f32.mrb[0].mxu0
    %v9660 = vadd.f32 0.0, %v9659
    %v9661 = vpop.f32.mrb[0].mxu0
    %v9662 = vadd.f32 0.0, %v9661
    %9663 = vdwg.mxu0
    %9664 = vmatprep.subr.bf16.mxu0 %v8888
    %9665 = vmatpush1.bf16.msra.mxu0 %v8887
    %9666 = vmatprep.subr.bf16.mxu0 %v8892
    %9667 = vmatpush1.bf16.msra.mxu0 %v8891
    %9668 = vmatprep.subr.bf16.mxu0 %v8896
    %9669 = vmatpush1.bf16.msra.mxu0 %v8895
    %9670 = vmatprep.subr.bf16.mxu0 %v8900
    %9671 = vmatpush1.bf16.msra.mxu0 %v8899
    %9672 = vmatprep.subr.bf16.mxu0 %v8904
    %9673 = vmatpush1.bf16.msra.mxu0 %v8903
    %9674 = vmatprep.subr.bf16.mxu0 %v8908
    %9675 = vmatpush1.bf16.msra.mxu0 %v8907
    %9676 = vmatprep.subr.bf16.mxu0 %v8912
    %9677 = vmatpush1.bf16.msra.mxu0 %v8911
    %9678 = vmatprep.subr.bf16.mxu0 %v8916
    %9679 = vmatpush1.bf16.msra.mxu0 %v8915
    %9680 = vmatprep.subr.bf16.mxu0 %v8920
    %9681 = vmatpush1.bf16.msra.mxu0 %v8919
    %9682 = vmatprep.subr.bf16.mxu0 %v8924
    %9683 = vmatpush1.bf16.msra.mxu0 %v8923
    %9684 = vmatprep.subr.bf16.mxu0 %v8928
    %9685 = vmatpush1.bf16.msra.mxu0 %v8927
    %9686 = vmatprep.subr.bf16.mxu0 %v8932
    %9687 = vmatpush1.bf16.msra.mxu0 %v8931
    %9688 = vmatprep.subr.bf16.mxu0 %v8936
    %9689 = vmatpush1.bf16.msra.mxu0 %v8935
    %9690 = vmatprep.subr.bf16.mxu0 %v8940
    %9691 = vmatpush1.bf16.msra.mxu0 %v8939
    %9692 = vmatprep.subr.bf16.mxu0 %v8944
    %9693 = vmatpush1.bf16.msra.mxu0 %v8943
    %9694 = vmatprep.subr.bf16.mxu0 %v8948
    %9695 = vmatpush1.bf16.msra.mxu0 %v8947
    %9696 = vmatprep.mubr.bf16.mxu0 %v7578
    %9697 = vmatmul.mubr.bf16.gmra.mrb[0].mxu0 %v7577
    %v9698 = vpop.f32.mrb[0].mxu0
    %v9699 = vadd.f32 %v9626, %v9698
    %v9700 = vpop.f32.mrb[0].mxu0
    %v9701 = vadd.f32 %v9628, %v9700
    %v9702 = vpop.f32.mrb[0].mxu0
    %v9703 = vadd.f32 %v9630, %v9702
    %v9704 = vpop.f32.mrb[0].mxu0
    %v9705 = vadd.f32 %v9632, %v9704
    %9706 = vmatprep.mubr.bf16.mxu0 %v7590
    %9707 = vmatmul.mubr.bf16.gmra.mrb[0].mxu0 %v7589
    %v9708 = vpop.f32.mrb[0].mxu0
    %v9709 = vadd.f32 %v9636, %v9708
    %v9710 = vpop.f32.mrb[0].mxu0
    %v9711 = vadd.f32 %v9638, %v9710
    %v9712 = vpop.f32.mrb[0].mxu0
    %v9713 = vadd.f32 %v9640, %v9712
    %v9714 = vpop.f32.mrb[0].mxu0
    %v9715 = vadd.f32 %v9642, %v9714
    %9716 = vmatprep.mubr.bf16.mxu0 %v7602
    %9717 = vmatmul.mubr.bf16.gmra.mrb[0].mxu0 %v7601
    %v9718 = vpop.f32.mrb[0].mxu0
    %v9719 = vadd.f32 %v9646, %v9718
    %v9720 = vpop.f32.mrb[0].mxu0
    %v9721 = vadd.f32 %v9648, %v9720
    %v9722 = vpop.f32.mrb[0].mxu0
    %v9723 = vadd.f32 %v9650, %v9722
    %v9724 = vpop.f32.mrb[0].mxu0
    %v9725 = vadd.f32 %v9652, %v9724
    %9726 = vmatprep.mubr.bf16.mxu0 %v7614
    %9727 = vmatmul.mubr.bf16.gmra.mrb[0].mxu0 %v7613
    %v9728 = vpop.f32.mrb[0].mxu0
    %v9729 = vadd.f32 %v9656, %v9728
    %v9730 = vpop.f32.mrb[0].mxu0
    %v9731 = vadd.f32 %v9658, %v9730
    %v9732 = vpop.f32.mrb[0].mxu0
    %v9733 = vadd.f32 %v9660, %v9732
    %v9734 = vpop.f32.mrb[0].mxu0
    %v9735 = vadd.f32 %v9662, %v9734
    %9736 = vdwg.mxu0
    %9737 = vmatprep.subr.bf16.mxu0 %v8952
    %9738 = vmatpush1.bf16.msra.mxu0 %v8951
    %9739 = vmatprep.subr.bf16.mxu0 %v8956
    %9740 = vmatpush1.bf16.msra.mxu0 %v8955
    %9741 = vmatprep.subr.bf16.mxu0 %v8960
    %9742 = vmatpush1.bf16.msra.mxu0 %v8959
    %9743 = vmatprep.subr.bf16.mxu0 %v8964
    %9744 = vmatpush1.bf16.msra.mxu0 %v8963
    %9745 = vmatprep.subr.bf16.mxu0 %v8968
    %9746 = vmatpush1.bf16.msra.mxu0 %v8967
    %9747 = vmatprep.subr.bf16.mxu0 %v8972
    %9748 = vmatpush1.bf16.msra.mxu0 %v8971
    %9749 = vmatprep.subr.bf16.mxu0 %v8976
    %9750 = vmatpush1.bf16.msra.mxu0 %v8975
    %9751 = vmatprep.subr.bf16.mxu0 %v8980
    %9752 = vmatpush1.bf16.msra.mxu0 %v8979
    %9753 = vmatprep.subr.bf16.mxu0 %v8984
    %9754 = vmatpush1.bf16.msra.mxu0 %v8983
    %9755 = vmatprep.subr.bf16.mxu0 %v8988
    %9756 = vmatpush1.bf16.msra.mxu0 %v8987
    %9757 = vmatprep.subr.bf16.mxu0 %v8992
    %9758 = vmatpush1.bf16.msra.mxu0 %v8991
    %9759 = vmatprep.subr.bf16.mxu0 %v8996
    %9760 = vmatpush1.bf16.msra.mxu0 %v8995
    %9761 = vmatprep.subr.bf16.mxu0 %v9000
    %9762 = vmatpush1.bf16.msra.mxu0 %v8999
    %9763 = vmatprep.subr.bf16.mxu0 %v9004
    %9764 = vmatpush1.bf16.msra.mxu0 %v9003
    %9765 = vmatprep.subr.bf16.mxu0 %v9008
    %9766 = vmatpush1.bf16.msra.mxu0 %v9007
    %9767 = vmatprep.subr.bf16.mxu0 %v9012
    %9768 = vmatpush1.bf16.msra.mxu0 %v9011
    %9769 = vmatprep.mubr.bf16.mxu0 %v7580
    %9770 = vmatmul.mubr.bf16.gmra.mrb[0].mxu0 %v7579
    %v9771 = vpop.f32.mrb[0].mxu0
    %v9772 = vadd.f32 %v9699, %v9771
    %v9773 = vpop.f32.mrb[0].mxu0
    %v9774 = vadd.f32 %v9701, %v9773
    %v9775 = vpop.f32.mrb[0].mxu0
    %v9776 = vadd.f32 %v9703, %v9775
    %v9777 = vpop.f32.mrb[0].mxu0
    %v9778 = vadd.f32 %v9705, %v9777
    %9779 = vmatprep.mubr.bf16.mxu0 %v7592
    %9780 = vmatmul.mubr.bf16.gmra.mrb[0].mxu0 %v7591
    %v9781 = vpop.f32.mrb[0].mxu0
    %v9782 = vadd.f32 %v9709, %v9781
    %v9783 = vpop.f32.mrb[0].mxu0
    %v9784 = vadd.f32 %v9711, %v9783
    %v9785 = vpop.f32.mrb[0].mxu0
    %v9786 = vadd.f32 %v9713, %v9785
    %v9787 = vpop.f32.mrb[0].mxu0
    %v9788 = vadd.f32 %v9715, %v9787
    %9789 = vmatprep.mubr.bf16.mxu0 %v7604
    %9790 = vmatmul.mubr.bf16.gmra.mrb[0].mxu0 %v7603
    %v9791 = vpop.f32.mrb[0].mxu0
    %v9792 = vadd.f32 %v9719, %v9791
    %v9793 = vpop.f32.mrb[0].mxu0
    %v9794 = vadd.f32 %v9721, %v9793
    %v9795 = vpop.f32.mrb[0].mxu0
    %v9796 = vadd.f32 %v9723, %v9795
    %v9797 = vpop.f32.mrb[0].mxu0
    %v9798 = vadd.f32 %v9725, %v9797
    %9799 = vmatprep.mubr.bf16.mxu0 %v7616
    %9800 = vmatmul.mubr.bf16.gmra.mrb[0].mxu0 %v7615
    %v9801 = vpop.f32.mrb[0].mxu0
    %v9802 = vadd.f32 %v9729, %v9801
    %v9803 = vpop.f32.mrb[0].mxu0
    %v9804 = vadd.f32 %v9731, %v9803
    %v9805 = vpop.f32.mrb[0].mxu0
    %v9806 = vadd.f32 %v9733, %v9805
    %v9807 = vpop.f32.mrb[0].mxu0
    %v9808 = vadd.f32 %v9735, %v9807
    %9809 = vdwg.mxu0
    %9810 = vmatprep.subr.bf16.mxu0 %v9016
    %9811 = vmatpush1.bf16.msra.mxu0 %v9015
    %9812 = vmatprep.subr.bf16.mxu0 %v9020
    %9813 = vmatpush1.bf16.msra.mxu0 %v9019
    %9814 = vmatprep.subr.bf16.mxu0 %v9024
    %9815 = vmatpush1.bf16.msra.mxu0 %v9023
    %9816 = vmatprep.subr.bf16.mxu0 %v9028
    %9817 = vmatpush1.bf16.msra.mxu0 %v9027
    %9818 = vmatprep.subr.bf16.mxu0 %v9032
    %9819 = vmatpush1.bf16.msra.mxu0 %v9031
    %9820 = vmatprep.subr.bf16.mxu0 %v9036
    %9821 = vmatpush1.bf16.msra.mxu0 %v9035
    %9822 = vmatprep.subr.bf16.mxu0 %v9040
    %9823 = vmatpush1.bf16.msra.mxu0 %v9039
    %9824 = vmatprep.subr.bf16.mxu0 %v9044
    %9825 = vmatpush1.bf16.msra.mxu0 %v9043
    %9826 = vmatprep.subr.bf16.mxu0 %v9048
    %9827 = vmatpush1.bf16.msra.mxu0 %v9047
    %9828 = vmatprep.subr.bf16.mxu0 %v9052
    %9829 = vmatpush1.bf16.msra.mxu0 %v9051
    %9830 = vmatprep.subr.bf16.mxu0 %v9056
    %9831 = vmatpush1.bf16.msra.mxu0 %v9055
    %9832 = vmatprep.subr.bf16.mxu0 %v9060
    %9833 = vmatpush1.bf16.msra.mxu0 %v9059
    %9834 = vmatprep.subr.bf16.mxu0 %v9064
    %9835 = vmatpush1.bf16.msra.mxu0 %v9063
    %9836 = vmatprep.subr.bf16.mxu0 %v9068
    %9837 = vmatpush1.bf16.msra.mxu0 %v9067
    %9838 = vmatprep.subr.bf16.mxu0 %v9072
    %9839 = vmatpush1.bf16.msra.mxu0 %v9071
    %9840 = vmatprep.subr.bf16.mxu0 %v9076
    %9841 = vmatpush1.bf16.msra.mxu0 %v9075
    %9842 = vmatprep.mubr.bf16.mxu0 %v7582
    %9843 = vmatmul.mubr.bf16.gmra.mrb[0].mxu0 %v7581
    %v9844 = vpop.f32.mrb[0].mxu0
    %v9845 = vadd.f32 %v9772, %v9844
    %v9846 = vpop.f32.mrb[0].mxu0
    %v9847 = vadd.f32 %v9774, %v9846
    %v9848 = vpop.f32.mrb[0].mxu0
    %v9849 = vadd.f32 %v9776, %v9848
    %v9850 = vpop.f32.mrb[0].mxu0
    %v9851 = vadd.f32 %v9778, %v9850
    %9852 = vmatprep.mubr.bf16.mxu0 %v7594
    %9853 = vmatmul.mubr.bf16.gmra.mrb[0].mxu0 %v7593
    %v9854 = vpop.f32.mrb[0].mxu0
    %v9855 = vadd.f32 %v9782, %v9854
    %v9856 = vpop.f32.mrb[0].mxu0
    %v9857 = vadd.f32 %v9784, %v9856
    %v9858 = vpop.f32.mrb[0].mxu0
    %v9859 = vadd.f32 %v9786, %v9858
    %v9860 = vpop.f32.mrb[0].mxu0
    %v9861 = vadd.f32 %v9788, %v9860
    %9862 = vmatprep.mubr.bf16.mxu0 %v7606
    %9863 = vmatmul.mubr.bf16.gmra.mrb[0].mxu0 %v7605
    %v9864 = vpop.f32.mrb[0].mxu0
    %v9865 = vadd.f32 %v9792, %v9864
    %v9866 = vpop.f32.mrb[0].mxu0
    %v9867 = vadd.f32 %v9794, %v9866
    %v9868 = vpop.f32.mrb[0].mxu0
    %v9869 = vadd.f32 %v9796, %v9868
    %v9870 = vpop.f32.mrb[0].mxu0
    %v9871 = vadd.f32 %v9798, %v9870
    %9872 = vmatprep.mubr.bf16.mxu0 %v7618
    %9873 = vmatmul.mubr.bf16.gmra.mrb[0].mxu0 %v7617
    %v9874 = vpop.f32.mrb[0].mxu0
    %v9875 = vadd.f32 %v9802, %v9874
    %v9876 = vpop.f32.mrb[0].mxu0
    %v9877 = vadd.f32 %v9804, %v9876
    %v9878 = vpop.f32.mrb[0].mxu0
    %v9879 = vadd.f32 %v9806, %v9878
    %v9880 = vpop.f32.mrb[0].mxu0
    %v9881 = vadd.f32 %v9808, %v9880
    %9882 = vdwg.mxu0
    %9883 = vmatprep.subr.bf16.mxu0 %v9080
    %9884 = vmatpush1.bf16.msra.mxu0 %v9079
    %9885 = vmatprep.subr.bf16.mxu0 %v9084
    %9886 = vmatpush1.bf16.msra.mxu0 %v9083
    %9887 = vmatprep.subr.bf16.mxu0 %v9088
    %9888 = vmatpush1.bf16.msra.mxu0 %v9087
    %9889 = vmatprep.subr.bf16.mxu0 %v9092
    %9890 = vmatpush1.bf16.msra.mxu0 %v9091
    %9891 = vmatprep.subr.bf16.mxu0 %v9096
    %9892 = vmatpush1.bf16.msra.mxu0 %v9095
    %9893 = vmatprep.subr.bf16.mxu0 %v9100
    %9894 = vmatpush1.bf16.msra.mxu0 %v9099
    %9895 = vmatprep.subr.bf16.mxu0 %v9104
    %9896 = vmatpush1.bf16.msra.mxu0 %v9103
    %9897 = vmatprep.subr.bf16.mxu0 %v9108
    %9898 = vmatpush1.bf16.msra.mxu0 %v9107
    %9899 = vmatprep.subr.bf16.mxu0 %v9112
    %9900 = vmatpush1.bf16.msra.mxu0 %v9111
    %9901 = vmatprep.subr.bf16.mxu0 %v9116
    %9902 = vmatpush1.bf16.msra.mxu0 %v9115
    %9903 = vmatprep.subr.bf16.mxu0 %v9120
    %9904 = vmatpush1.bf16.msra.mxu0 %v9119
    %9905 = vmatprep.subr.bf16.mxu0 %v9124
    %9906 = vmatpush1.bf16.msra.mxu0 %v9123
    %9907 = vmatprep.subr.bf16.mxu0 %v9128
    %9908 = vmatpush1.bf16.msra.mxu0 %v9127
    %9909 = vmatprep.subr.bf16.mxu0 %v9132
    %9910 = vmatpush1.bf16.msra.mxu0 %v9131
    %9911 = vmatprep.subr.bf16.mxu0 %v9136
    %9912 = vmatpush1.bf16.msra.mxu0 %v9135
    %9913 = vmatprep.subr.bf16.mxu0 %v9140
    %9914 = vmatpush1.bf16.msra.mxu0 %v9139
    %9915 = vmatprep.mubr.bf16.mxu0 %v7584
    %9916 = vmatmul.mubr.bf16.gmra.mrb[0].mxu0 %v7583
    %v9917 = vpop.f32.mrb[0].mxu0
    %v9918 = vadd.f32 %v9845, %v9917
    %v9919 = vpop.f32.mrb[0].mxu0
    %v9920 = vadd.f32 %v9847, %v9919
    %v9921 = vpop.f32.mrb[0].mxu0
    %v9922 = vadd.f32 %v9849, %v9921
    %v9923 = vpop.f32.mrb[0].mxu0
    %v9924 = vadd.f32 %v9851, %v9923
    %9925 = vmatprep.mubr.bf16.mxu0 %v7596
    %9926 = vmatmul.mubr.bf16.gmra.mrb[0].mxu0 %v7595
    %v9927 = vpop.f32.mrb[0].mxu0
    %v9928 = vadd.f32 %v9855, %v9927
    %v9929 = vpop.f32.mrb[0].mxu0
    %v9930 = vadd.f32 %v9857, %v9929
    %v9931 = vpop.f32.mrb[0].mxu0
    %v9932 = vadd.f32 %v9859, %v9931
    %v9933 = vpop.f32.mrb[0].mxu0
    %v9934 = vadd.f32 %v9861, %v9933
    %9935 = vmatprep.mubr.bf16.mxu0 %v7608
    %9936 = vmatmul.mubr.bf16.gmra.mrb[0].mxu0 %v7607
    %v9937 = vpop.f32.mrb[0].mxu0
    %v9938 = vadd.f32 %v9865, %v9937
    %v9939 = vpop.f32.mrb[0].mxu0
    %v9940 = vadd.f32 %v9867, %v9939
    %v9941 = vpop.f32.mrb[0].mxu0
    %v9942 = vadd.f32 %v9869, %v9941
    %v9943 = vpop.f32.mrb[0].mxu0
    %v9944 = vadd.f32 %v9871, %v9943
    %9945 = vmatprep.mubr.bf16.mxu0 %v7620
    %9946 = vmatmul.mubr.bf16.gmra.mrb[0].mxu0 %v7619
    %v9947 = vpop.f32.mrb[0].mxu0
    %v9948 = vadd.f32 %v9875, %v9947
    %v9949 = vpop.f32.mrb[0].mxu0
    %v9950 = vadd.f32 %v9877, %v9949
    %v9951 = vpop.f32.mrb[0].mxu0
    %v9952 = vadd.f32 %v9879, %v9951
    %v9953 = vpop.f32.mrb[0].mxu0
    %v9954 = vadd.f32 %v9881, %v9953
    %9955 = vdwg.mxu0
    %9956 = vmatprep.subr.bf16.mxu0 %v9144
    %9957 = vmatpush1.bf16.msra.mxu0 %v9143
    %9958 = vmatprep.subr.bf16.mxu0 %v9148
    %9959 = vmatpush1.bf16.msra.mxu0 %v9147
    %9960 = vmatprep.subr.bf16.mxu0 %v9152
    %9961 = vmatpush1.bf16.msra.mxu0 %v9151
    %9962 = vmatprep.subr.bf16.mxu0 %v9156
    %9963 = vmatpush1.bf16.msra.mxu0 %v9155
    %9964 = vmatprep.subr.bf16.mxu0 %v9160
    %9965 = vmatpush1.bf16.msra.mxu0 %v9159
    %9966 = vmatprep.subr.bf16.mxu0 %v9164
    %9967 = vmatpush1.bf16.msra.mxu0 %v9163
    %9968 = vmatprep.subr.bf16.mxu0 %v9168
    %9969 = vmatpush1.bf16.msra.mxu0 %v9167
    %9970 = vmatprep.subr.bf16.mxu0 %v9172
    %9971 = vmatpush1.bf16.msra.mxu0 %v9171
    %9972 = vmatprep.subr.bf16.mxu0 %v9176
    %9973 = vmatpush1.bf16.msra.mxu0 %v9175
    %9974 = vmatprep.subr.bf16.mxu0 %v9180
    %9975 = vmatpush1.bf16.msra.mxu0 %v9179
    %9976 = vmatprep.subr.bf16.mxu0 %v9184
    %9977 = vmatpush1.bf16.msra.mxu0 %v9183
    %9978 = vmatprep.subr.bf16.mxu0 %v9188
    %9979 = vmatpush1.bf16.msra.mxu0 %v9187
    %9980 = vmatprep.subr.bf16.mxu0 %v9192
    %9981 = vmatpush1.bf16.msra.mxu0 %v9191
    %9982 = vmatprep.subr.bf16.mxu0 %v9196
    %9983 = vmatpush1.bf16.msra.mxu0 %v9195
    %9984 = vmatprep.subr.bf16.mxu0 %v9200
    %9985 = vmatpush1.bf16.msra.mxu0 %v9199
    %9986 = vmatprep.subr.bf16.mxu0 %v9204
    %9987 = vmatpush1.bf16.msra.mxu0 %v9203
    %9988 = vmatprep.mubr.bf16.mxu0 %v7586
    %9989 = vmatmul.mubr.bf16.gmra.mrb[0].mxu0 %v7585
    %v9990 = vpop.f32.mrb[0].mxu0
    %v9991 = vadd.f32 %v9918, %v9990
    %v9992 = vpop.f32.mrb[0].mxu0
    %v9993 = vadd.f32 %v9920, %v9992
    %v9994 = vpop.f32.mrb[0].mxu0
    %v9995 = vadd.f32 %v9922, %v9994
    %v9996 = vpop.f32.mrb[0].mxu0
    %v9997 = vadd.f32 %v9924, %v9996
    %9998 = vmatprep.mubr.bf16.mxu0 %v7598
    %9999 = vmatmul.mubr.bf16.gmra.mrb[0].mxu0 %v7597
    %v10000 = vpop.f32.mrb[0].mxu0
    %v10001 = vadd.f32 %v9928, %v10000
    %v10002 = vpop.f32.mrb[0].mxu0
    %v10003 = vadd.f32 %v9930, %v10002
    %v10004 = vpop.f32.mrb[0].mxu0
    %v10005 = vadd.f32 %v9932, %v10004
    %v10006 = vpop.f32.mrb[0].mxu0
    %v10007 = vadd.f32 %v9934, %v10006
    %10008 = vmatprep.mubr.bf16.mxu0 %v7610
    %10009 = vmatmul.mubr.bf16.gmra.mrb[0].mxu0 %v7609
    %v10010 = vpop.f32.mrb[0].mxu0
    %v10011 = vadd.f32 %v9938, %v10010
    %v10012 = vpop.f32.mrb[0].mxu0
    %v10013 = vadd.f32 %v9940, %v10012
    %v10014 = vpop.f32.mrb[0].mxu0
    %v10015 = vadd.f32 %v9942, %v10014
    %v10016 = vpop.f32.mrb[0].mxu0
    %v10017 = vadd.f32 %v9944, %v10016
    %10018 = vmatprep.mubr.bf16.mxu0 %v7622
    %10019 = vmatmul.mubr.bf16.gmra.mrb[0].mxu0 %v7621
    %v10020 = vpop.f32.mrb[0].mxu0
    %v10021 = vadd.f32 %v9948, %v10020
    %v10022 = vpop.f32.mrb[0].mxu0
    %v10023 = vadd.f32 %v9950, %v10022
    %v10024 = vpop.f32.mrb[0].mxu0
    %v10025 = vadd.f32 %v9952, %v10024
    %v10026 = vpop.f32.mrb[0].mxu0
    %v10027 = vadd.f32 %v9954, %v10026
    %10028 = vdwg.mxu0
    %10029 = vmatprep.subr.bf16.mxu0 %v8826
    %10030 = vmatpush1.bf16.msra.mxu0 %v8825
    %10031 = vmatprep.subr.bf16.mxu0 %v8830
    %10032 = vmatpush1.bf16.msra.mxu0 %v8829
    %10033 = vmatprep.subr.bf16.mxu0 %v8834
    %10034 = vmatpush1.bf16.msra.mxu0 %v8833
    %10035 = vmatprep.subr.bf16.mxu0 %v8838
    %10036 = vmatpush1.bf16.msra.mxu0 %v8837
    %10037 = vmatprep.subr.bf16.mxu0 %v8842
    %10038 = vmatpush1.bf16.msra.mxu0 %v8841
    %10039 = vmatprep.subr.bf16.mxu0 %v8846
    %10040 = vmatpush1.bf16.msra.mxu0 %v8845
    %10041 = vmatprep.subr.bf16.mxu0 %v8850
    %10042 = vmatpush1.bf16.msra.mxu0 %v8849
    %10043 = vmatprep.subr.bf16.mxu0 %v8854
    %10044 = vmatpush1.bf16.msra.mxu0 %v8853
    %10045 = vmatprep.subr.bf16.mxu0 %v8858
    %10046 = vmatpush1.bf16.msra.mxu0 %v8857
    %10047 = vmatprep.subr.bf16.mxu0 %v8862
    %10048 = vmatpush1.bf16.msra.mxu0 %v8861
    %10049 = vmatprep.subr.bf16.mxu0 %v8866
    %10050 = vmatpush1.bf16.msra.mxu0 %v8865
    %10051 = vmatprep.subr.bf16.mxu0 %v8870
    %10052 = vmatpush1.bf16.msra.mxu0 %v8869
    %10053 = vmatprep.subr.bf16.mxu0 %v8874
    %10054 = vmatpush1.bf16.msra.mxu0 %v8873
    %10055 = vmatprep.subr.bf16.mxu0 %v8878
    %10056 = vmatpush1.bf16.msra.mxu0 %v8877
    %10057 = vmatprep.subr.bf16.mxu0 %v8882
    %10058 = vmatpush1.bf16.msra.mxu0 %v8881
    %10059 = vmatprep.subr.bf16.mxu0 %v8886
    %10060 = vmatpush1.bf16.msra.mxu0 %v8885
    %10061 = vmatprep.mubr.bf16.mxu0 %v7576
    %10062 = vmatmul.mubr.bf16.gmra.mrb[0].mxu0 %v7575
    %v10063 = vpop.f32.mrb[0].mxu0
    %v10064 = vadd.f32 0.0, %v10063
    %v10065 = vpop.f32.mrb[0].mxu0
    %v10066 = vadd.f32 0.0, %v10065
    %v10067 = vpop.f32.mrb[0].mxu0
    %v10068 = vadd.f32 0.0, %v10067
    %v10069 = vpop.f32.mrb[0].mxu0
    %v10070 = vadd.f32 0.0, %v10069
    %10071 = vmatprep.mubr.bf16.mxu0 %v7588
    %10072 = vmatmul.mubr.bf16.gmra.mrb[0].mxu0 %v7587
    %v10073 = vpop.f32.mrb[0].mxu0
    %v10074 = vadd.f32 0.0, %v10073
    %v10075 = vpop.f32.mrb[0].mxu0
    %v10076 = vadd.f32 0.0, %v10075
    %v10077 = vpop.f32.mrb[0].mxu0
    %v10078 = vadd.f32 0.0, %v10077
    %v10079 = vpop.f32.mrb[0].mxu0
    %v10080 = vadd.f32 0.0, %v10079
    %10081 = vmatprep.mubr.bf16.mxu0 %v7600
    %10082 = vmatmul.mubr.bf16.gmra.mrb[0].mxu0 %v7599
    %v10083 = vpop.f32.mrb[0].mxu0
    %v10084 = vadd.f32 0.0, %v10083
    %v10085 = vpop.f32.mrb[0].mxu0
    %v10086 = vadd.f32 0.0, %v10085
    %v10087 = vpop.f32.mrb[0].mxu0
    %v10088 = vadd.f32 0.0, %v10087
    %v10089 = vpop.f32.mrb[0].mxu0
    %v10090 = vadd.f32 0.0, %v10089
    %10091 = vmatprep.mubr.bf16.mxu0 %v7612
    %10092 = vmatmul.mubr.bf16.gmra.mrb[0].mxu0 %v7611
    %v10093 = vpop.f32.mrb[0].mxu0
    %v10094 = vadd.f32 0.0, %v10093
    %v10095 = vpop.f32.mrb[0].mxu0
    %v10096 = vadd.f32 0.0, %v10095
    %v10097 = vpop.f32.mrb[0].mxu0
    %v10098 = vadd.f32 0.0, %v10097
    %v10099 = vpop.f32.mrb[0].mxu0
    %v10100 = vadd.f32 0.0, %v10099
    %10101 = vdwg.mxu0
    %10102 = vmatprep.subr.bf16.mxu0 %v8890
    %10103 = vmatpush1.bf16.msra.mxu0 %v8889
    %10104 = vmatprep.subr.bf16.mxu0 %v8894
    %10105 = vmatpush1.bf16.msra.mxu0 %v8893
    %10106 = vmatprep.subr.bf16.mxu0 %v8898
    %10107 = vmatpush1.bf16.msra.mxu0 %v8897
    %10108 = vmatprep.subr.bf16.mxu0 %v8902
    %10109 = vmatpush1.bf16.msra.mxu0 %v8901
    %10110 = vmatprep.subr.bf16.mxu0 %v8906
    %10111 = vmatpush1.bf16.msra.mxu0 %v8905
    %10112 = vmatprep.subr.bf16.mxu0 %v8910
    %10113 = vmatpush1.bf16.msra.mxu0 %v8909
    %10114 = vmatprep.subr.bf16.mxu0 %v8914
    %10115 = vmatpush1.bf16.msra.mxu0 %v8913
    %10116 = vmatprep.subr.bf16.mxu0 %v8918
    %10117 = vmatpush1.bf16.msra.mxu0 %v8917
    %10118 = vmatprep.subr.bf16.mxu0 %v8922
    %10119 = vmatpush1.bf16.msra.mxu0 %v8921
    %10120 = vmatprep.subr.bf16.mxu0 %v8926
    %10121 = vmatpush1.bf16.msra.mxu0 %v8925
    %10122 = vmatprep.subr.bf16.mxu0 %v8930
    %10123 = vmatpush1.bf16.msra.mxu0 %v8929
    %10124 = vmatprep.subr.bf16.mxu0 %v8934
    %10125 = vmatpush1.bf16.msra.mxu0 %v8933
    %10126 = vmatprep.subr.bf16.mxu0 %v8938
    %10127 = vmatpush1.bf16.msra.mxu0 %v8937
    %10128 = vmatprep.subr.bf16.mxu0 %v8942
    %10129 = vmatpush1.bf16.msra.mxu0 %v8941
    %10130 = vmatprep.subr.bf16.mxu0 %v8946
    %10131 = vmatpush1.bf16.msra.mxu0 %v8945
    %10132 = vmatprep.subr.bf16.mxu0 %v8950
    %10133 = vmatpush1.bf16.msra.mxu0 %v8949
    %10134 = vmatprep.mubr.bf16.mxu0 %v7578
    %10135 = vmatmul.mubr.bf16.gmra.mrb[0].mxu0 %v7577
    %v10136 = vpop.f32.mrb[0].mxu0
    %v10137 = vadd.f32 %v10064, %v10136
    %v10138 = vpop.f32.mrb[0].mxu0
    %v10139 = vadd.f32 %v10066, %v10138
    %v10140 = vpop.f32.mrb[0].mxu0
    %v10141 = vadd.f32 %v10068, %v10140
    %v10142 = vpop.f32.mrb[0].mxu0
    %v10143 = vadd.f32 %v10070, %v10142
    %10144 = vmatprep.mubr.bf16.mxu0 %v7590
    %10145 = vmatmul.mubr.bf16.gmra.mrb[0].mxu0 %v7589
    %v10146 = vpop.f32.mrb[0].mxu0
    %v10147 = vadd.f32 %v10074, %v10146
    %v10148 = vpop.f32.mrb[0].mxu0
    %v10149 = vadd.f32 %v10076, %v10148
    %v10150 = vpop.f32.mrb[0].mxu0
    %v10151 = vadd.f32 %v10078, %v10150
    %v10152 = vpop.f32.mrb[0].mxu0
    %v10153 = vadd.f32 %v10080, %v10152
    %10154 = vmatprep.mubr.bf16.mxu0 %v7602
    %10155 = vmatmul.mubr.bf16.gmra.mrb[0].mxu0 %v7601
    %v10156 = vpop.f32.mrb[0].mxu0
    %v10157 = vadd.f32 %v10084, %v10156
    %v10158 = vpop.f32.mrb[0].mxu0
    %v10159 = vadd.f32 %v10086, %v10158
    %v10160 = vpop.f32.mrb[0].mxu0
    %v10161 = vadd.f32 %v10088, %v10160
    %v10162 = vpop.f32.mrb[0].mxu0
    %v10163 = vadd.f32 %v10090, %v10162
    %10164 = vmatprep.mubr.bf16.mxu0 %v7614
    %10165 = vmatmul.mubr.bf16.gmra.mrb[0].mxu0 %v7613
    %v10166 = vpop.f32.mrb[0].mxu0
    %v10167 = vadd.f32 %v10094, %v10166
    %v10168 = vpop.f32.mrb[0].mxu0
    %v10169 = vadd.f32 %v10096, %v10168
    %v10170 = vpop.f32.mrb[0].mxu0
    %v10171 = vadd.f32 %v10098, %v10170
    %v10172 = vpop.f32.mrb[0].mxu0
    %v10173 = vadd.f32 %v10100, %v10172
    %10174 = vdwg.mxu0
    %10175 = vmatprep.subr.bf16.mxu0 %v8954
    %10176 = vmatpush1.bf16.msra.mxu0 %v8953
    %10177 = vmatprep.subr.bf16.mxu0 %v8958
    %10178 = vmatpush1.bf16.msra.mxu0 %v8957
    %10179 = vmatprep.subr.bf16.mxu0 %v8962
    %10180 = vmatpush1.bf16.msra.mxu0 %v8961
    %10181 = vmatprep.subr.bf16.mxu0 %v8966
    %10182 = vmatpush1.bf16.msra.mxu0 %v8965
    %10183 = vmatprep.subr.bf16.mxu0 %v8970
    %10184 = vmatpush1.bf16.msra.mxu0 %v8969
    %10185 = vmatprep.subr.bf16.mxu0 %v8974
    %10186 = vmatpush1.bf16.msra.mxu0 %v8973
    %10187 = vmatprep.subr.bf16.mxu0 %v8978
    %10188 = vmatpush1.bf16.msra.mxu0 %v8977
    %10189 = vmatprep.subr.bf16.mxu0 %v8982
    %10190 = vmatpush1.bf16.msra.mxu0 %v8981
    %10191 = vmatprep.subr.bf16.mxu0 %v8986
    %10192 = vmatpush1.bf16.msra.mxu0 %v8985
    %10193 = vmatprep.subr.bf16.mxu0 %v8990
    %10194 = vmatpush1.bf16.msra.mxu0 %v8989
    %10195 = vmatprep.subr.bf16.mxu0 %v8994
    %10196 = vmatpush1.bf16.msra.mxu0 %v8993
    %10197 = vmatprep.subr.bf16.mxu0 %v8998
    %10198 = vmatpush1.bf16.msra.mxu0 %v8997
    %10199 = vmatprep.subr.bf16.mxu0 %v9002
    %10200 = vmatpush1.bf16.msra.mxu0 %v9001
    %10201 = vmatprep.subr.bf16.mxu0 %v9006
    %10202 = vmatpush1.bf16.msra.mxu0 %v9005
    %10203 = vmatprep.subr.bf16.mxu0 %v9010
    %10204 = vmatpush1.bf16.msra.mxu0 %v9009
    %10205 = vmatprep.subr.bf16.mxu0 %v9014
    %10206 = vmatpush1.bf16.msra.mxu0 %v9013
    %10207 = vmatprep.mubr.bf16.mxu0 %v7580
    %10208 = vmatmul.mubr.bf16.gmra.mrb[0].mxu0 %v7579
    %v10209 = vpop.f32.mrb[0].mxu0
    %v10210 = vadd.f32 %v10137, %v10209
    %v10211 = vpop.f32.mrb[0].mxu0
    %v10212 = vadd.f32 %v10139, %v10211
    %v10213 = vpop.f32.mrb[0].mxu0
    %v10214 = vadd.f32 %v10141, %v10213
    %v10215 = vpop.f32.mrb[0].mxu0
    %v10216 = vadd.f32 %v10143, %v10215
    %10217 = vmatprep.mubr.bf16.mxu0 %v7592
    %10218 = vmatmul.mubr.bf16.gmra.mrb[0].mxu0 %v7591
    %v10219 = vpop.f32.mrb[0].mxu0
    %v10220 = vadd.f32 %v10147, %v10219
    %v10221 = vpop.f32.mrb[0].mxu0
    %v10222 = vadd.f32 %v10149, %v10221
    %v10223 = vpop.f32.mrb[0].mxu0
    %v10224 = vadd.f32 %v10151, %v10223
    %v10225 = vpop.f32.mrb[0].mxu0
    %v10226 = vadd.f32 %v10153, %v10225
    %10227 = vmatprep.mubr.bf16.mxu0 %v7604
    %10228 = vmatmul.mubr.bf16.gmra.mrb[0].mxu0 %v7603
    %v10229 = vpop.f32.mrb[0].mxu0
    %v10230 = vadd.f32 %v10157, %v10229
    %v10231 = vpop.f32.mrb[0].mxu0
    %v10232 = vadd.f32 %v10159, %v10231
    %v10233 = vpop.f32.mrb[0].mxu0
    %v10234 = vadd.f32 %v10161, %v10233
    %v10235 = vpop.f32.mrb[0].mxu0
    %v10236 = vadd.f32 %v10163, %v10235
    %10237 = vmatprep.mubr.bf16.mxu0 %v7616
    %10238 = vmatmul.mubr.bf16.gmra.mrb[0].mxu0 %v7615
    %v10239 = vpop.f32.mrb[0].mxu0
    %v10240 = vadd.f32 %v10167, %v10239
    %v10241 = vpop.f32.mrb[0].mxu0
    %v10242 = vadd.f32 %v10169, %v10241
    %v10243 = vpop.f32.mrb[0].mxu0
    %v10244 = vadd.f32 %v10171, %v10243
    %v10245 = vpop.f32.mrb[0].mxu0
    %v10246 = vadd.f32 %v10173, %v10245
    %10247 = vdwg.mxu0
    %10248 = vmatprep.subr.bf16.mxu0 %v9018
    %10249 = vmatpush1.bf16.msra.mxu0 %v9017
    %10250 = vmatprep.subr.bf16.mxu0 %v9022
    %10251 = vmatpush1.bf16.msra.mxu0 %v9021
    %10252 = vmatprep.subr.bf16.mxu0 %v9026
    %10253 = vmatpush1.bf16.msra.mxu0 %v9025
    %10254 = vmatprep.subr.bf16.mxu0 %v9030
    %10255 = vmatpush1.bf16.msra.mxu0 %v9029
    %10256 = vmatprep.subr.bf16.mxu0 %v9034
    %10257 = vmatpush1.bf16.msra.mxu0 %v9033
    %10258 = vmatprep.subr.bf16.mxu0 %v9038
    %10259 = vmatpush1.bf16.msra.mxu0 %v9037
    %10260 = vmatprep.subr.bf16.mxu0 %v9042
    %10261 = vmatpush1.bf16.msra.mxu0 %v9041
    %10262 = vmatprep.subr.bf16.mxu0 %v9046
    %10263 = vmatpush1.bf16.msra.mxu0 %v9045
    %10264 = vmatprep.subr.bf16.mxu0 %v9050
    %10265 = vmatpush1.bf16.msra.mxu0 %v9049
    %10266 = vmatprep.subr.bf16.mxu0 %v9054
    %10267 = vmatpush1.bf16.msra.mxu0 %v9053
    %10268 = vmatprep.subr.bf16.mxu0 %v9058
    %10269 = vmatpush1.bf16.msra.mxu0 %v9057
    %10270 = vmatprep.subr.bf16.mxu0 %v9062
    %10271 = vmatpush1.bf16.msra.mxu0 %v9061
    %10272 = vmatprep.subr.bf16.mxu0 %v9066
    %10273 = vmatpush1.bf16.msra.mxu0 %v9065
    %10274 = vmatprep.subr.bf16.mxu0 %v9070
    %10275 = vmatpush1.bf16.msra.mxu0 %v9069
    %10276 = vmatprep.subr.bf16.mxu0 %v9074
    %10277 = vmatpush1.bf16.msra.mxu0 %v9073
    %10278 = vmatprep.subr.bf16.mxu0 %v9078
    %10279 = vmatpush1.bf16.msra.mxu0 %v9077
    %10280 = vmatprep.mubr.bf16.mxu0 %v7582
    %10281 = vmatmul.mubr.bf16.gmra.mrb[0].mxu0 %v7581
    %v10282 = vpop.f32.mrb[0].mxu0
    %v10283 = vadd.f32 %v10210, %v10282
    %v10284 = vpop.f32.mrb[0].mxu0
    %v10285 = vadd.f32 %v10212, %v10284
    %v10286 = vpop.f32.mrb[0].mxu0
    %v10287 = vadd.f32 %v10214, %v10286
    %v10288 = vpop.f32.mrb[0].mxu0
    %v10289 = vadd.f32 %v10216, %v10288
    %10290 = vmatprep.mubr.bf16.mxu0 %v7594
    %10291 = vmatmul.mubr.bf16.gmra.mrb[0].mxu0 %v7593
    %v10292 = vpop.f32.mrb[0].mxu0
    %v10293 = vadd.f32 %v10220, %v10292
    %v10294 = vpop.f32.mrb[0].mxu0
    %v10295 = vadd.f32 %v10222, %v10294
    %v10296 = vpop.f32.mrb[0].mxu0
    %v10297 = vadd.f32 %v10224, %v10296
    %v10298 = vpop.f32.mrb[0].mxu0
    %v10299 = vadd.f32 %v10226, %v10298
    %10300 = vmatprep.mubr.bf16.mxu0 %v7606
    %10301 = vmatmul.mubr.bf16.gmra.mrb[0].mxu0 %v7605
    %v10302 = vpop.f32.mrb[0].mxu0
    %v10303 = vadd.f32 %v10230, %v10302
    %v10304 = vpop.f32.mrb[0].mxu0
    %v10305 = vadd.f32 %v10232, %v10304
    %v10306 = vpop.f32.mrb[0].mxu0
    %v10307 = vadd.f32 %v10234, %v10306
    %v10308 = vpop.f32.mrb[0].mxu0
    %v10309 = vadd.f32 %v10236, %v10308
    %10310 = vmatprep.mubr.bf16.mxu0 %v7618
    %10311 = vmatmul.mubr.bf16.gmra.mrb[0].mxu0 %v7617
    %v10312 = vpop.f32.mrb[0].mxu0
    %v10313 = vadd.f32 %v10240, %v10312
    %v10314 = vpop.f32.mrb[0].mxu0
    %v10315 = vadd.f32 %v10242, %v10314
    %v10316 = vpop.f32.mrb[0].mxu0
    %v10317 = vadd.f32 %v10244, %v10316
    %v10318 = vpop.f32.mrb[0].mxu0
    %v10319 = vadd.f32 %v10246, %v10318
    %10320 = vdwg.mxu0
    %10321 = vmatprep.subr.bf16.mxu0 %v9082
    %10322 = vmatpush1.bf16.msra.mxu0 %v9081
    %10323 = vmatprep.subr.bf16.mxu0 %v9086
    %10324 = vmatpush1.bf16.msra.mxu0 %v9085
    %10325 = vmatprep.subr.bf16.mxu0 %v9090
    %10326 = vmatpush1.bf16.msra.mxu0 %v9089
    %10327 = vmatprep.subr.bf16.mxu0 %v9094
    %10328 = vmatpush1.bf16.msra.mxu0 %v9093
    %10329 = vmatprep.subr.bf16.mxu0 %v9098
    %10330 = vmatpush1.bf16.msra.mxu0 %v9097
    %10331 = vmatprep.subr.bf16.mxu0 %v9102
    %10332 = vmatpush1.bf16.msra.mxu0 %v9101
    %10333 = vmatprep.subr.bf16.mxu0 %v9106
    %10334 = vmatpush1.bf16.msra.mxu0 %v9105
    %10335 = vmatprep.subr.bf16.mxu0 %v9110
    %10336 = vmatpush1.bf16.msra.mxu0 %v9109
    %10337 = vmatprep.subr.bf16.mxu0 %v9114
    %10338 = vmatpush1.bf16.msra.mxu0 %v9113
    %10339 = vmatprep.subr.bf16.mxu0 %v9118
    %10340 = vmatpush1.bf16.msra.mxu0 %v9117
    %10341 = vmatprep.subr.bf16.mxu0 %v9122
    %10342 = vmatpush1.bf16.msra.mxu0 %v9121
    %10343 = vmatprep.subr.bf16.mxu0 %v9126
    %10344 = vmatpush1.bf16.msra.mxu0 %v9125
    %10345 = vmatprep.subr.bf16.mxu0 %v9130
    %10346 = vmatpush1.bf16.msra.mxu0 %v9129
    %10347 = vmatprep.subr.bf16.mxu0 %v9134
    %10348 = vmatpush1.bf16.msra.mxu0 %v9133
    %10349 = vmatprep.subr.bf16.mxu0 %v9138
    %10350 = vmatpush1.bf16.msra.mxu0 %v9137
    %10351 = vmatprep.subr.bf16.mxu0 %v9142
    %10352 = vmatpush1.bf16.msra.mxu0 %v9141
    %10353 = vmatprep.mubr.bf16.mxu0 %v7584
    %10354 = vmatmul.mubr.bf16.gmra.mrb[0].mxu0 %v7583
    %v10355 = vpop.f32.mrb[0].mxu0
    %v10356 = vadd.f32 %v10283, %v10355
    %v10357 = vpop.f32.mrb[0].mxu0
    %v10358 = vadd.f32 %v10285, %v10357
    %v10359 = vpop.f32.mrb[0].mxu0
    %v10360 = vadd.f32 %v10287, %v10359
    %v10361 = vpop.f32.mrb[0].mxu0
    %v10362 = vadd.f32 %v10289, %v10361
    %10363 = vmatprep.mubr.bf16.mxu0 %v7596
    %10364 = vmatmul.mubr.bf16.gmra.mrb[0].mxu0 %v7595
    %v10365 = vpop.f32.mrb[0].mxu0
    %v10366 = vadd.f32 %v10293, %v10365
    %v10367 = vpop.f32.mrb[0].mxu0
    %v10368 = vadd.f32 %v10295, %v10367
    %v10369 = vpop.f32.mrb[0].mxu0
    %v10370 = vadd.f32 %v10297, %v10369
    %v10371 = vpop.f32.mrb[0].mxu0
    %v10372 = vadd.f32 %v10299, %v10371
    %10373 = vmatprep.mubr.bf16.mxu0 %v7608
    %10374 = vmatmul.mubr.bf16.gmra.mrb[0].mxu0 %v7607
    %v10375 = vpop.f32.mrb[0].mxu0
    %v10376 = vadd.f32 %v10303, %v10375
    %v10377 = vpop.f32.mrb[0].mxu0
    %v10378 = vadd.f32 %v10305, %v10377
    %v10379 = vpop.f32.mrb[0].mxu0
    %v10380 = vadd.f32 %v10307, %v10379
    %v10381 = vpop.f32.mrb[0].mxu0
    %v10382 = vadd.f32 %v10309, %v10381
    %10383 = vmatprep.mubr.bf16.mxu0 %v7620
    %10384 = vmatmul.mubr.bf16.gmra.mrb[0].mxu0 %v7619
    %v10385 = vpop.f32.mrb[0].mxu0
    %v10386 = vadd.f32 %v10313, %v10385
    %v10387 = vpop.f32.mrb[0].mxu0
    %v10388 = vadd.f32 %v10315, %v10387
    %v10389 = vpop.f32.mrb[0].mxu0
    %v10390 = vadd.f32 %v10317, %v10389
    %v10391 = vpop.f32.mrb[0].mxu0
    %v10392 = vadd.f32 %v10319, %v10391
    %10393 = vdwg.mxu0
    %10394 = vmatprep.subr.bf16.mxu0 %v9146
    %10395 = vmatpush1.bf16.msra.mxu0 %v9145
    %10396 = vmatprep.subr.bf16.mxu0 %v9150
    %10397 = vmatpush1.bf16.msra.mxu0 %v9149
    %10398 = vmatprep.subr.bf16.mxu0 %v9154
    %10399 = vmatpush1.bf16.msra.mxu0 %v9153
    %10400 = vmatprep.subr.bf16.mxu0 %v9158
    %10401 = vmatpush1.bf16.msra.mxu0 %v9157
    %10402 = vmatprep.subr.bf16.mxu0 %v9162
    %10403 = vmatpush1.bf16.msra.mxu0 %v9161
    %10404 = vmatprep.subr.bf16.mxu0 %v9166
    %10405 = vmatpush1.bf16.msra.mxu0 %v9165
    %10406 = vmatprep.subr.bf16.mxu0 %v9170
    %10407 = vmatpush1.bf16.msra.mxu0 %v9169
    %10408 = vmatprep.subr.bf16.mxu0 %v9174
    %10409 = vmatpush1.bf16.msra.mxu0 %v9173
    %10410 = vmatprep.subr.bf16.mxu0 %v9178
    %10411 = vmatpush1.bf16.msra.mxu0 %v9177
    %10412 = vmatprep.subr.bf16.mxu0 %v9182
    %10413 = vmatpush1.bf16.msra.mxu0 %v9181
    %10414 = vmatprep.subr.bf16.mxu0 %v9186
    %10415 = vmatpush1.bf16.msra.mxu0 %v9185
    %10416 = vmatprep.subr.bf16.mxu0 %v9190
    %10417 = vmatpush1.bf16.msra.mxu0 %v9189
    %10418 = vmatprep.subr.bf16.mxu0 %v9194
    %10419 = vmatpush1.bf16.msra.mxu0 %v9193
    %10420 = vmatprep.subr.bf16.mxu0 %v9198
    %10421 = vmatpush1.bf16.msra.mxu0 %v9197
    %10422 = vmatprep.subr.bf16.mxu0 %v9202
    %10423 = vmatpush1.bf16.msra.mxu0 %v9201
    %10424 = vmatprep.subr.bf16.mxu0 %v9206
    %10425 = vmatpush1.bf16.msra.mxu0 %v9205
    %10426 = vmatprep.mubr.bf16.mxu0 %v7586
    %10427 = vmatmul.mubr.bf16.gmra.mrb[0].mxu0 %v7585
    %v10428 = vpop.f32.mrb[0].mxu0
    %v10429 = vadd.f32 %v10356, %v10428
    %v10430 = vpop.f32.mrb[0].mxu0
    %v10431 = vadd.f32 %v10358, %v10430
    %v10432 = vpop.f32.mrb[0].mxu0
    %v10433 = vadd.f32 %v10360, %v10432
    %v10434 = vpop.f32.mrb[0].mxu0
    %v10435 = vadd.f32 %v10362, %v10434
    %10436 = vmatprep.mubr.bf16.mxu0 %v7598
    %10437 = vmatmul.mubr.bf16.gmra.mrb[0].mxu0 %v7597
    %v10438 = vpop.f32.mrb[0].mxu0
    %v10439 = vadd.f32 %v10366, %v10438
    %v10440 = vpop.f32.mrb[0].mxu0
    %v10441 = vadd.f32 %v10368, %v10440
    %v10442 = vpop.f32.mrb[0].mxu0
    %v10443 = vadd.f32 %v10370, %v10442
    %v10444 = vpop.f32.mrb[0].mxu0
    %v10445 = vadd.f32 %v10372, %v10444
    %10446 = vmatprep.mubr.bf16.mxu0 %v7610
    %10447 = vmatmul.mubr.bf16.gmra.mrb[0].mxu0 %v7609
    %v10448 = vpop.f32.mrb[0].mxu0
    %v10449 = vadd.f32 %v10376, %v10448
    %v10450 = vpop.f32.mrb[0].mxu0
    %v10451 = vadd.f32 %v10378, %v10450
    %v10452 = vpop.f32.mrb[0].mxu0
    %v10453 = vadd.f32 %v10380, %v10452
    %v10454 = vpop.f32.mrb[0].mxu0
    %v10455 = vadd.f32 %v10382, %v10454
    %10456 = vmatprep.mubr.bf16.mxu0 %v7622
    %10457 = vmatmul.mubr.bf16.gmra.mrb[0].mxu0 %v7621
    %v10458 = vpop.f32.mrb[0].mxu0
    %v10459 = vadd.f32 %v10386, %v10458
    %v10460 = vpop.f32.mrb[0].mxu0
    %v10461 = vadd.f32 %v10388, %v10460
    %v10462 = vpop.f32.mrb[0].mxu0
    %v10463 = vadd.f32 %v10390, %v10462
    %v10464 = vpop.f32.mrb[0].mxu0
    %v10465 = vadd.f32 %v10392, %v10464
    %10466 = vdwg.mxu0
    %v10467 = vadd.f32 %v6518, %v9991
    %v10468 = vadd.f32 %v6520, %v9993
    %v10469 = vadd.f32 %v6956, %v10429
    %v10470 = vadd.f32 %v6958, %v10431
    %v10471 = vadd.f32 %v6522, %v9995
    %v10472 = vadd.f32 %v6524, %v9997
    %v10473 = vadd.f32 %v6960, %v10433
    %v10474 = vadd.f32 %v6962, %v10435
    %v10475 = vadd.f32 %v6528, %v10001
    %v10476 = vadd.f32 %v6530, %v10003
    %v10477 = vadd.f32 %v6966, %v10439
    %v10478 = vadd.f32 %v6968, %v10441
    %v10479 = vadd.f32 %v6532, %v10005
    %v10480 = vadd.f32 %v6534, %v10007
    %v10481 = vadd.f32 %v6970, %v10443
    %v10482 = vadd.f32 %v6972, %v10445
    %v10483 = vadd.f32 %v6538, %v10011
    %v10484 = vadd.f32 %v6540, %v10013
    %v10485 = vadd.f32 %v6976, %v10449
    %v10486 = vadd.f32 %v6978, %v10451
    %v10487 = vadd.f32 %v6542, %v10015
    %v10488 = vadd.f32 %v6544, %v10017
    %v10489 = vadd.f32 %v6980, %v10453
    %v10490 = vadd.f32 %v6982, %v10455
    %v10491 = vadd.f32 %v6548, %v10021
    %v10492 = vadd.f32 %v6550, %v10023
    %v10493 = vadd.f32 %v6986, %v10459
    %v10494 = vadd.f32 %v6988, %v10461
    %v10495 = vadd.f32 %v6552, %v10025
    %v10496 = vadd.f32 %v6554, %v10027
    %v10497 = vadd.f32 %v6990, %v10463
    %v10498 = vadd.f32 %v6992, %v10465
    %v10499 = vld [vmem:[#allocation4] sm:$0xf]
    %v10501 = vlaneseq
    %v10502 = vshrl.u32 %v10501, 7
    %v10503 = vsub.s32 0, %v10502
    %v10504 = vrot.slane %v10499, %v10503
    %v10505 = vlaneseq
    %v10506 = vshrl.u32 %v10505, 7
    %v10507 = vsub.s32 1, %v10506
    %v10508 = vrot.slane %v10499, %v10507
    %v10509 = vlaneseq
    %v10510 = vshrl.u32 %v10509, 7
    %v10511 = vsub.s32 2, %v10510
    %v10512 = vrot.slane %v10499, %v10511
    %v10513 = vlaneseq
    %v10514 = vshrl.u32 %v10513, 7
    %v10515 = vsub.s32 3, %v10514
    %v10516 = vrot.slane %v10499, %v10515
    %v10521 = vadd.f32 %v10467, %v10504
    %v10522 = vadd.f32 %v10468, %v10508
    %v10523 = vadd.f32 %v10469, %v10512
    %v10524 = vadd.f32 %v10470, %v10516
    %v10525 = vadd.f32 %v10471, %v10504
    %v10526 = vadd.f32 %v10472, %v10508
    %v10527 = vadd.f32 %v10473, %v10512
    %v10528 = vadd.f32 %v10474, %v10516
    %v10529 = vadd.f32 %v10475, %v10504
    %v10530 = vadd.f32 %v10476, %v10508
    %v10531 = vadd.f32 %v10477, %v10512
    %v10532 = vadd.f32 %v10478, %v10516
    %v10533 = vadd.f32 %v10479, %v10504
    %v10534 = vadd.f32 %v10480, %v10508
    %v10535 = vadd.f32 %v10481, %v10512
    %v10536 = vadd.f32 %v10482, %v10516
    %v10537 = vadd.f32 %v10483, %v10504
    %v10538 = vadd.f32 %v10484, %v10508
    %v10539 = vadd.f32 %v10485, %v10512
    %v10540 = vadd.f32 %v10486, %v10516
    %v10541 = vadd.f32 %v10487, %v10504
    %v10542 = vadd.f32 %v10488, %v10508
    %v10543 = vadd.f32 %v10489, %v10512
    %v10544 = vadd.f32 %v10490, %v10516
    %v10545 = vadd.f32 %v10491, %v10504
    %v10546 = vadd.f32 %v10492, %v10508
    %v10547 = vadd.f32 %v10493, %v10512
    %v10548 = vadd.f32 %v10494, %v10516
    %v10549 = vadd.f32 %v10495, %v10504
    %v10550 = vadd.f32 %v10496, %v10508
    %v10551 = vadd.f32 %v10497, %v10512
    %v10552 = vadd.f32 %v10498, %v10516
    %v10553 = vmax.f32 %v10521, 0.0
    %v10554 = vmax.f32 %v10522, 0.0
    %v10555 = vmax.f32 %v10523, 0.0
    %v10556 = vmax.f32 %v10524, 0.0
    %v10557 = vmax.f32 %v10525, 0.0
    %v10558 = vmax.f32 %v10526, 0.0
    %v10559 = vmax.f32 %v10527, 0.0
    %v10560 = vmax.f32 %v10528, 0.0
    %v10561 = vmax.f32 %v10529, 0.0
    %v10562 = vmax.f32 %v10530, 0.0
    %v10563 = vmax.f32 %v10531, 0.0
    %v10564 = vmax.f32 %v10532, 0.0
    %v10565 = vmax.f32 %v10533, 0.0
    %v10566 = vmax.f32 %v10534, 0.0
    %v10567 = vmax.f32 %v10535, 0.0
    %v10568 = vmax.f32 %v10536, 0.0
    %v10569 = vmax.f32 %v10537, 0.0
    %v10570 = vmax.f32 %v10538, 0.0
    %v10571 = vmax.f32 %v10539, 0.0
    %v10572 = vmax.f32 %v10540, 0.0
    %v10573 = vmax.f32 %v10541, 0.0
    %v10574 = vmax.f32 %v10542, 0.0
    %v10575 = vmax.f32 %v10543, 0.0
    %v10576 = vmax.f32 %v10544, 0.0
    %v10577 = vmax.f32 %v10545, 0.0
    %v10578 = vmax.f32 %v10546, 0.0
    %v10579 = vmax.f32 %v10547, 0.0
    %v10580 = vmax.f32 %v10548, 0.0
    %v10581 = vmax.f32 %v10549, 0.0
    %v10582 = vmax.f32 %v10550, 0.0
    %v10583 = vmax.f32 %v10551, 0.0
    %v10584 = vmax.f32 %v10552, 0.0
    %v10585 = vpack.c.bf16 %v10557, %v10553
    %v10586 = vpack.c.bf16 %v10558, %v10554
    %v10587 = vpack.c.bf16 %v10559, %v10555
    %v10588 = vpack.c.bf16 %v10560, %v10556
    %v10589 = vpack.c.bf16 %v10565, %v10561
    %v10590 = vpack.c.bf16 %v10566, %v10562
    %v10591 = vpack.c.bf16 %v10567, %v10563
    %v10592 = vpack.c.bf16 %v10568, %v10564
    %v10593 = vpack.c.bf16 %v10573, %v10569
    %v10594 = vpack.c.bf16 %v10574, %v10570
    %v10595 = vpack.c.bf16 %v10575, %v10571
    %v10596 = vpack.c.bf16 %v10576, %v10572
    %v10597 = vpack.c.bf16 %v10581, %v10577
    %v10598 = vpack.c.bf16 %v10582, %v10578
    %v10599 = vpack.c.bf16 %v10583, %v10579
    %v10600 = vpack.c.bf16 %v10584, %v10580
    %v10617 = vunpack.c.l.b16 %v10585
    %v10618 = vunpack.c.l.b16 %v10586
    %v10619 = vunpack.c.l.b16 %v10587
    %v10620 = vunpack.c.l.b16 %v10588
    %v10621 = vunpack.c.h.b16 %v10585
    %v10622 = vunpack.c.h.b16 %v10586
    %v10623 = vunpack.c.h.b16 %v10587
    %v10624 = vunpack.c.h.b16 %v10588
    %v10625 = vunpack.c.l.b16 %v10589
    %v10626 = vunpack.c.l.b16 %v10590
    %v10627 = vunpack.c.l.b16 %v10591
    %v10628 = vunpack.c.l.b16 %v10592
    %v10629 = vunpack.c.h.b16 %v10589
    %v10630 = vunpack.c.h.b16 %v10590
    %v10631 = vunpack.c.h.b16 %v10591
    %v10632 = vunpack.c.h.b16 %v10592
    %v10633 = vunpack.c.l.b16 %v10593
    %v10634 = vunpack.c.l.b16 %v10594
    %v10635 = vunpack.c.l.b16 %v10595
    %v10636 = vunpack.c.l.b16 %v10596
    %v10637 = vunpack.c.h.b16 %v10593
    %v10638 = vunpack.c.h.b16 %v10594
    %v10639 = vunpack.c.h.b16 %v10595
    %v10640 = vunpack.c.h.b16 %v10596
    %v10641 = vunpack.c.l.b16 %v10597
    %v10642 = vunpack.c.l.b16 %v10598
    %v10643 = vunpack.c.l.b16 %v10599
    %v10644 = vunpack.c.l.b16 %v10600
    %v10645 = vunpack.c.h.b16 %v10597
    %v10646 = vunpack.c.h.b16 %v10598
    %v10647 = vunpack.c.h.b16 %v10599
    %v10648 = vunpack.c.h.b16 %v10600
    %v10649 = vpack.c.b16 %v10618, %v10617
    %v10650 = vpack.c.b16 %v10620, %v10619
    %v10651 = vpack.c.b16 %v10622, %v10621
    %v10652 = vpack.c.b16 %v10624, %v10623
    %v10653 = vpack.c.b16 %v10626, %v10625
    %v10654 = vpack.c.b16 %v10628, %v10627
    %v10655 = vpack.c.b16 %v10630, %v10629
    %v10656 = vpack.c.b16 %v10632, %v10631
    %v10657 = vpack.c.b16 %v10634, %v10633
    %v10658 = vpack.c.b16 %v10636, %v10635
    %v10659 = vpack.c.b16 %v10638, %v10637
    %v10660 = vpack.c.b16 %v10640, %v10639
    %v10661 = vpack.c.b16 %v10642, %v10641
    %v10662 = vpack.c.b16 %v10644, %v10643
    %v10663 = vpack.c.b16 %v10646, %v10645
    %v10664 = vpack.c.b16 %v10648, %v10647
    %10681 = vst [vmem:[%s5] sm:$0xff] %v10649
    %10682 = vst [vmem:[%s5 + $0x8] sm:$0xff] %v10650
    %10683 = vst [vmem:[%s5 + $0x10] sm:$0xff] %v10651
    %10684 = vst [vmem:[%s5 + $0x18] sm:$0xff] %v10652
    %10685 = vst [vmem:[%s5 + $0x20] sm:$0xff] %v10653
    %10686 = vst [vmem:[%s5 + $0x28] sm:$0xff] %v10654
    %10687 = vst [vmem:[%s5 + $0x30] sm:$0xff] %v10655
    %10688 = vst [vmem:[%s5 + $0x38] sm:$0xff] %v10656
    %10689 = vst [vmem:[%s5 + $0x40] sm:$0xff] %v10657
    %10690 = vst [vmem:[%s5 + $0x48] sm:$0xff] %v10658
    %10691 = vst [vmem:[%s5 + $0x50] sm:$0xff] %v10659
    %10692 = vst [vmem:[%s5 + $0x58] sm:$0xff] %v10660
    %10693 = vst [vmem:[%s5 + $0x60] sm:$0xff] %v10661
    %10694 = vst [vmem:[%s5 + $0x68] sm:$0xff] %v10662
    %10695 = vst [vmem:[%s5 + $0x70] sm:$0xff] %v10663
    %10696 = vst [vmem:[%s5 + $0x78] sm:$0xff] %v10664
    %v10697 = vld [vmem:[%s3] sm:$0xff]
    %v10698 = vld [vmem:[%s3 + $0x8] sm:$0xf]
    %v10699 = vld [vmem:[%s3 + $0xc] sm:$0xff]
    %v10700 = vld [vmem:[%s3 + $0x14] sm:$0xf]
    %v10701 = vld [vmem:[%s3 + $0x18] sm:$0xff]
    %v10702 = vld [vmem:[%s3 + $0x20] sm:$0xf]
    %v10703 = vld [vmem:[%s3 + $0x24] sm:$0xff]
    %v10704 = vld [vmem:[%s3 + $0x2c] sm:$0xf]
    %v10705 = vld [vmem:[%s3 + $0x30] sm:$0xff]
    %v10706 = vld [vmem:[%s3 + $0x38] sm:$0xf]
    %v10707 = vld [vmem:[%s3 + $0x3c] sm:$0xff]
    %v10708 = vld [vmem:[%s3 + $0x44] sm:$0xf]
    %v10709 = vld [vmem:[%s3 + $0x48] sm:$0xff]
    %v10710 = vld [vmem:[%s3 + $0x50] sm:$0xf]
    %v10711 = vld [vmem:[%s3 + $0x54] sm:$0xff]
    %v10712 = vld [vmem:[%s3 + $0x5c] sm:$0xf]
    %v10713 = vld [vmem:[%s3 + $0x60] sm:$0xff]
    %v10714 = vld [vmem:[%s3 + $0x68] sm:$0xf]
    %v10715 = vld [vmem:[%s3 + $0x6c] sm:$0xff]
    %v10716 = vld [vmem:[%s3 + $0x74] sm:$0xf]
    %v10717 = vld [vmem:[%s3 + $0x78] sm:$0xff]
    %v10718 = vld [vmem:[%s3 + $0x80] sm:$0xf]
    %v10719 = vld [vmem:[%s3 + $0x84] sm:$0xff]
    %v10720 = vld [vmem:[%s3 + $0x8c] sm:$0xf]
    %v10721 = vld [vmem:[%s3 + $0x90] sm:$0xff]
    %v10722 = vld [vmem:[%s3 + $0x98] sm:$0xf]
    %v10723 = vld [vmem:[%s3 + $0x9c] sm:$0xff]
    %v10724 = vld [vmem:[%s3 + $0xa4] sm:$0xf]
    %v10725 = vld [vmem:[%s3 + $0xa8] sm:$0xff]
    %v10726 = vld [vmem:[%s3 + $0xb0] sm:$0xf]
    %v10727 = vld [vmem:[%s3 + $0xb4] sm:$0xff]
    %v10728 = vld [vmem:[%s3 + $0xbc] sm:$0xf]
    %v10729 = vld [vmem:[%s3 + $0xc0] sm:$0xff]
    %v10730 = vld [vmem:[%s3 + $0xc8] sm:$0xf]
    %v10731 = vld [vmem:[%s3 + $0xcc] sm:$0xff]
    %v10732 = vld [vmem:[%s3 + $0xd4] sm:$0xf]
    %v10733 = vld [vmem:[%s3 + $0xd8] sm:$0xff]
    %v10734 = vld [vmem:[%s3 + $0xe0] sm:$0xf]
    %v10735 = vld [vmem:[%s3 + $0xe4] sm:$0xff]
    %v10736 = vld [vmem:[%s3 + $0xec] sm:$0xf]
    %v10737 = vld [vmem:[%s3 + $0xf0] sm:$0xff]
    %v10738 = vld [vmem:[%s3 + $0xf8] sm:$0xf]
    %v10739 = vld [vmem:[%s3 + $0xfc] sm:$0xff]
    %v10740 = vld [vmem:[%s3 + $0x104] sm:$0xf]
    %v10741 = vld [vmem:[%s3 + $0x108] sm:$0xff]
    %v10742 = vld [vmem:[%s3 + $0x110] sm:$0xf]
    %v10743 = vld [vmem:[%s3 + $0x114] sm:$0xff]
    %v10744 = vld [vmem:[%s3 + $0x11c] sm:$0xf]
    %v10745 = vld [vmem:[%s3 + $0x120] sm:$0xff]
    %v10746 = vld [vmem:[%s3 + $0x128] sm:$0xf]
    %v10747 = vld [vmem:[%s3 + $0x12c] sm:$0xff]
    %v10748 = vld [vmem:[%s3 + $0x134] sm:$0xf]
    %v10749 = vld [vmem:[%s3 + $0x138] sm:$0xff]
    %v10750 = vld [vmem:[%s3 + $0x140] sm:$0xf]
    %v10751 = vld [vmem:[%s3 + $0x144] sm:$0xff]
    %v10752 = vld [vmem:[%s3 + $0x14c] sm:$0xf]
    %v10753 = vld [vmem:[%s3 + $0x150] sm:$0xff]
    %v10754 = vld [vmem:[%s3 + $0x158] sm:$0xf]
    %v10755 = vld [vmem:[%s3 + $0x15c] sm:$0xff]
    %v10756 = vld [vmem:[%s3 + $0x164] sm:$0xf]
    %v10757 = vld [vmem:[%s3 + $0x168] sm:$0xff]
    %v10758 = vld [vmem:[%s3 + $0x170] sm:$0xf]
    %v10759 = vld [vmem:[%s3 + $0x174] sm:$0xff]
    %v10760 = vld [vmem:[%s3 + $0x17c] sm:$0xf]
    %v10761 = vld [vmem:[%s3 + $0x180] sm:$0xff]
    %v10762 = vld [vmem:[%s3 + $0x188] sm:$0xf]
    %v10763 = vld [vmem:[%s3 + $0x18c] sm:$0xff]
    %v10764 = vld [vmem:[%s3 + $0x194] sm:$0xf]
    %v10765 = vld [vmem:[%s3 + $0x198] sm:$0xff]
    %v10766 = vld [vmem:[%s3 + $0x1a0] sm:$0xf]
    %v10767 = vld [vmem:[%s3 + $0x1a4] sm:$0xff]
    %v10768 = vld [vmem:[%s3 + $0x1ac] sm:$0xf]
    %v10769 = vld [vmem:[%s3 + $0x1b0] sm:$0xff]
    %v10770 = vld [vmem:[%s3 + $0x1b8] sm:$0xf]
    %v10771 = vld [vmem:[%s3 + $0x1bc] sm:$0xff]
    %v10772 = vld [vmem:[%s3 + $0x1c4] sm:$0xf]
    %v10773 = vld [vmem:[%s3 + $0x1c8] sm:$0xff]
    %v10774 = vld [vmem:[%s3 + $0x1d0] sm:$0xf]
    %v10775 = vld [vmem:[%s3 + $0x1d4] sm:$0xff]
    %v10776 = vld [vmem:[%s3 + $0x1dc] sm:$0xf]
    %v10777 = vld [vmem:[%s3 + $0x1e0] sm:$0xff]
    %v10778 = vld [vmem:[%s3 + $0x1e8] sm:$0xf]
    %v10779 = vld [vmem:[%s3 + $0x1ec] sm:$0xff]
    %v10780 = vld [vmem:[%s3 + $0x1f4] sm:$0xf]
    %v10781 = vld [vmem:[%s3 + $0x1f8] sm:$0xff]
    %v10782 = vld [vmem:[%s3 + $0x200] sm:$0xf]
    %v10783 = vld [vmem:[%s3 + $0x204] sm:$0xff]
    %v10784 = vld [vmem:[%s3 + $0x20c] sm:$0xf]
    %v10785 = vld [vmem:[%s3 + $0x210] sm:$0xff]
    %v10786 = vld [vmem:[%s3 + $0x218] sm:$0xf]
    %v10787 = vld [vmem:[%s3 + $0x21c] sm:$0xff]
    %v10788 = vld [vmem:[%s3 + $0x224] sm:$0xf]
    %v10789 = vld [vmem:[%s3 + $0x228] sm:$0xff]
    %v10790 = vld [vmem:[%s3 + $0x230] sm:$0xf]
    %v10791 = vld [vmem:[%s3 + $0x234] sm:$0xff]
    %v10792 = vld [vmem:[%s3 + $0x23c] sm:$0xf]
    %v10793 = vld [vmem:[%s3 + $0x240] sm:$0xff]
    %v10794 = vld [vmem:[%s3 + $0x248] sm:$0xf]
    %v10795 = vld [vmem:[%s3 + $0x24c] sm:$0xff]
    %v10796 = vld [vmem:[%s3 + $0x254] sm:$0xf]
    %v10797 = vld [vmem:[%s3 + $0x258] sm:$0xff]
    %v10798 = vld [vmem:[%s3 + $0x260] sm:$0xf]
    %v10799 = vld [vmem:[%s3 + $0x264] sm:$0xff]
    %v10800 = vld [vmem:[%s3 + $0x26c] sm:$0xf]
    %v10801 = vld [vmem:[%s3 + $0x270] sm:$0xff]
    %v10802 = vld [vmem:[%s3 + $0x278] sm:$0xf]
    %v10803 = vld [vmem:[%s3 + $0x27c] sm:$0xff]
    %v10804 = vld [vmem:[%s3 + $0x284] sm:$0xf]
    %v10805 = vld [vmem:[%s3 + $0x288] sm:$0xff]
    %v10806 = vld [vmem:[%s3 + $0x290] sm:$0xf]
    %v10807 = vld [vmem:[%s3 + $0x294] sm:$0xff]
    %v10808 = vld [vmem:[%s3 + $0x29c] sm:$0xf]
    %v10809 = vld [vmem:[%s3 + $0x2a0] sm:$0xff]
    %v10810 = vld [vmem:[%s3 + $0x2a8] sm:$0xf]
    %v10811 = vld [vmem:[%s3 + $0x2ac] sm:$0xff]
    %v10812 = vld [vmem:[%s3 + $0x2b4] sm:$0xf]
    %v10813 = vld [vmem:[%s3 + $0x2b8] sm:$0xff]
    %v10814 = vld [vmem:[%s3 + $0x2c0] sm:$0xf]
    %v10815 = vld [vmem:[%s3 + $0x2c4] sm:$0xff]
    %v10816 = vld [vmem:[%s3 + $0x2cc] sm:$0xf]
    %v10817 = vld [vmem:[%s3 + $0x2d0] sm:$0xff]
    %v10818 = vld [vmem:[%s3 + $0x2d8] sm:$0xf]
    %v10819 = vld [vmem:[%s3 + $0x2dc] sm:$0xff]
    %v10820 = vld [vmem:[%s3 + $0x2e4] sm:$0xf]
    %v10821 = vld [vmem:[%s3 + $0x2e8] sm:$0xff]
    %v10822 = vld [vmem:[%s3 + $0x2f0] sm:$0xf]
    %v10823 = vld [vmem:[%s3 + $0x2f4] sm:$0xff]
    %v10824 = vld [vmem:[%s3 + $0x2fc] sm:$0xf]
    %v10825 = vld [vmem:[%s4] sm:$0x7]
    %v10827 = vlaneseq
    %v10828 = vshrl.u32 %v10827, 7
    %v10829 = vsub.s32 0, %v10828
    %v10830 = vrot.slane %v10825, %v10829
    %v10831 = vlaneseq
    %v10832 = vshrl.u32 %v10831, 7
    %v10833 = vsub.s32 1, %v10832
    %v10834 = vrot.slane %v10825, %v10833
    %v10835 = vlaneseq
    %v10836 = vshrl.u32 %v10835, 7
    %v10837 = vsub.s32 2, %v10836
    %v10838 = vrot.slane %v10825, %v10837
    %v10970 = vunpack.c.l.b16 %v10697
    %v10971 = vunpack.c.h.b16 %v10697
    %v10972 = vunpack.c.l.b16 %v10698
    %v10973 = vunpack.c.l.b16 %v10699
    %v10974 = vunpack.c.h.b16 %v10699
    %v10975 = vunpack.c.l.b16 %v10700
    %v10976 = vunpack.c.l.b16 %v10701
    %v10977 = vunpack.c.h.b16 %v10701
    %v10978 = vunpack.c.l.b16 %v10702
    %v10979 = vunpack.c.l.b16 %v10703
    %v10980 = vunpack.c.h.b16 %v10703
    %v10981 = vunpack.c.l.b16 %v10704
    %v10982 = vunpack.c.l.b16 %v10705
    %v10983 = vunpack.c.h.b16 %v10705
    %v10984 = vunpack.c.l.b16 %v10706
    %v10985 = vunpack.c.l.b16 %v10707
    %v10986 = vunpack.c.h.b16 %v10707
    %v10987 = vunpack.c.l.b16 %v10708
    %v10988 = vunpack.c.l.b16 %v10709
    %v10989 = vunpack.c.h.b16 %v10709
    %v10990 = vunpack.c.l.b16 %v10710
    %v10991 = vunpack.c.l.b16 %v10711
    %v10992 = vunpack.c.h.b16 %v10711
    %v10993 = vunpack.c.l.b16 %v10712
    %v10994 = vunpack.c.l.b16 %v10713
    %v10995 = vunpack.c.h.b16 %v10713
    %v10996 = vunpack.c.l.b16 %v10714
    %v10997 = vunpack.c.l.b16 %v10715
    %v10998 = vunpack.c.h.b16 %v10715
    %v10999 = vunpack.c.l.b16 %v10716
    %v11000 = vunpack.c.l.b16 %v10717
    %v11001 = vunpack.c.h.b16 %v10717
    %v11002 = vunpack.c.l.b16 %v10718
    %v11003 = vunpack.c.l.b16 %v10719
    %v11004 = vunpack.c.h.b16 %v10719
    %v11005 = vunpack.c.l.b16 %v10720
    %v11006 = vunpack.c.l.b16 %v10721
    %v11007 = vunpack.c.h.b16 %v10721
    %v11008 = vunpack.c.l.b16 %v10722
    %v11009 = vunpack.c.l.b16 %v10723
    %v11010 = vunpack.c.h.b16 %v10723
    %v11011 = vunpack.c.l.b16 %v10724
    %v11012 = vunpack.c.l.b16 %v10725
    %v11013 = vunpack.c.h.b16 %v10725
    %v11014 = vunpack.c.l.b16 %v10726
    %v11015 = vunpack.c.l.b16 %v10727
    %v11016 = vunpack.c.h.b16 %v10727
    %v11017 = vunpack.c.l.b16 %v10728
    %v11018 = vunpack.c.l.b16 %v10729
    %v11019 = vunpack.c.h.b16 %v10729
    %v11020 = vunpack.c.l.b16 %v10730
    %v11021 = vunpack.c.l.b16 %v10731
    %v11022 = vunpack.c.h.b16 %v10731
    %v11023 = vunpack.c.l.b16 %v10732
    %v11024 = vunpack.c.l.b16 %v10733
    %v11025 = vunpack.c.h.b16 %v10733
    %v11026 = vunpack.c.l.b16 %v10734
    %v11027 = vunpack.c.l.b16 %v10735
    %v11028 = vunpack.c.h.b16 %v10735
    %v11029 = vunpack.c.l.b16 %v10736
    %v11030 = vunpack.c.l.b16 %v10737
    %v11031 = vunpack.c.h.b16 %v10737
    %v11032 = vunpack.c.l.b16 %v10738
    %v11033 = vunpack.c.l.b16 %v10739
    %v11034 = vunpack.c.h.b16 %v10739
    %v11035 = vunpack.c.l.b16 %v10740
    %v11036 = vunpack.c.l.b16 %v10741
    %v11037 = vunpack.c.h.b16 %v10741
    %v11038 = vunpack.c.l.b16 %v10742
    %v11039 = vunpack.c.l.b16 %v10743
    %v11040 = vunpack.c.h.b16 %v10743
    %v11041 = vunpack.c.l.b16 %v10744
    %v11042 = vunpack.c.l.b16 %v10745
    %v11043 = vunpack.c.h.b16 %v10745
    %v11044 = vunpack.c.l.b16 %v10746
    %v11045 = vunpack.c.l.b16 %v10747
    %v11046 = vunpack.c.h.b16 %v10747
    %v11047 = vunpack.c.l.b16 %v10748
    %v11048 = vunpack.c.l.b16 %v10749
    %v11049 = vunpack.c.h.b16 %v10749
    %v11050 = vunpack.c.l.b16 %v10750
    %v11051 = vunpack.c.l.b16 %v10751
    %v11052 = vunpack.c.h.b16 %v10751
    %v11053 = vunpack.c.l.b16 %v10752
    %v11054 = vunpack.c.l.b16 %v10753
    %v11055 = vunpack.c.h.b16 %v10753
    %v11056 = vunpack.c.l.b16 %v10754
    %v11057 = vunpack.c.l.b16 %v10755
    %v11058 = vunpack.c.h.b16 %v10755
    %v11059 = vunpack.c.l.b16 %v10756
    %v11060 = vunpack.c.l.b16 %v10757
    %v11061 = vunpack.c.h.b16 %v10757
    %v11062 = vunpack.c.l.b16 %v10758
    %v11063 = vunpack.c.l.b16 %v10759
    %v11064 = vunpack.c.h.b16 %v10759
    %v11065 = vunpack.c.l.b16 %v10760
    %v11066 = vunpack.c.l.b16 %v10761
    %v11067 = vunpack.c.h.b16 %v10761
    %v11068 = vunpack.c.l.b16 %v10762
    %v11069 = vunpack.c.l.b16 %v10763
    %v11070 = vunpack.c.h.b16 %v10763
    %v11071 = vunpack.c.l.b16 %v10764
    %v11072 = vunpack.c.l.b16 %v10765
    %v11073 = vunpack.c.h.b16 %v10765
    %v11074 = vunpack.c.l.b16 %v10766
    %v11075 = vunpack.c.l.b16 %v10767
    %v11076 = vunpack.c.h.b16 %v10767
    %v11077 = vunpack.c.l.b16 %v10768
    %v11078 = vunpack.c.l.b16 %v10769
    %v11079 = vunpack.c.h.b16 %v10769
    %v11080 = vunpack.c.l.b16 %v10770
    %v11081 = vunpack.c.l.b16 %v10771
    %v11082 = vunpack.c.h.b16 %v10771
    %v11083 = vunpack.c.l.b16 %v10772
    %v11084 = vunpack.c.l.b16 %v10773
    %v11085 = vunpack.c.h.b16 %v10773
    %v11086 = vunpack.c.l.b16 %v10774
    %v11087 = vunpack.c.l.b16 %v10775
    %v11088 = vunpack.c.h.b16 %v10775
    %v11089 = vunpack.c.l.b16 %v10776
    %v11090 = vunpack.c.l.b16 %v10777
    %v11091 = vunpack.c.h.b16 %v10777
    %v11092 = vunpack.c.l.b16 %v10778
    %v11093 = vunpack.c.l.b16 %v10779
    %v11094 = vunpack.c.h.b16 %v10779
    %v11095 = vunpack.c.l.b16 %v10780
    %v11096 = vunpack.c.l.b16 %v10781
    %v11097 = vunpack.c.h.b16 %v10781
    %v11098 = vunpack.c.l.b16 %v10782
    %v11099 = vunpack.c.l.b16 %v10783
    %v11100 = vunpack.c.h.b16 %v10783
    %v11101 = vunpack.c.l.b16 %v10784
    %v11102 = vunpack.c.l.b16 %v10785
    %v11103 = vunpack.c.h.b16 %v10785
    %v11104 = vunpack.c.l.b16 %v10786
    %v11105 = vunpack.c.l.b16 %v10787
    %v11106 = vunpack.c.h.b16 %v10787
    %v11107 = vunpack.c.l.b16 %v10788
    %v11108 = vunpack.c.l.b16 %v10789
    %v11109 = vunpack.c.h.b16 %v10789
    %v11110 = vunpack.c.l.b16 %v10790
    %v11111 = vunpack.c.l.b16 %v10791
    %v11112 = vunpack.c.h.b16 %v10791
    %v11113 = vunpack.c.l.b16 %v10792
    %v11114 = vunpack.c.l.b16 %v10793
    %v11115 = vunpack.c.h.b16 %v10793
    %v11116 = vunpack.c.l.b16 %v10794
    %v11117 = vunpack.c.l.b16 %v10795
    %v11118 = vunpack.c.h.b16 %v10795
    %v11119 = vunpack.c.l.b16 %v10796
    %v11120 = vunpack.c.l.b16 %v10797
    %v11121 = vunpack.c.h.b16 %v10797
    %v11122 = vunpack.c.l.b16 %v10798
    %v11123 = vunpack.c.l.b16 %v10799
    %v11124 = vunpack.c.h.b16 %v10799
    %v11125 = vunpack.c.l.b16 %v10800
    %v11126 = vunpack.c.l.b16 %v10801
    %v11127 = vunpack.c.h.b16 %v10801
    %v11128 = vunpack.c.l.b16 %v10802
    %v11129 = vunpack.c.l.b16 %v10803
    %v11130 = vunpack.c.h.b16 %v10803
    %v11131 = vunpack.c.l.b16 %v10804
    %v11132 = vunpack.c.l.b16 %v10805
    %v11133 = vunpack.c.h.b16 %v10805
    %v11134 = vunpack.c.l.b16 %v10806
    %v11135 = vunpack.c.l.b16 %v10807
    %v11136 = vunpack.c.h.b16 %v10807
    %v11137 = vunpack.c.l.b16 %v10808
    %v11138 = vunpack.c.l.b16 %v10809
    %v11139 = vunpack.c.h.b16 %v10809
    %v11140 = vunpack.c.l.b16 %v10810
    %v11141 = vunpack.c.l.b16 %v10811
    %v11142 = vunpack.c.h.b16 %v10811
    %v11143 = vunpack.c.l.b16 %v10812
    %v11144 = vunpack.c.l.b16 %v10813
    %v11145 = vunpack.c.h.b16 %v10813
    %v11146 = vunpack.c.l.b16 %v10814
    %v11147 = vunpack.c.l.b16 %v10815
    %v11148 = vunpack.c.h.b16 %v10815
    %v11149 = vunpack.c.l.b16 %v10816
    %v11150 = vunpack.c.l.b16 %v10817
    %v11151 = vunpack.c.h.b16 %v10817
    %v11152 = vunpack.c.l.b16 %v10818
    %v11153 = vunpack.c.l.b16 %v10819
    %v11154 = vunpack.c.h.b16 %v10819
    %v11155 = vunpack.c.l.b16 %v10820
    %v11156 = vunpack.c.l.b16 %v10821
    %v11157 = vunpack.c.h.b16 %v10821
    %v11158 = vunpack.c.l.b16 %v10822
    %v11159 = vunpack.c.l.b16 %v10823
    %v11160 = vunpack.c.h.b16 %v10823
    %v11161 = vunpack.c.l.b16 %v10824
    %v11162 = vpack.c.b16 %v10973, %v10970
    %v11163 = vpack.c.b16 %v10974, %v10971
    %v11164 = vpack.c.b16 %v10975, %v10972
    %v11165 = vpack.c.b16 %v10979, %v10976
    %v11166 = vpack.c.b16 %v10980, %v10977
    %v11167 = vpack.c.b16 %v10981, %v10978
    %v11168 = vpack.c.b16 %v10985, %v10982
    %v11169 = vpack.c.b16 %v10986, %v10983
    %v11170 = vpack.c.b16 %v10987, %v10984
    %v11171 = vpack.c.b16 %v10991, %v10988
    %v11172 = vpack.c.b16 %v10992, %v10989
    %v11173 = vpack.c.b16 %v10993, %v10990
    %v11174 = vpack.c.b16 %v10997, %v10994
    %v11175 = vpack.c.b16 %v10998, %v10995
    %v11176 = vpack.c.b16 %v10999, %v10996
    %v11177 = vpack.c.b16 %v11003, %v11000
    %v11178 = vpack.c.b16 %v11004, %v11001
    %v11179 = vpack.c.b16 %v11005, %v11002
    %v11180 = vpack.c.b16 %v11009, %v11006
    %v11181 = vpack.c.b16 %v11010, %v11007
    %v11182 = vpack.c.b16 %v11011, %v11008
    %v11183 = vpack.c.b16 %v11015, %v11012
    %v11184 = vpack.c.b16 %v11016, %v11013
    %v11185 = vpack.c.b16 %v11017, %v11014
    %v11186 = vpack.c.b16 %v11021, %v11018
    %v11187 = vpack.c.b16 %v11022, %v11019
    %v11188 = vpack.c.b16 %v11023, %v11020
    %v11189 = vpack.c.b16 %v11027, %v11024
    %v11190 = vpack.c.b16 %v11028, %v11025
    %v11191 = vpack.c.b16 %v11029, %v11026
    %v11192 = vpack.c.b16 %v11033, %v11030
    %v11193 = vpack.c.b16 %v11034, %v11031
    %v11194 = vpack.c.b16 %v11035, %v11032
    %v11195 = vpack.c.b16 %v11039, %v11036
    %v11196 = vpack.c.b16 %v11040, %v11037
    %v11197 = vpack.c.b16 %v11041, %v11038
    %v11198 = vpack.c.b16 %v11045, %v11042
    %v11199 = vpack.c.b16 %v11046, %v11043
    %v11200 = vpack.c.b16 %v11047, %v11044
    %v11201 = vpack.c.b16 %v11051, %v11048
    %v11202 = vpack.c.b16 %v11052, %v11049
    %v11203 = vpack.c.b16 %v11053, %v11050
    %v11204 = vpack.c.b16 %v11057, %v11054
    %v11205 = vpack.c.b16 %v11058, %v11055
    %v11206 = vpack.c.b16 %v11059, %v11056
    %v11207 = vpack.c.b16 %v11063, %v11060
    %v11208 = vpack.c.b16 %v11064, %v11061
    %v11209 = vpack.c.b16 %v11065, %v11062
    %v11210 = vpack.c.b16 %v11069, %v11066
    %v11211 = vpack.c.b16 %v11070, %v11067
    %v11212 = vpack.c.b16 %v11071, %v11068
    %v11213 = vpack.c.b16 %v11075, %v11072
    %v11214 = vpack.c.b16 %v11076, %v11073
    %v11215 = vpack.c.b16 %v11077, %v11074
    %v11216 = vpack.c.b16 %v11081, %v11078
    %v11217 = vpack.c.b16 %v11082, %v11079
    %v11218 = vpack.c.b16 %v11083, %v11080
    %v11219 = vpack.c.b16 %v11087, %v11084
    %v11220 = vpack.c.b16 %v11088, %v11085
    %v11221 = vpack.c.b16 %v11089, %v11086
    %v11222 = vpack.c.b16 %v11093, %v11090
    %v11223 = vpack.c.b16 %v11094, %v11091
    %v11224 = vpack.c.b16 %v11095, %v11092
    %v11225 = vpack.c.b16 %v11099, %v11096
    %v11226 = vpack.c.b16 %v11100, %v11097
    %v11227 = vpack.c.b16 %v11101, %v11098
    %v11228 = vpack.c.b16 %v11105, %v11102
    %v11229 = vpack.c.b16 %v11106, %v11103
    %v11230 = vpack.c.b16 %v11107, %v11104
    %v11231 = vpack.c.b16 %v11111, %v11108
    %v11232 = vpack.c.b16 %v11112, %v11109
    %v11233 = vpack.c.b16 %v11113, %v11110
    %v11234 = vpack.c.b16 %v11117, %v11114
    %v11235 = vpack.c.b16 %v11118, %v11115
    %v11236 = vpack.c.b16 %v11119, %v11116
    %v11237 = vpack.c.b16 %v11123, %v11120
    %v11238 = vpack.c.b16 %v11124, %v11121
    %v11239 = vpack.c.b16 %v11125, %v11122
    %v11240 = vpack.c.b16 %v11129, %v11126
    %v11241 = vpack.c.b16 %v11130, %v11127
    %v11242 = vpack.c.b16 %v11131, %v11128
    %v11243 = vpack.c.b16 %v11135, %v11132
    %v11244 = vpack.c.b16 %v11136, %v11133
    %v11245 = vpack.c.b16 %v11137, %v11134
    %v11246 = vpack.c.b16 %v11141, %v11138
    %v11247 = vpack.c.b16 %v11142, %v11139
    %v11248 = vpack.c.b16 %v11143, %v11140
    %v11249 = vpack.c.b16 %v11147, %v11144
    %v11250 = vpack.c.b16 %v11148, %v11145
    %v11251 = vpack.c.b16 %v11149, %v11146
    %v11252 = vpack.c.b16 %v11153, %v11150
    %v11253 = vpack.c.b16 %v11154, %v11151
    %v11254 = vpack.c.b16 %v11155, %v11152
    %v11255 = vpack.c.b16 %v11159, %v11156
    %v11256 = vpack.c.b16 %v11160, %v11157
    %v11257 = vpack.c.b16 %v11161, %v11158
    %11354 = vmatprep.subr.bf16.mxu0 %v11163
    %11355 = vmatpush1.bf16.msra.mxu0 %v11162
    %11356 = vmatprep.subr.bf16.mxu0 %v11166
    %11357 = vmatpush1.bf16.msra.mxu0 %v11165
    %11358 = vmatprep.subr.bf16.mxu0 %v11169
    %11359 = vmatpush1.bf16.msra.mxu0 %v11168
    %11360 = vmatprep.subr.bf16.mxu0 %v11172
    %11361 = vmatpush1.bf16.msra.mxu0 %v11171
    %11362 = vmatprep.subr.bf16.mxu0 %v11175
    %11363 = vmatpush1.bf16.msra.mxu0 %v11174
    %11364 = vmatprep.subr.bf16.mxu0 %v11178
    %11365 = vmatpush1.bf16.msra.mxu0 %v11177
    %11366 = vmatprep.subr.bf16.mxu0 %v11181
    %11367 = vmatpush1.bf16.msra.mxu0 %v11180
    %11368 = vmatprep.subr.bf16.mxu0 %v11184
    %11369 = vmatpush1.bf16.msra.mxu0 %v11183
    %11370 = vmatprep.subr.bf16.mxu0 %v11187
    %11371 = vmatpush1.bf16.msra.mxu0 %v11186
    %11372 = vmatprep.subr.bf16.mxu0 %v11190
    %11373 = vmatpush1.bf16.msra.mxu0 %v11189
    %11374 = vmatprep.subr.bf16.mxu0 %v11193
    %11375 = vmatpush1.bf16.msra.mxu0 %v11192
    %11376 = vmatprep.subr.bf16.mxu0 %v11196
    %11377 = vmatpush1.bf16.msra.mxu0 %v11195
    %11378 = vmatprep.subr.bf16.mxu0 %v11199
    %11379 = vmatpush1.bf16.msra.mxu0 %v11198
    %11380 = vmatprep.subr.bf16.mxu0 %v11202
    %11381 = vmatpush1.bf16.msra.mxu0 %v11201
    %11382 = vmatprep.subr.bf16.mxu0 %v11205
    %11383 = vmatpush1.bf16.msra.mxu0 %v11204
    %11384 = vmatprep.subr.bf16.mxu0 %v11208
    %11385 = vmatpush1.bf16.msra.mxu0 %v11207
    %11386 = vmatprep.mubr.bf16.mxu0 %v10586
    %11387 = vmatmul.mubr.bf16.gmra.mrb[0].mxu0 %v10585
    %v11388 = vpop.f32.mrb[0].mxu0
    %v11389 = vadd.f32 %v10830, %v11388
    %v11390 = vpop.f32.mrb[0].mxu0
    %v11391 = vadd.f32 %v10834, %v11390
    %v11392 = vpop.f32.mrb[0].mxu0
    %v11393 = vadd.f32 %v10830, %v11392
    %v11394 = vpop.f32.mrb[0].mxu0
    %v11395 = vadd.f32 %v10834, %v11394
    %11396 = vmatprep.mubr.bf16.mxu0 %v10590
    %11397 = vmatmul.mubr.bf16.gmra.mrb[0].mxu0 %v10589
    %v11398 = vpop.f32.mrb[0].mxu0
    %v11399 = vadd.f32 %v10830, %v11398
    %v11400 = vpop.f32.mrb[0].mxu0
    %v11401 = vadd.f32 %v10834, %v11400
    %v11402 = vpop.f32.mrb[0].mxu0
    %v11403 = vadd.f32 %v10830, %v11402
    %v11404 = vpop.f32.mrb[0].mxu0
    %v11405 = vadd.f32 %v10834, %v11404
    %11406 = vmatprep.mubr.bf16.mxu0 %v10594
    %11407 = vmatmul.mubr.bf16.gmra.mrb[0].mxu0 %v10593
    %v11408 = vpop.f32.mrb[0].mxu0
    %v11409 = vadd.f32 %v10830, %v11408
    %v11410 = vpop.f32.mrb[0].mxu0
    %v11411 = vadd.f32 %v10834, %v11410
    %v11412 = vpop.f32.mrb[0].mxu0
    %v11413 = vadd.f32 %v10830, %v11412
    %v11414 = vpop.f32.mrb[0].mxu0
    %v11415 = vadd.f32 %v10834, %v11414
    %11416 = vmatprep.mubr.bf16.mxu0 %v10598
    %11417 = vmatmul.mubr.bf16.gmra.mrb[0].mxu0 %v10597
    %v11418 = vpop.f32.mrb[0].mxu0
    %v11419 = vadd.f32 %v10830, %v11418
    %v11420 = vpop.f32.mrb[0].mxu0
    %v11421 = vadd.f32 %v10834, %v11420
    %v11422 = vpop.f32.mrb[0].mxu0
    %v11423 = vadd.f32 %v10830, %v11422
    %v11424 = vpop.f32.mrb[0].mxu0
    %v11425 = vadd.f32 %v10834, %v11424
    %11426 = vdwg.mxu0
    %11427 = vmatprep.subr.bf16.mxu0 %v11211
    %11428 = vmatpush1.bf16.msra.mxu0 %v11210
    %11429 = vmatprep.subr.bf16.mxu0 %v11214
    %11430 = vmatpush1.bf16.msra.mxu0 %v11213
    %11431 = vmatprep.subr.bf16.mxu0 %v11217
    %11432 = vmatpush1.bf16.msra.mxu0 %v11216
    %11433 = vmatprep.subr.bf16.mxu0 %v11220
    %11434 = vmatpush1.bf16.msra.mxu0 %v11219
    %11435 = vmatprep.subr.bf16.mxu0 %v11223
    %11436 = vmatpush1.bf16.msra.mxu0 %v11222
    %11437 = vmatprep.subr.bf16.mxu0 %v11226
    %11438 = vmatpush1.bf16.msra.mxu0 %v11225
    %11439 = vmatprep.subr.bf16.mxu0 %v11229
    %11440 = vmatpush1.bf16.msra.mxu0 %v11228
    %11441 = vmatprep.subr.bf16.mxu0 %v11232
    %11442 = vmatpush1.bf16.msra.mxu0 %v11231
    %11443 = vmatprep.subr.bf16.mxu0 %v11235
    %11444 = vmatpush1.bf16.msra.mxu0 %v11234
    %11445 = vmatprep.subr.bf16.mxu0 %v11238
    %11446 = vmatpush1.bf16.msra.mxu0 %v11237
    %11447 = vmatprep.subr.bf16.mxu0 %v11241
    %11448 = vmatpush1.bf16.msra.mxu0 %v11240
    %11449 = vmatprep.subr.bf16.mxu0 %v11244
    %11450 = vmatpush1.bf16.msra.mxu0 %v11243
    %11451 = vmatprep.subr.bf16.mxu0 %v11247
    %11452 = vmatpush1.bf16.msra.mxu0 %v11246
    %11453 = vmatprep.subr.bf16.mxu0 %v11250
    %11454 = vmatpush1.bf16.msra.mxu0 %v11249
    %11455 = vmatprep.subr.bf16.mxu0 %v11253
    %11456 = vmatpush1.bf16.msra.mxu0 %v11252
    %11457 = vmatprep.subr.bf16.mxu0 %v11256
    %11458 = vmatpush1.bf16.msra.mxu0 %v11255
    %11459 = vmatprep.mubr.bf16.mxu0 %v10588
    %11460 = vmatmul.mubr.bf16.gmra.mrb[0].mxu0 %v10587
    %v11461 = vpop.f32.mrb[0].mxu0
    %v11462 = vadd.f32 %v11389, %v11461
    %v11463 = vpop.f32.mrb[0].mxu0
    %v11464 = vadd.f32 %v11391, %v11463
    %v11465 = vpop.f32.mrb[0].mxu0
    %v11466 = vadd.f32 %v11393, %v11465
    %v11467 = vpop.f32.mrb[0].mxu0
    %v11468 = vadd.f32 %v11395, %v11467
    %11469 = vmatprep.mubr.bf16.mxu0 %v10592
    %11470 = vmatmul.mubr.bf16.gmra.mrb[0].mxu0 %v10591
    %v11471 = vpop.f32.mrb[0].mxu0
    %v11472 = vadd.f32 %v11399, %v11471
    %v11473 = vpop.f32.mrb[0].mxu0
    %v11474 = vadd.f32 %v11401, %v11473
    %v11475 = vpop.f32.mrb[0].mxu0
    %v11476 = vadd.f32 %v11403, %v11475
    %v11477 = vpop.f32.mrb[0].mxu0
    %v11478 = vadd.f32 %v11405, %v11477
    %11479 = vmatprep.mubr.bf16.mxu0 %v10596
    %11480 = vmatmul.mubr.bf16.gmra.mrb[0].mxu0 %v10595
    %v11481 = vpop.f32.mrb[0].mxu0
    %v11482 = vadd.f32 %v11409, %v11481
    %v11483 = vpop.f32.mrb[0].mxu0
    %v11484 = vadd.f32 %v11411, %v11483
    %v11485 = vpop.f32.mrb[0].mxu0
    %v11486 = vadd.f32 %v11413, %v11485
    %v11487 = vpop.f32.mrb[0].mxu0
    %v11488 = vadd.f32 %v11415, %v11487
    %11489 = vmatprep.mubr.bf16.mxu0 %v10600
    %11490 = vmatmul.mubr.bf16.gmra.mrb[0].mxu0 %v10599
    %v11491 = vpop.f32.mrb[0].mxu0
    %v11492 = vadd.f32 %v11419, %v11491
    %v11493 = vpop.f32.mrb[0].mxu0
    %v11494 = vadd.f32 %v11421, %v11493
    %v11495 = vpop.f32.mrb[0].mxu0
    %v11496 = vadd.f32 %v11423, %v11495
    %v11497 = vpop.f32.mrb[0].mxu0
    %v11498 = vadd.f32 %v11425, %v11497
    %11499 = vdwg.mxu0
    %11500 = vmatprep.subr.bf16.mxu0 0
    %11501 = vmatpush1.bf16.msra.mxu0 %v11164
    %11502 = vmatprep.subr.bf16.mxu0 0
    %11503 = vmatpush1.bf16.msra.mxu0 %v11167
    %11504 = vmatprep.subr.bf16.mxu0 0
    %11505 = vmatpush1.bf16.msra.mxu0 %v11170
    %11506 = vmatprep.subr.bf16.mxu0 0
    %11507 = vmatpush1.bf16.msra.mxu0 %v11173
    %11508 = vmatprep.subr.bf16.mxu0 0
    %11509 = vmatpush1.bf16.msra.mxu0 %v11176
    %11510 = vmatprep.subr.bf16.mxu0 0
    %11511 = vmatpush1.bf16.msra.mxu0 %v11179
    %11512 = vmatprep.subr.bf16.mxu0 0
    %11513 = vmatpush1.bf16.msra.mxu0 %v11182
    %11514 = vmatprep.subr.bf16.mxu0 0
    %11515 = vmatpush1.bf16.msra.mxu0 %v11185
    %11516 = vmatprep.subr.bf16.mxu0 0
    %11517 = vmatpush1.bf16.msra.mxu0 %v11188
    %11518 = vmatprep.subr.bf16.mxu0 0
    %11519 = vmatpush1.bf16.msra.mxu0 %v11191
    %11520 = vmatprep.subr.bf16.mxu0 0
    %11521 = vmatpush1.bf16.msra.mxu0 %v11194
    %11522 = vmatprep.subr.bf16.mxu0 0
    %11523 = vmatpush1.bf16.msra.mxu0 %v11197
    %11524 = vmatprep.subr.bf16.mxu0 0
    %11525 = vmatpush1.bf16.msra.mxu0 %v11200
    %11526 = vmatprep.subr.bf16.mxu0 0
    %11527 = vmatpush1.bf16.msra.mxu0 %v11203
    %11528 = vmatprep.subr.bf16.mxu0 0
    %11529 = vmatpush1.bf16.msra.mxu0 %v11206
    %11530 = vmatprep.subr.bf16.mxu0 0
    %11531 = vmatpush1.bf16.msra.mxu0 %v11209
    %11532 = vmatprep.mubr.bf16.mxu0 %v10586
    %11533 = vmatmul.mubr.bf16.gmra.mrb[0].mxu0 %v10585
    %v11534 = vpop.f32.mrb[0].mxu0
    %v11535 = vadd.f32 %v10838, %v11534
    %v11536 = vpop.f32.mrb[0].mxu0
    %v11537 = vpop.f32.mrb[0].mxu0
    %v11538 = vadd.f32 %v10838, %v11537
    %v11539 = vpop.f32.mrb[0].mxu0
    %11540 = vmatprep.mubr.bf16.mxu0 %v10590
    %11541 = vmatmul.mubr.bf16.gmra.mrb[0].mxu0 %v10589
    %v11542 = vpop.f32.mrb[0].mxu0
    %v11543 = vadd.f32 %v10838, %v11542
    %v11544 = vpop.f32.mrb[0].mxu0
    %v11545 = vpop.f32.mrb[0].mxu0
    %v11546 = vadd.f32 %v10838, %v11545
    %v11547 = vpop.f32.mrb[0].mxu0
    %11548 = vmatprep.mubr.bf16.mxu0 %v10594
    %11549 = vmatmul.mubr.bf16.gmra.mrb[0].mxu0 %v10593
    %v11550 = vpop.f32.mrb[0].mxu0
    %v11551 = vadd.f32 %v10838, %v11550
    %v11552 = vpop.f32.mrb[0].mxu0
    %v11553 = vpop.f32.mrb[0].mxu0
    %v11554 = vadd.f32 %v10838, %v11553
    %v11555 = vpop.f32.mrb[0].mxu0
    %11556 = vmatprep.mubr.bf16.mxu0 %v10598
    %11557 = vmatmul.mubr.bf16.gmra.mrb[0].mxu0 %v10597
    %v11558 = vpop.f32.mrb[0].mxu0
    %v11559 = vadd.f32 %v10838, %v11558
    %v11560 = vpop.f32.mrb[0].mxu0
    %v11561 = vpop.f32.mrb[0].mxu0
    %v11562 = vadd.f32 %v10838, %v11561
    %v11563 = vpop.f32.mrb[0].mxu0
    %11564 = vdwg.mxu0
    %11565 = vmatprep.subr.bf16.mxu0 0
    %11566 = vmatpush1.bf16.msra.mxu0 %v11212
    %11567 = vmatprep.subr.bf16.mxu0 0
    %11568 = vmatpush1.bf16.msra.mxu0 %v11215
    %11569 = vmatprep.subr.bf16.mxu0 0
    %11570 = vmatpush1.bf16.msra.mxu0 %v11218
    %11571 = vmatprep.subr.bf16.mxu0 0
    %11572 = vmatpush1.bf16.msra.mxu0 %v11221
    %11573 = vmatprep.subr.bf16.mxu0 0
    %11574 = vmatpush1.bf16.msra.mxu0 %v11224
    %11575 = vmatprep.subr.bf16.mxu0 0
    %11576 = vmatpush1.bf16.msra.mxu0 %v11227
    %11577 = vmatprep.subr.bf16.mxu0 0
    %11578 = vmatpush1.bf16.msra.mxu0 %v11230
    %11579 = vmatprep.subr.bf16.mxu0 0
    %11580 = vmatpush1.bf16.msra.mxu0 %v11233
    %11581 = vmatprep.subr.bf16.mxu0 0
    %11582 = vmatpush1.bf16.msra.mxu0 %v11236
    %11583 = vmatprep.subr.bf16.mxu0 0
    %11584 = vmatpush1.bf16.msra.mxu0 %v11239
    %11585 = vmatprep.subr.bf16.mxu0 0
    %11586 = vmatpush1.bf16.msra.mxu0 %v11242
    %11587 = vmatprep.subr.bf16.mxu0 0
    %11588 = vmatpush1.bf16.msra.mxu0 %v11245
    %11589 = vmatprep.subr.bf16.mxu0 0
    %11590 = vmatpush1.bf16.msra.mxu0 %v11248
    %11591 = vmatprep.subr.bf16.mxu0 0
    %11592 = vmatpush1.bf16.msra.mxu0 %v11251
    %11593 = vmatprep.subr.bf16.mxu0 0
    %11594 = vmatpush1.bf16.msra.mxu0 %v11254
    %11595 = vmatprep.subr.bf16.mxu0 0
    %11596 = vmatpush1.bf16.msra.mxu0 %v11257
    %11597 = vmatprep.mubr.bf16.mxu0 %v10588
    %11598 = vmatmul.mubr.bf16.gmra.mrb[0].mxu0 %v10587
    %v11599 = vpop.f32.mrb[0].mxu0
    %v11600 = vadd.f32 %v11535, %v11599
    %v11601 = vpop.f32.mrb[0].mxu0
    %v11602 = vpop.f32.mrb[0].mxu0
    %v11603 = vadd.f32 %v11538, %v11602
    %v11604 = vpop.f32.mrb[0].mxu0
    %11605 = vmatprep.mubr.bf16.mxu0 %v10592
    %11606 = vmatmul.mubr.bf16.gmra.mrb[0].mxu0 %v10591
    %v11607 = vpop.f32.mrb[0].mxu0
    %v11608 = vadd.f32 %v11543, %v11607
    %v11609 = vpop.f32.mrb[0].mxu0
    %v11610 = vpop.f32.mrb[0].mxu0
    %v11611 = vadd.f32 %v11546, %v11610
    %v11612 = vpop.f32.mrb[0].mxu0
    %11613 = vmatprep.mubr.bf16.mxu0 %v10596
    %11614 = vmatmul.mubr.bf16.gmra.mrb[0].mxu0 %v10595
    %v11615 = vpop.f32.mrb[0].mxu0
    %v11616 = vadd.f32 %v11551, %v11615
    %v11617 = vpop.f32.mrb[0].mxu0
    %v11618 = vpop.f32.mrb[0].mxu0
    %v11619 = vadd.f32 %v11554, %v11618
    %v11620 = vpop.f32.mrb[0].mxu0
    %11621 = vmatprep.mubr.bf16.mxu0 %v10600
    %11622 = vmatmul.mubr.bf16.gmra.mrb[0].mxu0 %v10599
    %v11623 = vpop.f32.mrb[0].mxu0
    %v11624 = vadd.f32 %v11559, %v11623
    %v11625 = vpop.f32.mrb[0].mxu0
    %v11626 = vpop.f32.mrb[0].mxu0
    %v11627 = vadd.f32 %v11562, %v11626
    %v11628 = vpop.f32.mrb[0].mxu0
    %11629 = vdwg.mxu0
    %v11630 = vmax.f32 %v11462, %v11464
    %v11631 = vmax.f32 %v11466, %v11468
    %v11632 = vmax.f32 %v11472, %v11474
    %v11633 = vmax.f32 %v11476, %v11478
    %v11634 = vmax.f32 %v11482, %v11484
    %v11635 = vmax.f32 %v11486, %v11488
    %v11636 = vmax.f32 %v11492, %v11494
    %v11637 = vmax.f32 %v11496, %v11498
    %v11638 = vsub.f32 %v11462, %v11630
    %v11639 = vsub.f32 %v11466, %v11631
    %v11640 = vsub.f32 %v11472, %v11632
    %v11641 = vsub.f32 %v11476, %v11633
    %v11642 = vsub.f32 %v11482, %v11634
    %v11643 = vsub.f32 %v11486, %v11635
    %v11644 = vsub.f32 %v11492, %v11636
    %v11645 = vsub.f32 %v11496, %v11637
    %v11646 = vmul.f32 %v11638, 1.442695
    %v11647 = vpow.pop %v11646
    %v11648 = vmul.f32 %v11639, 1.442695
    %v11649 = vpow.pop %v11648
    %v11650 = vmul.f32 %v11640, 1.442695
    %v11651 = vpow.pop %v11650
    %v11652 = vmul.f32 %v11641, 1.442695
    %v11653 = vpow.pop %v11652
    %v11654 = vmul.f32 %v11642, 1.442695
    %v11655 = vpow.pop %v11654
    %v11656 = vmul.f32 %v11643, 1.442695
    %v11657 = vpow.pop %v11656
    %v11658 = vmul.f32 %v11644, 1.442695
    %v11659 = vpow.pop %v11658
    %v11660 = vmul.f32 %v11645, 1.442695
    %v11661 = vpow.pop %v11660
    %v11662 = vsub.f32 %v11464, %v11630
    %v11663 = vsub.f32 %v11468, %v11631
    %v11664 = vsub.f32 %v11474, %v11632
    %v11665 = vsub.f32 %v11478, %v11633
    %v11666 = vsub.f32 %v11484, %v11634
    %v11667 = vsub.f32 %v11488, %v11635
    %v11668 = vsub.f32 %v11494, %v11636
    %v11669 = vsub.f32 %v11498, %v11637
    %v11670 = vmul.f32 %v11662, 1.442695
    %v11671 = vpow.pop %v11670
    %v11672 = vmul.f32 %v11663, 1.442695
    %v11673 = vpow.pop %v11672
    %v11674 = vmul.f32 %v11664, 1.442695
    %v11675 = vpow.pop %v11674
    %v11676 = vmul.f32 %v11665, 1.442695
    %v11677 = vpow.pop %v11676
    %v11678 = vmul.f32 %v11666, 1.442695
    %v11679 = vpow.pop %v11678
    %v11680 = vmul.f32 %v11667, 1.442695
    %v11681 = vpow.pop %v11680
    %v11682 = vmul.f32 %v11668, 1.442695
    %v11683 = vpow.pop %v11682
    %v11684 = vmul.f32 %v11669, 1.442695
    %v11685 = vpow.pop %v11684
    %v11686 = vadd.f32 %v11647, %v11671
    %v11687 = vadd.f32 %v11649, %v11673
    %v11688 = vadd.f32 %v11651, %v11675
    %v11689 = vadd.f32 %v11653, %v11677
    %v11690 = vadd.f32 %v11655, %v11679
    %v11691 = vadd.f32 %v11657, %v11681
    %v11692 = vadd.f32 %v11659, %v11683
    %v11693 = vadd.f32 %v11661, %v11685
    %v11694 = vrcp.pop %v11686
    %v11695 = vrcp.pop %v11687
    %v11696 = vrcp.pop %v11688
    %v11697 = vrcp.pop %v11689
    %v11698 = vrcp.pop %v11690
    %v11699 = vrcp.pop %v11691
    %v11700 = vrcp.pop %v11692
    %v11701 = vrcp.pop %v11693
    %v11702 = vmul.f32 %v11686, %v11694
    %v11703 = vmul.f32 %v11687, %v11695
    %v11704 = vmul.f32 %v11688, %v11696
    %v11705 = vmul.f32 %v11689, %v11697
    %v11706 = vmul.f32 %v11690, %v11698
    %v11707 = vmul.f32 %v11691, %v11699
    %v11708 = vmul.f32 %v11692, %v11700
    %v11709 = vmul.f32 %v11693, %v11701
    %v11710 = vsub.f32 2.0, %v11702
    %v11711 = vsub.f32 2.0, %v11703
    %v11712 = vsub.f32 2.0, %v11704
    %v11713 = vsub.f32 2.0, %v11705
    %v11714 = vsub.f32 2.0, %v11706
    %v11715 = vsub.f32 2.0, %v11707
    %v11716 = vsub.f32 2.0, %v11708
    %v11717 = vsub.f32 2.0, %v11709
    %v11718 = vmul.f32 %v11694, %v11710
    %v11719 = vmul.f32 %v11695, %v11711
    %v11720 = vmul.f32 %v11696, %v11712
    %v11721 = vmul.f32 %v11697, %v11713
    %v11722 = vmul.f32 %v11698, %v11714
    %v11723 = vmul.f32 %v11699, %v11715
    %v11724 = vmul.f32 %v11700, %v11716
    %v11725 = vmul.f32 %v11701, %v11717
    %v11726 = vmul.f32 %v11647, %v11718
    %v11727 = vmul.f32 %v11649, %v11719
    %v11728 = vmul.f32 %v11651, %v11720
    %v11729 = vmul.f32 %v11653, %v11721
    %v11730 = vmul.f32 %v11655, %v11722
    %v11731 = vmul.f32 %v11657, %v11723
    %v11732 = vmul.f32 %v11659, %v11724
    %v11733 = vmul.f32 %v11661, %v11725
    %v11734 = vmul.f32 %v11671, %v11718
    %v11735 = vmul.f32 %v11673, %v11719
    %v11736 = vmul.f32 %v11675, %v11720
    %v11737 = vmul.f32 %v11677, %v11721
    %v11738 = vmul.f32 %v11679, %v11722
    %v11739 = vmul.f32 %v11681, %v11723
    %v11740 = vmul.f32 %v11683, %v11724
    %v11741 = vmul.f32 %v11685, %v11725
    %11742 = vst [vmem:[%s6] sm:$0xff] %v11726
    %11743 = vst [vmem:[%s6 + $0x8] sm:$0xff] %v11734
    %11744 = vst [vmem:[%s6 + $0x10] sm:$0xff] %v11600
    %11745 = vst [vmem:[%s6 + $0x18] sm:$0xff] %v11727
    %11746 = vst [vmem:[%s6 + $0x20] sm:$0xff] %v11735
    %11747 = vst [vmem:[%s6 + $0x28] sm:$0xff] %v11603
    %11748 = vst [vmem:[%s6 + $0x30] sm:$0xff] %v11728
    %11749 = vst [vmem:[%s6 + $0x38] sm:$0xff] %v11736
    %11750 = vst [vmem:[%s6 + $0x40] sm:$0xff] %v11608
    %11751 = vst [vmem:[%s6 + $0x48] sm:$0xff] %v11729
    %11752 = vst [vmem:[%s6 + $0x50] sm:$0xff] %v11737
    %11753 = vst [vmem:[%s6 + $0x58] sm:$0xff] %v11611
    %11754 = vst [vmem:[%s6 + $0x60] sm:$0xff] %v11730
    %11755 = vst [vmem:[%s6 + $0x68] sm:$0xff] %v11738
    %11756 = vst [vmem:[%s6 + $0x70] sm:$0xff] %v11616
    %11757 = vst [vmem:[%s6 + $0x78] sm:$0xff] %v11731
    %11758 = vst [vmem:[%s6 + $0x80] sm:$0xff] %v11739
    %11759 = vst [vmem:[%s6 + $0x88] sm:$0xff] %v11619
    %11760 = vst [vmem:[%s6 + $0x90] sm:$0xff] %v11732
    %11761 = vst [vmem:[%s6 + $0x98] sm:$0xff] %v11740
    %11762 = vst [vmem:[%s6 + $0xa0] sm:$0xff] %v11624
    %11763 = vst [vmem:[%s6 + $0xa8] sm:$0xff] %v11733
    %11764 = vst [vmem:[%s6 + $0xb0] sm:$0xff] %v11741
    %11765 = vst [vmem:[%s6 + $0xb8] sm:$0xff] %v11627
    // Predicated region
    $region30: #{rpn_head_forward.1} parent=1 // pred_check
      _
    $region31: #{rpn_head_forward.1} parent=1 // pred_check_branch
      %11767 = sbr.rel (0) target = $region33
    $region32: #{rpn_head_forward.1} parent=1 // pred_region
      _
    $region33: #{rpn_head_forward.1} parent=1 // pred_fallthru
      _
    // Predicated region
    $region34: #{rpn_head_forward.1} parent=1 // pred_check
      _
    $region35: #{rpn_head_forward.1} parent=1 // pred_check_branch
      %11769 = sbr.rel (0) target = $region37
    $region36: #{rpn_head_forward.1} parent=1 // pred_region
      _
    $region37: #{rpn_head_forward.1} parent=1 // pred_fallthru
      _
    // Predicated region
    $region38: #{rpn_head_forward.1} parent=1 // pred_check
      _
    $region39: #{rpn_head_forward.1} parent=1 // pred_check_branch
      %11771 = sbr.rel (0) target = $region41
    $region40: #{rpn_head_forward.1} parent=1 // pred_region
      _
    $region41: #{rpn_head_forward.1} parent=1 // pred_fallthru
      _
    // Predicated region
    $region42: #{rpn_head_forward.1} parent=1 // pred_check
      _
    $region43: #{rpn_head_forward.1} parent=1 // pred_check_branch
      %11773 = sbr.rel (0) target = $region45
    $region44: #{rpn_head_forward.1} parent=1 // pred_region
      _
    $region45: #{rpn_head_forward.1} parent=1 // pred_fallthru
      _
    %11774 = vsyncpa [#allocation3], 1
    %11775 = vsyncpa [#allocation5], 1

</llo_original>
